<compile_context>
chip_gen: v7x
topology: tpu7x:2x2x1
jax: 0.10.0
libtpu: 0.0.40
codegen_flags: <defaults>
</compile_context>

<pallas_src>
import functools

import jax
import jax.numpy as jnp
from jax import lax
from jax.experimental import pallas as pl
from jax.experimental.pallas import tpu as pltpu


def _round_up(x, m):
    return (x + m - 1) // m * m


def _basic_block_kernel(x_ref, w1_ref, b1_ref, w2_ref, b2_ref, o_ref, pad_scr,
                        *, H, W, B0):
    # x_ref   : (1, Nin, Cp) bf16  spatially zero-padded input, flattened to
    #                              (H+2)*(W+2) rows (+ slack), channel-padded to Cp
    # w*_ref  : (9, Cp, Cp)  bf16  per-tap conv weights, BN scale folded in
    # b*_ref  : (1, Cp)      f32   folded conv bias + BN shift
    # o_ref   : (1, M, Cp)         output in the same (W+2)-pitched flattened layout
    # pad_scr : (Npad, Cp)   bf16  padded conv1->conv2 intermediate
    Wp = W + 2
    M = o_ref.shape[1]                      # = H * (W + 2)
    Npad, Cp = pad_scr.shape
    offs = [kh * Wp + kw for kh in range(3) for kw in range(3)]
    ctr = Wp + 1                            # centre tap offset (= residual offset)

    # ---- conv1: 9 tap-wise MXU matmuls off row-shifted views of the input ----
    acc1 = jnp.zeros((M, Cp), jnp.float32)
    for t, off in enumerate(offs):
        acc1 = acc1 + jnp.dot(x_ref[0, off:off + M, :], w1_ref[t],
                              preferred_element_type=jnp.float32)

    # bias + relu, then zero the 2 junk columns of every (W+2)-pitched row so they
    # act as conv2's left/right zero padding.
    col = lax.broadcasted_iota(jnp.int32, (M, 1), 0) % Wp
    keep = col < W
    out1 = jnp.where(keep, jnp.maximum(acc1 + b1_ref[...], 0.0), 0.0)

    # ---- padded intermediate: thin zero borders + sublane-aligned interior store ----
    pad_scr[0:B0, :] = jnp.zeros((B0, Cp), pad_scr.dtype)
    pad_scr[B0 + M:, :] = jnp.zeros((Npad - B0 - M, Cp), pad_scr.dtype)
    pad_scr[B0:B0 + M, :] = out1.astype(pad_scr.dtype)

    # ---- conv2: same tap-wise accumulation off the padded intermediate ----
    base = B0 - ctr                         # >= 0 because B0 = round_up(W+3, 8)
    acc2 = jnp.zeros((M, Cp), jnp.float32)
    for t, off in enumerate(offs):
        acc2 = acc2 + jnp.dot(pad_scr[base + off:base + off + M, :], w2_ref[t],
                              preferred_element_type=jnp.float32)

    # ---- bias + residual (centre-tap slice of the resident input) + relu ----
    resid = x_ref[0, ctr:ctr + M, :].astype(jnp.float32)
    out2 = jnp.maximum(acc2 + b2_ref[...] + resid, 0.0)
    o_ref[0] = out2.astype(o_ref.dtype)


def basic_block_pallas(x_nhwc, w1, b1_conv, bn1, w2, b2_conv, bn2, eps=1e-5):
    """x_nhwc: (B,H,W,C) f32.  w*: (3,3,Cin,Cout) HWIO.  bn*: dict(gamma,beta,mean,var).

    Inference-mode BatchNorm is folded into the conv weights (scale) and a per-channel
    bias (shift).  stride=1, downsample=None (module defaults) -> inplanes == planes.
    """
    B, H, W, C = x_nhwc.shape
    assert w1.shape[-1] == C, "BasicBlock with downsample=None needs inplanes == planes"
    Cp = _round_up(max(C, 128), 128)        # lane-dense channel padding
    Wp = W + 2
    M = H * Wp                              # output rows per image ((W+2)-pitched)
    Nin = _round_up((H + 2) * Wp + 2, 8)    # +2 rows of slack for the (kh=2,kw=2) tap
    B0 = _round_up(W + 3, 8)                # aligned interior offset inside pad_scr
    Npad = _round_up(B0 + M + W + 3, 8)

    def fold(w, conv_bias, bn):
        scale = (bn["gamma"] / jnp.sqrt(bn["var"] + eps)).astype(jnp.float32)
        w_f = w.astype(jnp.float32) * scale             # scale output channels
        bias = (conv_bias.astype(jnp.float32) - bn["mean"]) * scale + bn["beta"]
        return w_f, bias

    def pack_weight(w_f):                   # (3,3,C,C) -> tap-major (9, Cp, Cp) bf16
        wp = jnp.zeros((3, 3, Cp, Cp), jnp.float32).at[:, :, :C, :C].set(w_f)
        return wp.reshape(9, Cp, Cp).astype(jnp.bfloat16)

    def pack_bias(bias):
        return jnp.zeros((1, Cp), jnp.float32).at[0, :C].set(bias)

    w1_f, bias1 = fold(w1, b1_conv, bn1)
    w2_f, bias2 = fold(w2, b2_conv, bn2)
    w1_p, b1_p = pack_weight(w1_f), pack_bias(bias1)
    w2_p, b2_p = pack_weight(w2_f), pack_bias(bias2)

    # bf16 first (halves pad HBM traffic), then channel + spatial pad, flatten rows.
    xb = x_nhwc.astype(jnp.bfloat16)
    xp = jnp.pad(xb, ((0, 0), (1, 1), (1, 1), (0, Cp - C)))
    xflat = xp.reshape(B, (H + 2) * Wp, Cp)
    xflat = jnp.pad(xflat, ((0, 0), (0, Nin - (H + 2) * Wp), (0, 0)))

    kernel = functools.partial(_basic_block_kernel, H=H, W=W, B0=B0)

    # Invariant operands: single-buffered (constant index_map, no need to double-buffer).
    wspec = pl.BlockSpec((9, Cp, Cp), lambda b: (0, 0, 0),
                         pipeline_mode=pl.Buffered(1))
    bspec = pl.BlockSpec((1, Cp), lambda b: (0, 0),
                         pipeline_mode=pl.Buffered(1))

    out = pl.pallas_call(
        kernel,
        out_shape=jax.ShapeDtypeStruct((B, M, Cp), x_nhwc.dtype),
        grid_spec=pltpu.PrefetchScalarGridSpec(
            num_scalar_prefetch=0,
            grid=(B,),
            in_specs=[
                pl.BlockSpec((1, Nin, Cp), lambda b: (b, 0, 0)),
                wspec, bspec, wspec, bspec,
            ],
            out_specs=pl.BlockSpec((1, M, Cp), lambda b: (b, 0, 0)),
            scratch_shapes=[pltpu.VMEM((Npad, Cp), jnp.bfloat16)],
        ),
        compiler_params=pltpu.CompilerParams(
            dimension_semantics=("parallel",),
            vmem_limit_bytes=32 * 1024 * 1024,
        ),
    )(xflat, w1_p, b1_p, w2_p, b2_p)

    # De-pitch (drop the 2 junk columns per row) and strip channel padding.
    return out.reshape(B, H, Wp, Cp)[:, :, :W, :C]


def basic_block_reference(x_nhwc, w1, b1_conv, bn1, w2, b2_conv, bn2, eps=1e-5):
    """Plain-JAX f32 reference (inference-mode BN), for correctness check."""
    def conv(x, w, b):
        y = lax.conv_general_dilated(
            x, w, window_strides=(1, 1), padding="SAME",
            dimension_numbers=("NHWC", "HWIO", "NHWC"))
        return y + b

    def bn(x, p):
        return (x - p["mean"]) / jnp.sqrt(p["var"] + eps) * p["gamma"] + p["beta"]

    out = jax.nn.relu(bn(conv(x_nhwc, w1, b1_conv), bn1))
    out = bn(conv(out, w2, b2_conv), bn2)
    out = out + x_nhwc
    return jax.nn.relu(out)


if __name__ == "__main__":
    # Small demo shapes consistent with the module: B=2, inplanes=planes=4, 16x16, stride=1.
    # NOTE: at C=4 padded to Cp=128, almost all flops/bytes are on zero lanes -- do not
    # tune performance from this shape; real ResNet stages (C in 64..512) are the target.
    B, H, W, C = 2, 16, 16, 4
    key = jax.random.PRNGKey(0)
    keys = jax.random.split(key, 12)

    x = jax.random.normal(keys[0], (B, H, W, C), dtype=jnp.float32)

    w1 = 0.1 * jax.random.normal(keys[1], (3, 3, C, C), dtype=jnp.float32)
    b1_conv = 0.1 * jax.random.normal(keys[2], (C,), dtype=jnp.float32)
    w2 = 0.1 * jax.random.normal(keys[3], (3, 3, C, C), dtype=jnp.float32)
    b2_conv = 0.1 * jax.random.normal(keys[4], (C,), dtype=jnp.float32)

    bn1 = {
        "gamma": 1.0 + 0.1 * jax.random.normal(keys[5], (C,), dtype=jnp.float32),
        "beta": 0.1 * jax.random.normal(keys[6], (C,), dtype=jnp.float32),
        "mean": 0.1 * jax.random.normal(keys[7], (C,), dtype=jnp.float32),
        "var": jnp.abs(jax.random.normal(keys[8], (C,), dtype=jnp.float32)) + 0.5,
    }
    bn2 = {
        "gamma": 1.0 + 0.1 * jax.random.normal(keys[9], (C,), dtype=jnp.float32),
        "beta": 0.1 * jax.random.normal(keys[10], (C,), dtype=jnp.float32),
        "mean": 0.1 * jax.random.normal(keys[11], (C,), dtype=jnp.float32),
        "var": jnp.abs(jax.random.normal(keys[0], (C,), dtype=jnp.float32)) + 0.5,
    }

    out = basic_block_pallas(x, w1, b1_conv, bn1, w2, b2_conv, bn2)
    out = jax.block_until_ready(out)

    ref = basic_block_reference(x, w1, b1_conv, bn1, w2, b2_conv, bn2)
    ref = jax.block_until_ready(ref)

    assert out.shape == (B, H, W, C)
    # bf16 activations/weights (f32 accumulation) vs. pure-f32 reference -> loose tol.
    max_err = float(jnp.max(jnp.abs(out - ref)))
    assert max_err < 1e-1, f"max abs error {max_err}"
    print("KERNEL_OK")
</pallas_src>

<mosaic_0001>
module attributes {stable_mosaic.version = 11 : i64} {
  func.func @_basic_block_kernel(%arg0: i32, %arg1: memref<1x328x128xbf16, #tpu.memory_space<vmem>>, %arg2: memref<9x128x128xbf16, #tpu.memory_space<vmem>>, %arg3: memref<1x128xf32, #tpu.memory_space<vmem>>, %arg4: memref<9x128x128xbf16, #tpu.memory_space<vmem>>, %arg5: memref<1x128xf32, #tpu.memory_space<vmem>>, %arg6: memref<1x288x128xf32, #tpu.memory_space<vmem>>, %arg7: memref<336x128xbf16, #tpu.memory_space<vmem>>) attributes {dimension_semantics = [#tpu.dimension_semantics<parallel>], iteration_bounds = array<i64: 2>, scalar_prefetch = 0 : i64, scratch_operands = 1 : i64, tpu.core_type = #tpu.core_type<tc>, window_params = [{transform_indices = @transform_0, window_bounds = array<i64: 1, 328, 128>}, {pipeline_mode = #tpu.pipeline_mode<synchronous>, transform_indices = @transform_1, window_bounds = array<i64: 9, 128, 128>}, {pipeline_mode = #tpu.pipeline_mode<synchronous>, transform_indices = @transform_2, window_bounds = array<i64: 1, 128>}, {pipeline_mode = #tpu.pipeline_mode<synchronous>, transform_indices = @transform_3, window_bounds = array<i64: 9, 128, 128>}, {pipeline_mode = #tpu.pipeline_mode<synchronous>, transform_indices = @transform_4, window_bounds = array<i64: 1, 128>}, {transform_indices = @transform_5, window_bounds = array<i64: 1, 288, 128>}]} {
    %cst = arith.constant 0.000000e+00 : f32
    %0 = vector.broadcast %cst : f32 to vector<288x128xf32>
    %c0 = arith.constant 0 : index
    %c0_0 = arith.constant 0 : index
    %c0_1 = arith.constant 0 : index
    %1 = vector.load %arg1[%c0, %c0_0, %c0_1] : memref<1x328x128xbf16, #tpu.memory_space<vmem>>, vector<1x288x128xbf16>
    %2 = vector.shape_cast %1 : vector<1x288x128xbf16> to vector<288x128xbf16>
    %c0_2 = arith.constant 0 : index
    %c0_3 = arith.constant 0 : index
    %c0_4 = arith.constant 0 : index
    %3 = vector.load %arg2[%c0_2, %c0_3, %c0_4] : memref<9x128x128xbf16, #tpu.memory_space<vmem>>, vector<1x128x128xbf16>
    %4 = vector.shape_cast %3 : vector<1x128x128xbf16> to vector<128x128xbf16>
    %cst_5 = arith.constant dense<0.000000e+00> : vector<288x128xf32>
    %5 = tpu.matmul %2, %4, %cst_5 {dimension_numbers = #tpu.dot_dimension_numbers<[1], [0], [0], [1], [0, 0, 1, 1], [], []>} : vector<288x128xbf16>, vector<128x128xbf16>, vector<288x128xf32> -> vector<288x128xf32>
    %6 = arith.addf %0, %5 : vector<288x128xf32>
    %c0_6 = arith.constant 0 : index
    %c1 = arith.constant 1 : index
    %c0_7 = arith.constant 0 : index
    %7 = vector.load %arg1[%c0_6, %c1, %c0_7] : memref<1x328x128xbf16, #tpu.memory_space<vmem>>, vector<1x288x128xbf16>
    %8 = vector.shape_cast %7 : vector<1x288x128xbf16> to vector<288x128xbf16>
    %c1_8 = arith.constant 1 : index
    %c0_9 = arith.constant 0 : index
    %c0_10 = arith.constant 0 : index
    %9 = vector.load %arg2[%c1_8, %c0_9, %c0_10] : memref<9x128x128xbf16, #tpu.memory_space<vmem>>, vector<1x128x128xbf16>
    %10 = vector.shape_cast %9 : vector<1x128x128xbf16> to vector<128x128xbf16>
    %cst_11 = arith.constant dense<0.000000e+00> : vector<288x128xf32>
    %11 = tpu.matmul %8, %10, %cst_11 {dimension_numbers = #tpu.dot_dimension_numbers<[1], [0], [0], [1], [0, 0, 1, 1], [], []>} : vector<288x128xbf16>, vector<128x128xbf16>, vector<288x128xf32> -> vector<288x128xf32>
    %12 = arith.addf %6, %11 : vector<288x128xf32>
    %c0_12 = arith.constant 0 : index
    %c2 = arith.constant 2 : index
    %c0_13 = arith.constant 0 : index
    %13 = vector.load %arg1[%c0_12, %c2, %c0_13] : memref<1x328x128xbf16, #tpu.memory_space<vmem>>, vector<1x288x128xbf16>
    %14 = vector.shape_cast %13 : vector<1x288x128xbf16> to vector<288x128xbf16>
    %c2_14 = arith.constant 2 : index
    %c0_15 = arith.constant 0 : index
    %c0_16 = arith.constant 0 : index
    %15 = vector.load %arg2[%c2_14, %c0_15, %c0_16] : memref<9x128x128xbf16, #tpu.memory_space<vmem>>, vector<1x128x128xbf16>
    %16 = vector.shape_cast %15 : vector<1x128x128xbf16> to vector<128x128xbf16>
    %cst_17 = arith.constant dense<0.000000e+00> : vector<288x128xf32>
    %17 = tpu.matmul %14, %16, %cst_17 {dimension_numbers = #tpu.dot_dimension_numbers<[1], [0], [0], [1], [0, 0, 1, 1], [], []>} : vector<288x128xbf16>, vector<128x128xbf16>, vector<288x128xf32> -> vector<288x128xf32>
    %18 = arith.addf %12, %17 : vector<288x128xf32>
    %c0_18 = arith.constant 0 : index
    %c18 = arith.constant 18 : index
    %c0_19 = arith.constant 0 : index
    %19 = vector.load %arg1[%c0_18, %c18, %c0_19] : memref<1x328x128xbf16, #tpu.memory_space<vmem>>, vector<1x288x128xbf16>
    %20 = vector.shape_cast %19 : vector<1x288x128xbf16> to vector<288x128xbf16>
    %c3 = arith.constant 3 : index
    %c0_20 = arith.constant 0 : index
    %c0_21 = arith.constant 0 : index
    %21 = vector.load %arg2[%c3, %c0_20, %c0_21] : memref<9x128x128xbf16, #tpu.memory_space<vmem>>, vector<1x128x128xbf16>
    %22 = vector.shape_cast %21 : vector<1x128x128xbf16> to vector<128x128xbf16>
    %cst_22 = arith.constant dense<0.000000e+00> : vector<288x128xf32>
    %23 = tpu.matmul %20, %22, %cst_22 {dimension_numbers = #tpu.dot_dimension_numbers<[1], [0], [0], [1], [0, 0, 1, 1], [], []>} : vector<288x128xbf16>, vector<128x128xbf16>, vector<288x128xf32> -> vector<288x128xf32>
    %24 = arith.addf %18, %23 : vector<288x128xf32>
    %c0_23 = arith.constant 0 : index
    %c19 = arith.constant 19 : index
    %c0_24 = arith.constant 0 : index
    %25 = vector.load %arg1[%c0_23, %c19, %c0_24] : memref<1x328x128xbf16, #tpu.memory_space<vmem>>, vector<1x288x128xbf16>
    %26 = vector.shape_cast %25 : vector<1x288x128xbf16> to vector<288x128xbf16>
    %c4 = arith.constant 4 : index
    %c0_25 = arith.constant 0 : index
    %c0_26 = arith.constant 0 : index
    %27 = vector.load %arg2[%c4, %c0_25, %c0_26] : memref<9x128x128xbf16, #tpu.memory_space<vmem>>, vector<1x128x128xbf16>
    %28 = vector.shape_cast %27 : vector<1x128x128xbf16> to vector<128x128xbf16>
    %cst_27 = arith.constant dense<0.000000e+00> : vector<288x128xf32>
    %29 = tpu.matmul %26, %28, %cst_27 {dimension_numbers = #tpu.dot_dimension_numbers<[1], [0], [0], [1], [0, 0, 1, 1], [], []>} : vector<288x128xbf16>, vector<128x128xbf16>, vector<288x128xf32> -> vector<288x128xf32>
    %30 = arith.addf %24, %29 : vector<288x128xf32>
    %c0_28 = arith.constant 0 : index
    %c20 = arith.constant 20 : index
    %c0_29 = arith.constant 0 : index
    %31 = vector.load %arg1[%c0_28, %c20, %c0_29] : memref<1x328x128xbf16, #tpu.memory_space<vmem>>, vector<1x288x128xbf16>
    %32 = vector.shape_cast %31 : vector<1x288x128xbf16> to vector<288x128xbf16>
    %c5 = arith.constant 5 : index
    %c0_30 = arith.constant 0 : index
    %c0_31 = arith.constant 0 : index
    %33 = vector.load %arg2[%c5, %c0_30, %c0_31] : memref<9x128x128xbf16, #tpu.memory_space<vmem>>, vector<1x128x128xbf16>
    %34 = vector.shape_cast %33 : vector<1x128x128xbf16> to vector<128x128xbf16>
    %cst_32 = arith.constant dense<0.000000e+00> : vector<288x128xf32>
    %35 = tpu.matmul %32, %34, %cst_32 {dimension_numbers = #tpu.dot_dimension_numbers<[1], [0], [0], [1], [0, 0, 1, 1], [], []>} : vector<288x128xbf16>, vector<128x128xbf16>, vector<288x128xf32> -> vector<288x128xf32>
    %36 = arith.addf %30, %35 : vector<288x128xf32>
    %c0_33 = arith.constant 0 : index
    %c36 = arith.constant 36 : index
    %c0_34 = arith.constant 0 : index
    %37 = vector.load %arg1[%c0_33, %c36, %c0_34] : memref<1x328x128xbf16, #tpu.memory_space<vmem>>, vector<1x288x128xbf16>
    %38 = vector.shape_cast %37 : vector<1x288x128xbf16> to vector<288x128xbf16>
    %c6 = arith.constant 6 : index
    %c0_35 = arith.constant 0 : index
    %c0_36 = arith.constant 0 : index
    %39 = vector.load %arg2[%c6, %c0_35, %c0_36] : memref<9x128x128xbf16, #tpu.memory_space<vmem>>, vector<1x128x128xbf16>
    %40 = vector.shape_cast %39 : vector<1x128x128xbf16> to vector<128x128xbf16>
    %cst_37 = arith.constant dense<0.000000e+00> : vector<288x128xf32>
    %41 = tpu.matmul %38, %40, %cst_37 {dimension_numbers = #tpu.dot_dimension_numbers<[1], [0], [0], [1], [0, 0, 1, 1], [], []>} : vector<288x128xbf16>, vector<128x128xbf16>, vector<288x128xf32> -> vector<288x128xf32>
    %42 = arith.addf %36, %41 : vector<288x128xf32>
    %c0_38 = arith.constant 0 : index
    %c37 = arith.constant 37 : index
    %c0_39 = arith.constant 0 : index
    %43 = vector.load %arg1[%c0_38, %c37, %c0_39] : memref<1x328x128xbf16, #tpu.memory_space<vmem>>, vector<1x288x128xbf16>
    %44 = vector.shape_cast %43 : vector<1x288x128xbf16> to vector<288x128xbf16>
    %c7 = arith.constant 7 : index
    %c0_40 = arith.constant 0 : index
    %c0_41 = arith.constant 0 : index
    %45 = vector.load %arg2[%c7, %c0_40, %c0_41] : memref<9x128x128xbf16, #tpu.memory_space<vmem>>, vector<1x128x128xbf16>
    %46 = vector.shape_cast %45 : vector<1x128x128xbf16> to vector<128x128xbf16>
    %cst_42 = arith.constant dense<0.000000e+00> : vector<288x128xf32>
    %47 = tpu.matmul %44, %46, %cst_42 {dimension_numbers = #tpu.dot_dimension_numbers<[1], [0], [0], [1], [0, 0, 1, 1], [], []>} : vector<288x128xbf16>, vector<128x128xbf16>, vector<288x128xf32> -> vector<288x128xf32>
    %48 = arith.addf %42, %47 : vector<288x128xf32>
    %c0_43 = arith.constant 0 : index
    %c38 = arith.constant 38 : index
    %c0_44 = arith.constant 0 : index
    %49 = vector.load %arg1[%c0_43, %c38, %c0_44] : memref<1x328x128xbf16, #tpu.memory_space<vmem>>, vector<1x288x128xbf16>
    %50 = vector.shape_cast %49 : vector<1x288x128xbf16> to vector<288x128xbf16>
    %c8 = arith.constant 8 : index
    %c0_45 = arith.constant 0 : index
    %c0_46 = arith.constant 0 : index
    %51 = vector.load %arg2[%c8, %c0_45, %c0_46] : memref<9x128x128xbf16, #tpu.memory_space<vmem>>, vector<1x128x128xbf16>
    %52 = vector.shape_cast %51 : vector<1x128x128xbf16> to vector<128x128xbf16>
    %cst_47 = arith.constant dense<0.000000e+00> : vector<288x128xf32>
    %53 = tpu.matmul %50, %52, %cst_47 {dimension_numbers = #tpu.dot_dimension_numbers<[1], [0], [0], [1], [0, 0, 1, 1], [], []>} : vector<288x128xbf16>, vector<128x128xbf16>, vector<288x128xf32> -> vector<288x128xf32>
    %54 = arith.addf %48, %53 : vector<288x128xf32>
    %55 = tpu.iota {dimensions = array<i32: 0>} : vector<288x1xi32>
    %c18_i32 = arith.constant 18 : i32
    %c0_i32 = arith.constant 0 : i32
    %56 = arith.cmpi eq, %c18_i32, %c0_i32 : i32
    %c1_i32 = arith.constant 1 : i32
    %57 = arith.select %56, %c1_i32, %c18_i32 : i32
    %58 = vector.broadcast %57 : i32 to vector<288x1xi32>
    %59 = arith.remsi %55, %58 : vector<288x1xi32>
    %c0_i32_48 = arith.constant 0 : i32
    %60 = vector.broadcast %c0_i32_48 : i32 to vector<288x1xi32>
    %61 = arith.cmpi ne, %59, %60 : vector<288x1xi32>
    %c0_i32_49 = arith.constant 0 : i32
    %62 = vector.broadcast %c0_i32_49 : i32 to vector<288x1xi32>
    %63 = arith.cmpi slt, %59, %62 : vector<288x1xi32>
    %c0_i32_50 = arith.constant 0 : i32
    %64 = arith.cmpi slt, %57, %c0_i32_50 : i32
    %65 = vector.broadcast %64 : i1 to vector<288x1xi1>
    %66 = vector.broadcast %65 : vector<288x1xi1> to vector<288x1xi1>
    %67 = arith.xori %63, %66 : vector<288x1xi1>
    %68 = arith.andi %67, %61 : vector<288x1xi1>
    %69 = vector.broadcast %57 : i32 to vector<288x1xi32>
    %70 = arith.addi %59, %69 : vector<288x1xi32>
    %71 = arith.select %68, %70, %59 : vector<288x1xi1>, vector<288x1xi32>
    %c16_i32 = arith.constant 16 : i32
    %72 = vector.broadcast %c16_i32 : i32 to vector<288x1xi32>
    %73 = arith.cmpi slt, %71, %72 : vector<288x1xi32>
    %c0_51 = arith.constant 0 : index
    %c0_52 = arith.constant 0 : index
    %74 = vector.load %arg3[%c0_51, %c0_52] : memref<1x128xf32, #tpu.memory_space<vmem>>, vector<1x128xf32>
    %75 = vector.broadcast %74 : vector<1x128xf32> to vector<288x128xf32>
    %76 = arith.addf %54, %75 : vector<288x128xf32>
    %cst_53 = arith.constant 0.000000e+00 : f32
    %77 = vector.broadcast %cst_53 : f32 to vector<288x128xf32>
    %78 = arith.maximumf %76, %77 : vector<288x128xf32>
    %cst_54 = arith.constant 0.000000e+00 : f32
    %79 = vector.shape_cast %73 : vector<288x1xi1> to vector<288x1xi1>
    %80 = vector.broadcast %79 : vector<288x1xi1> to vector<288x128xi1>
    %81 = vector.broadcast %cst_54 : f32 to vector<288x128xf32>
    %82 = arith.select %80, %78, %81 : vector<288x128xi1>, vector<288x128xf32>
    %cst_55 = arith.constant 0.000000e+00 : bf16
    %83 = vector.broadcast %cst_55 : bf16 to vector<24x128xbf16>
    %c0_56 = arith.constant 0 : index
    %c0_57 = arith.constant 0 : index
    %84 = vector.load %arg7[%c0_56, %c0_57] : memref<336x128xbf16, #tpu.memory_space<vmem>>, vector<24x128xbf16>
    tpu.vector_store %arg7[%c0_56, %c0_57], %83 {strides = array<i32>} : memref<336x128xbf16, #tpu.memory_space<vmem>>, vector<24x128xbf16>,
    %cst_58 = arith.constant 0.000000e+00 : bf16
    %85 = vector.broadcast %cst_58 : bf16 to vector<24x128xbf16>
    %c312 = arith.constant 312 : index
    %c0_59 = arith.constant 0 : index
    %86 = vector.load %arg7[%c312, %c0_59] : memref<336x128xbf16, #tpu.memory_space<vmem>>, vector<24x128xbf16>
    tpu.vector_store %arg7[%c312, %c0_59], %85 {strides = array<i32>} : memref<336x128xbf16, #tpu.memory_space<vmem>>, vector<24x128xbf16>,
    %87 = arith.truncf %82 : vector<288x128xf32> to vector<288x128xbf16>
    %c24 = arith.constant 24 : index
    %c0_60 = arith.constant 0 : index
    %88 = vector.load %arg7[%c24, %c0_60] : memref<336x128xbf16, #tpu.memory_space<vmem>>, vector<288x128xbf16>
    tpu.vector_store %arg7[%c24, %c0_60], %87 {strides = array<i32>} : memref<336x128xbf16, #tpu.memory_space<vmem>>, vector<288x128xbf16>,
    %cst_61 = arith.constant 0.000000e+00 : f32
    %89 = vector.broadcast %cst_61 : f32 to vector<288x128xf32>
    %c5_62 = arith.constant 5 : index
    %c0_63 = arith.constant 0 : index
    %90 = vector.load %arg7[%c5_62, %c0_63] : memref<336x128xbf16, #tpu.memory_space<vmem>>, vector<288x128xbf16>
    %c0_64 = arith.constant 0 : index
    %c0_65 = arith.constant 0 : index
    %c0_66 = arith.constant 0 : index
    %91 = vector.load %arg4[%c0_64, %c0_65, %c0_66] : memref<9x128x128xbf16, #tpu.memory_space<vmem>>, vector<1x128x128xbf16>
    %92 = vector.shape_cast %91 : vector<1x128x128xbf16> to vector<128x128xbf16>
    %cst_67 = arith.constant dense<0.000000e+00> : vector<288x128xf32>
    %93 = tpu.matmul %90, %92, %cst_67 {dimension_numbers = #tpu.dot_dimension_numbers<[1], [0], [0], [1], [0, 0, 1, 1], [], []>} : vector<288x128xbf16>, vector<128x128xbf16>, vector<288x128xf32> -> vector<288x128xf32>
    %94 = arith.addf %89, %93 : vector<288x128xf32>
    %c6_68 = arith.constant 6 : index
    %c0_69 = arith.constant 0 : index
    %95 = vector.load %arg7[%c6_68, %c0_69] : memref<336x128xbf16, #tpu.memory_space<vmem>>, vector<288x128xbf16>
    %c1_70 = arith.constant 1 : index
    %c0_71 = arith.constant 0 : index
    %c0_72 = arith.constant 0 : index
    %96 = vector.load %arg4[%c1_70, %c0_71, %c0_72] : memref<9x128x128xbf16, #tpu.memory_space<vmem>>, vector<1x128x128xbf16>
    %97 = vector.shape_cast %96 : vector<1x128x128xbf16> to vector<128x128xbf16>
    %cst_73 = arith.constant dense<0.000000e+00> : vector<288x128xf32>
    %98 = tpu.matmul %95, %97, %cst_73 {dimension_numbers = #tpu.dot_dimension_numbers<[1], [0], [0], [1], [0, 0, 1, 1], [], []>} : vector<288x128xbf16>, vector<128x128xbf16>, vector<288x128xf32> -> vector<288x128xf32>
    %99 = arith.addf %94, %98 : vector<288x128xf32>
    %c7_74 = arith.constant 7 : index
    %c0_75 = arith.constant 0 : index
    %100 = vector.load %arg7[%c7_74, %c0_75] : memref<336x128xbf16, #tpu.memory_space<vmem>>, vector<288x128xbf16>
    %c2_76 = arith.constant 2 : index
    %c0_77 = arith.constant 0 : index
    %c0_78 = arith.constant 0 : index
    %101 = vector.load %arg4[%c2_76, %c0_77, %c0_78] : memref<9x128x128xbf16, #tpu.memory_space<vmem>>, vector<1x128x128xbf16>
    %102 = vector.shape_cast %101 : vector<1x128x128xbf16> to vector<128x128xbf16>
    %cst_79 = arith.constant dense<0.000000e+00> : vector<288x128xf32>
    %103 = tpu.matmul %100, %102, %cst_79 {dimension_numbers = #tpu.dot_dimension_numbers<[1], [0], [0], [1], [0, 0, 1, 1], [], []>} : vector<288x128xbf16>, vector<128x128xbf16>, vector<288x128xf32> -> vector<288x128xf32>
    %104 = arith.addf %99, %103 : vector<288x128xf32>
    %c23 = arith.constant 23 : index
    %c0_80 = arith.constant 0 : index
    %105 = vector.load %arg7[%c23, %c0_80] : memref<336x128xbf16, #tpu.memory_space<vmem>>, vector<288x128xbf16>
    %c3_81 = arith.constant 3 : index
    %c0_82 = arith.constant 0 : index
    %c0_83 = arith.constant 0 : index
    %106 = vector.load %arg4[%c3_81, %c0_82, %c0_83] : memref<9x128x128xbf16, #tpu.memory_space<vmem>>, vector<1x128x128xbf16>
    %107 = vector.shape_cast %106 : vector<1x128x128xbf16> to vector<128x128xbf16>
    %cst_84 = arith.constant dense<0.000000e+00> : vector<288x128xf32>
    %108 = tpu.matmul %105, %107, %cst_84 {dimension_numbers = #tpu.dot_dimension_numbers<[1], [0], [0], [1], [0, 0, 1, 1], [], []>} : vector<288x128xbf16>, vector<128x128xbf16>, vector<288x128xf32> -> vector<288x128xf32>
    %109 = arith.addf %104, %108 : vector<288x128xf32>
    %c24_85 = arith.constant 24 : index
    %c0_86 = arith.constant 0 : index
    %110 = vector.load %arg7[%c24_85, %c0_86] : memref<336x128xbf16, #tpu.memory_space<vmem>>, vector<288x128xbf16>
    %c4_87 = arith.constant 4 : index
    %c0_88 = arith.constant 0 : index
    %c0_89 = arith.constant 0 : index
    %111 = vector.load %arg4[%c4_87, %c0_88, %c0_89] : memref<9x128x128xbf16, #tpu.memory_space<vmem>>, vector<1x128x128xbf16>
    %112 = vector.shape_cast %111 : vector<1x128x128xbf16> to vector<128x128xbf16>
    %cst_90 = arith.constant dense<0.000000e+00> : vector<288x128xf32>
    %113 = tpu.matmul %110, %112, %cst_90 {dimension_numbers = #tpu.dot_dimension_numbers<[1], [0], [0], [1], [0, 0, 1, 1], [], []>} : vector<288x128xbf16>, vector<128x128xbf16>, vector<288x128xf32> -> vector<288x128xf32>
    %114 = arith.addf %109, %113 : vector<288x128xf32>
    %c25 = arith.constant 25 : index
    %c0_91 = arith.constant 0 : index
    %115 = vector.load %arg7[%c25, %c0_91] : memref<336x128xbf16, #tpu.memory_space<vmem>>, vector<288x128xbf16>
    %c5_92 = arith.constant 5 : index
    %c0_93 = arith.constant 0 : index
    %c0_94 = arith.constant 0 : index
    %116 = vector.load %arg4[%c5_92, %c0_93, %c0_94] : memref<9x128x128xbf16, #tpu.memory_space<vmem>>, vector<1x128x128xbf16>
    %117 = vector.shape_cast %116 : vector<1x128x128xbf16> to vector<128x128xbf16>
    %cst_95 = arith.constant dense<0.000000e+00> : vector<288x128xf32>
    %118 = tpu.matmul %115, %117, %cst_95 {dimension_numbers = #tpu.dot_dimension_numbers<[1], [0], [0], [1], [0, 0, 1, 1], [], []>} : vector<288x128xbf16>, vector<128x128xbf16>, vector<288x128xf32> -> vector<288x128xf32>
    %119 = arith.addf %114, %118 : vector<288x128xf32>
    %c41 = arith.constant 41 : index
    %c0_96 = arith.constant 0 : index
    %120 = vector.load %arg7[%c41, %c0_96] : memref<336x128xbf16, #tpu.memory_space<vmem>>, vector<288x128xbf16>
    %c6_97 = arith.constant 6 : index
    %c0_98 = arith.constant 0 : index
    %c0_99 = arith.constant 0 : index
    %121 = vector.load %arg4[%c6_97, %c0_98, %c0_99] : memref<9x128x128xbf16, #tpu.memory_space<vmem>>, vector<1x128x128xbf16>
    %122 = vector.shape_cast %121 : vector<1x128x128xbf16> to vector<128x128xbf16>
    %cst_100 = arith.constant dense<0.000000e+00> : vector<288x128xf32>
    %123 = tpu.matmul %120, %122, %cst_100 {dimension_numbers = #tpu.dot_dimension_numbers<[1], [0], [0], [1], [0, 0, 1, 1], [], []>} : vector<288x128xbf16>, vector<128x128xbf16>, vector<288x128xf32> -> vector<288x128xf32>
    %124 = arith.addf %119, %123 : vector<288x128xf32>
    %c42 = arith.constant 42 : index
    %c0_101 = arith.constant 0 : index
    %125 = vector.load %arg7[%c42, %c0_101] : memref<336x128xbf16, #tpu.memory_space<vmem>>, vector<288x128xbf16>
    %c7_102 = arith.constant 7 : index
    %c0_103 = arith.constant 0 : index
    %c0_104 = arith.constant 0 : index
    %126 = vector.load %arg4[%c7_102, %c0_103, %c0_104] : memref<9x128x128xbf16, #tpu.memory_space<vmem>>, vector<1x128x128xbf16>
    %127 = vector.shape_cast %126 : vector<1x128x128xbf16> to vector<128x128xbf16>
    %cst_105 = arith.constant dense<0.000000e+00> : vector<288x128xf32>
    %128 = tpu.matmul %125, %127, %cst_105 {dimension_numbers = #tpu.dot_dimension_numbers<[1], [0], [0], [1], [0, 0, 1, 1], [], []>} : vector<288x128xbf16>, vector<128x128xbf16>, vector<288x128xf32> -> vector<288x128xf32>
    %129 = arith.addf %124, %128 : vector<288x128xf32>
    %c43 = arith.constant 43 : index
    %c0_106 = arith.constant 0 : index
    %130 = vector.load %arg7[%c43, %c0_106] : memref<336x128xbf16, #tpu.memory_space<vmem>>, vector<288x128xbf16>
    %c8_107 = arith.constant 8 : index
    %c0_108 = arith.constant 0 : index
    %c0_109 = arith.constant 0 : index
    %131 = vector.load %arg4[%c8_107, %c0_108, %c0_109] : memref<9x128x128xbf16, #tpu.memory_space<vmem>>, vector<1x128x128xbf16>
    %132 = vector.shape_cast %131 : vector<1x128x128xbf16> to vector<128x128xbf16>
    %cst_110 = arith.constant dense<0.000000e+00> : vector<288x128xf32>
    %133 = tpu.matmul %130, %132, %cst_110 {dimension_numbers = #tpu.dot_dimension_numbers<[1], [0], [0], [1], [0, 0, 1, 1], [], []>} : vector<288x128xbf16>, vector<128x128xbf16>, vector<288x128xf32> -> vector<288x128xf32>
    %134 = arith.addf %129, %133 : vector<288x128xf32>
    %c0_111 = arith.constant 0 : index
    %c19_112 = arith.constant 19 : index
    %c0_113 = arith.constant 0 : index
    %135 = vector.load %arg1[%c0_111, %c19_112, %c0_113] : memref<1x328x128xbf16, #tpu.memory_space<vmem>>, vector<1x288x128xbf16>
    %136 = vector.shape_cast %135 : vector<1x288x128xbf16> to vector<288x128xbf16>
    %137 = arith.extf %136 : vector<288x128xbf16> to vector<288x128xf32>
    %c0_114 = arith.constant 0 : index
    %c0_115 = arith.constant 0 : index
    %138 = vector.load %arg5[%c0_114, %c0_115] : memref<1x128xf32, #tpu.memory_space<vmem>>, vector<1x128xf32>
    %139 = vector.broadcast %138 : vector<1x128xf32> to vector<288x128xf32>
    %140 = arith.addf %134, %139 : vector<288x128xf32>
    %141 = arith.addf %140, %137 : vector<288x128xf32>
    %cst_116 = arith.constant 0.000000e+00 : f32
    %142 = vector.broadcast %cst_116 : f32 to vector<288x128xf32>
    %143 = arith.maximumf %141, %142 : vector<288x128xf32>
    %c0_117 = arith.constant 0 : index
    %c0_118 = arith.constant 0 : index
    %c0_119 = arith.constant 0 : index
    %144 = vector.load %arg6[%c0_117, %c0_118, %c0_119] : memref<1x288x128xf32, #tpu.memory_space<vmem>>, vector<1x288x128xf32>
    %145 = vector.shape_cast %144 : vector<1x288x128xf32> to vector<288x128xf32>
    %146 = vector.shape_cast %143 : vector<288x128xf32> to vector<1x288x128xf32>
    tpu.vector_store %arg6[%c0_117, %c0_118, %c0_119], %146 {strides = array<i32>} : memref<1x288x128xf32, #tpu.memory_space<vmem>>, vector<1x288x128xf32>,
    return
  }
  func.func @transform_0(%arg0: i32) -> (i32, i32, i32) {
    %c0_i32 = arith.constant 0 : i32
    %c0_i32_0 = arith.constant 0 : i32
    %c0_i32_1 = arith.constant 0 : i32
    return %arg0, %c0_i32, %c0_i32_0 : i32, i32, i32
  }
  func.func @transform_1(%arg0: i32) -> (i32, i32, i32) {
    %c0_i32 = arith.constant 0 : i32
    %c0_i32_0 = arith.constant 0 : i32
    %c0_i32_1 = arith.constant 0 : i32
    %c0_i32_2 = arith.constant 0 : i32
    return %c0_i32, %c0_i32_0, %c0_i32_1 : i32, i32, i32
  }
  func.func @transform_2(%arg0: i32) -> (i32, i32) {
    %c0_i32 = arith.constant 0 : i32
    %c0_i32_0 = arith.constant 0 : i32
    %c0_i32_1 = arith.constant 0 : i32
    return %c0_i32, %c0_i32_0 : i32, i32
  }
  func.func @transform_3(%arg0: i32) -> (i32, i32, i32) {
    %c0_i32 = arith.constant 0 : i32
    %c0_i32_0 = arith.constant 0 : i32
    %c0_i32_1 = arith.constant 0 : i32
    %c0_i32_2 = arith.constant 0 : i32
    return %c0_i32, %c0_i32_0, %c0_i32_1 : i32, i32, i32
  }
  func.func @transform_4(%arg0: i32) -> (i32, i32) {
    %c0_i32 = arith.constant 0 : i32
    %c0_i32_0 = arith.constant 0 : i32
    %c0_i32_1 = arith.constant 0 : i32
    return %c0_i32, %c0_i32_0 : i32, i32
  }
  func.func @transform_5(%arg0: i32) -> (i32, i32, i32) {
    %c0_i32 = arith.constant 0 : i32
    %c0_i32_0 = arith.constant 0 : i32
    %c0_i32_1 = arith.constant 0 : i32
    return %arg0, %c0_i32, %c0_i32_0 : i32, i32, i32
  }
}

</mosaic_0001>

<llo_original>
// kernel: tpu_custom_call.1
$region0: #{tpu_custom_call.1}
  #allocation0 [shape = 'u32[]', space=smem, size = 0x4, offset = 0x4, fixed_abs, tag = 'smem constant byte address 0x4 - core index']
  #allocation1 [shape = 'u32[144,128]{1,0:T(1,128)}', space=vmem, size = 0x12000, scoped, tag = 'internal scratch']
  #allocation2 [shape = 'bf16[336,128]{1,0:T(16,128)(2,1)}', space=vmem, size = 0x15000, scoped, tag = 'scratch operand']
  %s0 = inlined_call_operand.hbm [shape: bf16[2,328,128], index: 0, kind: input, shape index: {}]
  %s1 = inlined_call_operand.hbm [shape: bf16[9,128,128], index: 1, kind: input, shape index: {}]
  %s2 = inlined_call_operand.vmem [shape: f32[1,128], index: 2, kind: input, shape index: {}]
  %s3 = inlined_call_operand.hbm [shape: bf16[9,128,128], index: 3, kind: input, shape index: {}]
  %s4 = inlined_call_operand.vmem [shape: f32[1,128], index: 4, kind: input, shape index: {}]
  %s5 = inlined_call_operand.hbm [shape: f32[2,288,128], index: 5, kind: output, shape index: {}]
  %s6 = sld [smem:[#allocation0]]
  $region65: #{tpu_custom_call.1} parent=0
    _
  %s8 = ssub.s32 1, %s6
  %s9 = scalar_select 0, %s8, %s6
  $region1: #{tpu_custom_call.1} parent=0
    #allocation3 [shape = 'u8[167936]{0}', space=vmem, size = 0x29000, scoped, tag = 'input window, operand 0']
    #allocation4 [shape = 's32[2]{0}', space=sflag, size = 0x8, scoped, tag = 'scoped memory for tpu_custom_call.1']
    #allocation5 [shape = 's32[2]{0}', space=sflag, size = 0x8, scoped, tag = 'scoped memory for tpu_custom_call.1']
    #allocation6 [shape = 'u8[294912]{0}', space=vmem, size = 0x48000, scoped, tag = 'input window, operand 1, single buffered']
    #allocation7 [shape = 's32[1]{0}', space=sflag, size = 0x4, scoped, tag = 'scoped memory for tpu_custom_call.1']
    #allocation8 [shape = 'u8[294912]{0}', space=vmem, size = 0x48000, scoped, tag = 'input window, operand 3, single buffered']
    #allocation9 [shape = 'u8[294912]{0}', space=vmem, size = 0x48000, scoped, tag = 'output window, operand 0']
    %10 = vsyncpa [#allocation4], 0
    %s11 = scalar_lea.sflag [#allocation4], 1
    %12 = vsyncpa %s11, 0
    %13 = vsyncpa [#allocation7], 0
    %14 = vsyncpa [#allocation5], 0
    %s15 = scalar_lea.sflag [#allocation5], 1
    %16 = vsyncpa %s15, 0
    loop: start=0, step=1, limit=4
    $region2: #{tpu_custom_call.1} parent=1 // loop_pre_header
      _
    $region3: #{tpu_custom_call.1} parent=1 // loop_header
      %s18 = sphi 0, %s22
      %p19 = scmp.ge.s32.totalorder %s18, 4
      %s28 = sphi 0, %s30
      %s31 = sphi 0, %s28
      %s32 = sphi 0, %s31
      %s48 = sphi 0, %s32
      %s52 = sphi 0, %s52
      %s54 = sphi 0, %s52
      %s55 = sphi 0, %s54
      %s69 = sphi 0, %s55
      %s73 = sphi 0, %s73
      %s75 = sphi 0, %s73
      %s76 = sphi 0, %s75
      %s90 = sphi 0, %s76
      %s94 = sphi 0, %s94
      %s96 = sphi 0, %s94
      %s97 = sphi 0, %s96
      %s111 = sphi 0, %s97
      %s115 = sphi 0, %s115
      %s117 = sphi 0, %s115
      %s118 = sphi 0, %s117
      %s132 = sphi 0, %s118
      %s138 = sphi 0, %s140
      %s141 = sphi 0, %s138
      %s142 = sphi 0, %s141
      %s158 = sphi 0, %s142
    $region4: #{tpu_custom_call.1} parent=1 // loop_header_branch
      %21 = sbr.rel (%p19) target = $region8
    $region5: #{tpu_custom_call.1} parent=1 // loop_body
      %s23 = ssub.s32 %s18, 1
      %s24 = ssub.s32 %s18, 2
      %s25 = sadd.s32 %s18, 1
      %s26 = ssub.s32 %s18, %s25
      %p27 = scmp.eq.s32.totalorder %s26, 0
      %s29 = sadd.s32 %s28, 1
      %s30 = scalar_select %p27, %s28, %s29
      %p33 = pneg %p27
      %p34 = scmp.eq.s32.totalorder %s18, 1
      %p35 = por %p33, %p34
      %p36 = scmp.ne.s32.totalorder %s28, %s31
      %p37 = scmp.eq.s32.totalorder %s18, 0
      %p38 = por %p36, %p37
      %p39 = scmp.ne.s32.totalorder %s28, %s31
      %p40 = scmp.eq.s32.totalorder %s23, 1
      %p41 = por %p39, %p40
      %p42 = scmp.ne.s32.totalorder %s31, %s32
      %p43 = scmp.eq.s32.totalorder %s23, 0
      %p44 = por %p42, %p43
      %p45 = scmp.ne.s32.totalorder %s31, %s32
      %p46 = scmp.eq.s32.totalorder %s24, 1
      %p47 = por %p45, %p46
      %p49 = scmp.ne.s32.totalorder %s32, %s48
      %p50 = scmp.eq.s32.totalorder %s24, 0
      %p51 = por %p49, %p50
      %s53 = sadd.s32 %s52, 1
      %p56 = scmp.eq.s32.totalorder %s18, 1
      %p57 = scmp.ne.s32.totalorder %s52, %s54
      %p58 = scmp.eq.s32.totalorder %s18, 0
      %p59 = por %p57, %p58
      %p60 = scmp.ne.s32.totalorder %s52, %s54
      %p61 = scmp.eq.s32.totalorder %s23, 1
      %p62 = por %p60, %p61
      %p63 = scmp.ne.s32.totalorder %s54, %s55
      %p64 = scmp.eq.s32.totalorder %s23, 0
      %p65 = por %p63, %p64
      %p66 = scmp.ne.s32.totalorder %s54, %s55
      %p67 = scmp.eq.s32.totalorder %s24, 1
      %p68 = por %p66, %p67
      %p70 = scmp.ne.s32.totalorder %s55, %s69
      %p71 = scmp.eq.s32.totalorder %s24, 0
      %p72 = por %p70, %p71
      %s74 = sadd.s32 %s73, 1
      %p77 = scmp.eq.s32.totalorder %s18, 1
      %p78 = scmp.ne.s32.totalorder %s73, %s75
      %p79 = scmp.eq.s32.totalorder %s18, 0
      %p80 = por %p78, %p79
      %p81 = scmp.ne.s32.totalorder %s73, %s75
      %p82 = scmp.eq.s32.totalorder %s23, 1
      %p83 = por %p81, %p82
      %p84 = scmp.ne.s32.totalorder %s75, %s76
      %p85 = scmp.eq.s32.totalorder %s23, 0
      %p86 = por %p84, %p85
      %p87 = scmp.ne.s32.totalorder %s75, %s76
      %p88 = scmp.eq.s32.totalorder %s24, 1
      %p89 = por %p87, %p88
      %p91 = scmp.ne.s32.totalorder %s76, %s90
      %p92 = scmp.eq.s32.totalorder %s24, 0
      %p93 = por %p91, %p92
      %s95 = sadd.s32 %s94, 1
      %p98 = scmp.eq.s32.totalorder %s18, 1
      %p99 = scmp.ne.s32.totalorder %s94, %s96
      %p100 = scmp.eq.s32.totalorder %s18, 0
      %p101 = por %p99, %p100
      %p102 = scmp.ne.s32.totalorder %s94, %s96
      %p103 = scmp.eq.s32.totalorder %s23, 1
      %p104 = por %p102, %p103
      %p105 = scmp.ne.s32.totalorder %s96, %s97
      %p106 = scmp.eq.s32.totalorder %s23, 0
      %p107 = por %p105, %p106
      %p108 = scmp.ne.s32.totalorder %s96, %s97
      %p109 = scmp.eq.s32.totalorder %s24, 1
      %p110 = por %p108, %p109
      %p112 = scmp.ne.s32.totalorder %s97, %s111
      %p113 = scmp.eq.s32.totalorder %s24, 0
      %p114 = por %p112, %p113
      %s116 = sadd.s32 %s115, 1
      %p119 = scmp.eq.s32.totalorder %s18, 1
      %p120 = scmp.ne.s32.totalorder %s115, %s117
      %p121 = scmp.eq.s32.totalorder %s18, 0
      %p122 = por %p120, %p121
      %p123 = scmp.ne.s32.totalorder %s115, %s117
      %p124 = scmp.eq.s32.totalorder %s23, 1
      %p125 = por %p123, %p124
      %p126 = scmp.ne.s32.totalorder %s117, %s118
      %p127 = scmp.eq.s32.totalorder %s23, 0
      %p128 = por %p126, %p127
      %p129 = scmp.ne.s32.totalorder %s117, %s118
      %p130 = scmp.eq.s32.totalorder %s24, 1
      %p131 = por %p129, %p130
      %p133 = scmp.ne.s32.totalorder %s118, %s132
      %p134 = scmp.eq.s32.totalorder %s24, 0
      %p135 = por %p133, %p134
      %s136 = ssub.s32 %s18, %s25
      %p137 = scmp.eq.s32.totalorder %s136, 0
      %s139 = sadd.s32 %s138, 1
      %s140 = scalar_select %p137, %s138, %s139
      %p143 = pneg %p137
      %p144 = scmp.eq.s32.totalorder %s18, 1
      %p145 = por %p143, %p144
      %p146 = scmp.ne.s32.totalorder %s138, %s141
      %p147 = scmp.eq.s32.totalorder %s18, 0
      %p148 = por %p146, %p147
      %p149 = scmp.ne.s32.totalorder %s138, %s141
      %p150 = scmp.eq.s32.totalorder %s23, 1
      %p151 = por %p149, %p150
      %p152 = scmp.ne.s32.totalorder %s141, %s142
      %p153 = scmp.eq.s32.totalorder %s23, 0
      %p154 = por %p152, %p153
      %p155 = scmp.ne.s32.totalorder %s141, %s142
      %p156 = scmp.eq.s32.totalorder %s24, 1
      %p157 = por %p155, %p156
      %p159 = scmp.ne.s32.totalorder %s142, %s158
      %p160 = scmp.eq.s32.totalorder %s24, 0
      %p161 = por %p159, %p160
      %p162 = scmp.le.s32.totalorder 1, %s18
      %p163 = scmp.lt.s32.totalorder %s18, 3
      %p164 = pnand %p162, %p163
      %p165 = pneg %p164
      // Predicated region
      $region9: #{tpu_custom_call.1} parent=5 // pred_check
        _
      $region10: #{tpu_custom_call.1} parent=5 // pred_check_branch
        %167 = sbr.rel (%p164) target = $region12
      $region11: #{tpu_custom_call.1} parent=5 // pred_region
        %s168 = ssub.s32 %s18, 1
        // Predicated region
        $region13: #{tpu_custom_call.1} parent=11 // pred_check
          %p169 = pneg %p65
        $region14: #{tpu_custom_call.1} parent=11 // pred_check_branch
          %171 = sbr.rel (%p169) target = $region16
        $region15: #{tpu_custom_call.1} parent=11 // pred_region
          %s173 = ssub.s32 9216, 9216
          %174 = vsyncadd [#allocation7], %s173
          %s175 = sshll.u32 [#allocation6], 4
          %s176 = int_to_ptr.vmem [resolvable:$true] %s175
          %181 = dma.hbm_to_vmem [thread:$0]  %s1, 9216, %s176, [#allocation7], 64, 64, 4
        $region16: #{tpu_custom_call.1} parent=11 // pred_fallthru
          _
        // Predicated region
        $region17: #{tpu_custom_call.1} parent=11 // pred_check
          %p182 = pneg %p86
        $region18: #{tpu_custom_call.1} parent=11 // pred_check_branch
          %184 = sbr.rel (%p182) target = $region20
        $region19: #{tpu_custom_call.1} parent=11 // pred_region
          _
        $region20: #{tpu_custom_call.1} parent=11 // pred_fallthru
          _
        // Predicated region
        $region21: #{tpu_custom_call.1} parent=11 // pred_check
          %p185 = pneg %p107
        $region22: #{tpu_custom_call.1} parent=11 // pred_check_branch
          %187 = sbr.rel (%p185) target = $region24
        $region23: #{tpu_custom_call.1} parent=11 // pred_region
          %s189 = ssub.s32 9216, 9216
          %190 = vsyncadd [#allocation7], %s189
          %s191 = sshll.u32 [#allocation8], 4
          %s192 = int_to_ptr.vmem [resolvable:$true] %s191
          %197 = dma.hbm_to_vmem [thread:$0]  %s3, 9216, %s192, [#allocation7], 64, 64, 4
        $region24: #{tpu_custom_call.1} parent=11 // pred_fallthru
          _
        // Predicated region
        $region25: #{tpu_custom_call.1} parent=11 // pred_check
          %p198 = pneg %p128
        $region26: #{tpu_custom_call.1} parent=11 // pred_check_branch
          %200 = sbr.rel (%p198) target = $region28
        $region27: #{tpu_custom_call.1} parent=11 // pred_region
          _
        $region28: #{tpu_custom_call.1} parent=11 // pred_fallthru
          _
      $region12: #{tpu_custom_call.1} parent=5 // pred_fallthru
        _
      %p201 = scmp.lt.s32.totalorder %s18, 2
      // Predicated region
      $region29: #{tpu_custom_call.1} parent=5 // pred_check
        %p202 = pneg %p201
      $region30: #{tpu_custom_call.1} parent=5 // pred_check_branch
        %204 = sbr.rel (%p202) target = $region32
      $region31: #{tpu_custom_call.1} parent=5 // pred_region
        // Predicated region
        $region33: #{tpu_custom_call.1} parent=31 // pred_check
          %p205 = pneg %p38
        $region34: #{tpu_custom_call.1} parent=31 // pred_check_branch
          %207 = sbr.rel (%p205) target = $region36
        $region35: #{tpu_custom_call.1} parent=31 // pred_region
          %s208 = sand.u32 %s28, 1
          %s209 = scalar_lea.sflag [#allocation4], %s208
          %s210 = sand.u32 %s28, 1
          %s211 = smul.addr %s210, 164
          %s212 = scalar_lea.vmem [#allocation3], %s211
          %s214 = ssub.s32 2624, 2624
          %215 = vsyncadd %s209, %s214
          %s216 = smul.addr %s18, 41
          %s217 = smul.addr %s216, 64
          %s218 = scalar_lea.hbm %s0, %s217
          %s219 = sshll.u32 %s212, 4
          %s220 = int_to_ptr.vmem [resolvable:$true] %s219
          %225 = dma.hbm_to_vmem [thread:$0]  %s218, 2624, %s220, %s209, 64, 64, 4
        $region36: #{tpu_custom_call.1} parent=31 // pred_fallthru
          _
      $region32: #{tpu_custom_call.1} parent=5 // pred_fallthru
        _
      %p226 = scmp.le.s32.totalorder 1, %s18
      %p227 = scmp.lt.s32.totalorder %s18, 3
      %p228 = pnand %p226, %p227
      %p229 = pneg %p228
      // Predicated region
      $region37: #{tpu_custom_call.1} parent=5 // pred_check
        _
      $region38: #{tpu_custom_call.1} parent=5 // pred_check_branch
        %231 = sbr.rel (%p228) target = $region40
      $region39: #{tpu_custom_call.1} parent=5 // pred_region
        %s232 = ssub.s32 %s18, 1
        %s233 = sand.u32 %s31, 1
        %s234 = scalar_lea.sflag [#allocation4], %s233
        %s235 = sand.u32 %s31, 1
        %s236 = smul.addr %s235, 164
        %s237 = scalar_lea.vmem [#allocation3], %s236
        // Predicated region
        $region41: #{tpu_custom_call.1} parent=39 // pred_check
          %p238 = pneg %p44
        $region42: #{tpu_custom_call.1} parent=39 // pred_check_branch
          %240 = sbr.rel (%p238) target = $region44
        $region43: #{tpu_custom_call.1} parent=39 // pred_region
          %241 = dma.done %s234, 2624
        $region44: #{tpu_custom_call.1} parent=39 // pred_fallthru
          _
        // Predicated region
        $region45: #{tpu_custom_call.1} parent=39 // pred_check
          %p242 = pneg %p65
        $region46: #{tpu_custom_call.1} parent=39 // pred_check_branch
          %244 = sbr.rel (%p242) target = $region48
        $region47: #{tpu_custom_call.1} parent=39 // pred_region
          %245 = dma.done [#allocation7], 9216
        $region48: #{tpu_custom_call.1} parent=39 // pred_fallthru
          _
        // Predicated region
        $region49: #{tpu_custom_call.1} parent=39 // pred_check
          %p246 = pneg %p107
        $region50: #{tpu_custom_call.1} parent=39 // pred_check_branch
          %248 = sbr.rel (%p246) target = $region52
        $region51: #{tpu_custom_call.1} parent=39 // pred_region
          %249 = dma.done [#allocation7], 9216
        $region52: #{tpu_custom_call.1} parent=39 // pred_fallthru
          _
        %s250 = sand.u32 %s31, 1
        %s251 = scalar_lea.sflag [#allocation4], %s250
        %s252 = sand.u32 %s31, 1
        %s253 = smul.addr %s252, 164
        %s254 = scalar_lea.vmem [#allocation3], %s253
        %p255 = pneg %p44
        %p256 = pneg %p41
        %p257 = pneg %p65
        %p258 = pneg %p62
        %p259 = pneg %p86
        %p260 = pneg %p83
        %p261 = pneg %p107
        %p262 = pneg %p104
        %p263 = pneg %p128
        %p264 = pneg %p125
        %p265 = pneg %p154
        %p266 = pneg %p151
        %s267 = sand.u32 %s141, 1
        %s268 = scalar_lea.sflag [#allocation5], %s267
        %s269 = sand.u32 %s141, 1
        %s270 = smul.addr %s269, 288
        %s271 = scalar_lea.vmem [#allocation9], %s270
        %v273 = vld [vmem:[%s237] sm:$0xf]
        %v274 = vld [vmem:[%s237 + $0x4] sm:$0xf]
        %v275 = vld [vmem:[%s237 + $0x8] sm:$0xf]
        %v276 = vld [vmem:[%s237 + $0xc] sm:$0xf]
        %v277 = vld [vmem:[%s237 + $0x10] sm:$0xf]
        %v278 = vld [vmem:[%s237 + $0x14] sm:$0xf]
        %v279 = vld [vmem:[%s237 + $0x18] sm:$0xf]
        %v280 = vld [vmem:[%s237 + $0x1c] sm:$0xf]
        %v281 = vld [vmem:[%s237 + $0x20] sm:$0xf]
        %v282 = vld [vmem:[%s237 + $0x24] sm:$0xf]
        %v283 = vld [vmem:[%s237 + $0x28] sm:$0xf]
        %v284 = vld [vmem:[%s237 + $0x2c] sm:$0xf]
        %v285 = vld [vmem:[%s237 + $0x30] sm:$0xf]
        %v286 = vld [vmem:[%s237 + $0x34] sm:$0xf]
        %v287 = vld [vmem:[%s237 + $0x38] sm:$0xf]
        %v288 = vld [vmem:[%s237 + $0x3c] sm:$0xf]
        %v289 = vld [vmem:[%s237 + $0x40] sm:$0xf]
        %v290 = vld [vmem:[%s237 + $0x44] sm:$0xf]
        %v291 = vld [vmem:[%s237 + $0x48] sm:$0xf]
        %v292 = vld [vmem:[%s237 + $0x4c] sm:$0xf]
        %v293 = vld [vmem:[%s237 + $0x50] sm:$0xf]
        %v294 = vld [vmem:[%s237 + $0x54] sm:$0xf]
        %v295 = vld [vmem:[%s237 + $0x58] sm:$0xf]
        %v296 = vld [vmem:[%s237 + $0x5c] sm:$0xf]
        %v297 = vld [vmem:[%s237 + $0x60] sm:$0xf]
        %v298 = vld [vmem:[%s237 + $0x64] sm:$0xf]
        %v299 = vld [vmem:[%s237 + $0x68] sm:$0xf]
        %v300 = vld [vmem:[%s237 + $0x6c] sm:$0xf]
        %v301 = vld [vmem:[%s237 + $0x70] sm:$0xf]
        %v302 = vld [vmem:[%s237 + $0x74] sm:$0xf]
        %v303 = vld [vmem:[%s237 + $0x78] sm:$0xf]
        %v304 = vld [vmem:[%s237 + $0x7c] sm:$0xf]
        %v305 = vld [vmem:[%s237 + $0x80] sm:$0xf]
        %v306 = vld [vmem:[%s237 + $0x84] sm:$0xf]
        %v307 = vld [vmem:[%s237 + $0x88] sm:$0xf]
        %v308 = vld [vmem:[%s237 + $0x8c] sm:$0xf]
        %v309 = vld [vmem:[#allocation6] sm:$0xf]
        %v310 = vld [vmem:[#allocation6 + $0x4] sm:$0xf]
        %v311 = vld [vmem:[#allocation6 + $0x8] sm:$0xf]
        %v312 = vld [vmem:[#allocation6 + $0xc] sm:$0xf]
        %v313 = vld [vmem:[#allocation6 + $0x10] sm:$0xf]
        %v314 = vld [vmem:[#allocation6 + $0x14] sm:$0xf]
        %v315 = vld [vmem:[#allocation6 + $0x18] sm:$0xf]
        %v316 = vld [vmem:[#allocation6 + $0x1c] sm:$0xf]
        %v317 = vld [vmem:[#allocation6 + $0x20] sm:$0xf]
        %v318 = vld [vmem:[#allocation6 + $0x24] sm:$0xf]
        %v319 = vld [vmem:[#allocation6 + $0x28] sm:$0xf]
        %v320 = vld [vmem:[#allocation6 + $0x2c] sm:$0xf]
        %v321 = vld [vmem:[#allocation6 + $0x30] sm:$0xf]
        %v322 = vld [vmem:[#allocation6 + $0x34] sm:$0xf]
        %v323 = vld [vmem:[#allocation6 + $0x38] sm:$0xf]
        %v324 = vld [vmem:[#allocation6 + $0x3c] sm:$0xf]
        %v325 = vld [vmem:[%s237 + $0x90] sm:$0x1]
        %s326 = scalar_lea.vmem [#allocation6], 64
        %v327 = vld [vmem:[%s326] sm:$0xf]
        %v328 = vld [vmem:[%s326 + $0x4] sm:$0xf]
        %v329 = vld [vmem:[%s326 + $0x8] sm:$0xf]
        %v330 = vld [vmem:[%s326 + $0xc] sm:$0xf]
        %v331 = vld [vmem:[%s326 + $0x10] sm:$0xf]
        %v332 = vld [vmem:[%s326 + $0x14] sm:$0xf]
        %v333 = vld [vmem:[%s326 + $0x18] sm:$0xf]
        %v334 = vld [vmem:[%s326 + $0x1c] sm:$0xf]
        %v335 = vld [vmem:[%s326 + $0x20] sm:$0xf]
        %v336 = vld [vmem:[%s326 + $0x24] sm:$0xf]
        %v337 = vld [vmem:[%s326 + $0x28] sm:$0xf]
        %v338 = vld [vmem:[%s326 + $0x2c] sm:$0xf]
        %v339 = vld [vmem:[%s326 + $0x30] sm:$0xf]
        %v340 = vld [vmem:[%s326 + $0x34] sm:$0xf]
        %v341 = vld [vmem:[%s326 + $0x38] sm:$0xf]
        %v342 = vld [vmem:[%s326 + $0x3c] sm:$0xf]
        %v380 = vunpack.c.l.b16 %v273
        %v381 = vunpack.c.l.b16 %v274
        %v382 = vunpack.c.l.b16 %v275
        %v383 = vunpack.c.l.b16 %v276
        %v384 = vunpack.c.l.b16 %v277
        %v385 = vunpack.c.l.b16 %v278
        %v386 = vunpack.c.l.b16 %v279
        %v387 = vunpack.c.l.b16 %v280
        %v388 = vunpack.c.l.b16 %v281
        %v389 = vunpack.c.l.b16 %v282
        %v390 = vunpack.c.l.b16 %v283
        %v391 = vunpack.c.l.b16 %v284
        %v392 = vunpack.c.l.b16 %v285
        %v393 = vunpack.c.l.b16 %v286
        %v394 = vunpack.c.l.b16 %v287
        %v395 = vunpack.c.l.b16 %v288
        %v396 = vunpack.c.l.b16 %v289
        %v397 = vunpack.c.l.b16 %v290
        %v398 = vunpack.c.l.b16 %v291
        %v399 = vunpack.c.l.b16 %v292
        %v400 = vunpack.c.l.b16 %v293
        %v401 = vunpack.c.l.b16 %v294
        %v402 = vunpack.c.l.b16 %v295
        %v403 = vunpack.c.l.b16 %v296
        %v404 = vunpack.c.l.b16 %v297
        %v405 = vunpack.c.l.b16 %v298
        %v406 = vunpack.c.l.b16 %v299
        %v407 = vunpack.c.l.b16 %v300
        %v408 = vunpack.c.l.b16 %v301
        %v409 = vunpack.c.l.b16 %v302
        %v410 = vunpack.c.l.b16 %v303
        %v411 = vunpack.c.l.b16 %v304
        %v412 = vunpack.c.l.b16 %v305
        %v413 = vunpack.c.l.b16 %v306
        %v414 = vunpack.c.l.b16 %v307
        %v415 = vunpack.c.l.b16 %v308
        %v416 = vunpack.c.l.b16 %v325
        %v417 = vpack.c.b16 %v381, %v380
        %v418 = vpack.c.b16 %v383, %v382
        %v419 = vpack.c.b16 %v385, %v384
        %v420 = vpack.c.b16 %v387, %v386
        %v421 = vpack.c.b16 %v389, %v388
        %v422 = vpack.c.b16 %v391, %v390
        %v423 = vpack.c.b16 %v393, %v392
        %v424 = vpack.c.b16 %v395, %v394
        %v425 = vpack.c.b16 %v397, %v396
        %v426 = vpack.c.b16 %v399, %v398
        %v427 = vpack.c.b16 %v401, %v400
        %v428 = vpack.c.b16 %v403, %v402
        %v429 = vpack.c.b16 %v405, %v404
        %v430 = vpack.c.b16 %v407, %v406
        %v431 = vpack.c.b16 %v409, %v408
        %v432 = vpack.c.b16 %v411, %v410
        %v433 = vpack.c.b16 %v413, %v412
        %v434 = vpack.c.b16 %v415, %v414
        %v435 = vpack.c.b16 %v416, %v416
        %vm436 = vsmask.f32 7424
        %v438 = vshrl.u32 %v417, 16
        %v440 = vshll.u32 %v417, 16
        %v442 = vrot.slane %v440, 1
        %v443 = vor.u32 %v438, %v442
        %v445 = vshll.u32 %v418, 16
        %v447 = vrot.slane %v445, 1
        %v448 = vsel %vm436, %v443, %v447
        %v449 = vshrl.u32 %v418, 16
        %v451 = vor.u32 %v449, %v447
        %v453 = vshll.u32 %v419, 16
        %v455 = vrot.slane %v453, 1
        %v456 = vsel %vm436, %v451, %v455
        %v457 = vshrl.u32 %v419, 16
        %v459 = vor.u32 %v457, %v455
        %v461 = vshll.u32 %v420, 16
        %v463 = vrot.slane %v461, 1
        %v464 = vsel %vm436, %v459, %v463
        %v465 = vshrl.u32 %v420, 16
        %v467 = vor.u32 %v465, %v463
        %v469 = vshll.u32 %v421, 16
        %v471 = vrot.slane %v469, 1
        %v472 = vsel %vm436, %v467, %v471
        %v473 = vshrl.u32 %v421, 16
        %v475 = vor.u32 %v473, %v471
        %v477 = vshll.u32 %v422, 16
        %v479 = vrot.slane %v477, 1
        %v480 = vsel %vm436, %v475, %v479
        %v481 = vshrl.u32 %v422, 16
        %v483 = vor.u32 %v481, %v479
        %v485 = vshll.u32 %v423, 16
        %v487 = vrot.slane %v485, 1
        %v488 = vsel %vm436, %v483, %v487
        %v489 = vshrl.u32 %v423, 16
        %v491 = vor.u32 %v489, %v487
        %v493 = vshll.u32 %v424, 16
        %v495 = vrot.slane %v493, 1
        %v496 = vsel %vm436, %v491, %v495
        %v497 = vshrl.u32 %v424, 16
        %v499 = vor.u32 %v497, %v495
        %v501 = vshll.u32 %v425, 16
        %v503 = vrot.slane %v501, 1
        %v504 = vsel %vm436, %v499, %v503
        %v505 = vshrl.u32 %v425, 16
        %v507 = vor.u32 %v505, %v503
        %v509 = vshll.u32 %v426, 16
        %v511 = vrot.slane %v509, 1
        %v512 = vsel %vm436, %v507, %v511
        %v513 = vshrl.u32 %v426, 16
        %v515 = vor.u32 %v513, %v511
        %v517 = vshll.u32 %v427, 16
        %v519 = vrot.slane %v517, 1
        %v520 = vsel %vm436, %v515, %v519
        %v521 = vshrl.u32 %v427, 16
        %v523 = vor.u32 %v521, %v519
        %v525 = vshll.u32 %v428, 16
        %v527 = vrot.slane %v525, 1
        %v528 = vsel %vm436, %v523, %v527
        %v529 = vshrl.u32 %v428, 16
        %v531 = vor.u32 %v529, %v527
        %v533 = vshll.u32 %v429, 16
        %v535 = vrot.slane %v533, 1
        %v536 = vsel %vm436, %v531, %v535
        %v537 = vshrl.u32 %v429, 16
        %v539 = vor.u32 %v537, %v535
        %v541 = vshll.u32 %v430, 16
        %v543 = vrot.slane %v541, 1
        %v544 = vsel %vm436, %v539, %v543
        %v545 = vshrl.u32 %v430, 16
        %v547 = vor.u32 %v545, %v543
        %v549 = vshll.u32 %v431, 16
        %v551 = vrot.slane %v549, 1
        %v552 = vsel %vm436, %v547, %v551
        %v553 = vshrl.u32 %v431, 16
        %v555 = vor.u32 %v553, %v551
        %v557 = vshll.u32 %v432, 16
        %v559 = vrot.slane %v557, 1
        %v560 = vsel %vm436, %v555, %v559
        %v561 = vshrl.u32 %v432, 16
        %v563 = vor.u32 %v561, %v559
        %v565 = vshll.u32 %v433, 16
        %v567 = vrot.slane %v565, 1
        %v568 = vsel %vm436, %v563, %v567
        %v569 = vshrl.u32 %v433, 16
        %v571 = vor.u32 %v569, %v567
        %v573 = vshll.u32 %v434, 16
        %v575 = vrot.slane %v573, 1
        %v576 = vsel %vm436, %v571, %v575
        %v577 = vshrl.u32 %v434, 16
        %v579 = vor.u32 %v577, %v575
        %v581 = vshll.u32 %v435, 16
        %v583 = vrot.slane %v581, 1
        %v584 = vsel %vm436, %v579, %v583
        %v619 = vunpack.c.l.b16 %v327
        %v620 = vunpack.c.l.b16 %v328
        %v621 = vunpack.c.l.b16 %v329
        %v622 = vunpack.c.l.b16 %v330
        %v623 = vunpack.c.l.b16 %v331
        %v624 = vunpack.c.l.b16 %v332
        %v625 = vunpack.c.l.b16 %v333
        %v626 = vunpack.c.l.b16 %v334
        %v627 = vunpack.c.l.b16 %v335
        %v628 = vunpack.c.l.b16 %v336
        %v629 = vunpack.c.l.b16 %v337
        %v630 = vunpack.c.l.b16 %v338
        %v631 = vunpack.c.l.b16 %v339
        %v632 = vunpack.c.l.b16 %v340
        %v633 = vunpack.c.l.b16 %v341
        %v634 = vunpack.c.l.b16 %v342
        %v635 = vpack.c.b16 %v620, %v619
        %v636 = vpack.c.b16 %v622, %v621
        %v637 = vpack.c.b16 %v624, %v623
        %v638 = vpack.c.b16 %v626, %v625
        %v639 = vpack.c.b16 %v628, %v627
        %v640 = vpack.c.b16 %v630, %v629
        %v641 = vpack.c.b16 %v632, %v631
        %v642 = vpack.c.b16 %v634, %v633
        %651 = vmatprep.subr.bf16.mxu0 0
        %652 = vmatpush1.bf16.msra.mxu0 %v635
        %653 = vmatprep.subr.bf16.mxu0 0
        %654 = vmatpush1.bf16.msra.mxu0 %v636
        %655 = vmatprep.subr.bf16.mxu0 0
        %656 = vmatpush1.bf16.msra.mxu0 %v637
        %657 = vmatprep.subr.bf16.mxu0 0
        %658 = vmatpush1.bf16.msra.mxu0 %v638
        %659 = vmatprep.subr.bf16.mxu0 0
        %660 = vmatpush1.bf16.msra.mxu0 %v639
        %661 = vmatprep.subr.bf16.mxu0 0
        %662 = vmatpush1.bf16.msra.mxu0 %v640
        %663 = vmatprep.subr.bf16.mxu0 0
        %664 = vmatpush1.bf16.msra.mxu0 %v641
        %665 = vmatprep.subr.bf16.mxu0 0
        %666 = vmatpush1.bf16.msra.mxu0 %v642
        %667 = vmatprep.subr.bf16.mxu0 0
        %668 = vmatpush1.bf16.msra.mxu0 0
        %669 = vmatprep.subr.bf16.mxu0 0
        %670 = vmatpush1.bf16.msra.mxu0 0
        %671 = vmatprep.subr.bf16.mxu0 0
        %672 = vmatpush1.bf16.msra.mxu0 0
        %673 = vmatprep.subr.bf16.mxu0 0
        %674 = vmatpush1.bf16.msra.mxu0 0
        %675 = vmatprep.subr.bf16.mxu0 0
        %676 = vmatpush1.bf16.msra.mxu0 0
        %677 = vmatprep.subr.bf16.mxu0 0
        %678 = vmatpush1.bf16.msra.mxu0 0
        %679 = vmatprep.subr.bf16.mxu0 0
        %680 = vmatpush1.bf16.msra.mxu0 0
        %681 = vmatprep.subr.bf16.mxu0 0
        %682 = vmatpush1.bf16.msra.mxu0 0
        %683 = vmatprep.mubr.bf16.mxu0 0
        %684 = vmatmul.mubr.bf16.gmra.mrb[0].mxu0 %v448
        %v685 = vpop.f32.mrb[0].mxu0
        %v686 = vadd.f32 0.0, %v685
        %v687 = vpop.f32.mrb[0].mxu0
        %v688 = vpop.f32.mrb[0].mxu0
        %v689 = vadd.f32 0.0, %v688
        %v690 = vpop.f32.mrb[0].mxu0
        %691 = vmatprep.mubr.bf16.mxu0 0
        %692 = vmatmul.mubr.bf16.gmra.mrb[0].mxu0 %v456
        %v693 = vpop.f32.mrb[0].mxu0
        %v694 = vadd.f32 0.0, %v693
        %v695 = vpop.f32.mrb[0].mxu0
        %v696 = vpop.f32.mrb[0].mxu0
        %v697 = vadd.f32 0.0, %v696
        %v698 = vpop.f32.mrb[0].mxu0
        %699 = vmatprep.mubr.bf16.mxu0 0
        %700 = vmatmul.mubr.bf16.gmra.mrb[0].mxu0 %v464
        %v701 = vpop.f32.mrb[0].mxu0
        %v702 = vadd.f32 0.0, %v701
        %v703 = vpop.f32.mrb[0].mxu0
        %v704 = vpop.f32.mrb[0].mxu0
        %v705 = vadd.f32 0.0, %v704
        %v706 = vpop.f32.mrb[0].mxu0
        %707 = vmatprep.mubr.bf16.mxu0 0
        %708 = vmatmul.mubr.bf16.gmra.mrb[0].mxu0 %v472
        %v709 = vpop.f32.mrb[0].mxu0
        %v710 = vadd.f32 0.0, %v709
        %v711 = vpop.f32.mrb[0].mxu0
        %v712 = vpop.f32.mrb[0].mxu0
        %v713 = vadd.f32 0.0, %v712
        %v714 = vpop.f32.mrb[0].mxu0
        %715 = vmatprep.mubr.bf16.mxu0 0
        %716 = vmatmul.mubr.bf16.gmra.mrb[0].mxu0 %v480
        %v717 = vpop.f32.mrb[0].mxu0
        %v718 = vadd.f32 0.0, %v717
        %v719 = vpop.f32.mrb[0].mxu0
        %v720 = vpop.f32.mrb[0].mxu0
        %v721 = vadd.f32 0.0, %v720
        %v722 = vpop.f32.mrb[0].mxu0
        %723 = vmatprep.mubr.bf16.mxu0 0
        %724 = vmatmul.mubr.bf16.gmra.mrb[0].mxu0 %v488
        %v725 = vpop.f32.mrb[0].mxu0
        %v726 = vadd.f32 0.0, %v725
        %v727 = vpop.f32.mrb[0].mxu0
        %v728 = vpop.f32.mrb[0].mxu0
        %v729 = vadd.f32 0.0, %v728
        %v730 = vpop.f32.mrb[0].mxu0
        %731 = vmatprep.mubr.bf16.mxu0 0
        %732 = vmatmul.mubr.bf16.gmra.mrb[0].mxu0 %v496
        %v733 = vpop.f32.mrb[0].mxu0
        %v734 = vadd.f32 0.0, %v733
        %v735 = vpop.f32.mrb[0].mxu0
        %v736 = vpop.f32.mrb[0].mxu0
        %v737 = vadd.f32 0.0, %v736
        %v738 = vpop.f32.mrb[0].mxu0
        %739 = vmatprep.mubr.bf16.mxu0 0
        %740 = vmatmul.mubr.bf16.gmra.mrb[0].mxu0 %v504
        %v741 = vpop.f32.mrb[0].mxu0
        %v742 = vadd.f32 0.0, %v741
        %v743 = vpop.f32.mrb[0].mxu0
        %v744 = vpop.f32.mrb[0].mxu0
        %v745 = vadd.f32 0.0, %v744
        %v746 = vpop.f32.mrb[0].mxu0
        %747 = vmatprep.mubr.bf16.mxu0 0
        %748 = vmatmul.mubr.bf16.gmra.mrb[0].mxu0 %v512
        %v749 = vpop.f32.mrb[0].mxu0
        %v750 = vadd.f32 0.0, %v749
        %v751 = vpop.f32.mrb[0].mxu0
        %v752 = vpop.f32.mrb[0].mxu0
        %v753 = vadd.f32 0.0, %v752
        %v754 = vpop.f32.mrb[0].mxu0
        %755 = vmatprep.mubr.bf16.mxu0 0
        %756 = vmatmul.mubr.bf16.gmra.mrb[0].mxu0 %v520
        %v757 = vpop.f32.mrb[0].mxu0
        %v758 = vadd.f32 0.0, %v757
        %v759 = vpop.f32.mrb[0].mxu0
        %v760 = vpop.f32.mrb[0].mxu0
        %v761 = vadd.f32 0.0, %v760
        %v762 = vpop.f32.mrb[0].mxu0
        %763 = vmatprep.mubr.bf16.mxu0 0
        %764 = vmatmul.mubr.bf16.gmra.mrb[0].mxu0 %v528
        %v765 = vpop.f32.mrb[0].mxu0
        %v766 = vadd.f32 0.0, %v765
        %v767 = vpop.f32.mrb[0].mxu0
        %v768 = vpop.f32.mrb[0].mxu0
        %v769 = vadd.f32 0.0, %v768
        %v770 = vpop.f32.mrb[0].mxu0
        %771 = vmatprep.mubr.bf16.mxu0 0
        %772 = vmatmul.mubr.bf16.gmra.mrb[0].mxu0 %v536
        %v773 = vpop.f32.mrb[0].mxu0
        %v774 = vadd.f32 0.0, %v773
        %v775 = vpop.f32.mrb[0].mxu0
        %v776 = vpop.f32.mrb[0].mxu0
        %v777 = vadd.f32 0.0, %v776
        %v778 = vpop.f32.mrb[0].mxu0
        %779 = vmatprep.mubr.bf16.mxu0 0
        %780 = vmatmul.mubr.bf16.gmra.mrb[0].mxu0 %v544
        %v781 = vpop.f32.mrb[0].mxu0
        %v782 = vadd.f32 0.0, %v781
        %v783 = vpop.f32.mrb[0].mxu0
        %v784 = vpop.f32.mrb[0].mxu0
        %v785 = vadd.f32 0.0, %v784
        %v786 = vpop.f32.mrb[0].mxu0
        %787 = vmatprep.mubr.bf16.mxu0 0
        %788 = vmatmul.mubr.bf16.gmra.mrb[0].mxu0 %v552
        %v789 = vpop.f32.mrb[0].mxu0
        %v790 = vadd.f32 0.0, %v789
        %v791 = vpop.f32.mrb[0].mxu0
        %v792 = vpop.f32.mrb[0].mxu0
        %v793 = vadd.f32 0.0, %v792
        %v794 = vpop.f32.mrb[0].mxu0
        %795 = vmatprep.mubr.bf16.mxu0 0
        %796 = vmatmul.mubr.bf16.gmra.mrb[0].mxu0 %v560
        %v797 = vpop.f32.mrb[0].mxu0
        %v798 = vadd.f32 0.0, %v797
        %v799 = vpop.f32.mrb[0].mxu0
        %v800 = vpop.f32.mrb[0].mxu0
        %v801 = vadd.f32 0.0, %v800
        %v802 = vpop.f32.mrb[0].mxu0
        %803 = vmatprep.mubr.bf16.mxu0 0
        %804 = vmatmul.mubr.bf16.gmra.mrb[0].mxu0 %v568
        %v805 = vpop.f32.mrb[0].mxu0
        %v806 = vadd.f32 0.0, %v805
        %v807 = vpop.f32.mrb[0].mxu0
        %v808 = vpop.f32.mrb[0].mxu0
        %v809 = vadd.f32 0.0, %v808
        %v810 = vpop.f32.mrb[0].mxu0
        %811 = vmatprep.mubr.bf16.mxu0 0
        %812 = vmatmul.mubr.bf16.gmra.mrb[0].mxu0 %v576
        %v813 = vpop.f32.mrb[0].mxu0
        %v814 = vadd.f32 0.0, %v813
        %v815 = vpop.f32.mrb[0].mxu0
        %v816 = vpop.f32.mrb[0].mxu0
        %v817 = vadd.f32 0.0, %v816
        %v818 = vpop.f32.mrb[0].mxu0
        %819 = vmatprep.mubr.bf16.mxu0 0
        %820 = vmatmul.mubr.bf16.gmra.mrb[0].mxu0 %v584
        %v821 = vpop.f32.mrb[0].mxu0
        %v822 = vadd.f32 0.0, %v821
        %v823 = vpop.f32.mrb[0].mxu0
        %v824 = vpop.f32.mrb[0].mxu0
        %v825 = vadd.f32 0.0, %v824
        %v826 = vpop.f32.mrb[0].mxu0
        %827 = vdwg.mxu0
        %v862 = vunpack.c.l.b16 %v309
        %v863 = vunpack.c.l.b16 %v310
        %v864 = vunpack.c.l.b16 %v311
        %v865 = vunpack.c.l.b16 %v312
        %v866 = vunpack.c.l.b16 %v313
        %v867 = vunpack.c.l.b16 %v314
        %v868 = vunpack.c.l.b16 %v315
        %v869 = vunpack.c.l.b16 %v316
        %v870 = vunpack.c.l.b16 %v317
        %v871 = vunpack.c.l.b16 %v318
        %v872 = vunpack.c.l.b16 %v319
        %v873 = vunpack.c.l.b16 %v320
        %v874 = vunpack.c.l.b16 %v321
        %v875 = vunpack.c.l.b16 %v322
        %v876 = vunpack.c.l.b16 %v323
        %v877 = vunpack.c.l.b16 %v324
        %v878 = vpack.c.b16 %v863, %v862
        %v879 = vpack.c.b16 %v865, %v864
        %v880 = vpack.c.b16 %v867, %v866
        %v881 = vpack.c.b16 %v869, %v868
        %v882 = vpack.c.b16 %v871, %v870
        %v883 = vpack.c.b16 %v873, %v872
        %v884 = vpack.c.b16 %v875, %v874
        %v885 = vpack.c.b16 %v877, %v876
        %894 = vmatprep.subr.bf16.mxu0 0
        %895 = vmatpush1.bf16.msra.mxu0 %v878
        %896 = vmatprep.subr.bf16.mxu0 0
        %897 = vmatpush1.bf16.msra.mxu0 %v879
        %898 = vmatprep.subr.bf16.mxu0 0
        %899 = vmatpush1.bf16.msra.mxu0 %v880
        %900 = vmatprep.subr.bf16.mxu0 0
        %901 = vmatpush1.bf16.msra.mxu0 %v881
        %902 = vmatprep.subr.bf16.mxu0 0
        %903 = vmatpush1.bf16.msra.mxu0 %v882
        %904 = vmatprep.subr.bf16.mxu0 0
        %905 = vmatpush1.bf16.msra.mxu0 %v883
        %906 = vmatprep.subr.bf16.mxu0 0
        %907 = vmatpush1.bf16.msra.mxu0 %v884
        %908 = vmatprep.subr.bf16.mxu0 0
        %909 = vmatpush1.bf16.msra.mxu0 %v885
        %910 = vmatprep.subr.bf16.mxu0 0
        %911 = vmatpush1.bf16.msra.mxu0 0
        %912 = vmatprep.subr.bf16.mxu0 0
        %913 = vmatpush1.bf16.msra.mxu0 0
        %914 = vmatprep.subr.bf16.mxu0 0
        %915 = vmatpush1.bf16.msra.mxu0 0
        %916 = vmatprep.subr.bf16.mxu0 0
        %917 = vmatpush1.bf16.msra.mxu0 0
        %918 = vmatprep.subr.bf16.mxu0 0
        %919 = vmatpush1.bf16.msra.mxu0 0
        %920 = vmatprep.subr.bf16.mxu0 0
        %921 = vmatpush1.bf16.msra.mxu0 0
        %922 = vmatprep.subr.bf16.mxu0 0
        %923 = vmatpush1.bf16.msra.mxu0 0
        %924 = vmatprep.subr.bf16.mxu0 0
        %925 = vmatpush1.bf16.msra.mxu0 0
        %926 = vmatprep.mubr.bf16.mxu0 0
        %927 = vmatmul.mubr.bf16.gmra.mrb[0].mxu0 %v417
        %v928 = vpop.f32.mrb[0].mxu0
        %v929 = vadd.f32 %v686, %v928
        %v930 = vpop.f32.mrb[0].mxu0
        %v931 = vpop.f32.mrb[0].mxu0
        %v932 = vadd.f32 %v689, %v931
        %v933 = vpop.f32.mrb[0].mxu0
        %934 = vmatprep.mubr.bf16.mxu0 0
        %935 = vmatmul.mubr.bf16.gmra.mrb[0].mxu0 %v418
        %v936 = vpop.f32.mrb[0].mxu0
        %v937 = vadd.f32 %v694, %v936
        %v938 = vpop.f32.mrb[0].mxu0
        %v939 = vpop.f32.mrb[0].mxu0
        %v940 = vadd.f32 %v697, %v939
        %v941 = vpop.f32.mrb[0].mxu0
        %942 = vmatprep.mubr.bf16.mxu0 0
        %943 = vmatmul.mubr.bf16.gmra.mrb[0].mxu0 %v419
        %v944 = vpop.f32.mrb[0].mxu0
        %v945 = vadd.f32 %v702, %v944
        %v946 = vpop.f32.mrb[0].mxu0
        %v947 = vpop.f32.mrb[0].mxu0
        %v948 = vadd.f32 %v705, %v947
        %v949 = vpop.f32.mrb[0].mxu0
        %950 = vmatprep.mubr.bf16.mxu0 0
        %951 = vmatmul.mubr.bf16.gmra.mrb[0].mxu0 %v420
        %v952 = vpop.f32.mrb[0].mxu0
        %v953 = vadd.f32 %v710, %v952
        %v954 = vpop.f32.mrb[0].mxu0
        %v955 = vpop.f32.mrb[0].mxu0
        %v956 = vadd.f32 %v713, %v955
        %v957 = vpop.f32.mrb[0].mxu0
        %958 = vmatprep.mubr.bf16.mxu0 0
        %959 = vmatmul.mubr.bf16.gmra.mrb[0].mxu0 %v421
        %v960 = vpop.f32.mrb[0].mxu0
        %v961 = vadd.f32 %v718, %v960
        %v962 = vpop.f32.mrb[0].mxu0
        %v963 = vpop.f32.mrb[0].mxu0
        %v964 = vadd.f32 %v721, %v963
        %v965 = vpop.f32.mrb[0].mxu0
        %966 = vmatprep.mubr.bf16.mxu0 0
        %967 = vmatmul.mubr.bf16.gmra.mrb[0].mxu0 %v422
        %v968 = vpop.f32.mrb[0].mxu0
        %v969 = vadd.f32 %v726, %v968
        %v970 = vpop.f32.mrb[0].mxu0
        %v971 = vpop.f32.mrb[0].mxu0
        %v972 = vadd.f32 %v729, %v971
        %v973 = vpop.f32.mrb[0].mxu0
        %974 = vmatprep.mubr.bf16.mxu0 0
        %975 = vmatmul.mubr.bf16.gmra.mrb[0].mxu0 %v423
        %v976 = vpop.f32.mrb[0].mxu0
        %v977 = vadd.f32 %v734, %v976
        %v978 = vpop.f32.mrb[0].mxu0
        %v979 = vpop.f32.mrb[0].mxu0
        %v980 = vadd.f32 %v737, %v979
        %v981 = vpop.f32.mrb[0].mxu0
        %982 = vmatprep.mubr.bf16.mxu0 0
        %983 = vmatmul.mubr.bf16.gmra.mrb[0].mxu0 %v424
        %v984 = vpop.f32.mrb[0].mxu0
        %v985 = vadd.f32 %v742, %v984
        %v986 = vpop.f32.mrb[0].mxu0
        %v987 = vpop.f32.mrb[0].mxu0
        %v988 = vadd.f32 %v745, %v987
        %v989 = vpop.f32.mrb[0].mxu0
        %990 = vmatprep.mubr.bf16.mxu0 0
        %991 = vmatmul.mubr.bf16.gmra.mrb[0].mxu0 %v425
        %v992 = vpop.f32.mrb[0].mxu0
        %v993 = vadd.f32 %v750, %v992
        %v994 = vpop.f32.mrb[0].mxu0
        %v995 = vpop.f32.mrb[0].mxu0
        %v996 = vadd.f32 %v753, %v995
        %v997 = vpop.f32.mrb[0].mxu0
        %998 = vmatprep.mubr.bf16.mxu0 0
        %999 = vmatmul.mubr.bf16.gmra.mrb[0].mxu0 %v426
        %v1000 = vpop.f32.mrb[0].mxu0
        %v1001 = vadd.f32 %v758, %v1000
        %v1002 = vpop.f32.mrb[0].mxu0
        %v1003 = vpop.f32.mrb[0].mxu0
        %v1004 = vadd.f32 %v761, %v1003
        %v1005 = vpop.f32.mrb[0].mxu0
        %1006 = vmatprep.mubr.bf16.mxu0 0
        %1007 = vmatmul.mubr.bf16.gmra.mrb[0].mxu0 %v427
        %v1008 = vpop.f32.mrb[0].mxu0
        %v1009 = vadd.f32 %v766, %v1008
        %v1010 = vpop.f32.mrb[0].mxu0
        %v1011 = vpop.f32.mrb[0].mxu0
        %v1012 = vadd.f32 %v769, %v1011
        %v1013 = vpop.f32.mrb[0].mxu0
        %1014 = vmatprep.mubr.bf16.mxu0 0
        %1015 = vmatmul.mubr.bf16.gmra.mrb[0].mxu0 %v428
        %v1016 = vpop.f32.mrb[0].mxu0
        %v1017 = vadd.f32 %v774, %v1016
        %v1018 = vpop.f32.mrb[0].mxu0
        %v1019 = vpop.f32.mrb[0].mxu0
        %v1020 = vadd.f32 %v777, %v1019
        %v1021 = vpop.f32.mrb[0].mxu0
        %1022 = vmatprep.mubr.bf16.mxu0 0
        %1023 = vmatmul.mubr.bf16.gmra.mrb[0].mxu0 %v429
        %v1024 = vpop.f32.mrb[0].mxu0
        %v1025 = vadd.f32 %v782, %v1024
        %v1026 = vpop.f32.mrb[0].mxu0
        %v1027 = vpop.f32.mrb[0].mxu0
        %v1028 = vadd.f32 %v785, %v1027
        %v1029 = vpop.f32.mrb[0].mxu0
        %1030 = vmatprep.mubr.bf16.mxu0 0
        %1031 = vmatmul.mubr.bf16.gmra.mrb[0].mxu0 %v430
        %v1032 = vpop.f32.mrb[0].mxu0
        %v1033 = vadd.f32 %v790, %v1032
        %v1034 = vpop.f32.mrb[0].mxu0
        %v1035 = vpop.f32.mrb[0].mxu0
        %v1036 = vadd.f32 %v793, %v1035
        %v1037 = vpop.f32.mrb[0].mxu0
        %1038 = vmatprep.mubr.bf16.mxu0 0
        %1039 = vmatmul.mubr.bf16.gmra.mrb[0].mxu0 %v431
        %v1040 = vpop.f32.mrb[0].mxu0
        %v1041 = vadd.f32 %v798, %v1040
        %v1042 = vpop.f32.mrb[0].mxu0
        %v1043 = vpop.f32.mrb[0].mxu0
        %v1044 = vadd.f32 %v801, %v1043
        %v1045 = vpop.f32.mrb[0].mxu0
        %1046 = vmatprep.mubr.bf16.mxu0 0
        %1047 = vmatmul.mubr.bf16.gmra.mrb[0].mxu0 %v432
        %v1048 = vpop.f32.mrb[0].mxu0
        %v1049 = vadd.f32 %v806, %v1048
        %v1050 = vpop.f32.mrb[0].mxu0
        %v1051 = vpop.f32.mrb[0].mxu0
        %v1052 = vadd.f32 %v809, %v1051
        %v1053 = vpop.f32.mrb[0].mxu0
        %1054 = vmatprep.mubr.bf16.mxu0 0
        %1055 = vmatmul.mubr.bf16.gmra.mrb[0].mxu0 %v433
        %v1056 = vpop.f32.mrb[0].mxu0
        %v1057 = vadd.f32 %v814, %v1056
        %v1058 = vpop.f32.mrb[0].mxu0
        %v1059 = vpop.f32.mrb[0].mxu0
        %v1060 = vadd.f32 %v817, %v1059
        %v1061 = vpop.f32.mrb[0].mxu0
        %1062 = vmatprep.mubr.bf16.mxu0 0
        %1063 = vmatmul.mubr.bf16.gmra.mrb[0].mxu0 %v434
        %v1064 = vpop.f32.mrb[0].mxu0
        %v1065 = vadd.f32 %v822, %v1064
        %v1066 = vpop.f32.mrb[0].mxu0
        %v1067 = vpop.f32.mrb[0].mxu0
        %v1068 = vadd.f32 %v825, %v1067
        %v1069 = vpop.f32.mrb[0].mxu0
        %1070 = vdwg.mxu0
        %v1071 = vld [vmem:[%s237] sm:$0xe]
        %s1072 = scalar_lea.vmem [#allocation6], 128
        %v1073 = vld [vmem:[%s1072] sm:$0xf]
        %v1074 = vld [vmem:[%s1072 + $0x4] sm:$0xf]
        %v1075 = vld [vmem:[%s1072 + $0x8] sm:$0xf]
        %v1076 = vld [vmem:[%s1072 + $0xc] sm:$0xf]
        %v1077 = vld [vmem:[%s1072 + $0x10] sm:$0xf]
        %v1078 = vld [vmem:[%s1072 + $0x14] sm:$0xf]
        %v1079 = vld [vmem:[%s1072 + $0x18] sm:$0xf]
        %v1080 = vld [vmem:[%s1072 + $0x1c] sm:$0xf]
        %v1081 = vld [vmem:[%s1072 + $0x20] sm:$0xf]
        %v1082 = vld [vmem:[%s1072 + $0x24] sm:$0xf]
        %v1083 = vld [vmem:[%s1072 + $0x28] sm:$0xf]
        %v1084 = vld [vmem:[%s1072 + $0x2c] sm:$0xf]
        %v1085 = vld [vmem:[%s1072 + $0x30] sm:$0xf]
        %v1086 = vld [vmem:[%s1072 + $0x34] sm:$0xf]
        %v1087 = vld [vmem:[%s1072 + $0x38] sm:$0xf]
        %v1088 = vld [vmem:[%s1072 + $0x3c] sm:$0xf]
        %v1090 = vunpack.c.l.b16 %v1071
        %v1091 = vpack.c.b16 %v381, %v1090
        %vm1092 = vcmask 1046528
        %v1093 = vrot.slane %v1091, 1
        %v1094 = vrot.slane %v418, 1
        %v1095 = vsel %vm1092, %v1093, %v1094
        %v1096 = vrot.slane %v419, 1
        %v1097 = vsel %vm1092, %v1094, %v1096
        %v1098 = vrot.slane %v420, 1
        %v1099 = vsel %vm1092, %v1096, %v1098
        %v1100 = vrot.slane %v421, 1
        %v1101 = vsel %vm1092, %v1098, %v1100
        %v1102 = vrot.slane %v422, 1
        %v1103 = vsel %vm1092, %v1100, %v1102
        %v1104 = vrot.slane %v423, 1
        %v1105 = vsel %vm1092, %v1102, %v1104
        %v1106 = vrot.slane %v424, 1
        %v1107 = vsel %vm1092, %v1104, %v1106
        %v1108 = vrot.slane %v425, 1
        %v1109 = vsel %vm1092, %v1106, %v1108
        %v1110 = vrot.slane %v426, 1
        %v1111 = vsel %vm1092, %v1108, %v1110
        %v1112 = vrot.slane %v427, 1
        %v1113 = vsel %vm1092, %v1110, %v1112
        %v1114 = vrot.slane %v428, 1
        %v1115 = vsel %vm1092, %v1112, %v1114
        %v1116 = vrot.slane %v429, 1
        %v1117 = vsel %vm1092, %v1114, %v1116
        %v1118 = vrot.slane %v430, 1
        %v1119 = vsel %vm1092, %v1116, %v1118
        %v1120 = vrot.slane %v431, 1
        %v1121 = vsel %vm1092, %v1118, %v1120
        %v1122 = vrot.slane %v432, 1
        %v1123 = vsel %vm1092, %v1120, %v1122
        %v1124 = vrot.slane %v433, 1
        %v1125 = vsel %vm1092, %v1122, %v1124
        %v1126 = vrot.slane %v434, 1
        %v1127 = vsel %vm1092, %v1124, %v1126
        %v1128 = vrot.slane %v435, 1
        %v1129 = vsel %vm1092, %v1126, %v1128
        %v1164 = vunpack.c.l.b16 %v1073
        %v1165 = vunpack.c.l.b16 %v1074
        %v1166 = vunpack.c.l.b16 %v1075
        %v1167 = vunpack.c.l.b16 %v1076
        %v1168 = vunpack.c.l.b16 %v1077
        %v1169 = vunpack.c.l.b16 %v1078
        %v1170 = vunpack.c.l.b16 %v1079
        %v1171 = vunpack.c.l.b16 %v1080
        %v1172 = vunpack.c.l.b16 %v1081
        %v1173 = vunpack.c.l.b16 %v1082
        %v1174 = vunpack.c.l.b16 %v1083
        %v1175 = vunpack.c.l.b16 %v1084
        %v1176 = vunpack.c.l.b16 %v1085
        %v1177 = vunpack.c.l.b16 %v1086
        %v1178 = vunpack.c.l.b16 %v1087
        %v1179 = vunpack.c.l.b16 %v1088
        %v1180 = vpack.c.b16 %v1165, %v1164
        %v1181 = vpack.c.b16 %v1167, %v1166
        %v1182 = vpack.c.b16 %v1169, %v1168
        %v1183 = vpack.c.b16 %v1171, %v1170
        %v1184 = vpack.c.b16 %v1173, %v1172
        %v1185 = vpack.c.b16 %v1175, %v1174
        %v1186 = vpack.c.b16 %v1177, %v1176
        %v1187 = vpack.c.b16 %v1179, %v1178
        %1196 = vmatprep.subr.bf16.mxu0 0
        %1197 = vmatpush1.bf16.msra.mxu0 %v1180
        %1198 = vmatprep.subr.bf16.mxu0 0
        %1199 = vmatpush1.bf16.msra.mxu0 %v1181
        %1200 = vmatprep.subr.bf16.mxu0 0
        %1201 = vmatpush1.bf16.msra.mxu0 %v1182
        %1202 = vmatprep.subr.bf16.mxu0 0
        %1203 = vmatpush1.bf16.msra.mxu0 %v1183
        %1204 = vmatprep.subr.bf16.mxu0 0
        %1205 = vmatpush1.bf16.msra.mxu0 %v1184
        %1206 = vmatprep.subr.bf16.mxu0 0
        %1207 = vmatpush1.bf16.msra.mxu0 %v1185
        %1208 = vmatprep.subr.bf16.mxu0 0
        %1209 = vmatpush1.bf16.msra.mxu0 %v1186
        %1210 = vmatprep.subr.bf16.mxu0 0
        %1211 = vmatpush1.bf16.msra.mxu0 %v1187
        %1212 = vmatprep.subr.bf16.mxu0 0
        %1213 = vmatpush1.bf16.msra.mxu0 0
        %1214 = vmatprep.subr.bf16.mxu0 0
        %1215 = vmatpush1.bf16.msra.mxu0 0
        %1216 = vmatprep.subr.bf16.mxu0 0
        %1217 = vmatpush1.bf16.msra.mxu0 0
        %1218 = vmatprep.subr.bf16.mxu0 0
        %1219 = vmatpush1.bf16.msra.mxu0 0
        %1220 = vmatprep.subr.bf16.mxu0 0
        %1221 = vmatpush1.bf16.msra.mxu0 0
        %1222 = vmatprep.subr.bf16.mxu0 0
        %1223 = vmatpush1.bf16.msra.mxu0 0
        %1224 = vmatprep.subr.bf16.mxu0 0
        %1225 = vmatpush1.bf16.msra.mxu0 0
        %1226 = vmatprep.subr.bf16.mxu0 0
        %1227 = vmatpush1.bf16.msra.mxu0 0
        %1228 = vmatprep.mubr.bf16.mxu0 0
        %1229 = vmatmul.mubr.bf16.gmra.mrb[0].mxu0 %v1095
        %v1230 = vpop.f32.mrb[0].mxu0
        %v1231 = vadd.f32 0.0, %v1230
        %v1232 = vpop.f32.mrb[0].mxu0
        %v1233 = vpop.f32.mrb[0].mxu0
        %v1234 = vadd.f32 0.0, %v1233
        %v1235 = vpop.f32.mrb[0].mxu0
        %1236 = vmatprep.mubr.bf16.mxu0 0
        %1237 = vmatmul.mubr.bf16.gmra.mrb[0].mxu0 %v1097
        %v1238 = vpop.f32.mrb[0].mxu0
        %v1239 = vadd.f32 0.0, %v1238
        %v1240 = vpop.f32.mrb[0].mxu0
        %v1241 = vpop.f32.mrb[0].mxu0
        %v1242 = vadd.f32 0.0, %v1241
        %v1243 = vpop.f32.mrb[0].mxu0
        %1244 = vmatprep.mubr.bf16.mxu0 0
        %1245 = vmatmul.mubr.bf16.gmra.mrb[0].mxu0 %v1099
        %v1246 = vpop.f32.mrb[0].mxu0
        %v1247 = vadd.f32 0.0, %v1246
        %v1248 = vpop.f32.mrb[0].mxu0
        %v1249 = vpop.f32.mrb[0].mxu0
        %v1250 = vadd.f32 0.0, %v1249
        %v1251 = vpop.f32.mrb[0].mxu0
        %1252 = vmatprep.mubr.bf16.mxu0 0
        %1253 = vmatmul.mubr.bf16.gmra.mrb[0].mxu0 %v1101
        %v1254 = vpop.f32.mrb[0].mxu0
        %v1255 = vadd.f32 0.0, %v1254
        %v1256 = vpop.f32.mrb[0].mxu0
        %v1257 = vpop.f32.mrb[0].mxu0
        %v1258 = vadd.f32 0.0, %v1257
        %v1259 = vpop.f32.mrb[0].mxu0
        %1260 = vmatprep.mubr.bf16.mxu0 0
        %1261 = vmatmul.mubr.bf16.gmra.mrb[0].mxu0 %v1103
        %v1262 = vpop.f32.mrb[0].mxu0
        %v1263 = vadd.f32 0.0, %v1262
        %v1264 = vpop.f32.mrb[0].mxu0
        %v1265 = vpop.f32.mrb[0].mxu0
        %v1266 = vadd.f32 0.0, %v1265
        %v1267 = vpop.f32.mrb[0].mxu0
        %1268 = vmatprep.mubr.bf16.mxu0 0
        %1269 = vmatmul.mubr.bf16.gmra.mrb[0].mxu0 %v1105
        %v1270 = vpop.f32.mrb[0].mxu0
        %v1271 = vadd.f32 0.0, %v1270
        %v1272 = vpop.f32.mrb[0].mxu0
        %v1273 = vpop.f32.mrb[0].mxu0
        %v1274 = vadd.f32 0.0, %v1273
        %v1275 = vpop.f32.mrb[0].mxu0
        %1276 = vmatprep.mubr.bf16.mxu0 0
        %1277 = vmatmul.mubr.bf16.gmra.mrb[0].mxu0 %v1107
        %v1278 = vpop.f32.mrb[0].mxu0
        %v1279 = vadd.f32 0.0, %v1278
        %v1280 = vpop.f32.mrb[0].mxu0
        %v1281 = vpop.f32.mrb[0].mxu0
        %v1282 = vadd.f32 0.0, %v1281
        %v1283 = vpop.f32.mrb[0].mxu0
        %1284 = vmatprep.mubr.bf16.mxu0 0
        %1285 = vmatmul.mubr.bf16.gmra.mrb[0].mxu0 %v1109
        %v1286 = vpop.f32.mrb[0].mxu0
        %v1287 = vadd.f32 0.0, %v1286
        %v1288 = vpop.f32.mrb[0].mxu0
        %v1289 = vpop.f32.mrb[0].mxu0
        %v1290 = vadd.f32 0.0, %v1289
        %v1291 = vpop.f32.mrb[0].mxu0
        %1292 = vmatprep.mubr.bf16.mxu0 0
        %1293 = vmatmul.mubr.bf16.gmra.mrb[0].mxu0 %v1111
        %v1294 = vpop.f32.mrb[0].mxu0
        %v1295 = vadd.f32 0.0, %v1294
        %v1296 = vpop.f32.mrb[0].mxu0
        %v1297 = vpop.f32.mrb[0].mxu0
        %v1298 = vadd.f32 0.0, %v1297
        %v1299 = vpop.f32.mrb[0].mxu0
        %1300 = vmatprep.mubr.bf16.mxu0 0
        %1301 = vmatmul.mubr.bf16.gmra.mrb[0].mxu0 %v1113
        %v1302 = vpop.f32.mrb[0].mxu0
        %v1303 = vadd.f32 0.0, %v1302
        %v1304 = vpop.f32.mrb[0].mxu0
        %v1305 = vpop.f32.mrb[0].mxu0
        %v1306 = vadd.f32 0.0, %v1305
        %v1307 = vpop.f32.mrb[0].mxu0
        %1308 = vmatprep.mubr.bf16.mxu0 0
        %1309 = vmatmul.mubr.bf16.gmra.mrb[0].mxu0 %v1115
        %v1310 = vpop.f32.mrb[0].mxu0
        %v1311 = vadd.f32 0.0, %v1310
        %v1312 = vpop.f32.mrb[0].mxu0
        %v1313 = vpop.f32.mrb[0].mxu0
        %v1314 = vadd.f32 0.0, %v1313
        %v1315 = vpop.f32.mrb[0].mxu0
        %1316 = vmatprep.mubr.bf16.mxu0 0
        %1317 = vmatmul.mubr.bf16.gmra.mrb[0].mxu0 %v1117
        %v1318 = vpop.f32.mrb[0].mxu0
        %v1319 = vadd.f32 0.0, %v1318
        %v1320 = vpop.f32.mrb[0].mxu0
        %v1321 = vpop.f32.mrb[0].mxu0
        %v1322 = vadd.f32 0.0, %v1321
        %v1323 = vpop.f32.mrb[0].mxu0
        %1324 = vmatprep.mubr.bf16.mxu0 0
        %1325 = vmatmul.mubr.bf16.gmra.mrb[0].mxu0 %v1119
        %v1326 = vpop.f32.mrb[0].mxu0
        %v1327 = vadd.f32 0.0, %v1326
        %v1328 = vpop.f32.mrb[0].mxu0
        %v1329 = vpop.f32.mrb[0].mxu0
        %v1330 = vadd.f32 0.0, %v1329
        %v1331 = vpop.f32.mrb[0].mxu0
        %1332 = vmatprep.mubr.bf16.mxu0 0
        %1333 = vmatmul.mubr.bf16.gmra.mrb[0].mxu0 %v1121
        %v1334 = vpop.f32.mrb[0].mxu0
        %v1335 = vadd.f32 0.0, %v1334
        %v1336 = vpop.f32.mrb[0].mxu0
        %v1337 = vpop.f32.mrb[0].mxu0
        %v1338 = vadd.f32 0.0, %v1337
        %v1339 = vpop.f32.mrb[0].mxu0
        %1340 = vmatprep.mubr.bf16.mxu0 0
        %1341 = vmatmul.mubr.bf16.gmra.mrb[0].mxu0 %v1123
        %v1342 = vpop.f32.mrb[0].mxu0
        %v1343 = vadd.f32 0.0, %v1342
        %v1344 = vpop.f32.mrb[0].mxu0
        %v1345 = vpop.f32.mrb[0].mxu0
        %v1346 = vadd.f32 0.0, %v1345
        %v1347 = vpop.f32.mrb[0].mxu0
        %1348 = vmatprep.mubr.bf16.mxu0 0
        %1349 = vmatmul.mubr.bf16.gmra.mrb[0].mxu0 %v1125
        %v1350 = vpop.f32.mrb[0].mxu0
        %v1351 = vadd.f32 0.0, %v1350
        %v1352 = vpop.f32.mrb[0].mxu0
        %v1353 = vpop.f32.mrb[0].mxu0
        %v1354 = vadd.f32 0.0, %v1353
        %v1355 = vpop.f32.mrb[0].mxu0
        %1356 = vmatprep.mubr.bf16.mxu0 0
        %1357 = vmatmul.mubr.bf16.gmra.mrb[0].mxu0 %v1127
        %v1358 = vpop.f32.mrb[0].mxu0
        %v1359 = vadd.f32 0.0, %v1358
        %v1360 = vpop.f32.mrb[0].mxu0
        %v1361 = vpop.f32.mrb[0].mxu0
        %v1362 = vadd.f32 0.0, %v1361
        %v1363 = vpop.f32.mrb[0].mxu0
        %1364 = vmatprep.mubr.bf16.mxu0 0
        %1365 = vmatmul.mubr.bf16.gmra.mrb[0].mxu0 %v1129
        %v1366 = vpop.f32.mrb[0].mxu0
        %v1367 = vadd.f32 0.0, %v1366
        %v1368 = vpop.f32.mrb[0].mxu0
        %v1369 = vpop.f32.mrb[0].mxu0
        %v1370 = vadd.f32 0.0, %v1369
        %v1371 = vpop.f32.mrb[0].mxu0
        %1372 = vdwg.mxu0
        %v1373 = vadd.f32 %v929, %v1231
        %v1374 = vadd.f32 %v932, %v1234
        %v1375 = vadd.f32 %v937, %v1239
        %v1376 = vadd.f32 %v940, %v1242
        %v1377 = vadd.f32 %v945, %v1247
        %v1378 = vadd.f32 %v948, %v1250
        %v1379 = vadd.f32 %v953, %v1255
        %v1380 = vadd.f32 %v956, %v1258
        %v1381 = vadd.f32 %v961, %v1263
        %v1382 = vadd.f32 %v964, %v1266
        %v1383 = vadd.f32 %v969, %v1271
        %v1384 = vadd.f32 %v972, %v1274
        %v1385 = vadd.f32 %v977, %v1279
        %v1386 = vadd.f32 %v980, %v1282
        %v1387 = vadd.f32 %v985, %v1287
        %v1388 = vadd.f32 %v988, %v1290
        %v1389 = vadd.f32 %v993, %v1295
        %v1390 = vadd.f32 %v996, %v1298
        %v1391 = vadd.f32 %v1001, %v1303
        %v1392 = vadd.f32 %v1004, %v1306
        %v1393 = vadd.f32 %v1009, %v1311
        %v1394 = vadd.f32 %v1012, %v1314
        %v1395 = vadd.f32 %v1017, %v1319
        %v1396 = vadd.f32 %v1020, %v1322
        %v1397 = vadd.f32 %v1025, %v1327
        %v1398 = vadd.f32 %v1028, %v1330
        %v1399 = vadd.f32 %v1033, %v1335
        %v1400 = vadd.f32 %v1036, %v1338
        %v1401 = vadd.f32 %v1041, %v1343
        %v1402 = vadd.f32 %v1044, %v1346
        %v1403 = vadd.f32 %v1049, %v1351
        %v1404 = vadd.f32 %v1052, %v1354
        %v1405 = vadd.f32 %v1057, %v1359
        %v1406 = vadd.f32 %v1060, %v1362
        %v1407 = vadd.f32 %v1065, %v1367
        %v1408 = vadd.f32 %v1068, %v1370
        %v1409 = vld [vmem:[%s237 + $0x8] sm:$0xe]
        %v1410 = vld [vmem:[%s237 + $0xc] sm:$0xf]
        %v1411 = vld [vmem:[%s237 + $0x10] sm:$0xf]
        %v1412 = vld [vmem:[%s237 + $0x14] sm:$0xf]
        %v1413 = vld [vmem:[%s237 + $0x18] sm:$0xf]
        %v1414 = vld [vmem:[%s237 + $0x1c] sm:$0xf]
        %v1415 = vld [vmem:[%s237 + $0x20] sm:$0xf]
        %v1416 = vld [vmem:[%s237 + $0x24] sm:$0xf]
        %v1417 = vld [vmem:[%s237 + $0x28] sm:$0xf]
        %v1418 = vld [vmem:[%s237 + $0x2c] sm:$0xf]
        %v1419 = vld [vmem:[%s237 + $0x30] sm:$0xf]
        %v1420 = vld [vmem:[%s237 + $0x34] sm:$0xf]
        %v1421 = vld [vmem:[%s237 + $0x38] sm:$0xf]
        %v1422 = vld [vmem:[%s237 + $0x3c] sm:$0xf]
        %v1423 = vld [vmem:[%s237 + $0x40] sm:$0xf]
        %v1424 = vld [vmem:[%s237 + $0x44] sm:$0xf]
        %v1425 = vld [vmem:[%s237 + $0x48] sm:$0xf]
        %v1426 = vld [vmem:[%s237 + $0x4c] sm:$0xf]
        %v1427 = vld [vmem:[%s237 + $0x50] sm:$0xf]
        %v1428 = vld [vmem:[%s237 + $0x54] sm:$0xf]
        %v1429 = vld [vmem:[%s237 + $0x58] sm:$0xf]
        %v1430 = vld [vmem:[%s237 + $0x5c] sm:$0xf]
        %v1431 = vld [vmem:[%s237 + $0x60] sm:$0xf]
        %v1432 = vld [vmem:[%s237 + $0x64] sm:$0xf]
        %v1433 = vld [vmem:[%s237 + $0x68] sm:$0xf]
        %v1434 = vld [vmem:[%s237 + $0x6c] sm:$0xf]
        %v1435 = vld [vmem:[%s237 + $0x70] sm:$0xf]
        %v1436 = vld [vmem:[%s237 + $0x74] sm:$0xf]
        %v1437 = vld [vmem:[%s237 + $0x78] sm:$0xf]
        %v1438 = vld [vmem:[%s237 + $0x7c] sm:$0xf]
        %v1439 = vld [vmem:[%s237 + $0x80] sm:$0xf]
        %v1440 = vld [vmem:[%s237 + $0x84] sm:$0xf]
        %v1441 = vld [vmem:[%s237 + $0x88] sm:$0xf]
        %v1442 = vld [vmem:[%s237 + $0x8c] sm:$0xf]
        %v1443 = vld [vmem:[%s237 + $0x90] sm:$0xf]
        %v1444 = vld [vmem:[%s237 + $0x94] sm:$0xf]
        %v1445 = vld [vmem:[%s237 + $0x98] sm:$0x1]
        %s1446 = scalar_lea.vmem [#allocation6], 192
        %v1447 = vld [vmem:[%s1446] sm:$0xf]
        %v1448 = vld [vmem:[%s1446 + $0x4] sm:$0xf]
        %v1449 = vld [vmem:[%s1446 + $0x8] sm:$0xf]
        %v1450 = vld [vmem:[%s1446 + $0xc] sm:$0xf]
        %v1451 = vld [vmem:[%s1446 + $0x10] sm:$0xf]
        %v1452 = vld [vmem:[%s1446 + $0x14] sm:$0xf]
        %v1453 = vld [vmem:[%s1446 + $0x18] sm:$0xf]
        %v1454 = vld [vmem:[%s1446 + $0x1c] sm:$0xf]
        %v1455 = vld [vmem:[%s1446 + $0x20] sm:$0xf]
        %v1456 = vld [vmem:[%s1446 + $0x24] sm:$0xf]
        %v1457 = vld [vmem:[%s1446 + $0x28] sm:$0xf]
        %v1458 = vld [vmem:[%s1446 + $0x2c] sm:$0xf]
        %v1459 = vld [vmem:[%s1446 + $0x30] sm:$0xf]
        %v1460 = vld [vmem:[%s1446 + $0x34] sm:$0xf]
        %v1461 = vld [vmem:[%s1446 + $0x38] sm:$0xf]
        %v1462 = vld [vmem:[%s1446 + $0x3c] sm:$0xf]
        %v1500 = vunpack.c.l.b16 %v1409
        %v1501 = vunpack.c.l.b16 %v1410
        %v1502 = vunpack.c.l.b16 %v1411
        %v1503 = vunpack.c.l.b16 %v1412
        %v1504 = vunpack.c.l.b16 %v1413
        %v1505 = vunpack.c.l.b16 %v1414
        %v1506 = vunpack.c.l.b16 %v1415
        %v1507 = vunpack.c.l.b16 %v1416
        %v1508 = vunpack.c.l.b16 %v1417
        %v1509 = vunpack.c.l.b16 %v1418
        %v1510 = vunpack.c.l.b16 %v1419
        %v1511 = vunpack.c.l.b16 %v1420
        %v1512 = vunpack.c.l.b16 %v1421
        %v1513 = vunpack.c.l.b16 %v1422
        %v1514 = vunpack.c.l.b16 %v1423
        %v1515 = vunpack.c.l.b16 %v1424
        %v1516 = vunpack.c.l.b16 %v1425
        %v1517 = vunpack.c.l.b16 %v1426
        %v1518 = vunpack.c.l.b16 %v1427
        %v1519 = vunpack.c.l.b16 %v1428
        %v1520 = vunpack.c.l.b16 %v1429
        %v1521 = vunpack.c.l.b16 %v1430
        %v1522 = vunpack.c.l.b16 %v1431
        %v1523 = vunpack.c.l.b16 %v1432
        %v1524 = vunpack.c.l.b16 %v1433
        %v1525 = vunpack.c.l.b16 %v1434
        %v1526 = vunpack.c.l.b16 %v1435
        %v1527 = vunpack.c.l.b16 %v1436
        %v1528 = vunpack.c.l.b16 %v1437
        %v1529 = vunpack.c.l.b16 %v1438
        %v1530 = vunpack.c.l.b16 %v1439
        %v1531 = vunpack.c.l.b16 %v1440
        %v1532 = vunpack.c.l.b16 %v1441
        %v1533 = vunpack.c.l.b16 %v1442
        %v1534 = vunpack.c.l.b16 %v1443
        %v1535 = vunpack.c.l.b16 %v1444
        %v1536 = vunpack.c.l.b16 %v1445
        %v1537 = vpack.c.b16 %v1501, %v1500
        %v1538 = vpack.c.b16 %v1503, %v1502
        %v1539 = vpack.c.b16 %v1505, %v1504
        %v1540 = vpack.c.b16 %v1507, %v1506
        %v1541 = vpack.c.b16 %v1509, %v1508
        %v1542 = vpack.c.b16 %v1511, %v1510
        %v1543 = vpack.c.b16 %v1513, %v1512
        %v1544 = vpack.c.b16 %v1515, %v1514
        %v1545 = vpack.c.b16 %v1517, %v1516
        %v1546 = vpack.c.b16 %v1519, %v1518
        %v1547 = vpack.c.b16 %v1521, %v1520
        %v1548 = vpack.c.b16 %v1523, %v1522
        %v1549 = vpack.c.b16 %v1525, %v1524
        %v1550 = vpack.c.b16 %v1527, %v1526
        %v1551 = vpack.c.b16 %v1529, %v1528
        %v1552 = vpack.c.b16 %v1531, %v1530
        %v1553 = vpack.c.b16 %v1533, %v1532
        %v1554 = vpack.c.b16 %v1535, %v1534
        %v1555 = vpack.c.b16 %v1536, %v1536
        %v1556 = vrot.slane %v1537, 1
        %v1557 = vrot.slane %v1538, 1
        %v1558 = vsel %vm1092, %v1556, %v1557
        %v1559 = vrot.slane %v1539, 1
        %v1560 = vsel %vm1092, %v1557, %v1559
        %v1561 = vrot.slane %v1540, 1
        %v1562 = vsel %vm1092, %v1559, %v1561
        %v1563 = vrot.slane %v1541, 1
        %v1564 = vsel %vm1092, %v1561, %v1563
        %v1565 = vrot.slane %v1542, 1
        %v1566 = vsel %vm1092, %v1563, %v1565
        %v1567 = vrot.slane %v1543, 1
        %v1568 = vsel %vm1092, %v1565, %v1567
        %v1569 = vrot.slane %v1544, 1
        %v1570 = vsel %vm1092, %v1567, %v1569
        %v1571 = vrot.slane %v1545, 1
        %v1572 = vsel %vm1092, %v1569, %v1571
        %v1573 = vrot.slane %v1546, 1
        %v1574 = vsel %vm1092, %v1571, %v1573
        %v1575 = vrot.slane %v1547, 1
        %v1576 = vsel %vm1092, %v1573, %v1575
        %v1577 = vrot.slane %v1548, 1
        %v1578 = vsel %vm1092, %v1575, %v1577
        %v1579 = vrot.slane %v1549, 1
        %v1580 = vsel %vm1092, %v1577, %v1579
        %v1581 = vrot.slane %v1550, 1
        %v1582 = vsel %vm1092, %v1579, %v1581
        %v1583 = vrot.slane %v1551, 1
        %v1584 = vsel %vm1092, %v1581, %v1583
        %v1585 = vrot.slane %v1552, 1
        %v1586 = vsel %vm1092, %v1583, %v1585
        %v1587 = vrot.slane %v1553, 1
        %v1588 = vsel %vm1092, %v1585, %v1587
        %v1589 = vrot.slane %v1554, 1
        %v1590 = vsel %vm1092, %v1587, %v1589
        %v1591 = vrot.slane %v1555, 1
        %v1592 = vsel %vm1092, %v1589, %v1591
        %v1627 = vunpack.c.l.b16 %v1447
        %v1628 = vunpack.c.l.b16 %v1448
        %v1629 = vunpack.c.l.b16 %v1449
        %v1630 = vunpack.c.l.b16 %v1450
        %v1631 = vunpack.c.l.b16 %v1451
        %v1632 = vunpack.c.l.b16 %v1452
        %v1633 = vunpack.c.l.b16 %v1453
        %v1634 = vunpack.c.l.b16 %v1454
        %v1635 = vunpack.c.l.b16 %v1455
        %v1636 = vunpack.c.l.b16 %v1456
        %v1637 = vunpack.c.l.b16 %v1457
        %v1638 = vunpack.c.l.b16 %v1458
        %v1639 = vunpack.c.l.b16 %v1459
        %v1640 = vunpack.c.l.b16 %v1460
        %v1641 = vunpack.c.l.b16 %v1461
        %v1642 = vunpack.c.l.b16 %v1462
        %v1643 = vpack.c.b16 %v1628, %v1627
        %v1644 = vpack.c.b16 %v1630, %v1629
        %v1645 = vpack.c.b16 %v1632, %v1631
        %v1646 = vpack.c.b16 %v1634, %v1633
        %v1647 = vpack.c.b16 %v1636, %v1635
        %v1648 = vpack.c.b16 %v1638, %v1637
        %v1649 = vpack.c.b16 %v1640, %v1639
        %v1650 = vpack.c.b16 %v1642, %v1641
        %1659 = vmatprep.subr.bf16.mxu0 0
        %1660 = vmatpush1.bf16.msra.mxu0 %v1643
        %1661 = vmatprep.subr.bf16.mxu0 0
        %1662 = vmatpush1.bf16.msra.mxu0 %v1644
        %1663 = vmatprep.subr.bf16.mxu0 0
        %1664 = vmatpush1.bf16.msra.mxu0 %v1645
        %1665 = vmatprep.subr.bf16.mxu0 0
        %1666 = vmatpush1.bf16.msra.mxu0 %v1646
        %1667 = vmatprep.subr.bf16.mxu0 0
        %1668 = vmatpush1.bf16.msra.mxu0 %v1647
        %1669 = vmatprep.subr.bf16.mxu0 0
        %1670 = vmatpush1.bf16.msra.mxu0 %v1648
        %1671 = vmatprep.subr.bf16.mxu0 0
        %1672 = vmatpush1.bf16.msra.mxu0 %v1649
        %1673 = vmatprep.subr.bf16.mxu0 0
        %1674 = vmatpush1.bf16.msra.mxu0 %v1650
        %1675 = vmatprep.subr.bf16.mxu0 0
        %1676 = vmatpush1.bf16.msra.mxu0 0
        %1677 = vmatprep.subr.bf16.mxu0 0
        %1678 = vmatpush1.bf16.msra.mxu0 0
        %1679 = vmatprep.subr.bf16.mxu0 0
        %1680 = vmatpush1.bf16.msra.mxu0 0
        %1681 = vmatprep.subr.bf16.mxu0 0
        %1682 = vmatpush1.bf16.msra.mxu0 0
        %1683 = vmatprep.subr.bf16.mxu0 0
        %1684 = vmatpush1.bf16.msra.mxu0 0
        %1685 = vmatprep.subr.bf16.mxu0 0
        %1686 = vmatpush1.bf16.msra.mxu0 0
        %1687 = vmatprep.subr.bf16.mxu0 0
        %1688 = vmatpush1.bf16.msra.mxu0 0
        %1689 = vmatprep.subr.bf16.mxu0 0
        %1690 = vmatpush1.bf16.msra.mxu0 0
        %1691 = vmatprep.mubr.bf16.mxu0 0
        %1692 = vmatmul.mubr.bf16.gmra.mrb[0].mxu0 %v1558
        %v1693 = vpop.f32.mrb[0].mxu0
        %v1694 = vadd.f32 0.0, %v1693
        %v1695 = vpop.f32.mrb[0].mxu0
        %v1696 = vpop.f32.mrb[0].mxu0
        %v1697 = vadd.f32 0.0, %v1696
        %v1698 = vpop.f32.mrb[0].mxu0
        %1699 = vmatprep.mubr.bf16.mxu0 0
        %1700 = vmatmul.mubr.bf16.gmra.mrb[0].mxu0 %v1560
        %v1701 = vpop.f32.mrb[0].mxu0
        %v1702 = vadd.f32 0.0, %v1701
        %v1703 = vpop.f32.mrb[0].mxu0
        %v1704 = vpop.f32.mrb[0].mxu0
        %v1705 = vadd.f32 0.0, %v1704
        %v1706 = vpop.f32.mrb[0].mxu0
        %1707 = vmatprep.mubr.bf16.mxu0 0
        %1708 = vmatmul.mubr.bf16.gmra.mrb[0].mxu0 %v1562
        %v1709 = vpop.f32.mrb[0].mxu0
        %v1710 = vadd.f32 0.0, %v1709
        %v1711 = vpop.f32.mrb[0].mxu0
        %v1712 = vpop.f32.mrb[0].mxu0
        %v1713 = vadd.f32 0.0, %v1712
        %v1714 = vpop.f32.mrb[0].mxu0
        %1715 = vmatprep.mubr.bf16.mxu0 0
        %1716 = vmatmul.mubr.bf16.gmra.mrb[0].mxu0 %v1564
        %v1717 = vpop.f32.mrb[0].mxu0
        %v1718 = vadd.f32 0.0, %v1717
        %v1719 = vpop.f32.mrb[0].mxu0
        %v1720 = vpop.f32.mrb[0].mxu0
        %v1721 = vadd.f32 0.0, %v1720
        %v1722 = vpop.f32.mrb[0].mxu0
        %1723 = vmatprep.mubr.bf16.mxu0 0
        %1724 = vmatmul.mubr.bf16.gmra.mrb[0].mxu0 %v1566
        %v1725 = vpop.f32.mrb[0].mxu0
        %v1726 = vadd.f32 0.0, %v1725
        %v1727 = vpop.f32.mrb[0].mxu0
        %v1728 = vpop.f32.mrb[0].mxu0
        %v1729 = vadd.f32 0.0, %v1728
        %v1730 = vpop.f32.mrb[0].mxu0
        %1731 = vmatprep.mubr.bf16.mxu0 0
        %1732 = vmatmul.mubr.bf16.gmra.mrb[0].mxu0 %v1568
        %v1733 = vpop.f32.mrb[0].mxu0
        %v1734 = vadd.f32 0.0, %v1733
        %v1735 = vpop.f32.mrb[0].mxu0
        %v1736 = vpop.f32.mrb[0].mxu0
        %v1737 = vadd.f32 0.0, %v1736
        %v1738 = vpop.f32.mrb[0].mxu0
        %1739 = vmatprep.mubr.bf16.mxu0 0
        %1740 = vmatmul.mubr.bf16.gmra.mrb[0].mxu0 %v1570
        %v1741 = vpop.f32.mrb[0].mxu0
        %v1742 = vadd.f32 0.0, %v1741
        %v1743 = vpop.f32.mrb[0].mxu0
        %v1744 = vpop.f32.mrb[0].mxu0
        %v1745 = vadd.f32 0.0, %v1744
        %v1746 = vpop.f32.mrb[0].mxu0
        %1747 = vmatprep.mubr.bf16.mxu0 0
        %1748 = vmatmul.mubr.bf16.gmra.mrb[0].mxu0 %v1572
        %v1749 = vpop.f32.mrb[0].mxu0
        %v1750 = vadd.f32 0.0, %v1749
        %v1751 = vpop.f32.mrb[0].mxu0
        %v1752 = vpop.f32.mrb[0].mxu0
        %v1753 = vadd.f32 0.0, %v1752
        %v1754 = vpop.f32.mrb[0].mxu0
        %1755 = vmatprep.mubr.bf16.mxu0 0
        %1756 = vmatmul.mubr.bf16.gmra.mrb[0].mxu0 %v1574
        %v1757 = vpop.f32.mrb[0].mxu0
        %v1758 = vadd.f32 0.0, %v1757
        %v1759 = vpop.f32.mrb[0].mxu0
        %v1760 = vpop.f32.mrb[0].mxu0
        %v1761 = vadd.f32 0.0, %v1760
        %v1762 = vpop.f32.mrb[0].mxu0
        %1763 = vmatprep.mubr.bf16.mxu0 0
        %1764 = vmatmul.mubr.bf16.gmra.mrb[0].mxu0 %v1576
        %v1765 = vpop.f32.mrb[0].mxu0
        %v1766 = vadd.f32 0.0, %v1765
        %v1767 = vpop.f32.mrb[0].mxu0
        %v1768 = vpop.f32.mrb[0].mxu0
        %v1769 = vadd.f32 0.0, %v1768
        %v1770 = vpop.f32.mrb[0].mxu0
        %1771 = vmatprep.mubr.bf16.mxu0 0
        %1772 = vmatmul.mubr.bf16.gmra.mrb[0].mxu0 %v1578
        %v1773 = vpop.f32.mrb[0].mxu0
        %v1774 = vadd.f32 0.0, %v1773
        %v1775 = vpop.f32.mrb[0].mxu0
        %v1776 = vpop.f32.mrb[0].mxu0
        %v1777 = vadd.f32 0.0, %v1776
        %v1778 = vpop.f32.mrb[0].mxu0
        %1779 = vmatprep.mubr.bf16.mxu0 0
        %1780 = vmatmul.mubr.bf16.gmra.mrb[0].mxu0 %v1580
        %v1781 = vpop.f32.mrb[0].mxu0
        %v1782 = vadd.f32 0.0, %v1781
        %v1783 = vpop.f32.mrb[0].mxu0
        %v1784 = vpop.f32.mrb[0].mxu0
        %v1785 = vadd.f32 0.0, %v1784
        %v1786 = vpop.f32.mrb[0].mxu0
        %1787 = vmatprep.mubr.bf16.mxu0 0
        %1788 = vmatmul.mubr.bf16.gmra.mrb[0].mxu0 %v1582
        %v1789 = vpop.f32.mrb[0].mxu0
        %v1790 = vadd.f32 0.0, %v1789
        %v1791 = vpop.f32.mrb[0].mxu0
        %v1792 = vpop.f32.mrb[0].mxu0
        %v1793 = vadd.f32 0.0, %v1792
        %v1794 = vpop.f32.mrb[0].mxu0
        %1795 = vmatprep.mubr.bf16.mxu0 0
        %1796 = vmatmul.mubr.bf16.gmra.mrb[0].mxu0 %v1584
        %v1797 = vpop.f32.mrb[0].mxu0
        %v1798 = vadd.f32 0.0, %v1797
        %v1799 = vpop.f32.mrb[0].mxu0
        %v1800 = vpop.f32.mrb[0].mxu0
        %v1801 = vadd.f32 0.0, %v1800
        %v1802 = vpop.f32.mrb[0].mxu0
        %1803 = vmatprep.mubr.bf16.mxu0 0
        %1804 = vmatmul.mubr.bf16.gmra.mrb[0].mxu0 %v1586
        %v1805 = vpop.f32.mrb[0].mxu0
        %v1806 = vadd.f32 0.0, %v1805
        %v1807 = vpop.f32.mrb[0].mxu0
        %v1808 = vpop.f32.mrb[0].mxu0
        %v1809 = vadd.f32 0.0, %v1808
        %v1810 = vpop.f32.mrb[0].mxu0
        %1811 = vmatprep.mubr.bf16.mxu0 0
        %1812 = vmatmul.mubr.bf16.gmra.mrb[0].mxu0 %v1588
        %v1813 = vpop.f32.mrb[0].mxu0
        %v1814 = vadd.f32 0.0, %v1813
        %v1815 = vpop.f32.mrb[0].mxu0
        %v1816 = vpop.f32.mrb[0].mxu0
        %v1817 = vadd.f32 0.0, %v1816
        %v1818 = vpop.f32.mrb[0].mxu0
        %1819 = vmatprep.mubr.bf16.mxu0 0
        %1820 = vmatmul.mubr.bf16.gmra.mrb[0].mxu0 %v1590
        %v1821 = vpop.f32.mrb[0].mxu0
        %v1822 = vadd.f32 0.0, %v1821
        %v1823 = vpop.f32.mrb[0].mxu0
        %v1824 = vpop.f32.mrb[0].mxu0
        %v1825 = vadd.f32 0.0, %v1824
        %v1826 = vpop.f32.mrb[0].mxu0
        %1827 = vmatprep.mubr.bf16.mxu0 0
        %1828 = vmatmul.mubr.bf16.gmra.mrb[0].mxu0 %v1592
        %v1829 = vpop.f32.mrb[0].mxu0
        %v1830 = vadd.f32 0.0, %v1829
        %v1831 = vpop.f32.mrb[0].mxu0
        %v1832 = vpop.f32.mrb[0].mxu0
        %v1833 = vadd.f32 0.0, %v1832
        %v1834 = vpop.f32.mrb[0].mxu0
        %1835 = vdwg.mxu0
        %v1836 = vadd.f32 %v1373, %v1694
        %v1837 = vadd.f32 %v1374, %v1697
        %v1838 = vadd.f32 %v1375, %v1702
        %v1839 = vadd.f32 %v1376, %v1705
        %v1840 = vadd.f32 %v1377, %v1710
        %v1841 = vadd.f32 %v1378, %v1713
        %v1842 = vadd.f32 %v1379, %v1718
        %v1843 = vadd.f32 %v1380, %v1721
        %v1844 = vadd.f32 %v1381, %v1726
        %v1845 = vadd.f32 %v1382, %v1729
        %v1846 = vadd.f32 %v1383, %v1734
        %v1847 = vadd.f32 %v1384, %v1737
        %v1848 = vadd.f32 %v1385, %v1742
        %v1849 = vadd.f32 %v1386, %v1745
        %v1850 = vadd.f32 %v1387, %v1750
        %v1851 = vadd.f32 %v1388, %v1753
        %v1852 = vadd.f32 %v1389, %v1758
        %v1853 = vadd.f32 %v1390, %v1761
        %v1854 = vadd.f32 %v1391, %v1766
        %v1855 = vadd.f32 %v1392, %v1769
        %v1856 = vadd.f32 %v1393, %v1774
        %v1857 = vadd.f32 %v1394, %v1777
        %v1858 = vadd.f32 %v1395, %v1782
        %v1859 = vadd.f32 %v1396, %v1785
        %v1860 = vadd.f32 %v1397, %v1790
        %v1861 = vadd.f32 %v1398, %v1793
        %v1862 = vadd.f32 %v1399, %v1798
        %v1863 = vadd.f32 %v1400, %v1801
        %v1864 = vadd.f32 %v1401, %v1806
        %v1865 = vadd.f32 %v1402, %v1809
        %v1866 = vadd.f32 %v1403, %v1814
        %v1867 = vadd.f32 %v1404, %v1817
        %v1868 = vadd.f32 %v1405, %v1822
        %v1869 = vadd.f32 %v1406, %v1825
        %v1870 = vadd.f32 %v1407, %v1830
        %v1871 = vadd.f32 %v1408, %v1833
        %v1872 = vld [vmem:[%s237 + $0x98] sm:$0x3]
        %s1873 = scalar_lea.vmem [#allocation6], 256
        %v1874 = vld [vmem:[%s1873] sm:$0xf]
        %v1875 = vld [vmem:[%s1873 + $0x4] sm:$0xf]
        %v1876 = vld [vmem:[%s1873 + $0x8] sm:$0xf]
        %v1877 = vld [vmem:[%s1873 + $0xc] sm:$0xf]
        %v1878 = vld [vmem:[%s1873 + $0x10] sm:$0xf]
        %v1879 = vld [vmem:[%s1873 + $0x14] sm:$0xf]
        %v1880 = vld [vmem:[%s1873 + $0x18] sm:$0xf]
        %v1881 = vld [vmem:[%s1873 + $0x1c] sm:$0xf]
        %v1882 = vld [vmem:[%s1873 + $0x20] sm:$0xf]
        %v1883 = vld [vmem:[%s1873 + $0x24] sm:$0xf]
        %v1884 = vld [vmem:[%s1873 + $0x28] sm:$0xf]
        %v1885 = vld [vmem:[%s1873 + $0x2c] sm:$0xf]
        %v1886 = vld [vmem:[%s1873 + $0x30] sm:$0xf]
        %v1887 = vld [vmem:[%s1873 + $0x34] sm:$0xf]
        %v1888 = vld [vmem:[%s1873 + $0x38] sm:$0xf]
        %v1889 = vld [vmem:[%s1873 + $0x3c] sm:$0xf]
        %v1891 = vunpack.c.l.b16 %v1872
        %v1892 = vpack.c.b16 %v1891, %v1891
        %vm1893 = vsmask.f32 6400
        %v1895 = vshrl.u32 %v1537, 16
        %v1897 = vrot.slane %v1895, 1
        %v1898 = vshll.u32 %v1537, 16
        %v1900 = vrot.slane %v1898, 2
        %v1901 = vor.u32 %v1897, %v1900
        %v1903 = vshrl.u32 %v1538, 16
        %v1905 = vrot.slane %v1903, 1
        %v1906 = vshll.u32 %v1538, 16
        %v1908 = vrot.slane %v1906, 2
        %v1909 = vor.u32 %v1905, %v1908
        %v1910 = vsel %vm1893, %v1901, %v1909
        %v1912 = vshrl.u32 %v1539, 16
        %v1914 = vrot.slane %v1912, 1
        %v1915 = vshll.u32 %v1539, 16
        %v1917 = vrot.slane %v1915, 2
        %v1918 = vor.u32 %v1914, %v1917
        %v1919 = vsel %vm1893, %v1909, %v1918
        %v1921 = vshrl.u32 %v1540, 16
        %v1923 = vrot.slane %v1921, 1
        %v1924 = vshll.u32 %v1540, 16
        %v1926 = vrot.slane %v1924, 2
        %v1927 = vor.u32 %v1923, %v1926
        %v1928 = vsel %vm1893, %v1918, %v1927
        %v1930 = vshrl.u32 %v1541, 16
        %v1932 = vrot.slane %v1930, 1
        %v1933 = vshll.u32 %v1541, 16
        %v1935 = vrot.slane %v1933, 2
        %v1936 = vor.u32 %v1932, %v1935
        %v1937 = vsel %vm1893, %v1927, %v1936
        %v1939 = vshrl.u32 %v1542, 16
        %v1941 = vrot.slane %v1939, 1
        %v1942 = vshll.u32 %v1542, 16
        %v1944 = vrot.slane %v1942, 2
        %v1945 = vor.u32 %v1941, %v1944
        %v1946 = vsel %vm1893, %v1936, %v1945
        %v1948 = vshrl.u32 %v1543, 16
        %v1950 = vrot.slane %v1948, 1
        %v1951 = vshll.u32 %v1543, 16
        %v1953 = vrot.slane %v1951, 2
        %v1954 = vor.u32 %v1950, %v1953
        %v1955 = vsel %vm1893, %v1945, %v1954
        %v1957 = vshrl.u32 %v1544, 16
        %v1959 = vrot.slane %v1957, 1
        %v1960 = vshll.u32 %v1544, 16
        %v1962 = vrot.slane %v1960, 2
        %v1963 = vor.u32 %v1959, %v1962
        %v1964 = vsel %vm1893, %v1954, %v1963
        %v1966 = vshrl.u32 %v1545, 16
        %v1968 = vrot.slane %v1966, 1
        %v1969 = vshll.u32 %v1545, 16
        %v1971 = vrot.slane %v1969, 2
        %v1972 = vor.u32 %v1968, %v1971
        %v1973 = vsel %vm1893, %v1963, %v1972
        %v1975 = vshrl.u32 %v1546, 16
        %v1977 = vrot.slane %v1975, 1
        %v1978 = vshll.u32 %v1546, 16
        %v1980 = vrot.slane %v1978, 2
        %v1981 = vor.u32 %v1977, %v1980
        %v1982 = vsel %vm1893, %v1972, %v1981
        %v1984 = vshrl.u32 %v1547, 16
        %v1986 = vrot.slane %v1984, 1
        %v1987 = vshll.u32 %v1547, 16
        %v1989 = vrot.slane %v1987, 2
        %v1990 = vor.u32 %v1986, %v1989
        %v1991 = vsel %vm1893, %v1981, %v1990
        %v1993 = vshrl.u32 %v1548, 16
        %v1995 = vrot.slane %v1993, 1
        %v1996 = vshll.u32 %v1548, 16
        %v1998 = vrot.slane %v1996, 2
        %v1999 = vor.u32 %v1995, %v1998
        %v2000 = vsel %vm1893, %v1990, %v1999
        %v2002 = vshrl.u32 %v1549, 16
        %v2004 = vrot.slane %v2002, 1
        %v2005 = vshll.u32 %v1549, 16
        %v2007 = vrot.slane %v2005, 2
        %v2008 = vor.u32 %v2004, %v2007
        %v2009 = vsel %vm1893, %v1999, %v2008
        %v2011 = vshrl.u32 %v1550, 16
        %v2013 = vrot.slane %v2011, 1
        %v2014 = vshll.u32 %v1550, 16
        %v2016 = vrot.slane %v2014, 2
        %v2017 = vor.u32 %v2013, %v2016
        %v2018 = vsel %vm1893, %v2008, %v2017
        %v2020 = vshrl.u32 %v1551, 16
        %v2022 = vrot.slane %v2020, 1
        %v2023 = vshll.u32 %v1551, 16
        %v2025 = vrot.slane %v2023, 2
        %v2026 = vor.u32 %v2022, %v2025
        %v2027 = vsel %vm1893, %v2017, %v2026
        %v2029 = vshrl.u32 %v1552, 16
        %v2031 = vrot.slane %v2029, 1
        %v2032 = vshll.u32 %v1552, 16
        %v2034 = vrot.slane %v2032, 2
        %v2035 = vor.u32 %v2031, %v2034
        %v2036 = vsel %vm1893, %v2026, %v2035
        %v2038 = vshrl.u32 %v1553, 16
        %v2040 = vrot.slane %v2038, 1
        %v2041 = vshll.u32 %v1553, 16
        %v2043 = vrot.slane %v2041, 2
        %v2044 = vor.u32 %v2040, %v2043
        %v2045 = vsel %vm1893, %v2035, %v2044
        %v2047 = vshrl.u32 %v1554, 16
        %v2049 = vrot.slane %v2047, 1
        %v2050 = vshll.u32 %v1554, 16
        %v2052 = vrot.slane %v2050, 2
        %v2053 = vor.u32 %v2049, %v2052
        %v2054 = vsel %vm1893, %v2044, %v2053
        %v2056 = vshrl.u32 %v1892, 16
        %v2058 = vrot.slane %v2056, 1
        %v2059 = vshll.u32 %v1892, 16
        %v2061 = vrot.slane %v2059, 2
        %v2062 = vor.u32 %v2058, %v2061
        %v2063 = vsel %vm1893, %v2053, %v2062
        %v2098 = vunpack.c.l.b16 %v1874
        %v2099 = vunpack.c.l.b16 %v1875
        %v2100 = vunpack.c.l.b16 %v1876
        %v2101 = vunpack.c.l.b16 %v1877
        %v2102 = vunpack.c.l.b16 %v1878
        %v2103 = vunpack.c.l.b16 %v1879
        %v2104 = vunpack.c.l.b16 %v1880
        %v2105 = vunpack.c.l.b16 %v1881
        %v2106 = vunpack.c.l.b16 %v1882
        %v2107 = vunpack.c.l.b16 %v1883
        %v2108 = vunpack.c.l.b16 %v1884
        %v2109 = vunpack.c.l.b16 %v1885
        %v2110 = vunpack.c.l.b16 %v1886
        %v2111 = vunpack.c.l.b16 %v1887
        %v2112 = vunpack.c.l.b16 %v1888
        %v2113 = vunpack.c.l.b16 %v1889
        %v2114 = vpack.c.b16 %v2099, %v2098
        %v2115 = vpack.c.b16 %v2101, %v2100
        %v2116 = vpack.c.b16 %v2103, %v2102
        %v2117 = vpack.c.b16 %v2105, %v2104
        %v2118 = vpack.c.b16 %v2107, %v2106
        %v2119 = vpack.c.b16 %v2109, %v2108
        %v2120 = vpack.c.b16 %v2111, %v2110
        %v2121 = vpack.c.b16 %v2113, %v2112
        %2130 = vmatprep.subr.bf16.mxu0 0
        %2131 = vmatpush1.bf16.msra.mxu0 %v2114
        %2132 = vmatprep.subr.bf16.mxu0 0
        %2133 = vmatpush1.bf16.msra.mxu0 %v2115
        %2134 = vmatprep.subr.bf16.mxu0 0
        %2135 = vmatpush1.bf16.msra.mxu0 %v2116
        %2136 = vmatprep.subr.bf16.mxu0 0
        %2137 = vmatpush1.bf16.msra.mxu0 %v2117
        %2138 = vmatprep.subr.bf16.mxu0 0
        %2139 = vmatpush1.bf16.msra.mxu0 %v2118
        %2140 = vmatprep.subr.bf16.mxu0 0
        %2141 = vmatpush1.bf16.msra.mxu0 %v2119
        %2142 = vmatprep.subr.bf16.mxu0 0
        %2143 = vmatpush1.bf16.msra.mxu0 %v2120
        %2144 = vmatprep.subr.bf16.mxu0 0
        %2145 = vmatpush1.bf16.msra.mxu0 %v2121
        %2146 = vmatprep.subr.bf16.mxu0 0
        %2147 = vmatpush1.bf16.msra.mxu0 0
        %2148 = vmatprep.subr.bf16.mxu0 0
        %2149 = vmatpush1.bf16.msra.mxu0 0
        %2150 = vmatprep.subr.bf16.mxu0 0
        %2151 = vmatpush1.bf16.msra.mxu0 0
        %2152 = vmatprep.subr.bf16.mxu0 0
        %2153 = vmatpush1.bf16.msra.mxu0 0
        %2154 = vmatprep.subr.bf16.mxu0 0
        %2155 = vmatpush1.bf16.msra.mxu0 0
        %2156 = vmatprep.subr.bf16.mxu0 0
        %2157 = vmatpush1.bf16.msra.mxu0 0
        %2158 = vmatprep.subr.bf16.mxu0 0
        %2159 = vmatpush1.bf16.msra.mxu0 0
        %2160 = vmatprep.subr.bf16.mxu0 0
        %2161 = vmatpush1.bf16.msra.mxu0 0
        %2162 = vmatprep.mubr.bf16.mxu0 0
        %2163 = vmatmul.mubr.bf16.gmra.mrb[0].mxu0 %v1910
        %v2164 = vpop.f32.mrb[0].mxu0
        %v2165 = vadd.f32 0.0, %v2164
        %v2166 = vpop.f32.mrb[0].mxu0
        %v2167 = vpop.f32.mrb[0].mxu0
        %v2168 = vadd.f32 0.0, %v2167
        %v2169 = vpop.f32.mrb[0].mxu0
        %2170 = vmatprep.mubr.bf16.mxu0 0
        %2171 = vmatmul.mubr.bf16.gmra.mrb[0].mxu0 %v1919
        %v2172 = vpop.f32.mrb[0].mxu0
        %v2173 = vadd.f32 0.0, %v2172
        %v2174 = vpop.f32.mrb[0].mxu0
        %v2175 = vpop.f32.mrb[0].mxu0
        %v2176 = vadd.f32 0.0, %v2175
        %v2177 = vpop.f32.mrb[0].mxu0
        %2178 = vmatprep.mubr.bf16.mxu0 0
        %2179 = vmatmul.mubr.bf16.gmra.mrb[0].mxu0 %v1928
        %v2180 = vpop.f32.mrb[0].mxu0
        %v2181 = vadd.f32 0.0, %v2180
        %v2182 = vpop.f32.mrb[0].mxu0
        %v2183 = vpop.f32.mrb[0].mxu0
        %v2184 = vadd.f32 0.0, %v2183
        %v2185 = vpop.f32.mrb[0].mxu0
        %2186 = vmatprep.mubr.bf16.mxu0 0
        %2187 = vmatmul.mubr.bf16.gmra.mrb[0].mxu0 %v1937
        %v2188 = vpop.f32.mrb[0].mxu0
        %v2189 = vadd.f32 0.0, %v2188
        %v2190 = vpop.f32.mrb[0].mxu0
        %v2191 = vpop.f32.mrb[0].mxu0
        %v2192 = vadd.f32 0.0, %v2191
        %v2193 = vpop.f32.mrb[0].mxu0
        %2194 = vmatprep.mubr.bf16.mxu0 0
        %2195 = vmatmul.mubr.bf16.gmra.mrb[0].mxu0 %v1946
        %v2196 = vpop.f32.mrb[0].mxu0
        %v2197 = vadd.f32 0.0, %v2196
        %v2198 = vpop.f32.mrb[0].mxu0
        %v2199 = vpop.f32.mrb[0].mxu0
        %v2200 = vadd.f32 0.0, %v2199
        %v2201 = vpop.f32.mrb[0].mxu0
        %2202 = vmatprep.mubr.bf16.mxu0 0
        %2203 = vmatmul.mubr.bf16.gmra.mrb[0].mxu0 %v1955
        %v2204 = vpop.f32.mrb[0].mxu0
        %v2205 = vadd.f32 0.0, %v2204
        %v2206 = vpop.f32.mrb[0].mxu0
        %v2207 = vpop.f32.mrb[0].mxu0
        %v2208 = vadd.f32 0.0, %v2207
        %v2209 = vpop.f32.mrb[0].mxu0
        %2210 = vmatprep.mubr.bf16.mxu0 0
        %2211 = vmatmul.mubr.bf16.gmra.mrb[0].mxu0 %v1964
        %v2212 = vpop.f32.mrb[0].mxu0
        %v2213 = vadd.f32 0.0, %v2212
        %v2214 = vpop.f32.mrb[0].mxu0
        %v2215 = vpop.f32.mrb[0].mxu0
        %v2216 = vadd.f32 0.0, %v2215
        %v2217 = vpop.f32.mrb[0].mxu0
        %2218 = vmatprep.mubr.bf16.mxu0 0
        %2219 = vmatmul.mubr.bf16.gmra.mrb[0].mxu0 %v1973
        %v2220 = vpop.f32.mrb[0].mxu0
        %v2221 = vadd.f32 0.0, %v2220
        %v2222 = vpop.f32.mrb[0].mxu0
        %v2223 = vpop.f32.mrb[0].mxu0
        %v2224 = vadd.f32 0.0, %v2223
        %v2225 = vpop.f32.mrb[0].mxu0
        %2226 = vmatprep.mubr.bf16.mxu0 0
        %2227 = vmatmul.mubr.bf16.gmra.mrb[0].mxu0 %v1982
        %v2228 = vpop.f32.mrb[0].mxu0
        %v2229 = vadd.f32 0.0, %v2228
        %v2230 = vpop.f32.mrb[0].mxu0
        %v2231 = vpop.f32.mrb[0].mxu0
        %v2232 = vadd.f32 0.0, %v2231
        %v2233 = vpop.f32.mrb[0].mxu0
        %2234 = vmatprep.mubr.bf16.mxu0 0
        %2235 = vmatmul.mubr.bf16.gmra.mrb[0].mxu0 %v1991
        %v2236 = vpop.f32.mrb[0].mxu0
        %v2237 = vadd.f32 0.0, %v2236
        %v2238 = vpop.f32.mrb[0].mxu0
        %v2239 = vpop.f32.mrb[0].mxu0
        %v2240 = vadd.f32 0.0, %v2239
        %v2241 = vpop.f32.mrb[0].mxu0
        %2242 = vmatprep.mubr.bf16.mxu0 0
        %2243 = vmatmul.mubr.bf16.gmra.mrb[0].mxu0 %v2000
        %v2244 = vpop.f32.mrb[0].mxu0
        %v2245 = vadd.f32 0.0, %v2244
        %v2246 = vpop.f32.mrb[0].mxu0
        %v2247 = vpop.f32.mrb[0].mxu0
        %v2248 = vadd.f32 0.0, %v2247
        %v2249 = vpop.f32.mrb[0].mxu0
        %2250 = vmatprep.mubr.bf16.mxu0 0
        %2251 = vmatmul.mubr.bf16.gmra.mrb[0].mxu0 %v2009
        %v2252 = vpop.f32.mrb[0].mxu0
        %v2253 = vadd.f32 0.0, %v2252
        %v2254 = vpop.f32.mrb[0].mxu0
        %v2255 = vpop.f32.mrb[0].mxu0
        %v2256 = vadd.f32 0.0, %v2255
        %v2257 = vpop.f32.mrb[0].mxu0
        %2258 = vmatprep.mubr.bf16.mxu0 0
        %2259 = vmatmul.mubr.bf16.gmra.mrb[0].mxu0 %v2018
        %v2260 = vpop.f32.mrb[0].mxu0
        %v2261 = vadd.f32 0.0, %v2260
        %v2262 = vpop.f32.mrb[0].mxu0
        %v2263 = vpop.f32.mrb[0].mxu0
        %v2264 = vadd.f32 0.0, %v2263
        %v2265 = vpop.f32.mrb[0].mxu0
        %2266 = vmatprep.mubr.bf16.mxu0 0
        %2267 = vmatmul.mubr.bf16.gmra.mrb[0].mxu0 %v2027
        %v2268 = vpop.f32.mrb[0].mxu0
        %v2269 = vadd.f32 0.0, %v2268
        %v2270 = vpop.f32.mrb[0].mxu0
        %v2271 = vpop.f32.mrb[0].mxu0
        %v2272 = vadd.f32 0.0, %v2271
        %v2273 = vpop.f32.mrb[0].mxu0
        %2274 = vmatprep.mubr.bf16.mxu0 0
        %2275 = vmatmul.mubr.bf16.gmra.mrb[0].mxu0 %v2036
        %v2276 = vpop.f32.mrb[0].mxu0
        %v2277 = vadd.f32 0.0, %v2276
        %v2278 = vpop.f32.mrb[0].mxu0
        %v2279 = vpop.f32.mrb[0].mxu0
        %v2280 = vadd.f32 0.0, %v2279
        %v2281 = vpop.f32.mrb[0].mxu0
        %2282 = vmatprep.mubr.bf16.mxu0 0
        %2283 = vmatmul.mubr.bf16.gmra.mrb[0].mxu0 %v2045
        %v2284 = vpop.f32.mrb[0].mxu0
        %v2285 = vadd.f32 0.0, %v2284
        %v2286 = vpop.f32.mrb[0].mxu0
        %v2287 = vpop.f32.mrb[0].mxu0
        %v2288 = vadd.f32 0.0, %v2287
        %v2289 = vpop.f32.mrb[0].mxu0
        %2290 = vmatprep.mubr.bf16.mxu0 0
        %2291 = vmatmul.mubr.bf16.gmra.mrb[0].mxu0 %v2054
        %v2292 = vpop.f32.mrb[0].mxu0
        %v2293 = vadd.f32 0.0, %v2292
        %v2294 = vpop.f32.mrb[0].mxu0
        %v2295 = vpop.f32.mrb[0].mxu0
        %v2296 = vadd.f32 0.0, %v2295
        %v2297 = vpop.f32.mrb[0].mxu0
        %2298 = vmatprep.mubr.bf16.mxu0 0
        %2299 = vmatmul.mubr.bf16.gmra.mrb[0].mxu0 %v2063
        %v2300 = vpop.f32.mrb[0].mxu0
        %v2301 = vadd.f32 0.0, %v2300
        %v2302 = vpop.f32.mrb[0].mxu0
        %v2303 = vpop.f32.mrb[0].mxu0
        %v2304 = vadd.f32 0.0, %v2303
        %v2305 = vpop.f32.mrb[0].mxu0
        %2306 = vdwg.mxu0
        %v2307 = vadd.f32 %v1836, %v2165
        %v2308 = vadd.f32 %v1837, %v2168
        %v2309 = vadd.f32 %v1838, %v2173
        %v2310 = vadd.f32 %v1839, %v2176
        %v2311 = vadd.f32 %v1840, %v2181
        %v2312 = vadd.f32 %v1841, %v2184
        %v2313 = vadd.f32 %v1842, %v2189
        %v2314 = vadd.f32 %v1843, %v2192
        %v2315 = vadd.f32 %v1844, %v2197
        %v2316 = vadd.f32 %v1845, %v2200
        %v2317 = vadd.f32 %v1846, %v2205
        %v2318 = vadd.f32 %v1847, %v2208
        %v2319 = vadd.f32 %v1848, %v2213
        %v2320 = vadd.f32 %v1849, %v2216
        %v2321 = vadd.f32 %v1850, %v2221
        %v2322 = vadd.f32 %v1851, %v2224
        %v2323 = vadd.f32 %v1852, %v2229
        %v2324 = vadd.f32 %v1853, %v2232
        %v2325 = vadd.f32 %v1854, %v2237
        %v2326 = vadd.f32 %v1855, %v2240
        %v2327 = vadd.f32 %v1856, %v2245
        %v2328 = vadd.f32 %v1857, %v2248
        %v2329 = vadd.f32 %v1858, %v2253
        %v2330 = vadd.f32 %v1859, %v2256
        %v2331 = vadd.f32 %v1860, %v2261
        %v2332 = vadd.f32 %v1861, %v2264
        %v2333 = vadd.f32 %v1862, %v2269
        %v2334 = vadd.f32 %v1863, %v2272
        %v2335 = vadd.f32 %v1864, %v2277
        %v2336 = vadd.f32 %v1865, %v2280
        %v2337 = vadd.f32 %v1866, %v2285
        %v2338 = vadd.f32 %v1867, %v2288
        %v2339 = vadd.f32 %v1868, %v2293
        %v2340 = vadd.f32 %v1869, %v2296
        %v2341 = vadd.f32 %v1870, %v2301
        %v2342 = vadd.f32 %v1871, %v2304
        %v2343 = vld [vmem:[%s237 + $0x8] sm:$0xc]
        %s2344 = scalar_lea.vmem [#allocation6], 320
        %v2345 = vld [vmem:[%s2344] sm:$0xf]
        %v2346 = vld [vmem:[%s2344 + $0x4] sm:$0xf]
        %v2347 = vld [vmem:[%s2344 + $0x8] sm:$0xf]
        %v2348 = vld [vmem:[%s2344 + $0xc] sm:$0xf]
        %v2349 = vld [vmem:[%s2344 + $0x10] sm:$0xf]
        %v2350 = vld [vmem:[%s2344 + $0x14] sm:$0xf]
        %v2351 = vld [vmem:[%s2344 + $0x18] sm:$0xf]
        %v2352 = vld [vmem:[%s2344 + $0x1c] sm:$0xf]
        %v2353 = vld [vmem:[%s2344 + $0x20] sm:$0xf]
        %v2354 = vld [vmem:[%s2344 + $0x24] sm:$0xf]
        %v2355 = vld [vmem:[%s2344 + $0x28] sm:$0xf]
        %v2356 = vld [vmem:[%s2344 + $0x2c] sm:$0xf]
        %v2357 = vld [vmem:[%s2344 + $0x30] sm:$0xf]
        %v2358 = vld [vmem:[%s2344 + $0x34] sm:$0xf]
        %v2359 = vld [vmem:[%s2344 + $0x38] sm:$0xf]
        %v2360 = vld [vmem:[%s2344 + $0x3c] sm:$0xf]
        %v2362 = vunpack.c.l.b16 %v2343
        %v2363 = vpack.c.b16 %v1501, %v2362
        %vm2364 = vcmask 1045504
        %v2365 = vrot.slane %v2363, 2
        %v2366 = vrot.slane %v1538, 2
        %v2367 = vsel %vm2364, %v2365, %v2366
        %v2368 = vrot.slane %v1539, 2
        %v2369 = vsel %vm2364, %v2366, %v2368
        %v2370 = vrot.slane %v1540, 2
        %v2371 = vsel %vm2364, %v2368, %v2370
        %v2372 = vrot.slane %v1541, 2
        %v2373 = vsel %vm2364, %v2370, %v2372
        %v2374 = vrot.slane %v1542, 2
        %v2375 = vsel %vm2364, %v2372, %v2374
        %v2376 = vrot.slane %v1543, 2
        %v2377 = vsel %vm2364, %v2374, %v2376
        %v2378 = vrot.slane %v1544, 2
        %v2379 = vsel %vm2364, %v2376, %v2378
        %v2380 = vrot.slane %v1545, 2
        %v2381 = vsel %vm2364, %v2378, %v2380
        %v2382 = vrot.slane %v1546, 2
        %v2383 = vsel %vm2364, %v2380, %v2382
        %v2384 = vrot.slane %v1547, 2
        %v2385 = vsel %vm2364, %v2382, %v2384
        %v2386 = vrot.slane %v1548, 2
        %v2387 = vsel %vm2364, %v2384, %v2386
        %v2388 = vrot.slane %v1549, 2
        %v2389 = vsel %vm2364, %v2386, %v2388
        %v2390 = vrot.slane %v1550, 2
        %v2391 = vsel %vm2364, %v2388, %v2390
        %v2392 = vrot.slane %v1551, 2
        %v2393 = vsel %vm2364, %v2390, %v2392
        %v2394 = vrot.slane %v1552, 2
        %v2395 = vsel %vm2364, %v2392, %v2394
        %v2396 = vrot.slane %v1553, 2
        %v2397 = vsel %vm2364, %v2394, %v2396
        %v2398 = vrot.slane %v1554, 2
        %v2399 = vsel %vm2364, %v2396, %v2398
        %v2400 = vrot.slane %v1892, 2
        %v2401 = vsel %vm2364, %v2398, %v2400
        %v2436 = vunpack.c.l.b16 %v2345
        %v2437 = vunpack.c.l.b16 %v2346
        %v2438 = vunpack.c.l.b16 %v2347
        %v2439 = vunpack.c.l.b16 %v2348
        %v2440 = vunpack.c.l.b16 %v2349
        %v2441 = vunpack.c.l.b16 %v2350
        %v2442 = vunpack.c.l.b16 %v2351
        %v2443 = vunpack.c.l.b16 %v2352
        %v2444 = vunpack.c.l.b16 %v2353
        %v2445 = vunpack.c.l.b16 %v2354
        %v2446 = vunpack.c.l.b16 %v2355
        %v2447 = vunpack.c.l.b16 %v2356
        %v2448 = vunpack.c.l.b16 %v2357
        %v2449 = vunpack.c.l.b16 %v2358
        %v2450 = vunpack.c.l.b16 %v2359
        %v2451 = vunpack.c.l.b16 %v2360
        %v2452 = vpack.c.b16 %v2437, %v2436
        %v2453 = vpack.c.b16 %v2439, %v2438
        %v2454 = vpack.c.b16 %v2441, %v2440
        %v2455 = vpack.c.b16 %v2443, %v2442
        %v2456 = vpack.c.b16 %v2445, %v2444
        %v2457 = vpack.c.b16 %v2447, %v2446
        %v2458 = vpack.c.b16 %v2449, %v2448
        %v2459 = vpack.c.b16 %v2451, %v2450
        %2468 = vmatprep.subr.bf16.mxu0 0
        %2469 = vmatpush1.bf16.msra.mxu0 %v2452
        %2470 = vmatprep.subr.bf16.mxu0 0
        %2471 = vmatpush1.bf16.msra.mxu0 %v2453
        %2472 = vmatprep.subr.bf16.mxu0 0
        %2473 = vmatpush1.bf16.msra.mxu0 %v2454
        %2474 = vmatprep.subr.bf16.mxu0 0
        %2475 = vmatpush1.bf16.msra.mxu0 %v2455
        %2476 = vmatprep.subr.bf16.mxu0 0
        %2477 = vmatpush1.bf16.msra.mxu0 %v2456
        %2478 = vmatprep.subr.bf16.mxu0 0
        %2479 = vmatpush1.bf16.msra.mxu0 %v2457
        %2480 = vmatprep.subr.bf16.mxu0 0
        %2481 = vmatpush1.bf16.msra.mxu0 %v2458
        %2482 = vmatprep.subr.bf16.mxu0 0
        %2483 = vmatpush1.bf16.msra.mxu0 %v2459
        %2484 = vmatprep.subr.bf16.mxu0 0
        %2485 = vmatpush1.bf16.msra.mxu0 0
        %2486 = vmatprep.subr.bf16.mxu0 0
        %2487 = vmatpush1.bf16.msra.mxu0 0
        %2488 = vmatprep.subr.bf16.mxu0 0
        %2489 = vmatpush1.bf16.msra.mxu0 0
        %2490 = vmatprep.subr.bf16.mxu0 0
        %2491 = vmatpush1.bf16.msra.mxu0 0
        %2492 = vmatprep.subr.bf16.mxu0 0
        %2493 = vmatpush1.bf16.msra.mxu0 0
        %2494 = vmatprep.subr.bf16.mxu0 0
        %2495 = vmatpush1.bf16.msra.mxu0 0
        %2496 = vmatprep.subr.bf16.mxu0 0
        %2497 = vmatpush1.bf16.msra.mxu0 0
        %2498 = vmatprep.subr.bf16.mxu0 0
        %2499 = vmatpush1.bf16.msra.mxu0 0
        %2500 = vmatprep.mubr.bf16.mxu0 0
        %2501 = vmatmul.mubr.bf16.gmra.mrb[0].mxu0 %v2367
        %v2502 = vpop.f32.mrb[0].mxu0
        %v2503 = vadd.f32 0.0, %v2502
        %v2504 = vpop.f32.mrb[0].mxu0
        %v2505 = vpop.f32.mrb[0].mxu0
        %v2506 = vadd.f32 0.0, %v2505
        %v2507 = vpop.f32.mrb[0].mxu0
        %2508 = vmatprep.mubr.bf16.mxu0 0
        %2509 = vmatmul.mubr.bf16.gmra.mrb[0].mxu0 %v2369
        %v2510 = vpop.f32.mrb[0].mxu0
        %v2511 = vadd.f32 0.0, %v2510
        %v2512 = vpop.f32.mrb[0].mxu0
        %v2513 = vpop.f32.mrb[0].mxu0
        %v2514 = vadd.f32 0.0, %v2513
        %v2515 = vpop.f32.mrb[0].mxu0
        %2516 = vmatprep.mubr.bf16.mxu0 0
        %2517 = vmatmul.mubr.bf16.gmra.mrb[0].mxu0 %v2371
        %v2518 = vpop.f32.mrb[0].mxu0
        %v2519 = vadd.f32 0.0, %v2518
        %v2520 = vpop.f32.mrb[0].mxu0
        %v2521 = vpop.f32.mrb[0].mxu0
        %v2522 = vadd.f32 0.0, %v2521
        %v2523 = vpop.f32.mrb[0].mxu0
        %2524 = vmatprep.mubr.bf16.mxu0 0
        %2525 = vmatmul.mubr.bf16.gmra.mrb[0].mxu0 %v2373
        %v2526 = vpop.f32.mrb[0].mxu0
        %v2527 = vadd.f32 0.0, %v2526
        %v2528 = vpop.f32.mrb[0].mxu0
        %v2529 = vpop.f32.mrb[0].mxu0
        %v2530 = vadd.f32 0.0, %v2529
        %v2531 = vpop.f32.mrb[0].mxu0
        %2532 = vmatprep.mubr.bf16.mxu0 0
        %2533 = vmatmul.mubr.bf16.gmra.mrb[0].mxu0 %v2375
        %v2534 = vpop.f32.mrb[0].mxu0
        %v2535 = vadd.f32 0.0, %v2534
        %v2536 = vpop.f32.mrb[0].mxu0
        %v2537 = vpop.f32.mrb[0].mxu0
        %v2538 = vadd.f32 0.0, %v2537
        %v2539 = vpop.f32.mrb[0].mxu0
        %2540 = vmatprep.mubr.bf16.mxu0 0
        %2541 = vmatmul.mubr.bf16.gmra.mrb[0].mxu0 %v2377
        %v2542 = vpop.f32.mrb[0].mxu0
        %v2543 = vadd.f32 0.0, %v2542
        %v2544 = vpop.f32.mrb[0].mxu0
        %v2545 = vpop.f32.mrb[0].mxu0
        %v2546 = vadd.f32 0.0, %v2545
        %v2547 = vpop.f32.mrb[0].mxu0
        %2548 = vmatprep.mubr.bf16.mxu0 0
        %2549 = vmatmul.mubr.bf16.gmra.mrb[0].mxu0 %v2379
        %v2550 = vpop.f32.mrb[0].mxu0
        %v2551 = vadd.f32 0.0, %v2550
        %v2552 = vpop.f32.mrb[0].mxu0
        %v2553 = vpop.f32.mrb[0].mxu0
        %v2554 = vadd.f32 0.0, %v2553
        %v2555 = vpop.f32.mrb[0].mxu0
        %2556 = vmatprep.mubr.bf16.mxu0 0
        %2557 = vmatmul.mubr.bf16.gmra.mrb[0].mxu0 %v2381
        %v2558 = vpop.f32.mrb[0].mxu0
        %v2559 = vadd.f32 0.0, %v2558
        %v2560 = vpop.f32.mrb[0].mxu0
        %v2561 = vpop.f32.mrb[0].mxu0
        %v2562 = vadd.f32 0.0, %v2561
        %v2563 = vpop.f32.mrb[0].mxu0
        %2564 = vmatprep.mubr.bf16.mxu0 0
        %2565 = vmatmul.mubr.bf16.gmra.mrb[0].mxu0 %v2383
        %v2566 = vpop.f32.mrb[0].mxu0
        %v2567 = vadd.f32 0.0, %v2566
        %v2568 = vpop.f32.mrb[0].mxu0
        %v2569 = vpop.f32.mrb[0].mxu0
        %v2570 = vadd.f32 0.0, %v2569
        %v2571 = vpop.f32.mrb[0].mxu0
        %2572 = vmatprep.mubr.bf16.mxu0 0
        %2573 = vmatmul.mubr.bf16.gmra.mrb[0].mxu0 %v2385
        %v2574 = vpop.f32.mrb[0].mxu0
        %v2575 = vadd.f32 0.0, %v2574
        %v2576 = vpop.f32.mrb[0].mxu0
        %v2577 = vpop.f32.mrb[0].mxu0
        %v2578 = vadd.f32 0.0, %v2577
        %v2579 = vpop.f32.mrb[0].mxu0
        %2580 = vmatprep.mubr.bf16.mxu0 0
        %2581 = vmatmul.mubr.bf16.gmra.mrb[0].mxu0 %v2387
        %v2582 = vpop.f32.mrb[0].mxu0
        %v2583 = vadd.f32 0.0, %v2582
        %v2584 = vpop.f32.mrb[0].mxu0
        %v2585 = vpop.f32.mrb[0].mxu0
        %v2586 = vadd.f32 0.0, %v2585
        %v2587 = vpop.f32.mrb[0].mxu0
        %2588 = vmatprep.mubr.bf16.mxu0 0
        %2589 = vmatmul.mubr.bf16.gmra.mrb[0].mxu0 %v2389
        %v2590 = vpop.f32.mrb[0].mxu0
        %v2591 = vadd.f32 0.0, %v2590
        %v2592 = vpop.f32.mrb[0].mxu0
        %v2593 = vpop.f32.mrb[0].mxu0
        %v2594 = vadd.f32 0.0, %v2593
        %v2595 = vpop.f32.mrb[0].mxu0
        %2596 = vmatprep.mubr.bf16.mxu0 0
        %2597 = vmatmul.mubr.bf16.gmra.mrb[0].mxu0 %v2391
        %v2598 = vpop.f32.mrb[0].mxu0
        %v2599 = vadd.f32 0.0, %v2598
        %v2600 = vpop.f32.mrb[0].mxu0
        %v2601 = vpop.f32.mrb[0].mxu0
        %v2602 = vadd.f32 0.0, %v2601
        %v2603 = vpop.f32.mrb[0].mxu0
        %2604 = vmatprep.mubr.bf16.mxu0 0
        %2605 = vmatmul.mubr.bf16.gmra.mrb[0].mxu0 %v2393
        %v2606 = vpop.f32.mrb[0].mxu0
        %v2607 = vadd.f32 0.0, %v2606
        %v2608 = vpop.f32.mrb[0].mxu0
        %v2609 = vpop.f32.mrb[0].mxu0
        %v2610 = vadd.f32 0.0, %v2609
        %v2611 = vpop.f32.mrb[0].mxu0
        %2612 = vmatprep.mubr.bf16.mxu0 0
        %2613 = vmatmul.mubr.bf16.gmra.mrb[0].mxu0 %v2395
        %v2614 = vpop.f32.mrb[0].mxu0
        %v2615 = vadd.f32 0.0, %v2614
        %v2616 = vpop.f32.mrb[0].mxu0
        %v2617 = vpop.f32.mrb[0].mxu0
        %v2618 = vadd.f32 0.0, %v2617
        %v2619 = vpop.f32.mrb[0].mxu0
        %2620 = vmatprep.mubr.bf16.mxu0 0
        %2621 = vmatmul.mubr.bf16.gmra.mrb[0].mxu0 %v2397
        %v2622 = vpop.f32.mrb[0].mxu0
        %v2623 = vadd.f32 0.0, %v2622
        %v2624 = vpop.f32.mrb[0].mxu0
        %v2625 = vpop.f32.mrb[0].mxu0
        %v2626 = vadd.f32 0.0, %v2625
        %v2627 = vpop.f32.mrb[0].mxu0
        %2628 = vmatprep.mubr.bf16.mxu0 0
        %2629 = vmatmul.mubr.bf16.gmra.mrb[0].mxu0 %v2399
        %v2630 = vpop.f32.mrb[0].mxu0
        %v2631 = vadd.f32 0.0, %v2630
        %v2632 = vpop.f32.mrb[0].mxu0
        %v2633 = vpop.f32.mrb[0].mxu0
        %v2634 = vadd.f32 0.0, %v2633
        %v2635 = vpop.f32.mrb[0].mxu0
        %2636 = vmatprep.mubr.bf16.mxu0 0
        %2637 = vmatmul.mubr.bf16.gmra.mrb[0].mxu0 %v2401
        %v2638 = vpop.f32.mrb[0].mxu0
        %v2639 = vadd.f32 0.0, %v2638
        %v2640 = vpop.f32.mrb[0].mxu0
        %v2641 = vpop.f32.mrb[0].mxu0
        %v2642 = vadd.f32 0.0, %v2641
        %v2643 = vpop.f32.mrb[0].mxu0
        %2644 = vdwg.mxu0
        %v2645 = vadd.f32 %v2307, %v2503
        %v2646 = vadd.f32 %v2308, %v2506
        %v2647 = vadd.f32 %v2309, %v2511
        %v2648 = vadd.f32 %v2310, %v2514
        %v2649 = vadd.f32 %v2311, %v2519
        %v2650 = vadd.f32 %v2312, %v2522
        %v2651 = vadd.f32 %v2313, %v2527
        %v2652 = vadd.f32 %v2314, %v2530
        %v2653 = vadd.f32 %v2315, %v2535
        %v2654 = vadd.f32 %v2316, %v2538
        %v2655 = vadd.f32 %v2317, %v2543
        %v2656 = vadd.f32 %v2318, %v2546
        %v2657 = vadd.f32 %v2319, %v2551
        %v2658 = vadd.f32 %v2320, %v2554
        %v2659 = vadd.f32 %v2321, %v2559
        %v2660 = vadd.f32 %v2322, %v2562
        %v2661 = vadd.f32 %v2323, %v2567
        %v2662 = vadd.f32 %v2324, %v2570
        %v2663 = vadd.f32 %v2325, %v2575
        %v2664 = vadd.f32 %v2326, %v2578
        %v2665 = vadd.f32 %v2327, %v2583
        %v2666 = vadd.f32 %v2328, %v2586
        %v2667 = vadd.f32 %v2329, %v2591
        %v2668 = vadd.f32 %v2330, %v2594
        %v2669 = vadd.f32 %v2331, %v2599
        %v2670 = vadd.f32 %v2332, %v2602
        %v2671 = vadd.f32 %v2333, %v2607
        %v2672 = vadd.f32 %v2334, %v2610
        %v2673 = vadd.f32 %v2335, %v2615
        %v2674 = vadd.f32 %v2336, %v2618
        %v2675 = vadd.f32 %v2337, %v2623
        %v2676 = vadd.f32 %v2338, %v2626
        %v2677 = vadd.f32 %v2339, %v2631
        %v2678 = vadd.f32 %v2340, %v2634
        %v2679 = vadd.f32 %v2341, %v2639
        %v2680 = vadd.f32 %v2342, %v2642
        %v2681 = vld [vmem:[%s237 + $0x10] sm:$0xc]
        %v2682 = vld [vmem:[%s237 + $0x14] sm:$0xf]
        %v2683 = vld [vmem:[%s237 + $0x18] sm:$0xf]
        %v2684 = vld [vmem:[%s237 + $0x1c] sm:$0xf]
        %v2685 = vld [vmem:[%s237 + $0x20] sm:$0xf]
        %v2686 = vld [vmem:[%s237 + $0x24] sm:$0xf]
        %v2687 = vld [vmem:[%s237 + $0x28] sm:$0xf]
        %v2688 = vld [vmem:[%s237 + $0x2c] sm:$0xf]
        %v2689 = vld [vmem:[%s237 + $0x30] sm:$0xf]
        %v2690 = vld [vmem:[%s237 + $0x34] sm:$0xf]
        %v2691 = vld [vmem:[%s237 + $0x38] sm:$0xf]
        %v2692 = vld [vmem:[%s237 + $0x3c] sm:$0xf]
        %v2693 = vld [vmem:[%s237 + $0x40] sm:$0xf]
        %v2694 = vld [vmem:[%s237 + $0x44] sm:$0xf]
        %v2695 = vld [vmem:[%s237 + $0x48] sm:$0xf]
        %v2696 = vld [vmem:[%s237 + $0x4c] sm:$0xf]
        %v2697 = vld [vmem:[%s237 + $0x50] sm:$0xf]
        %v2698 = vld [vmem:[%s237 + $0x54] sm:$0xf]
        %v2699 = vld [vmem:[%s237 + $0x58] sm:$0xf]
        %v2700 = vld [vmem:[%s237 + $0x5c] sm:$0xf]
        %v2701 = vld [vmem:[%s237 + $0x60] sm:$0xf]
        %v2702 = vld [vmem:[%s237 + $0x64] sm:$0xf]
        %v2703 = vld [vmem:[%s237 + $0x68] sm:$0xf]
        %v2704 = vld [vmem:[%s237 + $0x6c] sm:$0xf]
        %v2705 = vld [vmem:[%s237 + $0x70] sm:$0xf]
        %v2706 = vld [vmem:[%s237 + $0x74] sm:$0xf]
        %v2707 = vld [vmem:[%s237 + $0x78] sm:$0xf]
        %v2708 = vld [vmem:[%s237 + $0x7c] sm:$0xf]
        %v2709 = vld [vmem:[%s237 + $0x80] sm:$0xf]
        %v2710 = vld [vmem:[%s237 + $0x84] sm:$0xf]
        %v2711 = vld [vmem:[%s237 + $0x88] sm:$0xf]
        %v2712 = vld [vmem:[%s237 + $0x8c] sm:$0xf]
        %v2713 = vld [vmem:[%s237 + $0x90] sm:$0xf]
        %v2714 = vld [vmem:[%s237 + $0x94] sm:$0xf]
        %v2715 = vld [vmem:[%s237 + $0x98] sm:$0xf]
        %v2716 = vld [vmem:[%s237 + $0x9c] sm:$0xf]
        %v2717 = vld [vmem:[%s237 + $0xa0] sm:$0x3]
        %s2718 = scalar_lea.vmem [#allocation6], 384
        %v2719 = vld [vmem:[%s2718] sm:$0xf]
        %v2720 = vld [vmem:[%s2718 + $0x4] sm:$0xf]
        %v2721 = vld [vmem:[%s2718 + $0x8] sm:$0xf]
        %v2722 = vld [vmem:[%s2718 + $0xc] sm:$0xf]
        %v2723 = vld [vmem:[%s2718 + $0x10] sm:$0xf]
        %v2724 = vld [vmem:[%s2718 + $0x14] sm:$0xf]
        %v2725 = vld [vmem:[%s2718 + $0x18] sm:$0xf]
        %v2726 = vld [vmem:[%s2718 + $0x1c] sm:$0xf]
        %v2727 = vld [vmem:[%s2718 + $0x20] sm:$0xf]
        %v2728 = vld [vmem:[%s2718 + $0x24] sm:$0xf]
        %v2729 = vld [vmem:[%s2718 + $0x28] sm:$0xf]
        %v2730 = vld [vmem:[%s2718 + $0x2c] sm:$0xf]
        %v2731 = vld [vmem:[%s2718 + $0x30] sm:$0xf]
        %v2732 = vld [vmem:[%s2718 + $0x34] sm:$0xf]
        %v2733 = vld [vmem:[%s2718 + $0x38] sm:$0xf]
        %v2734 = vld [vmem:[%s2718 + $0x3c] sm:$0xf]
        %v2772 = vunpack.c.l.b16 %v2681
        %v2773 = vunpack.c.l.b16 %v2682
        %v2774 = vunpack.c.l.b16 %v2683
        %v2775 = vunpack.c.l.b16 %v2684
        %v2776 = vunpack.c.l.b16 %v2685
        %v2777 = vunpack.c.l.b16 %v2686
        %v2778 = vunpack.c.l.b16 %v2687
        %v2779 = vunpack.c.l.b16 %v2688
        %v2780 = vunpack.c.l.b16 %v2689
        %v2781 = vunpack.c.l.b16 %v2690
        %v2782 = vunpack.c.l.b16 %v2691
        %v2783 = vunpack.c.l.b16 %v2692
        %v2784 = vunpack.c.l.b16 %v2693
        %v2785 = vunpack.c.l.b16 %v2694
        %v2786 = vunpack.c.l.b16 %v2695
        %v2787 = vunpack.c.l.b16 %v2696
        %v2788 = vunpack.c.l.b16 %v2697
        %v2789 = vunpack.c.l.b16 %v2698
        %v2790 = vunpack.c.l.b16 %v2699
        %v2791 = vunpack.c.l.b16 %v2700
        %v2792 = vunpack.c.l.b16 %v2701
        %v2793 = vunpack.c.l.b16 %v2702
        %v2794 = vunpack.c.l.b16 %v2703
        %v2795 = vunpack.c.l.b16 %v2704
        %v2796 = vunpack.c.l.b16 %v2705
        %v2797 = vunpack.c.l.b16 %v2706
        %v2798 = vunpack.c.l.b16 %v2707
        %v2799 = vunpack.c.l.b16 %v2708
        %v2800 = vunpack.c.l.b16 %v2709
        %v2801 = vunpack.c.l.b16 %v2710
        %v2802 = vunpack.c.l.b16 %v2711
        %v2803 = vunpack.c.l.b16 %v2712
        %v2804 = vunpack.c.l.b16 %v2713
        %v2805 = vunpack.c.l.b16 %v2714
        %v2806 = vunpack.c.l.b16 %v2715
        %v2807 = vunpack.c.l.b16 %v2716
        %v2808 = vunpack.c.l.b16 %v2717
        %v2809 = vpack.c.b16 %v2773, %v2772
        %v2810 = vpack.c.b16 %v2775, %v2774
        %v2811 = vpack.c.b16 %v2777, %v2776
        %v2812 = vpack.c.b16 %v2779, %v2778
        %v2813 = vpack.c.b16 %v2781, %v2780
        %v2814 = vpack.c.b16 %v2783, %v2782
        %v2815 = vpack.c.b16 %v2785, %v2784
        %v2816 = vpack.c.b16 %v2787, %v2786
        %v2817 = vpack.c.b16 %v2789, %v2788
        %v2818 = vpack.c.b16 %v2791, %v2790
        %v2819 = vpack.c.b16 %v2793, %v2792
        %v2820 = vpack.c.b16 %v2795, %v2794
        %v2821 = vpack.c.b16 %v2797, %v2796
        %v2822 = vpack.c.b16 %v2799, %v2798
        %v2823 = vpack.c.b16 %v2801, %v2800
        %v2824 = vpack.c.b16 %v2803, %v2802
        %v2825 = vpack.c.b16 %v2805, %v2804
        %v2826 = vpack.c.b16 %v2807, %v2806
        %v2827 = vpack.c.b16 %v2808, %v2808
        %v2828 = vrot.slane %v2809, 2
        %v2829 = vrot.slane %v2810, 2
        %v2830 = vsel %vm2364, %v2828, %v2829
        %v2831 = vrot.slane %v2811, 2
        %v2832 = vsel %vm2364, %v2829, %v2831
        %v2833 = vrot.slane %v2812, 2
        %v2834 = vsel %vm2364, %v2831, %v2833
        %v2835 = vrot.slane %v2813, 2
        %v2836 = vsel %vm2364, %v2833, %v2835
        %v2837 = vrot.slane %v2814, 2
        %v2838 = vsel %vm2364, %v2835, %v2837
        %v2839 = vrot.slane %v2815, 2
        %v2840 = vsel %vm2364, %v2837, %v2839
        %v2841 = vrot.slane %v2816, 2
        %v2842 = vsel %vm2364, %v2839, %v2841
        %v2843 = vrot.slane %v2817, 2
        %v2844 = vsel %vm2364, %v2841, %v2843
        %v2845 = vrot.slane %v2818, 2
        %v2846 = vsel %vm2364, %v2843, %v2845
        %v2847 = vrot.slane %v2819, 2
        %v2848 = vsel %vm2364, %v2845, %v2847
        %v2849 = vrot.slane %v2820, 2
        %v2850 = vsel %vm2364, %v2847, %v2849
        %v2851 = vrot.slane %v2821, 2
        %v2852 = vsel %vm2364, %v2849, %v2851
        %v2853 = vrot.slane %v2822, 2
        %v2854 = vsel %vm2364, %v2851, %v2853
        %v2855 = vrot.slane %v2823, 2
        %v2856 = vsel %vm2364, %v2853, %v2855
        %v2857 = vrot.slane %v2824, 2
        %v2858 = vsel %vm2364, %v2855, %v2857
        %v2859 = vrot.slane %v2825, 2
        %v2860 = vsel %vm2364, %v2857, %v2859
        %v2861 = vrot.slane %v2826, 2
        %v2862 = vsel %vm2364, %v2859, %v2861
        %v2863 = vrot.slane %v2827, 2
        %v2864 = vsel %vm2364, %v2861, %v2863
        %v2899 = vunpack.c.l.b16 %v2719
        %v2900 = vunpack.c.l.b16 %v2720
        %v2901 = vunpack.c.l.b16 %v2721
        %v2902 = vunpack.c.l.b16 %v2722
        %v2903 = vunpack.c.l.b16 %v2723
        %v2904 = vunpack.c.l.b16 %v2724
        %v2905 = vunpack.c.l.b16 %v2725
        %v2906 = vunpack.c.l.b16 %v2726
        %v2907 = vunpack.c.l.b16 %v2727
        %v2908 = vunpack.c.l.b16 %v2728
        %v2909 = vunpack.c.l.b16 %v2729
        %v2910 = vunpack.c.l.b16 %v2730
        %v2911 = vunpack.c.l.b16 %v2731
        %v2912 = vunpack.c.l.b16 %v2732
        %v2913 = vunpack.c.l.b16 %v2733
        %v2914 = vunpack.c.l.b16 %v2734
        %v2915 = vpack.c.b16 %v2900, %v2899
        %v2916 = vpack.c.b16 %v2902, %v2901
        %v2917 = vpack.c.b16 %v2904, %v2903
        %v2918 = vpack.c.b16 %v2906, %v2905
        %v2919 = vpack.c.b16 %v2908, %v2907
        %v2920 = vpack.c.b16 %v2910, %v2909
        %v2921 = vpack.c.b16 %v2912, %v2911
        %v2922 = vpack.c.b16 %v2914, %v2913
        %2931 = vmatprep.subr.bf16.mxu0 0
        %2932 = vmatpush1.bf16.msra.mxu0 %v2915
        %2933 = vmatprep.subr.bf16.mxu0 0
        %2934 = vmatpush1.bf16.msra.mxu0 %v2916
        %2935 = vmatprep.subr.bf16.mxu0 0
        %2936 = vmatpush1.bf16.msra.mxu0 %v2917
        %2937 = vmatprep.subr.bf16.mxu0 0
        %2938 = vmatpush1.bf16.msra.mxu0 %v2918
        %2939 = vmatprep.subr.bf16.mxu0 0
        %2940 = vmatpush1.bf16.msra.mxu0 %v2919
        %2941 = vmatprep.subr.bf16.mxu0 0
        %2942 = vmatpush1.bf16.msra.mxu0 %v2920
        %2943 = vmatprep.subr.bf16.mxu0 0
        %2944 = vmatpush1.bf16.msra.mxu0 %v2921
        %2945 = vmatprep.subr.bf16.mxu0 0
        %2946 = vmatpush1.bf16.msra.mxu0 %v2922
        %2947 = vmatprep.subr.bf16.mxu0 0
        %2948 = vmatpush1.bf16.msra.mxu0 0
        %2949 = vmatprep.subr.bf16.mxu0 0
        %2950 = vmatpush1.bf16.msra.mxu0 0
        %2951 = vmatprep.subr.bf16.mxu0 0
        %2952 = vmatpush1.bf16.msra.mxu0 0
        %2953 = vmatprep.subr.bf16.mxu0 0
        %2954 = vmatpush1.bf16.msra.mxu0 0
        %2955 = vmatprep.subr.bf16.mxu0 0
        %2956 = vmatpush1.bf16.msra.mxu0 0
        %2957 = vmatprep.subr.bf16.mxu0 0
        %2958 = vmatpush1.bf16.msra.mxu0 0
        %2959 = vmatprep.subr.bf16.mxu0 0
        %2960 = vmatpush1.bf16.msra.mxu0 0
        %2961 = vmatprep.subr.bf16.mxu0 0
        %2962 = vmatpush1.bf16.msra.mxu0 0
        %2963 = vmatprep.mubr.bf16.mxu0 0
        %2964 = vmatmul.mubr.bf16.gmra.mrb[0].mxu0 %v2830
        %v2965 = vpop.f32.mrb[0].mxu0
        %v2966 = vadd.f32 0.0, %v2965
        %v2967 = vpop.f32.mrb[0].mxu0
        %v2968 = vpop.f32.mrb[0].mxu0
        %v2969 = vadd.f32 0.0, %v2968
        %v2970 = vpop.f32.mrb[0].mxu0
        %2971 = vmatprep.mubr.bf16.mxu0 0
        %2972 = vmatmul.mubr.bf16.gmra.mrb[0].mxu0 %v2832
        %v2973 = vpop.f32.mrb[0].mxu0
        %v2974 = vadd.f32 0.0, %v2973
        %v2975 = vpop.f32.mrb[0].mxu0
        %v2976 = vpop.f32.mrb[0].mxu0
        %v2977 = vadd.f32 0.0, %v2976
        %v2978 = vpop.f32.mrb[0].mxu0
        %2979 = vmatprep.mubr.bf16.mxu0 0
        %2980 = vmatmul.mubr.bf16.gmra.mrb[0].mxu0 %v2834
        %v2981 = vpop.f32.mrb[0].mxu0
        %v2982 = vadd.f32 0.0, %v2981
        %v2983 = vpop.f32.mrb[0].mxu0
        %v2984 = vpop.f32.mrb[0].mxu0
        %v2985 = vadd.f32 0.0, %v2984
        %v2986 = vpop.f32.mrb[0].mxu0
        %2987 = vmatprep.mubr.bf16.mxu0 0
        %2988 = vmatmul.mubr.bf16.gmra.mrb[0].mxu0 %v2836
        %v2989 = vpop.f32.mrb[0].mxu0
        %v2990 = vadd.f32 0.0, %v2989
        %v2991 = vpop.f32.mrb[0].mxu0
        %v2992 = vpop.f32.mrb[0].mxu0
        %v2993 = vadd.f32 0.0, %v2992
        %v2994 = vpop.f32.mrb[0].mxu0
        %2995 = vmatprep.mubr.bf16.mxu0 0
        %2996 = vmatmul.mubr.bf16.gmra.mrb[0].mxu0 %v2838
        %v2997 = vpop.f32.mrb[0].mxu0
        %v2998 = vadd.f32 0.0, %v2997
        %v2999 = vpop.f32.mrb[0].mxu0
        %v3000 = vpop.f32.mrb[0].mxu0
        %v3001 = vadd.f32 0.0, %v3000
        %v3002 = vpop.f32.mrb[0].mxu0
        %3003 = vmatprep.mubr.bf16.mxu0 0
        %3004 = vmatmul.mubr.bf16.gmra.mrb[0].mxu0 %v2840
        %v3005 = vpop.f32.mrb[0].mxu0
        %v3006 = vadd.f32 0.0, %v3005
        %v3007 = vpop.f32.mrb[0].mxu0
        %v3008 = vpop.f32.mrb[0].mxu0
        %v3009 = vadd.f32 0.0, %v3008
        %v3010 = vpop.f32.mrb[0].mxu0
        %3011 = vmatprep.mubr.bf16.mxu0 0
        %3012 = vmatmul.mubr.bf16.gmra.mrb[0].mxu0 %v2842
        %v3013 = vpop.f32.mrb[0].mxu0
        %v3014 = vadd.f32 0.0, %v3013
        %v3015 = vpop.f32.mrb[0].mxu0
        %v3016 = vpop.f32.mrb[0].mxu0
        %v3017 = vadd.f32 0.0, %v3016
        %v3018 = vpop.f32.mrb[0].mxu0
        %3019 = vmatprep.mubr.bf16.mxu0 0
        %3020 = vmatmul.mubr.bf16.gmra.mrb[0].mxu0 %v2844
        %v3021 = vpop.f32.mrb[0].mxu0
        %v3022 = vadd.f32 0.0, %v3021
        %v3023 = vpop.f32.mrb[0].mxu0
        %v3024 = vpop.f32.mrb[0].mxu0
        %v3025 = vadd.f32 0.0, %v3024
        %v3026 = vpop.f32.mrb[0].mxu0
        %3027 = vmatprep.mubr.bf16.mxu0 0
        %3028 = vmatmul.mubr.bf16.gmra.mrb[0].mxu0 %v2846
        %v3029 = vpop.f32.mrb[0].mxu0
        %v3030 = vadd.f32 0.0, %v3029
        %v3031 = vpop.f32.mrb[0].mxu0
        %v3032 = vpop.f32.mrb[0].mxu0
        %v3033 = vadd.f32 0.0, %v3032
        %v3034 = vpop.f32.mrb[0].mxu0
        %3035 = vmatprep.mubr.bf16.mxu0 0
        %3036 = vmatmul.mubr.bf16.gmra.mrb[0].mxu0 %v2848
        %v3037 = vpop.f32.mrb[0].mxu0
        %v3038 = vadd.f32 0.0, %v3037
        %v3039 = vpop.f32.mrb[0].mxu0
        %v3040 = vpop.f32.mrb[0].mxu0
        %v3041 = vadd.f32 0.0, %v3040
        %v3042 = vpop.f32.mrb[0].mxu0
        %3043 = vmatprep.mubr.bf16.mxu0 0
        %3044 = vmatmul.mubr.bf16.gmra.mrb[0].mxu0 %v2850
        %v3045 = vpop.f32.mrb[0].mxu0
        %v3046 = vadd.f32 0.0, %v3045
        %v3047 = vpop.f32.mrb[0].mxu0
        %v3048 = vpop.f32.mrb[0].mxu0
        %v3049 = vadd.f32 0.0, %v3048
        %v3050 = vpop.f32.mrb[0].mxu0
        %3051 = vmatprep.mubr.bf16.mxu0 0
        %3052 = vmatmul.mubr.bf16.gmra.mrb[0].mxu0 %v2852
        %v3053 = vpop.f32.mrb[0].mxu0
        %v3054 = vadd.f32 0.0, %v3053
        %v3055 = vpop.f32.mrb[0].mxu0
        %v3056 = vpop.f32.mrb[0].mxu0
        %v3057 = vadd.f32 0.0, %v3056
        %v3058 = vpop.f32.mrb[0].mxu0
        %3059 = vmatprep.mubr.bf16.mxu0 0
        %3060 = vmatmul.mubr.bf16.gmra.mrb[0].mxu0 %v2854
        %v3061 = vpop.f32.mrb[0].mxu0
        %v3062 = vadd.f32 0.0, %v3061
        %v3063 = vpop.f32.mrb[0].mxu0
        %v3064 = vpop.f32.mrb[0].mxu0
        %v3065 = vadd.f32 0.0, %v3064
        %v3066 = vpop.f32.mrb[0].mxu0
        %3067 = vmatprep.mubr.bf16.mxu0 0
        %3068 = vmatmul.mubr.bf16.gmra.mrb[0].mxu0 %v2856
        %v3069 = vpop.f32.mrb[0].mxu0
        %v3070 = vadd.f32 0.0, %v3069
        %v3071 = vpop.f32.mrb[0].mxu0
        %v3072 = vpop.f32.mrb[0].mxu0
        %v3073 = vadd.f32 0.0, %v3072
        %v3074 = vpop.f32.mrb[0].mxu0
        %3075 = vmatprep.mubr.bf16.mxu0 0
        %3076 = vmatmul.mubr.bf16.gmra.mrb[0].mxu0 %v2858
        %v3077 = vpop.f32.mrb[0].mxu0
        %v3078 = vadd.f32 0.0, %v3077
        %v3079 = vpop.f32.mrb[0].mxu0
        %v3080 = vpop.f32.mrb[0].mxu0
        %v3081 = vadd.f32 0.0, %v3080
        %v3082 = vpop.f32.mrb[0].mxu0
        %3083 = vmatprep.mubr.bf16.mxu0 0
        %3084 = vmatmul.mubr.bf16.gmra.mrb[0].mxu0 %v2860
        %v3085 = vpop.f32.mrb[0].mxu0
        %v3086 = vadd.f32 0.0, %v3085
        %v3087 = vpop.f32.mrb[0].mxu0
        %v3088 = vpop.f32.mrb[0].mxu0
        %v3089 = vadd.f32 0.0, %v3088
        %v3090 = vpop.f32.mrb[0].mxu0
        %3091 = vmatprep.mubr.bf16.mxu0 0
        %3092 = vmatmul.mubr.bf16.gmra.mrb[0].mxu0 %v2862
        %v3093 = vpop.f32.mrb[0].mxu0
        %v3094 = vadd.f32 0.0, %v3093
        %v3095 = vpop.f32.mrb[0].mxu0
        %v3096 = vpop.f32.mrb[0].mxu0
        %v3097 = vadd.f32 0.0, %v3096
        %v3098 = vpop.f32.mrb[0].mxu0
        %3099 = vmatprep.mubr.bf16.mxu0 0
        %3100 = vmatmul.mubr.bf16.gmra.mrb[0].mxu0 %v2864
        %v3101 = vpop.f32.mrb[0].mxu0
        %v3102 = vadd.f32 0.0, %v3101
        %v3103 = vpop.f32.mrb[0].mxu0
        %v3104 = vpop.f32.mrb[0].mxu0
        %v3105 = vadd.f32 0.0, %v3104
        %v3106 = vpop.f32.mrb[0].mxu0
        %3107 = vdwg.mxu0
        %v3108 = vadd.f32 %v2645, %v2966
        %v3109 = vadd.f32 %v2646, %v2969
        %v3110 = vadd.f32 %v2647, %v2974
        %v3111 = vadd.f32 %v2648, %v2977
        %v3112 = vadd.f32 %v2649, %v2982
        %v3113 = vadd.f32 %v2650, %v2985
        %v3114 = vadd.f32 %v2651, %v2990
        %v3115 = vadd.f32 %v2652, %v2993
        %v3116 = vadd.f32 %v2653, %v2998
        %v3117 = vadd.f32 %v2654, %v3001
        %v3118 = vadd.f32 %v2655, %v3006
        %v3119 = vadd.f32 %v2656, %v3009
        %v3120 = vadd.f32 %v2657, %v3014
        %v3121 = vadd.f32 %v2658, %v3017
        %v3122 = vadd.f32 %v2659, %v3022
        %v3123 = vadd.f32 %v2660, %v3025
        %v3124 = vadd.f32 %v2661, %v3030
        %v3125 = vadd.f32 %v2662, %v3033
        %v3126 = vadd.f32 %v2663, %v3038
        %v3127 = vadd.f32 %v2664, %v3041
        %v3128 = vadd.f32 %v2665, %v3046
        %v3129 = vadd.f32 %v2666, %v3049
        %v3130 = vadd.f32 %v2667, %v3054
        %v3131 = vadd.f32 %v2668, %v3057
        %v3132 = vadd.f32 %v2669, %v3062
        %v3133 = vadd.f32 %v2670, %v3065
        %v3134 = vadd.f32 %v2671, %v3070
        %v3135 = vadd.f32 %v2672, %v3073
        %v3136 = vadd.f32 %v2673, %v3078
        %v3137 = vadd.f32 %v2674, %v3081
        %v3138 = vadd.f32 %v2675, %v3086
        %v3139 = vadd.f32 %v2676, %v3089
        %v3140 = vadd.f32 %v2677, %v3094
        %v3141 = vadd.f32 %v2678, %v3097
        %v3142 = vadd.f32 %v2679, %v3102
        %v3143 = vadd.f32 %v2680, %v3105
        %v3144 = vld [vmem:[%s237 + $0xa0] sm:$0x7]
        %s3145 = scalar_lea.vmem [#allocation6], 448
        %v3146 = vld [vmem:[%s3145] sm:$0xf]
        %v3147 = vld [vmem:[%s3145 + $0x4] sm:$0xf]
        %v3148 = vld [vmem:[%s3145 + $0x8] sm:$0xf]
        %v3149 = vld [vmem:[%s3145 + $0xc] sm:$0xf]
        %v3150 = vld [vmem:[%s3145 + $0x10] sm:$0xf]
        %v3151 = vld [vmem:[%s3145 + $0x14] sm:$0xf]
        %v3152 = vld [vmem:[%s3145 + $0x18] sm:$0xf]
        %v3153 = vld [vmem:[%s3145 + $0x1c] sm:$0xf]
        %v3154 = vld [vmem:[%s3145 + $0x20] sm:$0xf]
        %v3155 = vld [vmem:[%s3145 + $0x24] sm:$0xf]
        %v3156 = vld [vmem:[%s3145 + $0x28] sm:$0xf]
        %v3157 = vld [vmem:[%s3145 + $0x2c] sm:$0xf]
        %v3158 = vld [vmem:[%s3145 + $0x30] sm:$0xf]
        %v3159 = vld [vmem:[%s3145 + $0x34] sm:$0xf]
        %v3160 = vld [vmem:[%s3145 + $0x38] sm:$0xf]
        %v3161 = vld [vmem:[%s3145 + $0x3c] sm:$0xf]
        %v3163 = vunpack.c.l.b16 %v3144
        %v3164 = vpack.c.b16 %v3163, %v3163
        %vm3165 = vsmask.f32 5376
        %v3167 = vshrl.u32 %v2809, 16
        %v3169 = vrot.slane %v3167, 2
        %v3170 = vshll.u32 %v2809, 16
        %v3172 = vrot.slane %v3170, 3
        %v3173 = vor.u32 %v3169, %v3172
        %v3175 = vshrl.u32 %v2810, 16
        %v3177 = vrot.slane %v3175, 2
        %v3178 = vshll.u32 %v2810, 16
        %v3180 = vrot.slane %v3178, 3
        %v3181 = vor.u32 %v3177, %v3180
        %v3182 = vsel %vm3165, %v3173, %v3181
        %v3184 = vshrl.u32 %v2811, 16
        %v3186 = vrot.slane %v3184, 2
        %v3187 = vshll.u32 %v2811, 16
        %v3189 = vrot.slane %v3187, 3
        %v3190 = vor.u32 %v3186, %v3189
        %v3191 = vsel %vm3165, %v3181, %v3190
        %v3193 = vshrl.u32 %v2812, 16
        %v3195 = vrot.slane %v3193, 2
        %v3196 = vshll.u32 %v2812, 16
        %v3198 = vrot.slane %v3196, 3
        %v3199 = vor.u32 %v3195, %v3198
        %v3200 = vsel %vm3165, %v3190, %v3199
        %v3202 = vshrl.u32 %v2813, 16
        %v3204 = vrot.slane %v3202, 2
        %v3205 = vshll.u32 %v2813, 16
        %v3207 = vrot.slane %v3205, 3
        %v3208 = vor.u32 %v3204, %v3207
        %v3209 = vsel %vm3165, %v3199, %v3208
        %v3211 = vshrl.u32 %v2814, 16
        %v3213 = vrot.slane %v3211, 2
        %v3214 = vshll.u32 %v2814, 16
        %v3216 = vrot.slane %v3214, 3
        %v3217 = vor.u32 %v3213, %v3216
        %v3218 = vsel %vm3165, %v3208, %v3217
        %v3220 = vshrl.u32 %v2815, 16
        %v3222 = vrot.slane %v3220, 2
        %v3223 = vshll.u32 %v2815, 16
        %v3225 = vrot.slane %v3223, 3
        %v3226 = vor.u32 %v3222, %v3225
        %v3227 = vsel %vm3165, %v3217, %v3226
        %v3229 = vshrl.u32 %v2816, 16
        %v3231 = vrot.slane %v3229, 2
        %v3232 = vshll.u32 %v2816, 16
        %v3234 = vrot.slane %v3232, 3
        %v3235 = vor.u32 %v3231, %v3234
        %v3236 = vsel %vm3165, %v3226, %v3235
        %v3238 = vshrl.u32 %v2817, 16
        %v3240 = vrot.slane %v3238, 2
        %v3241 = vshll.u32 %v2817, 16
        %v3243 = vrot.slane %v3241, 3
        %v3244 = vor.u32 %v3240, %v3243
        %v3245 = vsel %vm3165, %v3235, %v3244
        %v3247 = vshrl.u32 %v2818, 16
        %v3249 = vrot.slane %v3247, 2
        %v3250 = vshll.u32 %v2818, 16
        %v3252 = vrot.slane %v3250, 3
        %v3253 = vor.u32 %v3249, %v3252
        %v3254 = vsel %vm3165, %v3244, %v3253
        %v3256 = vshrl.u32 %v2819, 16
        %v3258 = vrot.slane %v3256, 2
        %v3259 = vshll.u32 %v2819, 16
        %v3261 = vrot.slane %v3259, 3
        %v3262 = vor.u32 %v3258, %v3261
        %v3263 = vsel %vm3165, %v3253, %v3262
        %v3265 = vshrl.u32 %v2820, 16
        %v3267 = vrot.slane %v3265, 2
        %v3268 = vshll.u32 %v2820, 16
        %v3270 = vrot.slane %v3268, 3
        %v3271 = vor.u32 %v3267, %v3270
        %v3272 = vsel %vm3165, %v3262, %v3271
        %v3274 = vshrl.u32 %v2821, 16
        %v3276 = vrot.slane %v3274, 2
        %v3277 = vshll.u32 %v2821, 16
        %v3279 = vrot.slane %v3277, 3
        %v3280 = vor.u32 %v3276, %v3279
        %v3281 = vsel %vm3165, %v3271, %v3280
        %v3283 = vshrl.u32 %v2822, 16
        %v3285 = vrot.slane %v3283, 2
        %v3286 = vshll.u32 %v2822, 16
        %v3288 = vrot.slane %v3286, 3
        %v3289 = vor.u32 %v3285, %v3288
        %v3290 = vsel %vm3165, %v3280, %v3289
        %v3292 = vshrl.u32 %v2823, 16
        %v3294 = vrot.slane %v3292, 2
        %v3295 = vshll.u32 %v2823, 16
        %v3297 = vrot.slane %v3295, 3
        %v3298 = vor.u32 %v3294, %v3297
        %v3299 = vsel %vm3165, %v3289, %v3298
        %v3301 = vshrl.u32 %v2824, 16
        %v3303 = vrot.slane %v3301, 2
        %v3304 = vshll.u32 %v2824, 16
        %v3306 = vrot.slane %v3304, 3
        %v3307 = vor.u32 %v3303, %v3306
        %v3308 = vsel %vm3165, %v3298, %v3307
        %v3310 = vshrl.u32 %v2825, 16
        %v3312 = vrot.slane %v3310, 2
        %v3313 = vshll.u32 %v2825, 16
        %v3315 = vrot.slane %v3313, 3
        %v3316 = vor.u32 %v3312, %v3315
        %v3317 = vsel %vm3165, %v3307, %v3316
        %v3319 = vshrl.u32 %v2826, 16
        %v3321 = vrot.slane %v3319, 2
        %v3322 = vshll.u32 %v2826, 16
        %v3324 = vrot.slane %v3322, 3
        %v3325 = vor.u32 %v3321, %v3324
        %v3326 = vsel %vm3165, %v3316, %v3325
        %v3328 = vshrl.u32 %v3164, 16
        %v3330 = vrot.slane %v3328, 2
        %v3331 = vshll.u32 %v3164, 16
        %v3333 = vrot.slane %v3331, 3
        %v3334 = vor.u32 %v3330, %v3333
        %v3335 = vsel %vm3165, %v3325, %v3334
        %v3370 = vunpack.c.l.b16 %v3146
        %v3371 = vunpack.c.l.b16 %v3147
        %v3372 = vunpack.c.l.b16 %v3148
        %v3373 = vunpack.c.l.b16 %v3149
        %v3374 = vunpack.c.l.b16 %v3150
        %v3375 = vunpack.c.l.b16 %v3151
        %v3376 = vunpack.c.l.b16 %v3152
        %v3377 = vunpack.c.l.b16 %v3153
        %v3378 = vunpack.c.l.b16 %v3154
        %v3379 = vunpack.c.l.b16 %v3155
        %v3380 = vunpack.c.l.b16 %v3156
        %v3381 = vunpack.c.l.b16 %v3157
        %v3382 = vunpack.c.l.b16 %v3158
        %v3383 = vunpack.c.l.b16 %v3159
        %v3384 = vunpack.c.l.b16 %v3160
        %v3385 = vunpack.c.l.b16 %v3161
        %v3386 = vpack.c.b16 %v3371, %v3370
        %v3387 = vpack.c.b16 %v3373, %v3372
        %v3388 = vpack.c.b16 %v3375, %v3374
        %v3389 = vpack.c.b16 %v3377, %v3376
        %v3390 = vpack.c.b16 %v3379, %v3378
        %v3391 = vpack.c.b16 %v3381, %v3380
        %v3392 = vpack.c.b16 %v3383, %v3382
        %v3393 = vpack.c.b16 %v3385, %v3384
        %3402 = vmatprep.subr.bf16.mxu0 0
        %3403 = vmatpush1.bf16.msra.mxu0 %v3386
        %3404 = vmatprep.subr.bf16.mxu0 0
        %3405 = vmatpush1.bf16.msra.mxu0 %v3387
        %3406 = vmatprep.subr.bf16.mxu0 0
        %3407 = vmatpush1.bf16.msra.mxu0 %v3388
        %3408 = vmatprep.subr.bf16.mxu0 0
        %3409 = vmatpush1.bf16.msra.mxu0 %v3389
        %3410 = vmatprep.subr.bf16.mxu0 0
        %3411 = vmatpush1.bf16.msra.mxu0 %v3390
        %3412 = vmatprep.subr.bf16.mxu0 0
        %3413 = vmatpush1.bf16.msra.mxu0 %v3391
        %3414 = vmatprep.subr.bf16.mxu0 0
        %3415 = vmatpush1.bf16.msra.mxu0 %v3392
        %3416 = vmatprep.subr.bf16.mxu0 0
        %3417 = vmatpush1.bf16.msra.mxu0 %v3393
        %3418 = vmatprep.subr.bf16.mxu0 0
        %3419 = vmatpush1.bf16.msra.mxu0 0
        %3420 = vmatprep.subr.bf16.mxu0 0
        %3421 = vmatpush1.bf16.msra.mxu0 0
        %3422 = vmatprep.subr.bf16.mxu0 0
        %3423 = vmatpush1.bf16.msra.mxu0 0
        %3424 = vmatprep.subr.bf16.mxu0 0
        %3425 = vmatpush1.bf16.msra.mxu0 0
        %3426 = vmatprep.subr.bf16.mxu0 0
        %3427 = vmatpush1.bf16.msra.mxu0 0
        %3428 = vmatprep.subr.bf16.mxu0 0
        %3429 = vmatpush1.bf16.msra.mxu0 0
        %3430 = vmatprep.subr.bf16.mxu0 0
        %3431 = vmatpush1.bf16.msra.mxu0 0
        %3432 = vmatprep.subr.bf16.mxu0 0
        %3433 = vmatpush1.bf16.msra.mxu0 0
        %3434 = vmatprep.mubr.bf16.mxu0 0
        %3435 = vmatmul.mubr.bf16.gmra.mrb[0].mxu0 %v3182
        %v3436 = vpop.f32.mrb[0].mxu0
        %v3437 = vadd.f32 0.0, %v3436
        %v3438 = vpop.f32.mrb[0].mxu0
        %v3439 = vpop.f32.mrb[0].mxu0
        %v3440 = vadd.f32 0.0, %v3439
        %v3441 = vpop.f32.mrb[0].mxu0
        %3442 = vmatprep.mubr.bf16.mxu0 0
        %3443 = vmatmul.mubr.bf16.gmra.mrb[0].mxu0 %v3191
        %v3444 = vpop.f32.mrb[0].mxu0
        %v3445 = vadd.f32 0.0, %v3444
        %v3446 = vpop.f32.mrb[0].mxu0
        %v3447 = vpop.f32.mrb[0].mxu0
        %v3448 = vadd.f32 0.0, %v3447
        %v3449 = vpop.f32.mrb[0].mxu0
        %3450 = vmatprep.mubr.bf16.mxu0 0
        %3451 = vmatmul.mubr.bf16.gmra.mrb[0].mxu0 %v3200
        %v3452 = vpop.f32.mrb[0].mxu0
        %v3453 = vadd.f32 0.0, %v3452
        %v3454 = vpop.f32.mrb[0].mxu0
        %v3455 = vpop.f32.mrb[0].mxu0
        %v3456 = vadd.f32 0.0, %v3455
        %v3457 = vpop.f32.mrb[0].mxu0
        %3458 = vmatprep.mubr.bf16.mxu0 0
        %3459 = vmatmul.mubr.bf16.gmra.mrb[0].mxu0 %v3209
        %v3460 = vpop.f32.mrb[0].mxu0
        %v3461 = vadd.f32 0.0, %v3460
        %v3462 = vpop.f32.mrb[0].mxu0
        %v3463 = vpop.f32.mrb[0].mxu0
        %v3464 = vadd.f32 0.0, %v3463
        %v3465 = vpop.f32.mrb[0].mxu0
        %3466 = vmatprep.mubr.bf16.mxu0 0
        %3467 = vmatmul.mubr.bf16.gmra.mrb[0].mxu0 %v3218
        %v3468 = vpop.f32.mrb[0].mxu0
        %v3469 = vadd.f32 0.0, %v3468
        %v3470 = vpop.f32.mrb[0].mxu0
        %v3471 = vpop.f32.mrb[0].mxu0
        %v3472 = vadd.f32 0.0, %v3471
        %v3473 = vpop.f32.mrb[0].mxu0
        %3474 = vmatprep.mubr.bf16.mxu0 0
        %3475 = vmatmul.mubr.bf16.gmra.mrb[0].mxu0 %v3227
        %v3476 = vpop.f32.mrb[0].mxu0
        %v3477 = vadd.f32 0.0, %v3476
        %v3478 = vpop.f32.mrb[0].mxu0
        %v3479 = vpop.f32.mrb[0].mxu0
        %v3480 = vadd.f32 0.0, %v3479
        %v3481 = vpop.f32.mrb[0].mxu0
        %3482 = vmatprep.mubr.bf16.mxu0 0
        %3483 = vmatmul.mubr.bf16.gmra.mrb[0].mxu0 %v3236
        %v3484 = vpop.f32.mrb[0].mxu0
        %v3485 = vadd.f32 0.0, %v3484
        %v3486 = vpop.f32.mrb[0].mxu0
        %v3487 = vpop.f32.mrb[0].mxu0
        %v3488 = vadd.f32 0.0, %v3487
        %v3489 = vpop.f32.mrb[0].mxu0
        %3490 = vmatprep.mubr.bf16.mxu0 0
        %3491 = vmatmul.mubr.bf16.gmra.mrb[0].mxu0 %v3245
        %v3492 = vpop.f32.mrb[0].mxu0
        %v3493 = vadd.f32 0.0, %v3492
        %v3494 = vpop.f32.mrb[0].mxu0
        %v3495 = vpop.f32.mrb[0].mxu0
        %v3496 = vadd.f32 0.0, %v3495
        %v3497 = vpop.f32.mrb[0].mxu0
        %3498 = vmatprep.mubr.bf16.mxu0 0
        %3499 = vmatmul.mubr.bf16.gmra.mrb[0].mxu0 %v3254
        %v3500 = vpop.f32.mrb[0].mxu0
        %v3501 = vadd.f32 0.0, %v3500
        %v3502 = vpop.f32.mrb[0].mxu0
        %v3503 = vpop.f32.mrb[0].mxu0
        %v3504 = vadd.f32 0.0, %v3503
        %v3505 = vpop.f32.mrb[0].mxu0
        %3506 = vmatprep.mubr.bf16.mxu0 0
        %3507 = vmatmul.mubr.bf16.gmra.mrb[0].mxu0 %v3263
        %v3508 = vpop.f32.mrb[0].mxu0
        %v3509 = vadd.f32 0.0, %v3508
        %v3510 = vpop.f32.mrb[0].mxu0
        %v3511 = vpop.f32.mrb[0].mxu0
        %v3512 = vadd.f32 0.0, %v3511
        %v3513 = vpop.f32.mrb[0].mxu0
        %3514 = vmatprep.mubr.bf16.mxu0 0
        %3515 = vmatmul.mubr.bf16.gmra.mrb[0].mxu0 %v3272
        %v3516 = vpop.f32.mrb[0].mxu0
        %v3517 = vadd.f32 0.0, %v3516
        %v3518 = vpop.f32.mrb[0].mxu0
        %v3519 = vpop.f32.mrb[0].mxu0
        %v3520 = vadd.f32 0.0, %v3519
        %v3521 = vpop.f32.mrb[0].mxu0
        %3522 = vmatprep.mubr.bf16.mxu0 0
        %3523 = vmatmul.mubr.bf16.gmra.mrb[0].mxu0 %v3281
        %v3524 = vpop.f32.mrb[0].mxu0
        %v3525 = vadd.f32 0.0, %v3524
        %v3526 = vpop.f32.mrb[0].mxu0
        %v3527 = vpop.f32.mrb[0].mxu0
        %v3528 = vadd.f32 0.0, %v3527
        %v3529 = vpop.f32.mrb[0].mxu0
        %3530 = vmatprep.mubr.bf16.mxu0 0
        %3531 = vmatmul.mubr.bf16.gmra.mrb[0].mxu0 %v3290
        %v3532 = vpop.f32.mrb[0].mxu0
        %v3533 = vadd.f32 0.0, %v3532
        %v3534 = vpop.f32.mrb[0].mxu0
        %v3535 = vpop.f32.mrb[0].mxu0
        %v3536 = vadd.f32 0.0, %v3535
        %v3537 = vpop.f32.mrb[0].mxu0
        %3538 = vmatprep.mubr.bf16.mxu0 0
        %3539 = vmatmul.mubr.bf16.gmra.mrb[0].mxu0 %v3299
        %v3540 = vpop.f32.mrb[0].mxu0
        %v3541 = vadd.f32 0.0, %v3540
        %v3542 = vpop.f32.mrb[0].mxu0
        %v3543 = vpop.f32.mrb[0].mxu0
        %v3544 = vadd.f32 0.0, %v3543
        %v3545 = vpop.f32.mrb[0].mxu0
        %3546 = vmatprep.mubr.bf16.mxu0 0
        %3547 = vmatmul.mubr.bf16.gmra.mrb[0].mxu0 %v3308
        %v3548 = vpop.f32.mrb[0].mxu0
        %v3549 = vadd.f32 0.0, %v3548
        %v3550 = vpop.f32.mrb[0].mxu0
        %v3551 = vpop.f32.mrb[0].mxu0
        %v3552 = vadd.f32 0.0, %v3551
        %v3553 = vpop.f32.mrb[0].mxu0
        %3554 = vmatprep.mubr.bf16.mxu0 0
        %3555 = vmatmul.mubr.bf16.gmra.mrb[0].mxu0 %v3317
        %v3556 = vpop.f32.mrb[0].mxu0
        %v3557 = vadd.f32 0.0, %v3556
        %v3558 = vpop.f32.mrb[0].mxu0
        %v3559 = vpop.f32.mrb[0].mxu0
        %v3560 = vadd.f32 0.0, %v3559
        %v3561 = vpop.f32.mrb[0].mxu0
        %3562 = vmatprep.mubr.bf16.mxu0 0
        %3563 = vmatmul.mubr.bf16.gmra.mrb[0].mxu0 %v3326
        %v3564 = vpop.f32.mrb[0].mxu0
        %v3565 = vadd.f32 0.0, %v3564
        %v3566 = vpop.f32.mrb[0].mxu0
        %v3567 = vpop.f32.mrb[0].mxu0
        %v3568 = vadd.f32 0.0, %v3567
        %v3569 = vpop.f32.mrb[0].mxu0
        %3570 = vmatprep.mubr.bf16.mxu0 0
        %3571 = vmatmul.mubr.bf16.gmra.mrb[0].mxu0 %v3335
        %v3572 = vpop.f32.mrb[0].mxu0
        %v3573 = vadd.f32 0.0, %v3572
        %v3574 = vpop.f32.mrb[0].mxu0
        %v3575 = vpop.f32.mrb[0].mxu0
        %v3576 = vadd.f32 0.0, %v3575
        %v3577 = vpop.f32.mrb[0].mxu0
        %3578 = vdwg.mxu0
        %v3579 = vadd.f32 %v3108, %v3437
        %v3580 = vadd.f32 %v3109, %v3440
        %v3581 = vadd.f32 %v3110, %v3445
        %v3582 = vadd.f32 %v3111, %v3448
        %v3583 = vadd.f32 %v3112, %v3453
        %v3584 = vadd.f32 %v3113, %v3456
        %v3585 = vadd.f32 %v3114, %v3461
        %v3586 = vadd.f32 %v3115, %v3464
        %v3587 = vadd.f32 %v3116, %v3469
        %v3588 = vadd.f32 %v3117, %v3472
        %v3589 = vadd.f32 %v3118, %v3477
        %v3590 = vadd.f32 %v3119, %v3480
        %v3591 = vadd.f32 %v3120, %v3485
        %v3592 = vadd.f32 %v3121, %v3488
        %v3593 = vadd.f32 %v3122, %v3493
        %v3594 = vadd.f32 %v3123, %v3496
        %v3595 = vadd.f32 %v3124, %v3501
        %v3596 = vadd.f32 %v3125, %v3504
        %v3597 = vadd.f32 %v3126, %v3509
        %v3598 = vadd.f32 %v3127, %v3512
        %v3599 = vadd.f32 %v3128, %v3517
        %v3600 = vadd.f32 %v3129, %v3520
        %v3601 = vadd.f32 %v3130, %v3525
        %v3602 = vadd.f32 %v3131, %v3528
        %v3603 = vadd.f32 %v3132, %v3533
        %v3604 = vadd.f32 %v3133, %v3536
        %v3605 = vadd.f32 %v3134, %v3541
        %v3606 = vadd.f32 %v3135, %v3544
        %v3607 = vadd.f32 %v3136, %v3549
        %v3608 = vadd.f32 %v3137, %v3552
        %v3609 = vadd.f32 %v3138, %v3557
        %v3610 = vadd.f32 %v3139, %v3560
        %v3611 = vadd.f32 %v3140, %v3565
        %v3612 = vadd.f32 %v3141, %v3568
        %v3613 = vadd.f32 %v3142, %v3573
        %v3614 = vadd.f32 %v3143, %v3576
        %v3615 = vld [vmem:[%s237 + $0x10] sm:$0x8]
        %s3616 = scalar_lea.vmem [#allocation6], 512
        %v3617 = vld [vmem:[%s3616] sm:$0xf]
        %v3618 = vld [vmem:[%s3616 + $0x4] sm:$0xf]
        %v3619 = vld [vmem:[%s3616 + $0x8] sm:$0xf]
        %v3620 = vld [vmem:[%s3616 + $0xc] sm:$0xf]
        %v3621 = vld [vmem:[%s3616 + $0x10] sm:$0xf]
        %v3622 = vld [vmem:[%s3616 + $0x14] sm:$0xf]
        %v3623 = vld [vmem:[%s3616 + $0x18] sm:$0xf]
        %v3624 = vld [vmem:[%s3616 + $0x1c] sm:$0xf]
        %v3625 = vld [vmem:[%s3616 + $0x20] sm:$0xf]
        %v3626 = vld [vmem:[%s3616 + $0x24] sm:$0xf]
        %v3627 = vld [vmem:[%s3616 + $0x28] sm:$0xf]
        %v3628 = vld [vmem:[%s3616 + $0x2c] sm:$0xf]
        %v3629 = vld [vmem:[%s3616 + $0x30] sm:$0xf]
        %v3630 = vld [vmem:[%s3616 + $0x34] sm:$0xf]
        %v3631 = vld [vmem:[%s3616 + $0x38] sm:$0xf]
        %v3632 = vld [vmem:[%s3616 + $0x3c] sm:$0xf]
        %v3634 = vunpack.c.l.b16 %v3615
        %v3635 = vpack.c.b16 %v2773, %v3634
        %vm3636 = vcmask 1044480
        %v3637 = vrot.slane %v3635, 3
        %v3638 = vrot.slane %v2810, 3
        %v3639 = vsel %vm3636, %v3637, %v3638
        %v3640 = vrot.slane %v2811, 3
        %v3641 = vsel %vm3636, %v3638, %v3640
        %v3642 = vrot.slane %v2812, 3
        %v3643 = vsel %vm3636, %v3640, %v3642
        %v3644 = vrot.slane %v2813, 3
        %v3645 = vsel %vm3636, %v3642, %v3644
        %v3646 = vrot.slane %v2814, 3
        %v3647 = vsel %vm3636, %v3644, %v3646
        %v3648 = vrot.slane %v2815, 3
        %v3649 = vsel %vm3636, %v3646, %v3648
        %v3650 = vrot.slane %v2816, 3
        %v3651 = vsel %vm3636, %v3648, %v3650
        %v3652 = vrot.slane %v2817, 3
        %v3653 = vsel %vm3636, %v3650, %v3652
        %v3654 = vrot.slane %v2818, 3
        %v3655 = vsel %vm3636, %v3652, %v3654
        %v3656 = vrot.slane %v2819, 3
        %v3657 = vsel %vm3636, %v3654, %v3656
        %v3658 = vrot.slane %v2820, 3
        %v3659 = vsel %vm3636, %v3656, %v3658
        %v3660 = vrot.slane %v2821, 3
        %v3661 = vsel %vm3636, %v3658, %v3660
        %v3662 = vrot.slane %v2822, 3
        %v3663 = vsel %vm3636, %v3660, %v3662
        %v3664 = vrot.slane %v2823, 3
        %v3665 = vsel %vm3636, %v3662, %v3664
        %v3666 = vrot.slane %v2824, 3
        %v3667 = vsel %vm3636, %v3664, %v3666
        %v3668 = vrot.slane %v2825, 3
        %v3669 = vsel %vm3636, %v3666, %v3668
        %v3670 = vrot.slane %v2826, 3
        %v3671 = vsel %vm3636, %v3668, %v3670
        %v3672 = vrot.slane %v3164, 3
        %v3673 = vsel %vm3636, %v3670, %v3672
        %v3708 = vunpack.c.l.b16 %v3617
        %v3709 = vunpack.c.l.b16 %v3618
        %v3710 = vunpack.c.l.b16 %v3619
        %v3711 = vunpack.c.l.b16 %v3620
        %v3712 = vunpack.c.l.b16 %v3621
        %v3713 = vunpack.c.l.b16 %v3622
        %v3714 = vunpack.c.l.b16 %v3623
        %v3715 = vunpack.c.l.b16 %v3624
        %v3716 = vunpack.c.l.b16 %v3625
        %v3717 = vunpack.c.l.b16 %v3626
        %v3718 = vunpack.c.l.b16 %v3627
        %v3719 = vunpack.c.l.b16 %v3628
        %v3720 = vunpack.c.l.b16 %v3629
        %v3721 = vunpack.c.l.b16 %v3630
        %v3722 = vunpack.c.l.b16 %v3631
        %v3723 = vunpack.c.l.b16 %v3632
        %v3724 = vpack.c.b16 %v3709, %v3708
        %v3725 = vpack.c.b16 %v3711, %v3710
        %v3726 = vpack.c.b16 %v3713, %v3712
        %v3727 = vpack.c.b16 %v3715, %v3714
        %v3728 = vpack.c.b16 %v3717, %v3716
        %v3729 = vpack.c.b16 %v3719, %v3718
        %v3730 = vpack.c.b16 %v3721, %v3720
        %v3731 = vpack.c.b16 %v3723, %v3722
        %3740 = vmatprep.subr.bf16.mxu0 0
        %3741 = vmatpush1.bf16.msra.mxu0 %v3724
        %3742 = vmatprep.subr.bf16.mxu0 0
        %3743 = vmatpush1.bf16.msra.mxu0 %v3725
        %3744 = vmatprep.subr.bf16.mxu0 0
        %3745 = vmatpush1.bf16.msra.mxu0 %v3726
        %3746 = vmatprep.subr.bf16.mxu0 0
        %3747 = vmatpush1.bf16.msra.mxu0 %v3727
        %3748 = vmatprep.subr.bf16.mxu0 0
        %3749 = vmatpush1.bf16.msra.mxu0 %v3728
        %3750 = vmatprep.subr.bf16.mxu0 0
        %3751 = vmatpush1.bf16.msra.mxu0 %v3729
        %3752 = vmatprep.subr.bf16.mxu0 0
        %3753 = vmatpush1.bf16.msra.mxu0 %v3730
        %3754 = vmatprep.subr.bf16.mxu0 0
        %3755 = vmatpush1.bf16.msra.mxu0 %v3731
        %3756 = vmatprep.subr.bf16.mxu0 0
        %3757 = vmatpush1.bf16.msra.mxu0 0
        %3758 = vmatprep.subr.bf16.mxu0 0
        %3759 = vmatpush1.bf16.msra.mxu0 0
        %3760 = vmatprep.subr.bf16.mxu0 0
        %3761 = vmatpush1.bf16.msra.mxu0 0
        %3762 = vmatprep.subr.bf16.mxu0 0
        %3763 = vmatpush1.bf16.msra.mxu0 0
        %3764 = vmatprep.subr.bf16.mxu0 0
        %3765 = vmatpush1.bf16.msra.mxu0 0
        %3766 = vmatprep.subr.bf16.mxu0 0
        %3767 = vmatpush1.bf16.msra.mxu0 0
        %3768 = vmatprep.subr.bf16.mxu0 0
        %3769 = vmatpush1.bf16.msra.mxu0 0
        %3770 = vmatprep.subr.bf16.mxu0 0
        %3771 = vmatpush1.bf16.msra.mxu0 0
        %3772 = vmatprep.mubr.bf16.mxu0 0
        %3773 = vmatmul.mubr.bf16.gmra.mrb[0].mxu0 %v3639
        %v3774 = vpop.f32.mrb[0].mxu0
        %v3775 = vadd.f32 0.0, %v3774
        %v3776 = vpop.f32.mrb[0].mxu0
        %v3777 = vpop.f32.mrb[0].mxu0
        %v3778 = vadd.f32 0.0, %v3777
        %v3779 = vpop.f32.mrb[0].mxu0
        %3780 = vmatprep.mubr.bf16.mxu0 0
        %3781 = vmatmul.mubr.bf16.gmra.mrb[0].mxu0 %v3641
        %v3782 = vpop.f32.mrb[0].mxu0
        %v3783 = vadd.f32 0.0, %v3782
        %v3784 = vpop.f32.mrb[0].mxu0
        %v3785 = vpop.f32.mrb[0].mxu0
        %v3786 = vadd.f32 0.0, %v3785
        %v3787 = vpop.f32.mrb[0].mxu0
        %3788 = vmatprep.mubr.bf16.mxu0 0
        %3789 = vmatmul.mubr.bf16.gmra.mrb[0].mxu0 %v3643
        %v3790 = vpop.f32.mrb[0].mxu0
        %v3791 = vadd.f32 0.0, %v3790
        %v3792 = vpop.f32.mrb[0].mxu0
        %v3793 = vpop.f32.mrb[0].mxu0
        %v3794 = vadd.f32 0.0, %v3793
        %v3795 = vpop.f32.mrb[0].mxu0
        %3796 = vmatprep.mubr.bf16.mxu0 0
        %3797 = vmatmul.mubr.bf16.gmra.mrb[0].mxu0 %v3645
        %v3798 = vpop.f32.mrb[0].mxu0
        %v3799 = vadd.f32 0.0, %v3798
        %v3800 = vpop.f32.mrb[0].mxu0
        %v3801 = vpop.f32.mrb[0].mxu0
        %v3802 = vadd.f32 0.0, %v3801
        %v3803 = vpop.f32.mrb[0].mxu0
        %3804 = vmatprep.mubr.bf16.mxu0 0
        %3805 = vmatmul.mubr.bf16.gmra.mrb[0].mxu0 %v3647
        %v3806 = vpop.f32.mrb[0].mxu0
        %v3807 = vadd.f32 0.0, %v3806
        %v3808 = vpop.f32.mrb[0].mxu0
        %v3809 = vpop.f32.mrb[0].mxu0
        %v3810 = vadd.f32 0.0, %v3809
        %v3811 = vpop.f32.mrb[0].mxu0
        %3812 = vmatprep.mubr.bf16.mxu0 0
        %3813 = vmatmul.mubr.bf16.gmra.mrb[0].mxu0 %v3649
        %v3814 = vpop.f32.mrb[0].mxu0
        %v3815 = vadd.f32 0.0, %v3814
        %v3816 = vpop.f32.mrb[0].mxu0
        %v3817 = vpop.f32.mrb[0].mxu0
        %v3818 = vadd.f32 0.0, %v3817
        %v3819 = vpop.f32.mrb[0].mxu0
        %3820 = vmatprep.mubr.bf16.mxu0 0
        %3821 = vmatmul.mubr.bf16.gmra.mrb[0].mxu0 %v3651
        %v3822 = vpop.f32.mrb[0].mxu0
        %v3823 = vadd.f32 0.0, %v3822
        %v3824 = vpop.f32.mrb[0].mxu0
        %v3825 = vpop.f32.mrb[0].mxu0
        %v3826 = vadd.f32 0.0, %v3825
        %v3827 = vpop.f32.mrb[0].mxu0
        %3828 = vmatprep.mubr.bf16.mxu0 0
        %3829 = vmatmul.mubr.bf16.gmra.mrb[0].mxu0 %v3653
        %v3830 = vpop.f32.mrb[0].mxu0
        %v3831 = vadd.f32 0.0, %v3830
        %v3832 = vpop.f32.mrb[0].mxu0
        %v3833 = vpop.f32.mrb[0].mxu0
        %v3834 = vadd.f32 0.0, %v3833
        %v3835 = vpop.f32.mrb[0].mxu0
        %3836 = vmatprep.mubr.bf16.mxu0 0
        %3837 = vmatmul.mubr.bf16.gmra.mrb[0].mxu0 %v3655
        %v3838 = vpop.f32.mrb[0].mxu0
        %v3839 = vadd.f32 0.0, %v3838
        %v3840 = vpop.f32.mrb[0].mxu0
        %v3841 = vpop.f32.mrb[0].mxu0
        %v3842 = vadd.f32 0.0, %v3841
        %v3843 = vpop.f32.mrb[0].mxu0
        %3844 = vmatprep.mubr.bf16.mxu0 0
        %3845 = vmatmul.mubr.bf16.gmra.mrb[0].mxu0 %v3657
        %v3846 = vpop.f32.mrb[0].mxu0
        %v3847 = vadd.f32 0.0, %v3846
        %v3848 = vpop.f32.mrb[0].mxu0
        %v3849 = vpop.f32.mrb[0].mxu0
        %v3850 = vadd.f32 0.0, %v3849
        %v3851 = vpop.f32.mrb[0].mxu0
        %3852 = vmatprep.mubr.bf16.mxu0 0
        %3853 = vmatmul.mubr.bf16.gmra.mrb[0].mxu0 %v3659
        %v3854 = vpop.f32.mrb[0].mxu0
        %v3855 = vadd.f32 0.0, %v3854
        %v3856 = vpop.f32.mrb[0].mxu0
        %v3857 = vpop.f32.mrb[0].mxu0
        %v3858 = vadd.f32 0.0, %v3857
        %v3859 = vpop.f32.mrb[0].mxu0
        %3860 = vmatprep.mubr.bf16.mxu0 0
        %3861 = vmatmul.mubr.bf16.gmra.mrb[0].mxu0 %v3661
        %v3862 = vpop.f32.mrb[0].mxu0
        %v3863 = vadd.f32 0.0, %v3862
        %v3864 = vpop.f32.mrb[0].mxu0
        %v3865 = vpop.f32.mrb[0].mxu0
        %v3866 = vadd.f32 0.0, %v3865
        %v3867 = vpop.f32.mrb[0].mxu0
        %3868 = vmatprep.mubr.bf16.mxu0 0
        %3869 = vmatmul.mubr.bf16.gmra.mrb[0].mxu0 %v3663
        %v3870 = vpop.f32.mrb[0].mxu0
        %v3871 = vadd.f32 0.0, %v3870
        %v3872 = vpop.f32.mrb[0].mxu0
        %v3873 = vpop.f32.mrb[0].mxu0
        %v3874 = vadd.f32 0.0, %v3873
        %v3875 = vpop.f32.mrb[0].mxu0
        %3876 = vmatprep.mubr.bf16.mxu0 0
        %3877 = vmatmul.mubr.bf16.gmra.mrb[0].mxu0 %v3665
        %v3878 = vpop.f32.mrb[0].mxu0
        %v3879 = vadd.f32 0.0, %v3878
        %v3880 = vpop.f32.mrb[0].mxu0
        %v3881 = vpop.f32.mrb[0].mxu0
        %v3882 = vadd.f32 0.0, %v3881
        %v3883 = vpop.f32.mrb[0].mxu0
        %3884 = vmatprep.mubr.bf16.mxu0 0
        %3885 = vmatmul.mubr.bf16.gmra.mrb[0].mxu0 %v3667
        %v3886 = vpop.f32.mrb[0].mxu0
        %v3887 = vadd.f32 0.0, %v3886
        %v3888 = vpop.f32.mrb[0].mxu0
        %v3889 = vpop.f32.mrb[0].mxu0
        %v3890 = vadd.f32 0.0, %v3889
        %v3891 = vpop.f32.mrb[0].mxu0
        %3892 = vmatprep.mubr.bf16.mxu0 0
        %3893 = vmatmul.mubr.bf16.gmra.mrb[0].mxu0 %v3669
        %v3894 = vpop.f32.mrb[0].mxu0
        %v3895 = vadd.f32 0.0, %v3894
        %v3896 = vpop.f32.mrb[0].mxu0
        %v3897 = vpop.f32.mrb[0].mxu0
        %v3898 = vadd.f32 0.0, %v3897
        %v3899 = vpop.f32.mrb[0].mxu0
        %3900 = vmatprep.mubr.bf16.mxu0 0
        %3901 = vmatmul.mubr.bf16.gmra.mrb[0].mxu0 %v3671
        %v3902 = vpop.f32.mrb[0].mxu0
        %v3903 = vadd.f32 0.0, %v3902
        %v3904 = vpop.f32.mrb[0].mxu0
        %v3905 = vpop.f32.mrb[0].mxu0
        %v3906 = vadd.f32 0.0, %v3905
        %v3907 = vpop.f32.mrb[0].mxu0
        %3908 = vmatprep.mubr.bf16.mxu0 0
        %3909 = vmatmul.mubr.bf16.gmra.mrb[0].mxu0 %v3673
        %v3910 = vpop.f32.mrb[0].mxu0
        %v3911 = vadd.f32 0.0, %v3910
        %v3912 = vpop.f32.mrb[0].mxu0
        %v3913 = vpop.f32.mrb[0].mxu0
        %v3914 = vadd.f32 0.0, %v3913
        %v3915 = vpop.f32.mrb[0].mxu0
        %3916 = vdwg.mxu0
        %v3917 = vadd.f32 %v3579, %v3775
        %v3918 = vadd.f32 %v3580, %v3778
        %v3919 = vadd.f32 %v3581, %v3783
        %v3920 = vadd.f32 %v3582, %v3786
        %v3921 = vadd.f32 %v3583, %v3791
        %v3922 = vadd.f32 %v3584, %v3794
        %v3923 = vadd.f32 %v3585, %v3799
        %v3924 = vadd.f32 %v3586, %v3802
        %v3925 = vadd.f32 %v3587, %v3807
        %v3926 = vadd.f32 %v3588, %v3810
        %v3927 = vadd.f32 %v3589, %v3815
        %v3928 = vadd.f32 %v3590, %v3818
        %v3929 = vadd.f32 %v3591, %v3823
        %v3930 = vadd.f32 %v3592, %v3826
        %v3931 = vadd.f32 %v3593, %v3831
        %v3932 = vadd.f32 %v3594, %v3834
        %v3933 = vadd.f32 %v3595, %v3839
        %v3934 = vadd.f32 %v3596, %v3842
        %v3935 = vadd.f32 %v3597, %v3847
        %v3936 = vadd.f32 %v3598, %v3850
        %v3937 = vadd.f32 %v3599, %v3855
        %v3938 = vadd.f32 %v3600, %v3858
        %v3939 = vadd.f32 %v3601, %v3863
        %v3940 = vadd.f32 %v3602, %v3866
        %v3941 = vadd.f32 %v3603, %v3871
        %v3942 = vadd.f32 %v3604, %v3874
        %v3943 = vadd.f32 %v3605, %v3879
        %v3944 = vadd.f32 %v3606, %v3882
        %v3945 = vadd.f32 %v3607, %v3887
        %v3946 = vadd.f32 %v3608, %v3890
        %v3947 = vadd.f32 %v3609, %v3895
        %v3948 = vadd.f32 %v3610, %v3898
        %v3949 = vadd.f32 %v3611, %v3903
        %v3950 = vadd.f32 %v3612, %v3906
        %v3951 = vadd.f32 %v3613, %v3911
        %v3952 = vadd.f32 %v3614, %v3914
        %v3953 = vlaneseq
        %v3954 = vshrl.u32 %v3953, 7
        %v3955 = vadd.s32 %v3954, 8
        %v3956 = vadd.s32 %v3954, 16
        %v3957 = vadd.s32 %v3954, 24
        %v3958 = vadd.s32 %v3954, 32
        %v3959 = vadd.s32 %v3954, 40
        %v3960 = vadd.s32 %v3954, 48
        %v3961 = vadd.s32 %v3954, 56
        %v3962 = vadd.s32 %v3954, 64
        %v3963 = vadd.s32 %v3954, 72
        %v3964 = vadd.s32 %v3954, 80
        %v3965 = vadd.s32 %v3954, 88
        %v3966 = vadd.s32 %v3954, 96
        %v3967 = vadd.s32 %v3954, 104
        %v3968 = vadd.s32 %v3954, 112
        %v3969 = vadd.s32 %v3954, 120
        %v3970 = vadd.s32 %v3954, 128
        %v3971 = vadd.s32 %v3954, 136
        %v3972 = vadd.s32 %v3954, 144
        %v3973 = vadd.s32 %v3954, 152
        %v3974 = vadd.s32 %v3954, 160
        %v3975 = vadd.s32 %v3954, 168
        %v3976 = vadd.s32 %v3954, 176
        %v3977 = vadd.s32 %v3954, 184
        %v3978 = vadd.s32 %v3954, 192
        %v3979 = vadd.s32 %v3954, 200
        %v3980 = vadd.s32 %v3954, 208
        %v3981 = vadd.s32 %v3954, 216
        %v3982 = vadd.s32 %v3954, 224
        %v3983 = vadd.s32 %v3954, 232
        %v3984 = vadd.s32 %v3954, 240
        %v3985 = vadd.s32 %v3954, 248
        %v3986 = vadd.s32 %v3954, 256
        %v3987 = vadd.s32 %v3954, 264
        %v3988 = vadd.s32 %v3954, 272
        %v3989 = vadd.s32 %v3954, 280
        %vm3990 = vcmp.lt.s32.totalorder %v3954, 0
        %v3991 = vsub.s32 0, %v3954
        %v3992 = vsel %vm3990, %v3991, %v3954
        %v3993 = vmul.u32.u64.compose %v3992, 3817748708
        %v3994 = vextract.low.u32 %v3993
        %v3995 = vextract.high.u32 %v3993
        %v3996 = vshrl.u32 %v3995, 4
        %v3997 = vmul.u32 %v3996, 18
        %v3998 = vsub.s32 %v3992, %v3997
        %v3999 = vsub.s32 0, %v3998
        %v4000 = vsel %vm3990, %v3999, %v3998
        %vm4001 = vcmp.lt.s32.totalorder %v3955, 0
        %v4002 = vsub.s32 0, %v3955
        %v4003 = vsel %vm4001, %v4002, %v3955
        %v4004 = vmul.u32.u64.compose %v4003, 3817748708
        %v4005 = vextract.low.u32 %v4004
        %v4006 = vextract.high.u32 %v4004
        %v4007 = vshrl.u32 %v4006, 4
        %v4008 = vmul.u32 %v4007, 18
        %v4009 = vsub.s32 %v4003, %v4008
        %v4010 = vsub.s32 0, %v4009
        %v4011 = vsel %vm4001, %v4010, %v4009
        %vm4012 = vcmp.lt.s32.totalorder %v3956, 0
        %v4013 = vsub.s32 0, %v3956
        %v4014 = vsel %vm4012, %v4013, %v3956
        %v4015 = vmul.u32.u64.compose %v4014, 3817748708
        %v4016 = vextract.low.u32 %v4015
        %v4017 = vextract.high.u32 %v4015
        %v4018 = vshrl.u32 %v4017, 4
        %v4019 = vmul.u32 %v4018, 18
        %v4020 = vsub.s32 %v4014, %v4019
        %v4021 = vsub.s32 0, %v4020
        %v4022 = vsel %vm4012, %v4021, %v4020
        %vm4023 = vcmp.lt.s32.totalorder %v3957, 0
        %v4024 = vsub.s32 0, %v3957
        %v4025 = vsel %vm4023, %v4024, %v3957
        %v4026 = vmul.u32.u64.compose %v4025, 3817748708
        %v4027 = vextract.low.u32 %v4026
        %v4028 = vextract.high.u32 %v4026
        %v4029 = vshrl.u32 %v4028, 4
        %v4030 = vmul.u32 %v4029, 18
        %v4031 = vsub.s32 %v4025, %v4030
        %v4032 = vsub.s32 0, %v4031
        %v4033 = vsel %vm4023, %v4032, %v4031
        %vm4034 = vcmp.lt.s32.totalorder %v3958, 0
        %v4035 = vsub.s32 0, %v3958
        %v4036 = vsel %vm4034, %v4035, %v3958
        %v4037 = vmul.u32.u64.compose %v4036, 3817748708
        %v4038 = vextract.low.u32 %v4037
        %v4039 = vextract.high.u32 %v4037
        %v4040 = vshrl.u32 %v4039, 4
        %v4041 = vmul.u32 %v4040, 18
        %v4042 = vsub.s32 %v4036, %v4041
        %v4043 = vsub.s32 0, %v4042
        %v4044 = vsel %vm4034, %v4043, %v4042
        %vm4045 = vcmp.lt.s32.totalorder %v3959, 0
        %v4046 = vsub.s32 0, %v3959
        %v4047 = vsel %vm4045, %v4046, %v3959
        %v4048 = vmul.u32.u64.compose %v4047, 3817748708
        %v4049 = vextract.low.u32 %v4048
        %v4050 = vextract.high.u32 %v4048
        %v4051 = vshrl.u32 %v4050, 4
        %v4052 = vmul.u32 %v4051, 18
        %v4053 = vsub.s32 %v4047, %v4052
        %v4054 = vsub.s32 0, %v4053
        %v4055 = vsel %vm4045, %v4054, %v4053
        %vm4056 = vcmp.lt.s32.totalorder %v3960, 0
        %v4057 = vsub.s32 0, %v3960
        %v4058 = vsel %vm4056, %v4057, %v3960
        %v4059 = vmul.u32.u64.compose %v4058, 3817748708
        %v4060 = vextract.low.u32 %v4059
        %v4061 = vextract.high.u32 %v4059
        %v4062 = vshrl.u32 %v4061, 4
        %v4063 = vmul.u32 %v4062, 18
        %v4064 = vsub.s32 %v4058, %v4063
        %v4065 = vsub.s32 0, %v4064
        %v4066 = vsel %vm4056, %v4065, %v4064
        %vm4067 = vcmp.lt.s32.totalorder %v3961, 0
        %v4068 = vsub.s32 0, %v3961
        %v4069 = vsel %vm4067, %v4068, %v3961
        %v4070 = vmul.u32.u64.compose %v4069, 3817748708
        %v4071 = vextract.low.u32 %v4070
        %v4072 = vextract.high.u32 %v4070
        %v4073 = vshrl.u32 %v4072, 4
        %v4074 = vmul.u32 %v4073, 18
        %v4075 = vsub.s32 %v4069, %v4074
        %v4076 = vsub.s32 0, %v4075
        %v4077 = vsel %vm4067, %v4076, %v4075
        %vm4078 = vcmp.lt.s32.totalorder %v3962, 0
        %v4079 = vsub.s32 0, %v3962
        %v4080 = vsel %vm4078, %v4079, %v3962
        %v4081 = vmul.u32.u64.compose %v4080, 3817748708
        %v4082 = vextract.low.u32 %v4081
        %v4083 = vextract.high.u32 %v4081
        %v4084 = vshrl.u32 %v4083, 4
        %v4085 = vmul.u32 %v4084, 18
        %v4086 = vsub.s32 %v4080, %v4085
        %v4087 = vsub.s32 0, %v4086
        %v4088 = vsel %vm4078, %v4087, %v4086
        %vm4089 = vcmp.lt.s32.totalorder %v3963, 0
        %v4090 = vsub.s32 0, %v3963
        %v4091 = vsel %vm4089, %v4090, %v3963
        %v4092 = vmul.u32.u64.compose %v4091, 3817748708
        %v4093 = vextract.low.u32 %v4092
        %v4094 = vextract.high.u32 %v4092
        %v4095 = vshrl.u32 %v4094, 4
        %v4096 = vmul.u32 %v4095, 18
        %v4097 = vsub.s32 %v4091, %v4096
        %v4098 = vsub.s32 0, %v4097
        %v4099 = vsel %vm4089, %v4098, %v4097
        %vm4100 = vcmp.lt.s32.totalorder %v3964, 0
        %v4101 = vsub.s32 0, %v3964
        %v4102 = vsel %vm4100, %v4101, %v3964
        %v4103 = vmul.u32.u64.compose %v4102, 3817748708
        %v4104 = vextract.low.u32 %v4103
        %v4105 = vextract.high.u32 %v4103
        %v4106 = vshrl.u32 %v4105, 4
        %v4107 = vmul.u32 %v4106, 18
        %v4108 = vsub.s32 %v4102, %v4107
        %v4109 = vsub.s32 0, %v4108
        %v4110 = vsel %vm4100, %v4109, %v4108
        %vm4111 = vcmp.lt.s32.totalorder %v3965, 0
        %v4112 = vsub.s32 0, %v3965
        %v4113 = vsel %vm4111, %v4112, %v3965
        %v4114 = vmul.u32.u64.compose %v4113, 3817748708
        %v4115 = vextract.low.u32 %v4114
        %v4116 = vextract.high.u32 %v4114
        %v4117 = vshrl.u32 %v4116, 4
        %v4118 = vmul.u32 %v4117, 18
        %v4119 = vsub.s32 %v4113, %v4118
        %v4120 = vsub.s32 0, %v4119
        %v4121 = vsel %vm4111, %v4120, %v4119
        %vm4122 = vcmp.lt.s32.totalorder %v3966, 0
        %v4123 = vsub.s32 0, %v3966
        %v4124 = vsel %vm4122, %v4123, %v3966
        %v4125 = vmul.u32.u64.compose %v4124, 3817748708
        %v4126 = vextract.low.u32 %v4125
        %v4127 = vextract.high.u32 %v4125
        %v4128 = vshrl.u32 %v4127, 4
        %v4129 = vmul.u32 %v4128, 18
        %v4130 = vsub.s32 %v4124, %v4129
        %v4131 = vsub.s32 0, %v4130
        %v4132 = vsel %vm4122, %v4131, %v4130
        %vm4133 = vcmp.lt.s32.totalorder %v3967, 0
        %v4134 = vsub.s32 0, %v3967
        %v4135 = vsel %vm4133, %v4134, %v3967
        %v4136 = vmul.u32.u64.compose %v4135, 3817748708
        %v4137 = vextract.low.u32 %v4136
        %v4138 = vextract.high.u32 %v4136
        %v4139 = vshrl.u32 %v4138, 4
        %v4140 = vmul.u32 %v4139, 18
        %v4141 = vsub.s32 %v4135, %v4140
        %v4142 = vsub.s32 0, %v4141
        %v4143 = vsel %vm4133, %v4142, %v4141
        %vm4144 = vcmp.lt.s32.totalorder %v3968, 0
        %v4145 = vsub.s32 0, %v3968
        %v4146 = vsel %vm4144, %v4145, %v3968
        %v4147 = vmul.u32.u64.compose %v4146, 3817748708
        %v4148 = vextract.low.u32 %v4147
        %v4149 = vextract.high.u32 %v4147
        %v4150 = vshrl.u32 %v4149, 4
        %v4151 = vmul.u32 %v4150, 18
        %v4152 = vsub.s32 %v4146, %v4151
        %v4153 = vsub.s32 0, %v4152
        %v4154 = vsel %vm4144, %v4153, %v4152
        %vm4155 = vcmp.lt.s32.totalorder %v3969, 0
        %v4156 = vsub.s32 0, %v3969
        %v4157 = vsel %vm4155, %v4156, %v3969
        %v4158 = vmul.u32.u64.compose %v4157, 3817748708
        %v4159 = vextract.low.u32 %v4158
        %v4160 = vextract.high.u32 %v4158
        %v4161 = vshrl.u32 %v4160, 4
        %v4162 = vmul.u32 %v4161, 18
        %v4163 = vsub.s32 %v4157, %v4162
        %v4164 = vsub.s32 0, %v4163
        %v4165 = vsel %vm4155, %v4164, %v4163
        %vm4166 = vcmp.lt.s32.totalorder %v3970, 0
        %v4167 = vsub.s32 0, %v3970
        %v4168 = vsel %vm4166, %v4167, %v3970
        %v4169 = vmul.u32.u64.compose %v4168, 3817748708
        %v4170 = vextract.low.u32 %v4169
        %v4171 = vextract.high.u32 %v4169
        %v4172 = vshrl.u32 %v4171, 4
        %v4173 = vmul.u32 %v4172, 18
        %v4174 = vsub.s32 %v4168, %v4173
        %v4175 = vsub.s32 0, %v4174
        %v4176 = vsel %vm4166, %v4175, %v4174
        %vm4177 = vcmp.lt.s32.totalorder %v3971, 0
        %v4178 = vsub.s32 0, %v3971
        %v4179 = vsel %vm4177, %v4178, %v3971
        %v4180 = vmul.u32.u64.compose %v4179, 3817748708
        %v4181 = vextract.low.u32 %v4180
        %v4182 = vextract.high.u32 %v4180
        %v4183 = vshrl.u32 %v4182, 4
        %v4184 = vmul.u32 %v4183, 18
        %v4185 = vsub.s32 %v4179, %v4184
        %v4186 = vsub.s32 0, %v4185
        %v4187 = vsel %vm4177, %v4186, %v4185
        %vm4188 = vcmp.lt.s32.totalorder %v3972, 0
        %v4189 = vsub.s32 0, %v3972
        %v4190 = vsel %vm4188, %v4189, %v3972
        %v4191 = vmul.u32.u64.compose %v4190, 3817748708
        %v4192 = vextract.low.u32 %v4191
        %v4193 = vextract.high.u32 %v4191
        %v4194 = vshrl.u32 %v4193, 4
        %v4195 = vmul.u32 %v4194, 18
        %v4196 = vsub.s32 %v4190, %v4195
        %v4197 = vsub.s32 0, %v4196
        %v4198 = vsel %vm4188, %v4197, %v4196
        %vm4199 = vcmp.lt.s32.totalorder %v3973, 0
        %v4200 = vsub.s32 0, %v3973
        %v4201 = vsel %vm4199, %v4200, %v3973
        %v4202 = vmul.u32.u64.compose %v4201, 3817748708
        %v4203 = vextract.low.u32 %v4202
        %v4204 = vextract.high.u32 %v4202
        %v4205 = vshrl.u32 %v4204, 4
        %v4206 = vmul.u32 %v4205, 18
        %v4207 = vsub.s32 %v4201, %v4206
        %v4208 = vsub.s32 0, %v4207
        %v4209 = vsel %vm4199, %v4208, %v4207
        %vm4210 = vcmp.lt.s32.totalorder %v3974, 0
        %v4211 = vsub.s32 0, %v3974
        %v4212 = vsel %vm4210, %v4211, %v3974
        %v4213 = vmul.u32.u64.compose %v4212, 3817748708
        %v4214 = vextract.low.u32 %v4213
        %v4215 = vextract.high.u32 %v4213
        %v4216 = vshrl.u32 %v4215, 4
        %v4217 = vmul.u32 %v4216, 18
        %v4218 = vsub.s32 %v4212, %v4217
        %v4219 = vsub.s32 0, %v4218
        %v4220 = vsel %vm4210, %v4219, %v4218
        %vm4221 = vcmp.lt.s32.totalorder %v3975, 0
        %v4222 = vsub.s32 0, %v3975
        %v4223 = vsel %vm4221, %v4222, %v3975
        %v4224 = vmul.u32.u64.compose %v4223, 3817748708
        %v4225 = vextract.low.u32 %v4224
        %v4226 = vextract.high.u32 %v4224
        %v4227 = vshrl.u32 %v4226, 4
        %v4228 = vmul.u32 %v4227, 18
        %v4229 = vsub.s32 %v4223, %v4228
        %v4230 = vsub.s32 0, %v4229
        %v4231 = vsel %vm4221, %v4230, %v4229
        %vm4232 = vcmp.lt.s32.totalorder %v3976, 0
        %v4233 = vsub.s32 0, %v3976
        %v4234 = vsel %vm4232, %v4233, %v3976
        %v4235 = vmul.u32.u64.compose %v4234, 3817748708
        %v4236 = vextract.low.u32 %v4235
        %v4237 = vextract.high.u32 %v4235
        %v4238 = vshrl.u32 %v4237, 4
        %v4239 = vmul.u32 %v4238, 18
        %v4240 = vsub.s32 %v4234, %v4239
        %v4241 = vsub.s32 0, %v4240
        %v4242 = vsel %vm4232, %v4241, %v4240
        %vm4243 = vcmp.lt.s32.totalorder %v3977, 0
        %v4244 = vsub.s32 0, %v3977
        %v4245 = vsel %vm4243, %v4244, %v3977
        %v4246 = vmul.u32.u64.compose %v4245, 3817748708
        %v4247 = vextract.low.u32 %v4246
        %v4248 = vextract.high.u32 %v4246
        %v4249 = vshrl.u32 %v4248, 4
        %v4250 = vmul.u32 %v4249, 18
        %v4251 = vsub.s32 %v4245, %v4250
        %v4252 = vsub.s32 0, %v4251
        %v4253 = vsel %vm4243, %v4252, %v4251
        %vm4254 = vcmp.lt.s32.totalorder %v3978, 0
        %v4255 = vsub.s32 0, %v3978
        %v4256 = vsel %vm4254, %v4255, %v3978
        %v4257 = vmul.u32.u64.compose %v4256, 3817748708
        %v4258 = vextract.low.u32 %v4257
        %v4259 = vextract.high.u32 %v4257
        %v4260 = vshrl.u32 %v4259, 4
        %v4261 = vmul.u32 %v4260, 18
        %v4262 = vsub.s32 %v4256, %v4261
        %v4263 = vsub.s32 0, %v4262
        %v4264 = vsel %vm4254, %v4263, %v4262
        %vm4265 = vcmp.lt.s32.totalorder %v3979, 0
        %v4266 = vsub.s32 0, %v3979
        %v4267 = vsel %vm4265, %v4266, %v3979
        %v4268 = vmul.u32.u64.compose %v4267, 3817748708
        %v4269 = vextract.low.u32 %v4268
        %v4270 = vextract.high.u32 %v4268
        %v4271 = vshrl.u32 %v4270, 4
        %v4272 = vmul.u32 %v4271, 18
        %v4273 = vsub.s32 %v4267, %v4272
        %v4274 = vsub.s32 0, %v4273
        %v4275 = vsel %vm4265, %v4274, %v4273
        %vm4276 = vcmp.lt.s32.totalorder %v3980, 0
        %v4277 = vsub.s32 0, %v3980
        %v4278 = vsel %vm4276, %v4277, %v3980
        %v4279 = vmul.u32.u64.compose %v4278, 3817748708
        %v4280 = vextract.low.u32 %v4279
        %v4281 = vextract.high.u32 %v4279
        %v4282 = vshrl.u32 %v4281, 4
        %v4283 = vmul.u32 %v4282, 18
        %v4284 = vsub.s32 %v4278, %v4283
        %v4285 = vsub.s32 0, %v4284
        %v4286 = vsel %vm4276, %v4285, %v4284
        %vm4287 = vcmp.lt.s32.totalorder %v3981, 0
        %v4288 = vsub.s32 0, %v3981
        %v4289 = vsel %vm4287, %v4288, %v3981
        %v4290 = vmul.u32.u64.compose %v4289, 3817748708
        %v4291 = vextract.low.u32 %v4290
        %v4292 = vextract.high.u32 %v4290
        %v4293 = vshrl.u32 %v4292, 4
        %v4294 = vmul.u32 %v4293, 18
        %v4295 = vsub.s32 %v4289, %v4294
        %v4296 = vsub.s32 0, %v4295
        %v4297 = vsel %vm4287, %v4296, %v4295
        %vm4298 = vcmp.lt.s32.totalorder %v3982, 0
        %v4299 = vsub.s32 0, %v3982
        %v4300 = vsel %vm4298, %v4299, %v3982
        %v4301 = vmul.u32.u64.compose %v4300, 3817748708
        %v4302 = vextract.low.u32 %v4301
        %v4303 = vextract.high.u32 %v4301
        %v4304 = vshrl.u32 %v4303, 4
        %v4305 = vmul.u32 %v4304, 18
        %v4306 = vsub.s32 %v4300, %v4305
        %v4307 = vsub.s32 0, %v4306
        %v4308 = vsel %vm4298, %v4307, %v4306
        %vm4309 = vcmp.lt.s32.totalorder %v3983, 0
        %v4310 = vsub.s32 0, %v3983
        %v4311 = vsel %vm4309, %v4310, %v3983
        %v4312 = vmul.u32.u64.compose %v4311, 3817748708
        %v4313 = vextract.low.u32 %v4312
        %v4314 = vextract.high.u32 %v4312
        %v4315 = vshrl.u32 %v4314, 4
        %v4316 = vmul.u32 %v4315, 18
        %v4317 = vsub.s32 %v4311, %v4316
        %v4318 = vsub.s32 0, %v4317
        %v4319 = vsel %vm4309, %v4318, %v4317
        %vm4320 = vcmp.lt.s32.totalorder %v3984, 0
        %v4321 = vsub.s32 0, %v3984
        %v4322 = vsel %vm4320, %v4321, %v3984
        %v4323 = vmul.u32.u64.compose %v4322, 3817748708
        %v4324 = vextract.low.u32 %v4323
        %v4325 = vextract.high.u32 %v4323
        %v4326 = vshrl.u32 %v4325, 4
        %v4327 = vmul.u32 %v4326, 18
        %v4328 = vsub.s32 %v4322, %v4327
        %v4329 = vsub.s32 0, %v4328
        %v4330 = vsel %vm4320, %v4329, %v4328
        %vm4331 = vcmp.lt.s32.totalorder %v3985, 0
        %v4332 = vsub.s32 0, %v3985
        %v4333 = vsel %vm4331, %v4332, %v3985
        %v4334 = vmul.u32.u64.compose %v4333, 3817748708
        %v4335 = vextract.low.u32 %v4334
        %v4336 = vextract.high.u32 %v4334
        %v4337 = vshrl.u32 %v4336, 4
        %v4338 = vmul.u32 %v4337, 18
        %v4339 = vsub.s32 %v4333, %v4338
        %v4340 = vsub.s32 0, %v4339
        %v4341 = vsel %vm4331, %v4340, %v4339
        %vm4342 = vcmp.lt.s32.totalorder %v3986, 0
        %v4343 = vsub.s32 0, %v3986
        %v4344 = vsel %vm4342, %v4343, %v3986
        %v4345 = vmul.u32.u64.compose %v4344, 3817748708
        %v4346 = vextract.low.u32 %v4345
        %v4347 = vextract.high.u32 %v4345
        %v4348 = vshrl.u32 %v4347, 4
        %v4349 = vmul.u32 %v4348, 18
        %v4350 = vsub.s32 %v4344, %v4349
        %v4351 = vsub.s32 0, %v4350
        %v4352 = vsel %vm4342, %v4351, %v4350
        %vm4353 = vcmp.lt.s32.totalorder %v3987, 0
        %v4354 = vsub.s32 0, %v3987
        %v4355 = vsel %vm4353, %v4354, %v3987
        %v4356 = vmul.u32.u64.compose %v4355, 3817748708
        %v4357 = vextract.low.u32 %v4356
        %v4358 = vextract.high.u32 %v4356
        %v4359 = vshrl.u32 %v4358, 4
        %v4360 = vmul.u32 %v4359, 18
        %v4361 = vsub.s32 %v4355, %v4360
        %v4362 = vsub.s32 0, %v4361
        %v4363 = vsel %vm4353, %v4362, %v4361
        %vm4364 = vcmp.lt.s32.totalorder %v3988, 0
        %v4365 = vsub.s32 0, %v3988
        %v4366 = vsel %vm4364, %v4365, %v3988
        %v4367 = vmul.u32.u64.compose %v4366, 3817748708
        %v4368 = vextract.low.u32 %v4367
        %v4369 = vextract.high.u32 %v4367
        %v4370 = vshrl.u32 %v4369, 4
        %v4371 = vmul.u32 %v4370, 18
        %v4372 = vsub.s32 %v4366, %v4371
        %v4373 = vsub.s32 0, %v4372
        %v4374 = vsel %vm4364, %v4373, %v4372
        %vm4375 = vcmp.lt.s32.totalorder %v3989, 0
        %v4376 = vsub.s32 0, %v3989
        %v4377 = vsel %vm4375, %v4376, %v3989
        %v4378 = vmul.u32.u64.compose %v4377, 3817748708
        %v4379 = vextract.low.u32 %v4378
        %v4380 = vextract.high.u32 %v4378
        %v4381 = vshrl.u32 %v4380, 4
        %v4382 = vmul.u32 %v4381, 18
        %v4383 = vsub.s32 %v4377, %v4382
        %v4384 = vsub.s32 0, %v4383
        %v4385 = vsel %vm4375, %v4384, %v4383
        %vm4386 = vcmp.ne.s32.totalorder %v4000, 0
        %vm4387 = vcmp.ne.s32.totalorder %v4011, 0
        %vm4388 = vcmp.ne.s32.totalorder %v4022, 0
        %vm4389 = vcmp.ne.s32.totalorder %v4033, 0
        %vm4390 = vcmp.ne.s32.totalorder %v4044, 0
        %vm4391 = vcmp.ne.s32.totalorder %v4055, 0
        %vm4392 = vcmp.ne.s32.totalorder %v4066, 0
        %vm4393 = vcmp.ne.s32.totalorder %v4077, 0
        %vm4394 = vcmp.ne.s32.totalorder %v4088, 0
        %vm4395 = vcmp.ne.s32.totalorder %v4099, 0
        %vm4396 = vcmp.ne.s32.totalorder %v4110, 0
        %vm4397 = vcmp.ne.s32.totalorder %v4121, 0
        %vm4398 = vcmp.ne.s32.totalorder %v4132, 0
        %vm4399 = vcmp.ne.s32.totalorder %v4143, 0
        %vm4400 = vcmp.ne.s32.totalorder %v4154, 0
        %vm4401 = vcmp.ne.s32.totalorder %v4165, 0
        %vm4402 = vcmp.ne.s32.totalorder %v4176, 0
        %vm4403 = vcmp.ne.s32.totalorder %v4187, 0
        %vm4404 = vcmp.ne.s32.totalorder %v4198, 0
        %vm4405 = vcmp.ne.s32.totalorder %v4209, 0
        %vm4406 = vcmp.ne.s32.totalorder %v4220, 0
        %vm4407 = vcmp.ne.s32.totalorder %v4231, 0
        %vm4408 = vcmp.ne.s32.totalorder %v4242, 0
        %vm4409 = vcmp.ne.s32.totalorder %v4253, 0
        %vm4410 = vcmp.ne.s32.totalorder %v4264, 0
        %vm4411 = vcmp.ne.s32.totalorder %v4275, 0
        %vm4412 = vcmp.ne.s32.totalorder %v4286, 0
        %vm4413 = vcmp.ne.s32.totalorder %v4297, 0
        %vm4414 = vcmp.ne.s32.totalorder %v4308, 0
        %vm4415 = vcmp.ne.s32.totalorder %v4319, 0
        %vm4416 = vcmp.ne.s32.totalorder %v4330, 0
        %vm4417 = vcmp.ne.s32.totalorder %v4341, 0
        %vm4418 = vcmp.ne.s32.totalorder %v4352, 0
        %vm4419 = vcmp.ne.s32.totalorder %v4363, 0
        %vm4420 = vcmp.ne.s32.totalorder %v4374, 0
        %vm4421 = vcmp.ne.s32.totalorder %v4385, 0
        %vm4422 = vcmp.lt.s32.totalorder %v4000, 0
        %vm4423 = vcmp.lt.s32.totalorder %v4011, 0
        %vm4424 = vcmp.lt.s32.totalorder %v4022, 0
        %vm4425 = vcmp.lt.s32.totalorder %v4033, 0
        %vm4426 = vcmp.lt.s32.totalorder %v4044, 0
        %vm4427 = vcmp.lt.s32.totalorder %v4055, 0
        %vm4428 = vcmp.lt.s32.totalorder %v4066, 0
        %vm4429 = vcmp.lt.s32.totalorder %v4077, 0
        %vm4430 = vcmp.lt.s32.totalorder %v4088, 0
        %vm4431 = vcmp.lt.s32.totalorder %v4099, 0
        %vm4432 = vcmp.lt.s32.totalorder %v4110, 0
        %vm4433 = vcmp.lt.s32.totalorder %v4121, 0
        %vm4434 = vcmp.lt.s32.totalorder %v4132, 0
        %vm4435 = vcmp.lt.s32.totalorder %v4143, 0
        %vm4436 = vcmp.lt.s32.totalorder %v4154, 0
        %vm4437 = vcmp.lt.s32.totalorder %v4165, 0
        %vm4438 = vcmp.lt.s32.totalorder %v4176, 0
        %vm4439 = vcmp.lt.s32.totalorder %v4187, 0
        %vm4440 = vcmp.lt.s32.totalorder %v4198, 0
        %vm4441 = vcmp.lt.s32.totalorder %v4209, 0
        %vm4442 = vcmp.lt.s32.totalorder %v4220, 0
        %vm4443 = vcmp.lt.s32.totalorder %v4231, 0
        %vm4444 = vcmp.lt.s32.totalorder %v4242, 0
        %vm4445 = vcmp.lt.s32.totalorder %v4253, 0
        %vm4446 = vcmp.lt.s32.totalorder %v4264, 0
        %vm4447 = vcmp.lt.s32.totalorder %v4275, 0
        %vm4448 = vcmp.lt.s32.totalorder %v4286, 0
        %vm4449 = vcmp.lt.s32.totalorder %v4297, 0
        %vm4450 = vcmp.lt.s32.totalorder %v4308, 0
        %vm4451 = vcmp.lt.s32.totalorder %v4319, 0
        %vm4452 = vcmp.lt.s32.totalorder %v4330, 0
        %vm4453 = vcmp.lt.s32.totalorder %v4341, 0
        %vm4454 = vcmp.lt.s32.totalorder %v4352, 0
        %vm4455 = vcmp.lt.s32.totalorder %v4363, 0
        %vm4456 = vcmp.lt.s32.totalorder %v4374, 0
        %vm4457 = vcmp.lt.s32.totalorder %v4385, 0
        %vm4458 = vmand %vm4422, %vm4386
        %vm4459 = vmand %vm4423, %vm4387
        %vm4460 = vmand %vm4424, %vm4388
        %vm4461 = vmand %vm4425, %vm4389
        %vm4462 = vmand %vm4426, %vm4390
        %vm4463 = vmand %vm4427, %vm4391
        %vm4464 = vmand %vm4428, %vm4392
        %vm4465 = vmand %vm4429, %vm4393
        %vm4466 = vmand %vm4430, %vm4394
        %vm4467 = vmand %vm4431, %vm4395
        %vm4468 = vmand %vm4432, %vm4396
        %vm4469 = vmand %vm4433, %vm4397
        %vm4470 = vmand %vm4434, %vm4398
        %vm4471 = vmand %vm4435, %vm4399
        %vm4472 = vmand %vm4436, %vm4400
        %vm4473 = vmand %vm4437, %vm4401
        %vm4474 = vmand %vm4438, %vm4402
        %vm4475 = vmand %vm4439, %vm4403
        %vm4476 = vmand %vm4440, %vm4404
        %vm4477 = vmand %vm4441, %vm4405
        %vm4478 = vmand %vm4442, %vm4406
        %vm4479 = vmand %vm4443, %vm4407
        %vm4480 = vmand %vm4444, %vm4408
        %vm4481 = vmand %vm4445, %vm4409
        %vm4482 = vmand %vm4446, %vm4410
        %vm4483 = vmand %vm4447, %vm4411
        %vm4484 = vmand %vm4448, %vm4412
        %vm4485 = vmand %vm4449, %vm4413
        %vm4486 = vmand %vm4450, %vm4414
        %vm4487 = vmand %vm4451, %vm4415
        %vm4488 = vmand %vm4452, %vm4416
        %vm4489 = vmand %vm4453, %vm4417
        %vm4490 = vmand %vm4454, %vm4418
        %vm4491 = vmand %vm4455, %vm4419
        %vm4492 = vmand %vm4456, %vm4420
        %vm4493 = vmand %vm4457, %vm4421
        %v4494 = vadd.s32 %v4000, 18
        %v4495 = vadd.s32 %v4011, 18
        %v4496 = vadd.s32 %v4022, 18
        %v4497 = vadd.s32 %v4033, 18
        %v4498 = vadd.s32 %v4044, 18
        %v4499 = vadd.s32 %v4055, 18
        %v4500 = vadd.s32 %v4066, 18
        %v4501 = vadd.s32 %v4077, 18
        %v4502 = vadd.s32 %v4088, 18
        %v4503 = vadd.s32 %v4099, 18
        %v4504 = vadd.s32 %v4110, 18
        %v4505 = vadd.s32 %v4121, 18
        %v4506 = vadd.s32 %v4132, 18
        %v4507 = vadd.s32 %v4143, 18
        %v4508 = vadd.s32 %v4154, 18
        %v4509 = vadd.s32 %v4165, 18
        %v4510 = vadd.s32 %v4176, 18
        %v4511 = vadd.s32 %v4187, 18
        %v4512 = vadd.s32 %v4198, 18
        %v4513 = vadd.s32 %v4209, 18
        %v4514 = vadd.s32 %v4220, 18
        %v4515 = vadd.s32 %v4231, 18
        %v4516 = vadd.s32 %v4242, 18
        %v4517 = vadd.s32 %v4253, 18
        %v4518 = vadd.s32 %v4264, 18
        %v4519 = vadd.s32 %v4275, 18
        %v4520 = vadd.s32 %v4286, 18
        %v4521 = vadd.s32 %v4297, 18
        %v4522 = vadd.s32 %v4308, 18
        %v4523 = vadd.s32 %v4319, 18
        %v4524 = vadd.s32 %v4330, 18
        %v4525 = vadd.s32 %v4341, 18
        %v4526 = vadd.s32 %v4352, 18
        %v4527 = vadd.s32 %v4363, 18
        %v4528 = vadd.s32 %v4374, 18
        %v4529 = vadd.s32 %v4385, 18
        %v4530 = vsel %vm4458, %v4494, %v4000
        %v4531 = vsel %vm4459, %v4495, %v4011
        %v4532 = vsel %vm4460, %v4496, %v4022
        %v4533 = vsel %vm4461, %v4497, %v4033
        %v4534 = vsel %vm4462, %v4498, %v4044
        %v4535 = vsel %vm4463, %v4499, %v4055
        %v4536 = vsel %vm4464, %v4500, %v4066
        %v4537 = vsel %vm4465, %v4501, %v4077
        %v4538 = vsel %vm4466, %v4502, %v4088
        %v4539 = vsel %vm4467, %v4503, %v4099
        %v4540 = vsel %vm4468, %v4504, %v4110
        %v4541 = vsel %vm4469, %v4505, %v4121
        %v4542 = vsel %vm4470, %v4506, %v4132
        %v4543 = vsel %vm4471, %v4507, %v4143
        %v4544 = vsel %vm4472, %v4508, %v4154
        %v4545 = vsel %vm4473, %v4509, %v4165
        %v4546 = vsel %vm4474, %v4510, %v4176
        %v4547 = vsel %vm4475, %v4511, %v4187
        %v4548 = vsel %vm4476, %v4512, %v4198
        %v4549 = vsel %vm4477, %v4513, %v4209
        %v4550 = vsel %vm4478, %v4514, %v4220
        %v4551 = vsel %vm4479, %v4515, %v4231
        %v4552 = vsel %vm4480, %v4516, %v4242
        %v4553 = vsel %vm4481, %v4517, %v4253
        %v4554 = vsel %vm4482, %v4518, %v4264
        %v4555 = vsel %vm4483, %v4519, %v4275
        %v4556 = vsel %vm4484, %v4520, %v4286
        %v4557 = vsel %vm4485, %v4521, %v4297
        %v4558 = vsel %vm4486, %v4522, %v4308
        %v4559 = vsel %vm4487, %v4523, %v4319
        %v4560 = vsel %vm4488, %v4524, %v4330
        %v4561 = vsel %vm4489, %v4525, %v4341
        %v4562 = vsel %vm4490, %v4526, %v4352
        %v4563 = vsel %vm4491, %v4527, %v4363
        %v4564 = vsel %vm4492, %v4528, %v4374
        %v4565 = vsel %vm4493, %v4529, %v4385
        %vm4566 = vcmp.lt.s32.totalorder %v4530, 16
        %vm4567 = vcmp.lt.s32.totalorder %v4531, 16
        %vm4568 = vcmp.lt.s32.totalorder %v4532, 16
        %vm4569 = vcmp.lt.s32.totalorder %v4533, 16
        %vm4570 = vcmp.lt.s32.totalorder %v4534, 16
        %vm4571 = vcmp.lt.s32.totalorder %v4535, 16
        %vm4572 = vcmp.lt.s32.totalorder %v4536, 16
        %vm4573 = vcmp.lt.s32.totalorder %v4537, 16
        %vm4574 = vcmp.lt.s32.totalorder %v4538, 16
        %vm4575 = vcmp.lt.s32.totalorder %v4539, 16
        %vm4576 = vcmp.lt.s32.totalorder %v4540, 16
        %vm4577 = vcmp.lt.s32.totalorder %v4541, 16
        %vm4578 = vcmp.lt.s32.totalorder %v4542, 16
        %vm4579 = vcmp.lt.s32.totalorder %v4543, 16
        %vm4580 = vcmp.lt.s32.totalorder %v4544, 16
        %vm4581 = vcmp.lt.s32.totalorder %v4545, 16
        %vm4582 = vcmp.lt.s32.totalorder %v4546, 16
        %vm4583 = vcmp.lt.s32.totalorder %v4547, 16
        %vm4584 = vcmp.lt.s32.totalorder %v4548, 16
        %vm4585 = vcmp.lt.s32.totalorder %v4549, 16
        %vm4586 = vcmp.lt.s32.totalorder %v4550, 16
        %vm4587 = vcmp.lt.s32.totalorder %v4551, 16
        %vm4588 = vcmp.lt.s32.totalorder %v4552, 16
        %vm4589 = vcmp.lt.s32.totalorder %v4553, 16
        %vm4590 = vcmp.lt.s32.totalorder %v4554, 16
        %vm4591 = vcmp.lt.s32.totalorder %v4555, 16
        %vm4592 = vcmp.lt.s32.totalorder %v4556, 16
        %vm4593 = vcmp.lt.s32.totalorder %v4557, 16
        %vm4594 = vcmp.lt.s32.totalorder %v4558, 16
        %vm4595 = vcmp.lt.s32.totalorder %v4559, 16
        %vm4596 = vcmp.lt.s32.totalorder %v4560, 16
        %vm4597 = vcmp.lt.s32.totalorder %v4561, 16
        %vm4598 = vcmp.lt.s32.totalorder %v4562, 16
        %vm4599 = vcmp.lt.s32.totalorder %v4563, 16
        %vm4600 = vcmp.lt.s32.totalorder %v4564, 16
        %vm4601 = vcmp.lt.s32.totalorder %v4565, 16
        %v4602 = vld [vmem:[%s2] sm:$0x1]
        %v4604 = vlaneseq
        %v4605 = vshrl.u32 %v4604, 7
        %v4606 = vsub.s32 0, %v4605
        %v4607 = vrot.slane %v4602, %v4606
        %v4609 = vadd.f32 %v3917, %v4607
        %v4610 = vadd.f32 %v3918, %v4607
        %v4611 = vadd.f32 %v3919, %v4607
        %v4612 = vadd.f32 %v3920, %v4607
        %v4613 = vadd.f32 %v3921, %v4607
        %v4614 = vadd.f32 %v3922, %v4607
        %v4615 = vadd.f32 %v3923, %v4607
        %v4616 = vadd.f32 %v3924, %v4607
        %v4617 = vadd.f32 %v3925, %v4607
        %v4618 = vadd.f32 %v3926, %v4607
        %v4619 = vadd.f32 %v3927, %v4607
        %v4620 = vadd.f32 %v3928, %v4607
        %v4621 = vadd.f32 %v3929, %v4607
        %v4622 = vadd.f32 %v3930, %v4607
        %v4623 = vadd.f32 %v3931, %v4607
        %v4624 = vadd.f32 %v3932, %v4607
        %v4625 = vadd.f32 %v3933, %v4607
        %v4626 = vadd.f32 %v3934, %v4607
        %v4627 = vadd.f32 %v3935, %v4607
        %v4628 = vadd.f32 %v3936, %v4607
        %v4629 = vadd.f32 %v3937, %v4607
        %v4630 = vadd.f32 %v3938, %v4607
        %v4631 = vadd.f32 %v3939, %v4607
        %v4632 = vadd.f32 %v3940, %v4607
        %v4633 = vadd.f32 %v3941, %v4607
        %v4634 = vadd.f32 %v3942, %v4607
        %v4635 = vadd.f32 %v3943, %v4607
        %v4636 = vadd.f32 %v3944, %v4607
        %v4637 = vadd.f32 %v3945, %v4607
        %v4638 = vadd.f32 %v3946, %v4607
        %v4639 = vadd.f32 %v3947, %v4607
        %v4640 = vadd.f32 %v3948, %v4607
        %v4641 = vadd.f32 %v3949, %v4607
        %v4642 = vadd.f32 %v3950, %v4607
        %v4643 = vadd.f32 %v3951, %v4607
        %v4644 = vadd.f32 %v3952, %v4607
        %v4645 = vmax.f32 %v4609, 0.0
        %v4646 = vmax.f32 %v4610, 0.0
        %v4647 = vmax.f32 %v4611, 0.0
        %v4648 = vmax.f32 %v4612, 0.0
        %v4649 = vmax.f32 %v4613, 0.0
        %v4650 = vmax.f32 %v4614, 0.0
        %v4651 = vmax.f32 %v4615, 0.0
        %v4652 = vmax.f32 %v4616, 0.0
        %v4653 = vmax.f32 %v4617, 0.0
        %v4654 = vmax.f32 %v4618, 0.0
        %v4655 = vmax.f32 %v4619, 0.0
        %v4656 = vmax.f32 %v4620, 0.0
        %v4657 = vmax.f32 %v4621, 0.0
        %v4658 = vmax.f32 %v4622, 0.0
        %v4659 = vmax.f32 %v4623, 0.0
        %v4660 = vmax.f32 %v4624, 0.0
        %v4661 = vmax.f32 %v4625, 0.0
        %v4662 = vmax.f32 %v4626, 0.0
        %v4663 = vmax.f32 %v4627, 0.0
        %v4664 = vmax.f32 %v4628, 0.0
        %v4665 = vmax.f32 %v4629, 0.0
        %v4666 = vmax.f32 %v4630, 0.0
        %v4667 = vmax.f32 %v4631, 0.0
        %v4668 = vmax.f32 %v4632, 0.0
        %v4669 = vmax.f32 %v4633, 0.0
        %v4670 = vmax.f32 %v4634, 0.0
        %v4671 = vmax.f32 %v4635, 0.0
        %v4672 = vmax.f32 %v4636, 0.0
        %v4673 = vmax.f32 %v4637, 0.0
        %v4674 = vmax.f32 %v4638, 0.0
        %v4675 = vmax.f32 %v4639, 0.0
        %v4676 = vmax.f32 %v4640, 0.0
        %v4677 = vmax.f32 %v4641, 0.0
        %v4678 = vmax.f32 %v4642, 0.0
        %v4679 = vmax.f32 %v4643, 0.0
        %v4680 = vmax.f32 %v4644, 0.0
        %v4681 = vsel %vm4566, 1, 0
        %v4682 = vsel %vm4567, 1, 0
        %v4683 = vsel %vm4568, 1, 0
        %v4684 = vsel %vm4569, 1, 0
        %v4685 = vsel %vm4570, 1, 0
        %v4686 = vsel %vm4571, 1, 0
        %v4687 = vsel %vm4572, 1, 0
        %v4688 = vsel %vm4573, 1, 0
        %v4689 = vsel %vm4574, 1, 0
        %v4690 = vsel %vm4575, 1, 0
        %v4691 = vsel %vm4576, 1, 0
        %v4692 = vsel %vm4577, 1, 0
        %v4693 = vsel %vm4578, 1, 0
        %v4694 = vsel %vm4579, 1, 0
        %v4695 = vsel %vm4580, 1, 0
        %v4696 = vsel %vm4581, 1, 0
        %v4697 = vsel %vm4582, 1, 0
        %v4698 = vsel %vm4583, 1, 0
        %v4699 = vsel %vm4584, 1, 0
        %v4700 = vsel %vm4585, 1, 0
        %v4701 = vsel %vm4586, 1, 0
        %v4702 = vsel %vm4587, 1, 0
        %v4703 = vsel %vm4588, 1, 0
        %v4704 = vsel %vm4589, 1, 0
        %v4705 = vsel %vm4590, 1, 0
        %v4706 = vsel %vm4591, 1, 0
        %v4707 = vsel %vm4592, 1, 0
        %v4708 = vsel %vm4593, 1, 0
        %v4709 = vsel %vm4594, 1, 0
        %v4710 = vsel %vm4595, 1, 0
        %v4711 = vsel %vm4596, 1, 0
        %v4712 = vsel %vm4597, 1, 0
        %v4713 = vsel %vm4598, 1, 0
        %v4714 = vsel %vm4599, 1, 0
        %v4715 = vsel %vm4600, 1, 0
        %v4716 = vsel %vm4601, 1, 0
        %vm4717 = vcmp.eq.s32.totalorder %v4681, 1
        %vm4718 = vcmp.eq.s32.totalorder %v4682, 1
        %vm4719 = vcmp.eq.s32.totalorder %v4683, 1
        %vm4720 = vcmp.eq.s32.totalorder %v4684, 1
        %vm4721 = vcmp.eq.s32.totalorder %v4685, 1
        %vm4722 = vcmp.eq.s32.totalorder %v4686, 1
        %vm4723 = vcmp.eq.s32.totalorder %v4687, 1
        %vm4724 = vcmp.eq.s32.totalorder %v4688, 1
        %vm4725 = vcmp.eq.s32.totalorder %v4689, 1
        %vm4726 = vcmp.eq.s32.totalorder %v4690, 1
        %vm4727 = vcmp.eq.s32.totalorder %v4691, 1
        %vm4728 = vcmp.eq.s32.totalorder %v4692, 1
        %vm4729 = vcmp.eq.s32.totalorder %v4693, 1
        %vm4730 = vcmp.eq.s32.totalorder %v4694, 1
        %vm4731 = vcmp.eq.s32.totalorder %v4695, 1
        %vm4732 = vcmp.eq.s32.totalorder %v4696, 1
        %vm4733 = vcmp.eq.s32.totalorder %v4697, 1
        %vm4734 = vcmp.eq.s32.totalorder %v4698, 1
        %vm4735 = vcmp.eq.s32.totalorder %v4699, 1
        %vm4736 = vcmp.eq.s32.totalorder %v4700, 1
        %vm4737 = vcmp.eq.s32.totalorder %v4701, 1
        %vm4738 = vcmp.eq.s32.totalorder %v4702, 1
        %vm4739 = vcmp.eq.s32.totalorder %v4703, 1
        %vm4740 = vcmp.eq.s32.totalorder %v4704, 1
        %vm4741 = vcmp.eq.s32.totalorder %v4705, 1
        %vm4742 = vcmp.eq.s32.totalorder %v4706, 1
        %vm4743 = vcmp.eq.s32.totalorder %v4707, 1
        %vm4744 = vcmp.eq.s32.totalorder %v4708, 1
        %vm4745 = vcmp.eq.s32.totalorder %v4709, 1
        %vm4746 = vcmp.eq.s32.totalorder %v4710, 1
        %vm4747 = vcmp.eq.s32.totalorder %v4711, 1
        %vm4748 = vcmp.eq.s32.totalorder %v4712, 1
        %vm4749 = vcmp.eq.s32.totalorder %v4713, 1
        %vm4750 = vcmp.eq.s32.totalorder %v4714, 1
        %vm4751 = vcmp.eq.s32.totalorder %v4715, 1
        %vm4752 = vcmp.eq.s32.totalorder %v4716, 1
        %v4753 = vsel %vm4717, %v4645, 0.0
        %v4754 = vsel %vm4718, %v4646, 0.0
        %v4755 = vsel %vm4719, %v4647, 0.0
        %v4756 = vsel %vm4720, %v4648, 0.0
        %v4757 = vsel %vm4721, %v4649, 0.0
        %v4758 = vsel %vm4722, %v4650, 0.0
        %v4759 = vsel %vm4723, %v4651, 0.0
        %v4760 = vsel %vm4724, %v4652, 0.0
        %v4761 = vsel %vm4725, %v4653, 0.0
        %v4762 = vsel %vm4726, %v4654, 0.0
        %v4763 = vsel %vm4727, %v4655, 0.0
        %v4764 = vsel %vm4728, %v4656, 0.0
        %v4765 = vsel %vm4729, %v4657, 0.0
        %v4766 = vsel %vm4730, %v4658, 0.0
        %v4767 = vsel %vm4731, %v4659, 0.0
        %v4768 = vsel %vm4732, %v4660, 0.0
        %v4769 = vsel %vm4733, %v4661, 0.0
        %v4770 = vsel %vm4734, %v4662, 0.0
        %v4771 = vsel %vm4735, %v4663, 0.0
        %v4772 = vsel %vm4736, %v4664, 0.0
        %v4773 = vsel %vm4737, %v4665, 0.0
        %v4774 = vsel %vm4738, %v4666, 0.0
        %v4775 = vsel %vm4739, %v4667, 0.0
        %v4776 = vsel %vm4740, %v4668, 0.0
        %v4777 = vsel %vm4741, %v4669, 0.0
        %v4778 = vsel %vm4742, %v4670, 0.0
        %v4779 = vsel %vm4743, %v4671, 0.0
        %v4780 = vsel %vm4744, %v4672, 0.0
        %v4781 = vsel %vm4745, %v4673, 0.0
        %v4782 = vsel %vm4746, %v4674, 0.0
        %v4783 = vsel %vm4747, %v4675, 0.0
        %v4784 = vsel %vm4748, %v4676, 0.0
        %v4785 = vsel %vm4749, %v4677, 0.0
        %v4786 = vsel %vm4750, %v4678, 0.0
        %v4787 = vsel %vm4751, %v4679, 0.0
        %v4788 = vsel %vm4752, %v4680, 0.0
        %4789 = vst [vmem:[#allocation2] sm:$0xff] 0
        %4790 = vst [vmem:[#allocation2 + $0x8] sm:$0xf] 0
        %4791 = vst [vmem:[#allocation2 + $0x98] sm:$0xf0] 0
        %4792 = vst [vmem:[#allocation2 + $0xa0] sm:$0xff] 0
        %v4793 = vpack.c.bf16 %v4754, %v4753
        %v4794 = vpack.c.bf16 %v4756, %v4755
        %v4795 = vpack.c.bf16 %v4758, %v4757
        %v4796 = vpack.c.bf16 %v4760, %v4759
        %v4797 = vpack.c.bf16 %v4762, %v4761
        %v4798 = vpack.c.bf16 %v4764, %v4763
        %v4799 = vpack.c.bf16 %v4766, %v4765
        %v4800 = vpack.c.bf16 %v4768, %v4767
        %v4801 = vpack.c.bf16 %v4770, %v4769
        %v4802 = vpack.c.bf16 %v4772, %v4771
        %v4803 = vpack.c.bf16 %v4774, %v4773
        %v4804 = vpack.c.bf16 %v4776, %v4775
        %v4805 = vpack.c.bf16 %v4778, %v4777
        %v4806 = vpack.c.bf16 %v4780, %v4779
        %v4807 = vpack.c.bf16 %v4782, %v4781
        %v4808 = vpack.c.bf16 %v4784, %v4783
        %v4809 = vpack.c.bf16 %v4786, %v4785
        %v4810 = vpack.c.bf16 %v4788, %v4787
        %vm4829 = vcmask 1043456
        %v4830 = vrot.slane %v4793, 4
        %v4831 = vrot.slane %v4794, 4
        %v4832 = vsel %vm4829, %v4830, %v4831
        %v4833 = vrot.slane %v4795, 4
        %v4834 = vsel %vm4829, %v4831, %v4833
        %v4835 = vrot.slane %v4796, 4
        %v4836 = vsel %vm4829, %v4833, %v4835
        %v4837 = vrot.slane %v4797, 4
        %v4838 = vsel %vm4829, %v4835, %v4837
        %v4839 = vrot.slane %v4798, 4
        %v4840 = vsel %vm4829, %v4837, %v4839
        %v4841 = vrot.slane %v4799, 4
        %v4842 = vsel %vm4829, %v4839, %v4841
        %v4843 = vrot.slane %v4800, 4
        %v4844 = vsel %vm4829, %v4841, %v4843
        %v4845 = vrot.slane %v4801, 4
        %v4846 = vsel %vm4829, %v4843, %v4845
        %v4847 = vrot.slane %v4802, 4
        %v4848 = vsel %vm4829, %v4845, %v4847
        %v4849 = vrot.slane %v4803, 4
        %v4850 = vsel %vm4829, %v4847, %v4849
        %v4851 = vrot.slane %v4804, 4
        %v4852 = vsel %vm4829, %v4849, %v4851
        %v4853 = vrot.slane %v4805, 4
        %v4854 = vsel %vm4829, %v4851, %v4853
        %v4855 = vrot.slane %v4806, 4
        %v4856 = vsel %vm4829, %v4853, %v4855
        %v4857 = vrot.slane %v4807, 4
        %v4858 = vsel %vm4829, %v4855, %v4857
        %v4859 = vrot.slane %v4808, 4
        %v4860 = vsel %vm4829, %v4857, %v4859
        %v4861 = vrot.slane %v4809, 4
        %v4862 = vsel %vm4829, %v4859, %v4861
        %v4863 = vrot.slane %v4810, 4
        %v4864 = vsel %vm4829, %v4861, %v4863
        %4884 = vst [vmem:[#allocation2 + $0x8] sm:$0xf0] %v4830
        %4885 = vst [vmem:[#allocation2 + $0x10] sm:$0xff] %v4832
        %4886 = vst [vmem:[#allocation2 + $0x18] sm:$0xff] %v4834
        %4887 = vst [vmem:[#allocation2 + $0x20] sm:$0xff] %v4836
        %4888 = vst [vmem:[#allocation2 + $0x28] sm:$0xff] %v4838
        %4889 = vst [vmem:[#allocation2 + $0x30] sm:$0xff] %v4840
        %4890 = vst [vmem:[#allocation2 + $0x38] sm:$0xff] %v4842
        %4891 = vst [vmem:[#allocation2 + $0x40] sm:$0xff] %v4844
        %4892 = vst [vmem:[#allocation2 + $0x48] sm:$0xff] %v4846
        %4893 = vst [vmem:[#allocation2 + $0x50] sm:$0xff] %v4848
        %4894 = vst [vmem:[#allocation2 + $0x58] sm:$0xff] %v4850
        %4895 = vst [vmem:[#allocation2 + $0x60] sm:$0xff] %v4852
        %4896 = vst [vmem:[#allocation2 + $0x68] sm:$0xff] %v4854
        %4897 = vst [vmem:[#allocation2 + $0x70] sm:$0xff] %v4856
        %4898 = vst [vmem:[#allocation2 + $0x78] sm:$0xff] %v4858
        %4899 = vst [vmem:[#allocation2 + $0x80] sm:$0xff] %v4860
        %4900 = vst [vmem:[#allocation2 + $0x88] sm:$0xff] %v4862
        %4901 = vst [vmem:[#allocation2 + $0x90] sm:$0xff] %v4864
        %4902 = vst [vmem:[#allocation2 + $0x98] sm:$0xf] %v4863
        %v4903 = vld [vmem:[#allocation2] sm:$0xfc]
        %v4904 = vld [vmem:[#allocation2 + $0x8] sm:$0xff]
        %v4905 = vld [vmem:[#allocation2 + $0x10] sm:$0xff]
        %v4906 = vld [vmem:[#allocation2 + $0x18] sm:$0xff]
        %v4907 = vld [vmem:[#allocation2 + $0x20] sm:$0xff]
        %v4908 = vld [vmem:[#allocation2 + $0x28] sm:$0xff]
        %v4909 = vld [vmem:[#allocation2 + $0x30] sm:$0xff]
        %v4910 = vld [vmem:[#allocation2 + $0x38] sm:$0xff]
        %v4911 = vld [vmem:[#allocation2 + $0x40] sm:$0xff]
        %v4912 = vld [vmem:[#allocation2 + $0x48] sm:$0xff]
        %v4913 = vld [vmem:[#allocation2 + $0x50] sm:$0xff]
        %v4914 = vld [vmem:[#allocation2 + $0x58] sm:$0xff]
        %v4915 = vld [vmem:[#allocation2 + $0x60] sm:$0xff]
        %v4916 = vld [vmem:[#allocation2 + $0x68] sm:$0xff]
        %v4917 = vld [vmem:[#allocation2 + $0x70] sm:$0xff]
        %v4918 = vld [vmem:[#allocation2 + $0x78] sm:$0xff]
        %v4919 = vld [vmem:[#allocation2 + $0x80] sm:$0xff]
        %v4920 = vld [vmem:[#allocation2 + $0x88] sm:$0xff]
        %v4921 = vld [vmem:[#allocation2 + $0x90] sm:$0x7]
        %v4922 = vld [vmem:[#allocation8] sm:$0xf]
        %v4923 = vld [vmem:[#allocation8 + $0x4] sm:$0xf]
        %v4924 = vld [vmem:[#allocation8 + $0x8] sm:$0xf]
        %v4925 = vld [vmem:[#allocation8 + $0xc] sm:$0xf]
        %v4926 = vld [vmem:[#allocation8 + $0x10] sm:$0xf]
        %v4927 = vld [vmem:[#allocation8 + $0x14] sm:$0xf]
        %v4928 = vld [vmem:[#allocation8 + $0x18] sm:$0xf]
        %v4929 = vld [vmem:[#allocation8 + $0x1c] sm:$0xf]
        %v4930 = vld [vmem:[#allocation8 + $0x20] sm:$0xf]
        %v4931 = vld [vmem:[#allocation8 + $0x24] sm:$0xf]
        %v4932 = vld [vmem:[#allocation8 + $0x28] sm:$0xf]
        %v4933 = vld [vmem:[#allocation8 + $0x2c] sm:$0xf]
        %v4934 = vld [vmem:[#allocation8 + $0x30] sm:$0xf]
        %v4935 = vld [vmem:[#allocation8 + $0x34] sm:$0xf]
        %v4936 = vld [vmem:[#allocation8 + $0x38] sm:$0xf]
        %v4937 = vld [vmem:[#allocation8 + $0x3c] sm:$0xf]
        %v4938 = vld [vmem:[#allocation2] sm:$0xf8]
        %s4939 = scalar_lea.vmem [#allocation8], 64
        %v4940 = vld [vmem:[%s4939] sm:$0xf]
        %v4941 = vld [vmem:[%s4939 + $0x4] sm:$0xf]
        %v4942 = vld [vmem:[%s4939 + $0x8] sm:$0xf]
        %v4943 = vld [vmem:[%s4939 + $0xc] sm:$0xf]
        %v4944 = vld [vmem:[%s4939 + $0x10] sm:$0xf]
        %v4945 = vld [vmem:[%s4939 + $0x14] sm:$0xf]
        %v4946 = vld [vmem:[%s4939 + $0x18] sm:$0xf]
        %v4947 = vld [vmem:[%s4939 + $0x1c] sm:$0xf]
        %v4948 = vld [vmem:[%s4939 + $0x20] sm:$0xf]
        %v4949 = vld [vmem:[%s4939 + $0x24] sm:$0xf]
        %v4950 = vld [vmem:[%s4939 + $0x28] sm:$0xf]
        %v4951 = vld [vmem:[%s4939 + $0x2c] sm:$0xf]
        %v4952 = vld [vmem:[%s4939 + $0x30] sm:$0xf]
        %v4953 = vld [vmem:[%s4939 + $0x34] sm:$0xf]
        %v4954 = vld [vmem:[%s4939 + $0x38] sm:$0xf]
        %v4955 = vld [vmem:[%s4939 + $0x3c] sm:$0xf]
        %v4975 = vrot.slane %v4938, 3
        %v4976 = vrot.slane %v4904, 3
        %v4977 = vsel %vm3636, %v4975, %v4976
        %v4978 = vrot.slane %v4905, 3
        %v4979 = vsel %vm3636, %v4976, %v4978
        %v4980 = vrot.slane %v4906, 3
        %v4981 = vsel %vm3636, %v4978, %v4980
        %v4982 = vrot.slane %v4907, 3
        %v4983 = vsel %vm3636, %v4980, %v4982
        %v4984 = vrot.slane %v4908, 3
        %v4985 = vsel %vm3636, %v4982, %v4984
        %v4986 = vrot.slane %v4909, 3
        %v4987 = vsel %vm3636, %v4984, %v4986
        %v4988 = vrot.slane %v4910, 3
        %v4989 = vsel %vm3636, %v4986, %v4988
        %v4990 = vrot.slane %v4911, 3
        %v4991 = vsel %vm3636, %v4988, %v4990
        %v4992 = vrot.slane %v4912, 3
        %v4993 = vsel %vm3636, %v4990, %v4992
        %v4994 = vrot.slane %v4913, 3
        %v4995 = vsel %vm3636, %v4992, %v4994
        %v4996 = vrot.slane %v4914, 3
        %v4997 = vsel %vm3636, %v4994, %v4996
        %v4998 = vrot.slane %v4915, 3
        %v4999 = vsel %vm3636, %v4996, %v4998
        %v5000 = vrot.slane %v4916, 3
        %v5001 = vsel %vm3636, %v4998, %v5000
        %v5002 = vrot.slane %v4917, 3
        %v5003 = vsel %vm3636, %v5000, %v5002
        %v5004 = vrot.slane %v4918, 3
        %v5005 = vsel %vm3636, %v5002, %v5004
        %v5006 = vrot.slane %v4919, 3
        %v5007 = vsel %vm3636, %v5004, %v5006
        %v5008 = vrot.slane %v4920, 3
        %v5009 = vsel %vm3636, %v5006, %v5008
        %v5010 = vrot.slane %v4921, 3
        %v5011 = vsel %vm3636, %v5008, %v5010
        %v5046 = vunpack.c.l.b16 %v4940
        %v5047 = vunpack.c.l.b16 %v4941
        %v5048 = vunpack.c.l.b16 %v4942
        %v5049 = vunpack.c.l.b16 %v4943
        %v5050 = vunpack.c.l.b16 %v4944
        %v5051 = vunpack.c.l.b16 %v4945
        %v5052 = vunpack.c.l.b16 %v4946
        %v5053 = vunpack.c.l.b16 %v4947
        %v5054 = vunpack.c.l.b16 %v4948
        %v5055 = vunpack.c.l.b16 %v4949
        %v5056 = vunpack.c.l.b16 %v4950
        %v5057 = vunpack.c.l.b16 %v4951
        %v5058 = vunpack.c.l.b16 %v4952
        %v5059 = vunpack.c.l.b16 %v4953
        %v5060 = vunpack.c.l.b16 %v4954
        %v5061 = vunpack.c.l.b16 %v4955
        %v5062 = vpack.c.b16 %v5047, %v5046
        %v5063 = vpack.c.b16 %v5049, %v5048
        %v5064 = vpack.c.b16 %v5051, %v5050
        %v5065 = vpack.c.b16 %v5053, %v5052
        %v5066 = vpack.c.b16 %v5055, %v5054
        %v5067 = vpack.c.b16 %v5057, %v5056
        %v5068 = vpack.c.b16 %v5059, %v5058
        %v5069 = vpack.c.b16 %v5061, %v5060
        %5078 = vmatprep.subr.bf16.mxu0 0
        %5079 = vmatpush1.bf16.msra.mxu0 %v5062
        %5080 = vmatprep.subr.bf16.mxu0 0
        %5081 = vmatpush1.bf16.msra.mxu0 %v5063
        %5082 = vmatprep.subr.bf16.mxu0 0
        %5083 = vmatpush1.bf16.msra.mxu0 %v5064
        %5084 = vmatprep.subr.bf16.mxu0 0
        %5085 = vmatpush1.bf16.msra.mxu0 %v5065
        %5086 = vmatprep.subr.bf16.mxu0 0
        %5087 = vmatpush1.bf16.msra.mxu0 %v5066
        %5088 = vmatprep.subr.bf16.mxu0 0
        %5089 = vmatpush1.bf16.msra.mxu0 %v5067
        %5090 = vmatprep.subr.bf16.mxu0 0
        %5091 = vmatpush1.bf16.msra.mxu0 %v5068
        %5092 = vmatprep.subr.bf16.mxu0 0
        %5093 = vmatpush1.bf16.msra.mxu0 %v5069
        %5094 = vmatprep.subr.bf16.mxu0 0
        %5095 = vmatpush1.bf16.msra.mxu0 0
        %5096 = vmatprep.subr.bf16.mxu0 0
        %5097 = vmatpush1.bf16.msra.mxu0 0
        %5098 = vmatprep.subr.bf16.mxu0 0
        %5099 = vmatpush1.bf16.msra.mxu0 0
        %5100 = vmatprep.subr.bf16.mxu0 0
        %5101 = vmatpush1.bf16.msra.mxu0 0
        %5102 = vmatprep.subr.bf16.mxu0 0
        %5103 = vmatpush1.bf16.msra.mxu0 0
        %5104 = vmatprep.subr.bf16.mxu0 0
        %5105 = vmatpush1.bf16.msra.mxu0 0
        %5106 = vmatprep.subr.bf16.mxu0 0
        %5107 = vmatpush1.bf16.msra.mxu0 0
        %5108 = vmatprep.subr.bf16.mxu0 0
        %5109 = vmatpush1.bf16.msra.mxu0 0
        %5110 = vmatprep.mubr.bf16.mxu0 0
        %5111 = vmatmul.mubr.bf16.gmra.mrb[0].mxu0 %v4977
        %v5112 = vpop.f32.mrb[0].mxu0
        %v5113 = vadd.f32 0.0, %v5112
        %v5114 = vpop.f32.mrb[0].mxu0
        %v5115 = vpop.f32.mrb[0].mxu0
        %v5116 = vadd.f32 0.0, %v5115
        %v5117 = vpop.f32.mrb[0].mxu0
        %5118 = vmatprep.mubr.bf16.mxu0 0
        %5119 = vmatmul.mubr.bf16.gmra.mrb[0].mxu0 %v4979
        %v5120 = vpop.f32.mrb[0].mxu0
        %v5121 = vadd.f32 0.0, %v5120
        %v5122 = vpop.f32.mrb[0].mxu0
        %v5123 = vpop.f32.mrb[0].mxu0
        %v5124 = vadd.f32 0.0, %v5123
        %v5125 = vpop.f32.mrb[0].mxu0
        %5126 = vmatprep.mubr.bf16.mxu0 0
        %5127 = vmatmul.mubr.bf16.gmra.mrb[0].mxu0 %v4981
        %v5128 = vpop.f32.mrb[0].mxu0
        %v5129 = vadd.f32 0.0, %v5128
        %v5130 = vpop.f32.mrb[0].mxu0
        %v5131 = vpop.f32.mrb[0].mxu0
        %v5132 = vadd.f32 0.0, %v5131
        %v5133 = vpop.f32.mrb[0].mxu0
        %5134 = vmatprep.mubr.bf16.mxu0 0
        %5135 = vmatmul.mubr.bf16.gmra.mrb[0].mxu0 %v4983
        %v5136 = vpop.f32.mrb[0].mxu0
        %v5137 = vadd.f32 0.0, %v5136
        %v5138 = vpop.f32.mrb[0].mxu0
        %v5139 = vpop.f32.mrb[0].mxu0
        %v5140 = vadd.f32 0.0, %v5139
        %v5141 = vpop.f32.mrb[0].mxu0
        %5142 = vmatprep.mubr.bf16.mxu0 0
        %5143 = vmatmul.mubr.bf16.gmra.mrb[0].mxu0 %v4985
        %v5144 = vpop.f32.mrb[0].mxu0
        %v5145 = vadd.f32 0.0, %v5144
        %v5146 = vpop.f32.mrb[0].mxu0
        %v5147 = vpop.f32.mrb[0].mxu0
        %v5148 = vadd.f32 0.0, %v5147
        %v5149 = vpop.f32.mrb[0].mxu0
        %5150 = vmatprep.mubr.bf16.mxu0 0
        %5151 = vmatmul.mubr.bf16.gmra.mrb[0].mxu0 %v4987
        %v5152 = vpop.f32.mrb[0].mxu0
        %v5153 = vadd.f32 0.0, %v5152
        %v5154 = vpop.f32.mrb[0].mxu0
        %v5155 = vpop.f32.mrb[0].mxu0
        %v5156 = vadd.f32 0.0, %v5155
        %v5157 = vpop.f32.mrb[0].mxu0
        %5158 = vmatprep.mubr.bf16.mxu0 0
        %5159 = vmatmul.mubr.bf16.gmra.mrb[0].mxu0 %v4989
        %v5160 = vpop.f32.mrb[0].mxu0
        %v5161 = vadd.f32 0.0, %v5160
        %v5162 = vpop.f32.mrb[0].mxu0
        %v5163 = vpop.f32.mrb[0].mxu0
        %v5164 = vadd.f32 0.0, %v5163
        %v5165 = vpop.f32.mrb[0].mxu0
        %5166 = vmatprep.mubr.bf16.mxu0 0
        %5167 = vmatmul.mubr.bf16.gmra.mrb[0].mxu0 %v4991
        %v5168 = vpop.f32.mrb[0].mxu0
        %v5169 = vadd.f32 0.0, %v5168
        %v5170 = vpop.f32.mrb[0].mxu0
        %v5171 = vpop.f32.mrb[0].mxu0
        %v5172 = vadd.f32 0.0, %v5171
        %v5173 = vpop.f32.mrb[0].mxu0
        %5174 = vmatprep.mubr.bf16.mxu0 0
        %5175 = vmatmul.mubr.bf16.gmra.mrb[0].mxu0 %v4993
        %v5176 = vpop.f32.mrb[0].mxu0
        %v5177 = vadd.f32 0.0, %v5176
        %v5178 = vpop.f32.mrb[0].mxu0
        %v5179 = vpop.f32.mrb[0].mxu0
        %v5180 = vadd.f32 0.0, %v5179
        %v5181 = vpop.f32.mrb[0].mxu0
        %5182 = vmatprep.mubr.bf16.mxu0 0
        %5183 = vmatmul.mubr.bf16.gmra.mrb[0].mxu0 %v4995
        %v5184 = vpop.f32.mrb[0].mxu0
        %v5185 = vadd.f32 0.0, %v5184
        %v5186 = vpop.f32.mrb[0].mxu0
        %v5187 = vpop.f32.mrb[0].mxu0
        %v5188 = vadd.f32 0.0, %v5187
        %v5189 = vpop.f32.mrb[0].mxu0
        %5190 = vmatprep.mubr.bf16.mxu0 0
        %5191 = vmatmul.mubr.bf16.gmra.mrb[0].mxu0 %v4997
        %v5192 = vpop.f32.mrb[0].mxu0
        %v5193 = vadd.f32 0.0, %v5192
        %v5194 = vpop.f32.mrb[0].mxu0
        %v5195 = vpop.f32.mrb[0].mxu0
        %v5196 = vadd.f32 0.0, %v5195
        %v5197 = vpop.f32.mrb[0].mxu0
        %5198 = vmatprep.mubr.bf16.mxu0 0
        %5199 = vmatmul.mubr.bf16.gmra.mrb[0].mxu0 %v4999
        %v5200 = vpop.f32.mrb[0].mxu0
        %v5201 = vadd.f32 0.0, %v5200
        %v5202 = vpop.f32.mrb[0].mxu0
        %v5203 = vpop.f32.mrb[0].mxu0
        %v5204 = vadd.f32 0.0, %v5203
        %v5205 = vpop.f32.mrb[0].mxu0
        %5206 = vmatprep.mubr.bf16.mxu0 0
        %5207 = vmatmul.mubr.bf16.gmra.mrb[0].mxu0 %v5001
        %v5208 = vpop.f32.mrb[0].mxu0
        %v5209 = vadd.f32 0.0, %v5208
        %v5210 = vpop.f32.mrb[0].mxu0
        %v5211 = vpop.f32.mrb[0].mxu0
        %v5212 = vadd.f32 0.0, %v5211
        %v5213 = vpop.f32.mrb[0].mxu0
        %5214 = vmatprep.mubr.bf16.mxu0 0
        %5215 = vmatmul.mubr.bf16.gmra.mrb[0].mxu0 %v5003
        %v5216 = vpop.f32.mrb[0].mxu0
        %v5217 = vadd.f32 0.0, %v5216
        %v5218 = vpop.f32.mrb[0].mxu0
        %v5219 = vpop.f32.mrb[0].mxu0
        %v5220 = vadd.f32 0.0, %v5219
        %v5221 = vpop.f32.mrb[0].mxu0
        %5222 = vmatprep.mubr.bf16.mxu0 0
        %5223 = vmatmul.mubr.bf16.gmra.mrb[0].mxu0 %v5005
        %v5224 = vpop.f32.mrb[0].mxu0
        %v5225 = vadd.f32 0.0, %v5224
        %v5226 = vpop.f32.mrb[0].mxu0
        %v5227 = vpop.f32.mrb[0].mxu0
        %v5228 = vadd.f32 0.0, %v5227
        %v5229 = vpop.f32.mrb[0].mxu0
        %5230 = vmatprep.mubr.bf16.mxu0 0
        %5231 = vmatmul.mubr.bf16.gmra.mrb[0].mxu0 %v5007
        %v5232 = vpop.f32.mrb[0].mxu0
        %v5233 = vadd.f32 0.0, %v5232
        %v5234 = vpop.f32.mrb[0].mxu0
        %v5235 = vpop.f32.mrb[0].mxu0
        %v5236 = vadd.f32 0.0, %v5235
        %v5237 = vpop.f32.mrb[0].mxu0
        %5238 = vmatprep.mubr.bf16.mxu0 0
        %5239 = vmatmul.mubr.bf16.gmra.mrb[0].mxu0 %v5009
        %v5240 = vpop.f32.mrb[0].mxu0
        %v5241 = vadd.f32 0.0, %v5240
        %v5242 = vpop.f32.mrb[0].mxu0
        %v5243 = vpop.f32.mrb[0].mxu0
        %v5244 = vadd.f32 0.0, %v5243
        %v5245 = vpop.f32.mrb[0].mxu0
        %5246 = vmatprep.mubr.bf16.mxu0 0
        %5247 = vmatmul.mubr.bf16.gmra.mrb[0].mxu0 %v5011
        %v5248 = vpop.f32.mrb[0].mxu0
        %v5249 = vadd.f32 0.0, %v5248
        %v5250 = vpop.f32.mrb[0].mxu0
        %v5251 = vpop.f32.mrb[0].mxu0
        %v5252 = vadd.f32 0.0, %v5251
        %v5253 = vpop.f32.mrb[0].mxu0
        %5254 = vdwg.mxu0
        %v5256 = vshrl.u32 %v4903, 16
        %v5258 = vrot.slane %v5256, 2
        %v5259 = vshll.u32 %v4903, 16
        %v5261 = vrot.slane %v5259, 3
        %v5262 = vor.u32 %v5258, %v5261
        %v5264 = vshrl.u32 %v4904, 16
        %v5266 = vrot.slane %v5264, 2
        %v5267 = vshll.u32 %v4904, 16
        %v5269 = vrot.slane %v5267, 3
        %v5270 = vor.u32 %v5266, %v5269
        %v5271 = vsel %vm3165, %v5262, %v5270
        %v5273 = vshrl.u32 %v4905, 16
        %v5275 = vrot.slane %v5273, 2
        %v5276 = vshll.u32 %v4905, 16
        %v5278 = vrot.slane %v5276, 3
        %v5279 = vor.u32 %v5275, %v5278
        %v5280 = vsel %vm3165, %v5270, %v5279
        %v5282 = vshrl.u32 %v4906, 16
        %v5284 = vrot.slane %v5282, 2
        %v5285 = vshll.u32 %v4906, 16
        %v5287 = vrot.slane %v5285, 3
        %v5288 = vor.u32 %v5284, %v5287
        %v5289 = vsel %vm3165, %v5279, %v5288
        %v5291 = vshrl.u32 %v4907, 16
        %v5293 = vrot.slane %v5291, 2
        %v5294 = vshll.u32 %v4907, 16
        %v5296 = vrot.slane %v5294, 3
        %v5297 = vor.u32 %v5293, %v5296
        %v5298 = vsel %vm3165, %v5288, %v5297
        %v5300 = vshrl.u32 %v4908, 16
        %v5302 = vrot.slane %v5300, 2
        %v5303 = vshll.u32 %v4908, 16
        %v5305 = vrot.slane %v5303, 3
        %v5306 = vor.u32 %v5302, %v5305
        %v5307 = vsel %vm3165, %v5297, %v5306
        %v5309 = vshrl.u32 %v4909, 16
        %v5311 = vrot.slane %v5309, 2
        %v5312 = vshll.u32 %v4909, 16
        %v5314 = vrot.slane %v5312, 3
        %v5315 = vor.u32 %v5311, %v5314
        %v5316 = vsel %vm3165, %v5306, %v5315
        %v5318 = vshrl.u32 %v4910, 16
        %v5320 = vrot.slane %v5318, 2
        %v5321 = vshll.u32 %v4910, 16
        %v5323 = vrot.slane %v5321, 3
        %v5324 = vor.u32 %v5320, %v5323
        %v5325 = vsel %vm3165, %v5315, %v5324
        %v5327 = vshrl.u32 %v4911, 16
        %v5329 = vrot.slane %v5327, 2
        %v5330 = vshll.u32 %v4911, 16
        %v5332 = vrot.slane %v5330, 3
        %v5333 = vor.u32 %v5329, %v5332
        %v5334 = vsel %vm3165, %v5324, %v5333
        %v5336 = vshrl.u32 %v4912, 16
        %v5338 = vrot.slane %v5336, 2
        %v5339 = vshll.u32 %v4912, 16
        %v5341 = vrot.slane %v5339, 3
        %v5342 = vor.u32 %v5338, %v5341
        %v5343 = vsel %vm3165, %v5333, %v5342
        %v5345 = vshrl.u32 %v4913, 16
        %v5347 = vrot.slane %v5345, 2
        %v5348 = vshll.u32 %v4913, 16
        %v5350 = vrot.slane %v5348, 3
        %v5351 = vor.u32 %v5347, %v5350
        %v5352 = vsel %vm3165, %v5342, %v5351
        %v5354 = vshrl.u32 %v4914, 16
        %v5356 = vrot.slane %v5354, 2
        %v5357 = vshll.u32 %v4914, 16
        %v5359 = vrot.slane %v5357, 3
        %v5360 = vor.u32 %v5356, %v5359
        %v5361 = vsel %vm3165, %v5351, %v5360
        %v5363 = vshrl.u32 %v4915, 16
        %v5365 = vrot.slane %v5363, 2
        %v5366 = vshll.u32 %v4915, 16
        %v5368 = vrot.slane %v5366, 3
        %v5369 = vor.u32 %v5365, %v5368
        %v5370 = vsel %vm3165, %v5360, %v5369
        %v5372 = vshrl.u32 %v4916, 16
        %v5374 = vrot.slane %v5372, 2
        %v5375 = vshll.u32 %v4916, 16
        %v5377 = vrot.slane %v5375, 3
        %v5378 = vor.u32 %v5374, %v5377
        %v5379 = vsel %vm3165, %v5369, %v5378
        %v5381 = vshrl.u32 %v4917, 16
        %v5383 = vrot.slane %v5381, 2
        %v5384 = vshll.u32 %v4917, 16
        %v5386 = vrot.slane %v5384, 3
        %v5387 = vor.u32 %v5383, %v5386
        %v5388 = vsel %vm3165, %v5378, %v5387
        %v5390 = vshrl.u32 %v4918, 16
        %v5392 = vrot.slane %v5390, 2
        %v5393 = vshll.u32 %v4918, 16
        %v5395 = vrot.slane %v5393, 3
        %v5396 = vor.u32 %v5392, %v5395
        %v5397 = vsel %vm3165, %v5387, %v5396
        %v5399 = vshrl.u32 %v4919, 16
        %v5401 = vrot.slane %v5399, 2
        %v5402 = vshll.u32 %v4919, 16
        %v5404 = vrot.slane %v5402, 3
        %v5405 = vor.u32 %v5401, %v5404
        %v5406 = vsel %vm3165, %v5396, %v5405
        %v5408 = vshrl.u32 %v4920, 16
        %v5410 = vrot.slane %v5408, 2
        %v5411 = vshll.u32 %v4920, 16
        %v5413 = vrot.slane %v5411, 3
        %v5414 = vor.u32 %v5410, %v5413
        %v5415 = vsel %vm3165, %v5405, %v5414
        %v5417 = vshrl.u32 %v4921, 16
        %v5419 = vrot.slane %v5417, 2
        %v5420 = vshll.u32 %v4921, 16
        %v5422 = vrot.slane %v5420, 3
        %v5423 = vor.u32 %v5419, %v5422
        %v5424 = vsel %vm3165, %v5414, %v5423
        %v5459 = vunpack.c.l.b16 %v4922
        %v5460 = vunpack.c.l.b16 %v4923
        %v5461 = vunpack.c.l.b16 %v4924
        %v5462 = vunpack.c.l.b16 %v4925
        %v5463 = vunpack.c.l.b16 %v4926
        %v5464 = vunpack.c.l.b16 %v4927
        %v5465 = vunpack.c.l.b16 %v4928
        %v5466 = vunpack.c.l.b16 %v4929
        %v5467 = vunpack.c.l.b16 %v4930
        %v5468 = vunpack.c.l.b16 %v4931
        %v5469 = vunpack.c.l.b16 %v4932
        %v5470 = vunpack.c.l.b16 %v4933
        %v5471 = vunpack.c.l.b16 %v4934
        %v5472 = vunpack.c.l.b16 %v4935
        %v5473 = vunpack.c.l.b16 %v4936
        %v5474 = vunpack.c.l.b16 %v4937
        %v5475 = vpack.c.b16 %v5460, %v5459
        %v5476 = vpack.c.b16 %v5462, %v5461
        %v5477 = vpack.c.b16 %v5464, %v5463
        %v5478 = vpack.c.b16 %v5466, %v5465
        %v5479 = vpack.c.b16 %v5468, %v5467
        %v5480 = vpack.c.b16 %v5470, %v5469
        %v5481 = vpack.c.b16 %v5472, %v5471
        %v5482 = vpack.c.b16 %v5474, %v5473
        %5491 = vmatprep.subr.bf16.mxu0 0
        %5492 = vmatpush1.bf16.msra.mxu0 %v5475
        %5493 = vmatprep.subr.bf16.mxu0 0
        %5494 = vmatpush1.bf16.msra.mxu0 %v5476
        %5495 = vmatprep.subr.bf16.mxu0 0
        %5496 = vmatpush1.bf16.msra.mxu0 %v5477
        %5497 = vmatprep.subr.bf16.mxu0 0
        %5498 = vmatpush1.bf16.msra.mxu0 %v5478
        %5499 = vmatprep.subr.bf16.mxu0 0
        %5500 = vmatpush1.bf16.msra.mxu0 %v5479
        %5501 = vmatprep.subr.bf16.mxu0 0
        %5502 = vmatpush1.bf16.msra.mxu0 %v5480
        %5503 = vmatprep.subr.bf16.mxu0 0
        %5504 = vmatpush1.bf16.msra.mxu0 %v5481
        %5505 = vmatprep.subr.bf16.mxu0 0
        %5506 = vmatpush1.bf16.msra.mxu0 %v5482
        %5507 = vmatprep.subr.bf16.mxu0 0
        %5508 = vmatpush1.bf16.msra.mxu0 0
        %5509 = vmatprep.subr.bf16.mxu0 0
        %5510 = vmatpush1.bf16.msra.mxu0 0
        %5511 = vmatprep.subr.bf16.mxu0 0
        %5512 = vmatpush1.bf16.msra.mxu0 0
        %5513 = vmatprep.subr.bf16.mxu0 0
        %5514 = vmatpush1.bf16.msra.mxu0 0
        %5515 = vmatprep.subr.bf16.mxu0 0
        %5516 = vmatpush1.bf16.msra.mxu0 0
        %5517 = vmatprep.subr.bf16.mxu0 0
        %5518 = vmatpush1.bf16.msra.mxu0 0
        %5519 = vmatprep.subr.bf16.mxu0 0
        %5520 = vmatpush1.bf16.msra.mxu0 0
        %5521 = vmatprep.subr.bf16.mxu0 0
        %5522 = vmatpush1.bf16.msra.mxu0 0
        %5523 = vmatprep.mubr.bf16.mxu0 0
        %5524 = vmatmul.mubr.bf16.gmra.mrb[0].mxu0 %v5271
        %v5525 = vpop.f32.mrb[0].mxu0
        %v5526 = vadd.f32 %v5113, %v5525
        %v5527 = vpop.f32.mrb[0].mxu0
        %v5528 = vpop.f32.mrb[0].mxu0
        %v5529 = vadd.f32 %v5116, %v5528
        %v5530 = vpop.f32.mrb[0].mxu0
        %5531 = vmatprep.mubr.bf16.mxu0 0
        %5532 = vmatmul.mubr.bf16.gmra.mrb[0].mxu0 %v5280
        %v5533 = vpop.f32.mrb[0].mxu0
        %v5534 = vadd.f32 %v5121, %v5533
        %v5535 = vpop.f32.mrb[0].mxu0
        %v5536 = vpop.f32.mrb[0].mxu0
        %v5537 = vadd.f32 %v5124, %v5536
        %v5538 = vpop.f32.mrb[0].mxu0
        %5539 = vmatprep.mubr.bf16.mxu0 0
        %5540 = vmatmul.mubr.bf16.gmra.mrb[0].mxu0 %v5289
        %v5541 = vpop.f32.mrb[0].mxu0
        %v5542 = vadd.f32 %v5129, %v5541
        %v5543 = vpop.f32.mrb[0].mxu0
        %v5544 = vpop.f32.mrb[0].mxu0
        %v5545 = vadd.f32 %v5132, %v5544
        %v5546 = vpop.f32.mrb[0].mxu0
        %5547 = vmatprep.mubr.bf16.mxu0 0
        %5548 = vmatmul.mubr.bf16.gmra.mrb[0].mxu0 %v5298
        %v5549 = vpop.f32.mrb[0].mxu0
        %v5550 = vadd.f32 %v5137, %v5549
        %v5551 = vpop.f32.mrb[0].mxu0
        %v5552 = vpop.f32.mrb[0].mxu0
        %v5553 = vadd.f32 %v5140, %v5552
        %v5554 = vpop.f32.mrb[0].mxu0
        %5555 = vmatprep.mubr.bf16.mxu0 0
        %5556 = vmatmul.mubr.bf16.gmra.mrb[0].mxu0 %v5307
        %v5557 = vpop.f32.mrb[0].mxu0
        %v5558 = vadd.f32 %v5145, %v5557
        %v5559 = vpop.f32.mrb[0].mxu0
        %v5560 = vpop.f32.mrb[0].mxu0
        %v5561 = vadd.f32 %v5148, %v5560
        %v5562 = vpop.f32.mrb[0].mxu0
        %5563 = vmatprep.mubr.bf16.mxu0 0
        %5564 = vmatmul.mubr.bf16.gmra.mrb[0].mxu0 %v5316
        %v5565 = vpop.f32.mrb[0].mxu0
        %v5566 = vadd.f32 %v5153, %v5565
        %v5567 = vpop.f32.mrb[0].mxu0
        %v5568 = vpop.f32.mrb[0].mxu0
        %v5569 = vadd.f32 %v5156, %v5568
        %v5570 = vpop.f32.mrb[0].mxu0
        %5571 = vmatprep.mubr.bf16.mxu0 0
        %5572 = vmatmul.mubr.bf16.gmra.mrb[0].mxu0 %v5325
        %v5573 = vpop.f32.mrb[0].mxu0
        %v5574 = vadd.f32 %v5161, %v5573
        %v5575 = vpop.f32.mrb[0].mxu0
        %v5576 = vpop.f32.mrb[0].mxu0
        %v5577 = vadd.f32 %v5164, %v5576
        %v5578 = vpop.f32.mrb[0].mxu0
        %5579 = vmatprep.mubr.bf16.mxu0 0
        %5580 = vmatmul.mubr.bf16.gmra.mrb[0].mxu0 %v5334
        %v5581 = vpop.f32.mrb[0].mxu0
        %v5582 = vadd.f32 %v5169, %v5581
        %v5583 = vpop.f32.mrb[0].mxu0
        %v5584 = vpop.f32.mrb[0].mxu0
        %v5585 = vadd.f32 %v5172, %v5584
        %v5586 = vpop.f32.mrb[0].mxu0
        %5587 = vmatprep.mubr.bf16.mxu0 0
        %5588 = vmatmul.mubr.bf16.gmra.mrb[0].mxu0 %v5343
        %v5589 = vpop.f32.mrb[0].mxu0
        %v5590 = vadd.f32 %v5177, %v5589
        %v5591 = vpop.f32.mrb[0].mxu0
        %v5592 = vpop.f32.mrb[0].mxu0
        %v5593 = vadd.f32 %v5180, %v5592
        %v5594 = vpop.f32.mrb[0].mxu0
        %5595 = vmatprep.mubr.bf16.mxu0 0
        %5596 = vmatmul.mubr.bf16.gmra.mrb[0].mxu0 %v5352
        %v5597 = vpop.f32.mrb[0].mxu0
        %v5598 = vadd.f32 %v5185, %v5597
        %v5599 = vpop.f32.mrb[0].mxu0
        %v5600 = vpop.f32.mrb[0].mxu0
        %v5601 = vadd.f32 %v5188, %v5600
        %v5602 = vpop.f32.mrb[0].mxu0
        %5603 = vmatprep.mubr.bf16.mxu0 0
        %5604 = vmatmul.mubr.bf16.gmra.mrb[0].mxu0 %v5361
        %v5605 = vpop.f32.mrb[0].mxu0
        %v5606 = vadd.f32 %v5193, %v5605
        %v5607 = vpop.f32.mrb[0].mxu0
        %v5608 = vpop.f32.mrb[0].mxu0
        %v5609 = vadd.f32 %v5196, %v5608
        %v5610 = vpop.f32.mrb[0].mxu0
        %5611 = vmatprep.mubr.bf16.mxu0 0
        %5612 = vmatmul.mubr.bf16.gmra.mrb[0].mxu0 %v5370
        %v5613 = vpop.f32.mrb[0].mxu0
        %v5614 = vadd.f32 %v5201, %v5613
        %v5615 = vpop.f32.mrb[0].mxu0
        %v5616 = vpop.f32.mrb[0].mxu0
        %v5617 = vadd.f32 %v5204, %v5616
        %v5618 = vpop.f32.mrb[0].mxu0
        %5619 = vmatprep.mubr.bf16.mxu0 0
        %5620 = vmatmul.mubr.bf16.gmra.mrb[0].mxu0 %v5379
        %v5621 = vpop.f32.mrb[0].mxu0
        %v5622 = vadd.f32 %v5209, %v5621
        %v5623 = vpop.f32.mrb[0].mxu0
        %v5624 = vpop.f32.mrb[0].mxu0
        %v5625 = vadd.f32 %v5212, %v5624
        %v5626 = vpop.f32.mrb[0].mxu0
        %5627 = vmatprep.mubr.bf16.mxu0 0
        %5628 = vmatmul.mubr.bf16.gmra.mrb[0].mxu0 %v5388
        %v5629 = vpop.f32.mrb[0].mxu0
        %v5630 = vadd.f32 %v5217, %v5629
        %v5631 = vpop.f32.mrb[0].mxu0
        %v5632 = vpop.f32.mrb[0].mxu0
        %v5633 = vadd.f32 %v5220, %v5632
        %v5634 = vpop.f32.mrb[0].mxu0
        %5635 = vmatprep.mubr.bf16.mxu0 0
        %5636 = vmatmul.mubr.bf16.gmra.mrb[0].mxu0 %v5397
        %v5637 = vpop.f32.mrb[0].mxu0
        %v5638 = vadd.f32 %v5225, %v5637
        %v5639 = vpop.f32.mrb[0].mxu0
        %v5640 = vpop.f32.mrb[0].mxu0
        %v5641 = vadd.f32 %v5228, %v5640
        %v5642 = vpop.f32.mrb[0].mxu0
        %5643 = vmatprep.mubr.bf16.mxu0 0
        %5644 = vmatmul.mubr.bf16.gmra.mrb[0].mxu0 %v5406
        %v5645 = vpop.f32.mrb[0].mxu0
        %v5646 = vadd.f32 %v5233, %v5645
        %v5647 = vpop.f32.mrb[0].mxu0
        %v5648 = vpop.f32.mrb[0].mxu0
        %v5649 = vadd.f32 %v5236, %v5648
        %v5650 = vpop.f32.mrb[0].mxu0
        %5651 = vmatprep.mubr.bf16.mxu0 0
        %5652 = vmatmul.mubr.bf16.gmra.mrb[0].mxu0 %v5415
        %v5653 = vpop.f32.mrb[0].mxu0
        %v5654 = vadd.f32 %v5241, %v5653
        %v5655 = vpop.f32.mrb[0].mxu0
        %v5656 = vpop.f32.mrb[0].mxu0
        %v5657 = vadd.f32 %v5244, %v5656
        %v5658 = vpop.f32.mrb[0].mxu0
        %5659 = vmatprep.mubr.bf16.mxu0 0
        %5660 = vmatmul.mubr.bf16.gmra.mrb[0].mxu0 %v5424
        %v5661 = vpop.f32.mrb[0].mxu0
        %v5662 = vadd.f32 %v5249, %v5661
        %v5663 = vpop.f32.mrb[0].mxu0
        %v5664 = vpop.f32.mrb[0].mxu0
        %v5665 = vadd.f32 %v5252, %v5664
        %v5666 = vpop.f32.mrb[0].mxu0
        %5667 = vdwg.mxu0
        %v5668 = vld [vmem:[#allocation2 + $0x90] sm:$0xf]
        %s5669 = scalar_lea.vmem [#allocation8], 128
        %v5670 = vld [vmem:[%s5669] sm:$0xf]
        %v5671 = vld [vmem:[%s5669 + $0x4] sm:$0xf]
        %v5672 = vld [vmem:[%s5669 + $0x8] sm:$0xf]
        %v5673 = vld [vmem:[%s5669 + $0xc] sm:$0xf]
        %v5674 = vld [vmem:[%s5669 + $0x10] sm:$0xf]
        %v5675 = vld [vmem:[%s5669 + $0x14] sm:$0xf]
        %v5676 = vld [vmem:[%s5669 + $0x18] sm:$0xf]
        %v5677 = vld [vmem:[%s5669 + $0x1c] sm:$0xf]
        %v5678 = vld [vmem:[%s5669 + $0x20] sm:$0xf]
        %v5679 = vld [vmem:[%s5669 + $0x24] sm:$0xf]
        %v5680 = vld [vmem:[%s5669 + $0x28] sm:$0xf]
        %v5681 = vld [vmem:[%s5669 + $0x2c] sm:$0xf]
        %v5682 = vld [vmem:[%s5669 + $0x30] sm:$0xf]
        %v5683 = vld [vmem:[%s5669 + $0x34] sm:$0xf]
        %v5684 = vld [vmem:[%s5669 + $0x38] sm:$0xf]
        %v5685 = vld [vmem:[%s5669 + $0x3c] sm:$0xf]
        %vm5686 = vsmask.f32 4352
        %v5688 = vshrl.u32 %v4938, 16
        %v5690 = vrot.slane %v5688, 3
        %v5691 = vshll.u32 %v4938, 16
        %v5693 = vrot.slane %v5691, 4
        %v5694 = vor.u32 %v5690, %v5693
        %v5695 = vrot.slane %v5264, 3
        %v5696 = vrot.slane %v5267, 4
        %v5697 = vor.u32 %v5695, %v5696
        %v5698 = vsel %vm5686, %v5694, %v5697
        %v5699 = vrot.slane %v5273, 3
        %v5700 = vrot.slane %v5276, 4
        %v5701 = vor.u32 %v5699, %v5700
        %v5702 = vsel %vm5686, %v5697, %v5701
        %v5703 = vrot.slane %v5282, 3
        %v5704 = vrot.slane %v5285, 4
        %v5705 = vor.u32 %v5703, %v5704
        %v5706 = vsel %vm5686, %v5701, %v5705
        %v5707 = vrot.slane %v5291, 3
        %v5708 = vrot.slane %v5294, 4
        %v5709 = vor.u32 %v5707, %v5708
        %v5710 = vsel %vm5686, %v5705, %v5709
        %v5711 = vrot.slane %v5300, 3
        %v5712 = vrot.slane %v5303, 4
        %v5713 = vor.u32 %v5711, %v5712
        %v5714 = vsel %vm5686, %v5709, %v5713
        %v5715 = vrot.slane %v5309, 3
        %v5716 = vrot.slane %v5312, 4
        %v5717 = vor.u32 %v5715, %v5716
        %v5718 = vsel %vm5686, %v5713, %v5717
        %v5719 = vrot.slane %v5318, 3
        %v5720 = vrot.slane %v5321, 4
        %v5721 = vor.u32 %v5719, %v5720
        %v5722 = vsel %vm5686, %v5717, %v5721
        %v5723 = vrot.slane %v5327, 3
        %v5724 = vrot.slane %v5330, 4
        %v5725 = vor.u32 %v5723, %v5724
        %v5726 = vsel %vm5686, %v5721, %v5725
        %v5727 = vrot.slane %v5336, 3
        %v5728 = vrot.slane %v5339, 4
        %v5729 = vor.u32 %v5727, %v5728
        %v5730 = vsel %vm5686, %v5725, %v5729
        %v5731 = vrot.slane %v5345, 3
        %v5732 = vrot.slane %v5348, 4
        %v5733 = vor.u32 %v5731, %v5732
        %v5734 = vsel %vm5686, %v5729, %v5733
        %v5735 = vrot.slane %v5354, 3
        %v5736 = vrot.slane %v5357, 4
        %v5737 = vor.u32 %v5735, %v5736
        %v5738 = vsel %vm5686, %v5733, %v5737
        %v5739 = vrot.slane %v5363, 3
        %v5740 = vrot.slane %v5366, 4
        %v5741 = vor.u32 %v5739, %v5740
        %v5742 = vsel %vm5686, %v5737, %v5741
        %v5743 = vrot.slane %v5372, 3
        %v5744 = vrot.slane %v5375, 4
        %v5745 = vor.u32 %v5743, %v5744
        %v5746 = vsel %vm5686, %v5741, %v5745
        %v5747 = vrot.slane %v5381, 3
        %v5748 = vrot.slane %v5384, 4
        %v5749 = vor.u32 %v5747, %v5748
        %v5750 = vsel %vm5686, %v5745, %v5749
        %v5751 = vrot.slane %v5390, 3
        %v5752 = vrot.slane %v5393, 4
        %v5753 = vor.u32 %v5751, %v5752
        %v5754 = vsel %vm5686, %v5749, %v5753
        %v5755 = vrot.slane %v5399, 3
        %v5756 = vrot.slane %v5402, 4
        %v5757 = vor.u32 %v5755, %v5756
        %v5758 = vsel %vm5686, %v5753, %v5757
        %v5759 = vrot.slane %v5408, 3
        %v5760 = vrot.slane %v5411, 4
        %v5761 = vor.u32 %v5759, %v5760
        %v5762 = vsel %vm5686, %v5757, %v5761
        %v5764 = vshrl.u32 %v5668, 16
        %v5766 = vrot.slane %v5764, 3
        %v5767 = vshll.u32 %v5668, 16
        %v5769 = vrot.slane %v5767, 4
        %v5770 = vor.u32 %v5766, %v5769
        %v5771 = vsel %vm5686, %v5761, %v5770
        %v5806 = vunpack.c.l.b16 %v5670
        %v5807 = vunpack.c.l.b16 %v5671
        %v5808 = vunpack.c.l.b16 %v5672
        %v5809 = vunpack.c.l.b16 %v5673
        %v5810 = vunpack.c.l.b16 %v5674
        %v5811 = vunpack.c.l.b16 %v5675
        %v5812 = vunpack.c.l.b16 %v5676
        %v5813 = vunpack.c.l.b16 %v5677
        %v5814 = vunpack.c.l.b16 %v5678
        %v5815 = vunpack.c.l.b16 %v5679
        %v5816 = vunpack.c.l.b16 %v5680
        %v5817 = vunpack.c.l.b16 %v5681
        %v5818 = vunpack.c.l.b16 %v5682
        %v5819 = vunpack.c.l.b16 %v5683
        %v5820 = vunpack.c.l.b16 %v5684
        %v5821 = vunpack.c.l.b16 %v5685
        %v5822 = vpack.c.b16 %v5807, %v5806
        %v5823 = vpack.c.b16 %v5809, %v5808
        %v5824 = vpack.c.b16 %v5811, %v5810
        %v5825 = vpack.c.b16 %v5813, %v5812
        %v5826 = vpack.c.b16 %v5815, %v5814
        %v5827 = vpack.c.b16 %v5817, %v5816
        %v5828 = vpack.c.b16 %v5819, %v5818
        %v5829 = vpack.c.b16 %v5821, %v5820
        %5838 = vmatprep.subr.bf16.mxu0 0
        %5839 = vmatpush1.bf16.msra.mxu0 %v5822
        %5840 = vmatprep.subr.bf16.mxu0 0
        %5841 = vmatpush1.bf16.msra.mxu0 %v5823
        %5842 = vmatprep.subr.bf16.mxu0 0
        %5843 = vmatpush1.bf16.msra.mxu0 %v5824
        %5844 = vmatprep.subr.bf16.mxu0 0
        %5845 = vmatpush1.bf16.msra.mxu0 %v5825
        %5846 = vmatprep.subr.bf16.mxu0 0
        %5847 = vmatpush1.bf16.msra.mxu0 %v5826
        %5848 = vmatprep.subr.bf16.mxu0 0
        %5849 = vmatpush1.bf16.msra.mxu0 %v5827
        %5850 = vmatprep.subr.bf16.mxu0 0
        %5851 = vmatpush1.bf16.msra.mxu0 %v5828
        %5852 = vmatprep.subr.bf16.mxu0 0
        %5853 = vmatpush1.bf16.msra.mxu0 %v5829
        %5854 = vmatprep.subr.bf16.mxu0 0
        %5855 = vmatpush1.bf16.msra.mxu0 0
        %5856 = vmatprep.subr.bf16.mxu0 0
        %5857 = vmatpush1.bf16.msra.mxu0 0
        %5858 = vmatprep.subr.bf16.mxu0 0
        %5859 = vmatpush1.bf16.msra.mxu0 0
        %5860 = vmatprep.subr.bf16.mxu0 0
        %5861 = vmatpush1.bf16.msra.mxu0 0
        %5862 = vmatprep.subr.bf16.mxu0 0
        %5863 = vmatpush1.bf16.msra.mxu0 0
        %5864 = vmatprep.subr.bf16.mxu0 0
        %5865 = vmatpush1.bf16.msra.mxu0 0
        %5866 = vmatprep.subr.bf16.mxu0 0
        %5867 = vmatpush1.bf16.msra.mxu0 0
        %5868 = vmatprep.subr.bf16.mxu0 0
        %5869 = vmatpush1.bf16.msra.mxu0 0
        %5870 = vmatprep.mubr.bf16.mxu0 0
        %5871 = vmatmul.mubr.bf16.gmra.mrb[0].mxu0 %v5698
        %v5872 = vpop.f32.mrb[0].mxu0
        %v5873 = vadd.f32 0.0, %v5872
        %v5874 = vpop.f32.mrb[0].mxu0
        %v5875 = vpop.f32.mrb[0].mxu0
        %v5876 = vadd.f32 0.0, %v5875
        %v5877 = vpop.f32.mrb[0].mxu0
        %5878 = vmatprep.mubr.bf16.mxu0 0
        %5879 = vmatmul.mubr.bf16.gmra.mrb[0].mxu0 %v5702
        %v5880 = vpop.f32.mrb[0].mxu0
        %v5881 = vadd.f32 0.0, %v5880
        %v5882 = vpop.f32.mrb[0].mxu0
        %v5883 = vpop.f32.mrb[0].mxu0
        %v5884 = vadd.f32 0.0, %v5883
        %v5885 = vpop.f32.mrb[0].mxu0
        %5886 = vmatprep.mubr.bf16.mxu0 0
        %5887 = vmatmul.mubr.bf16.gmra.mrb[0].mxu0 %v5706
        %v5888 = vpop.f32.mrb[0].mxu0
        %v5889 = vadd.f32 0.0, %v5888
        %v5890 = vpop.f32.mrb[0].mxu0
        %v5891 = vpop.f32.mrb[0].mxu0
        %v5892 = vadd.f32 0.0, %v5891
        %v5893 = vpop.f32.mrb[0].mxu0
        %5894 = vmatprep.mubr.bf16.mxu0 0
        %5895 = vmatmul.mubr.bf16.gmra.mrb[0].mxu0 %v5710
        %v5896 = vpop.f32.mrb[0].mxu0
        %v5897 = vadd.f32 0.0, %v5896
        %v5898 = vpop.f32.mrb[0].mxu0
        %v5899 = vpop.f32.mrb[0].mxu0
        %v5900 = vadd.f32 0.0, %v5899
        %v5901 = vpop.f32.mrb[0].mxu0
        %5902 = vmatprep.mubr.bf16.mxu0 0
        %5903 = vmatmul.mubr.bf16.gmra.mrb[0].mxu0 %v5714
        %v5904 = vpop.f32.mrb[0].mxu0
        %v5905 = vadd.f32 0.0, %v5904
        %v5906 = vpop.f32.mrb[0].mxu0
        %v5907 = vpop.f32.mrb[0].mxu0
        %v5908 = vadd.f32 0.0, %v5907
        %v5909 = vpop.f32.mrb[0].mxu0
        %5910 = vmatprep.mubr.bf16.mxu0 0
        %5911 = vmatmul.mubr.bf16.gmra.mrb[0].mxu0 %v5718
        %v5912 = vpop.f32.mrb[0].mxu0
        %v5913 = vadd.f32 0.0, %v5912
        %v5914 = vpop.f32.mrb[0].mxu0
        %v5915 = vpop.f32.mrb[0].mxu0
        %v5916 = vadd.f32 0.0, %v5915
        %v5917 = vpop.f32.mrb[0].mxu0
        %5918 = vmatprep.mubr.bf16.mxu0 0
        %5919 = vmatmul.mubr.bf16.gmra.mrb[0].mxu0 %v5722
        %v5920 = vpop.f32.mrb[0].mxu0
        %v5921 = vadd.f32 0.0, %v5920
        %v5922 = vpop.f32.mrb[0].mxu0
        %v5923 = vpop.f32.mrb[0].mxu0
        %v5924 = vadd.f32 0.0, %v5923
        %v5925 = vpop.f32.mrb[0].mxu0
        %5926 = vmatprep.mubr.bf16.mxu0 0
        %5927 = vmatmul.mubr.bf16.gmra.mrb[0].mxu0 %v5726
        %v5928 = vpop.f32.mrb[0].mxu0
        %v5929 = vadd.f32 0.0, %v5928
        %v5930 = vpop.f32.mrb[0].mxu0
        %v5931 = vpop.f32.mrb[0].mxu0
        %v5932 = vadd.f32 0.0, %v5931
        %v5933 = vpop.f32.mrb[0].mxu0
        %5934 = vmatprep.mubr.bf16.mxu0 0
        %5935 = vmatmul.mubr.bf16.gmra.mrb[0].mxu0 %v5730
        %v5936 = vpop.f32.mrb[0].mxu0
        %v5937 = vadd.f32 0.0, %v5936
        %v5938 = vpop.f32.mrb[0].mxu0
        %v5939 = vpop.f32.mrb[0].mxu0
        %v5940 = vadd.f32 0.0, %v5939
        %v5941 = vpop.f32.mrb[0].mxu0
        %5942 = vmatprep.mubr.bf16.mxu0 0
        %5943 = vmatmul.mubr.bf16.gmra.mrb[0].mxu0 %v5734
        %v5944 = vpop.f32.mrb[0].mxu0
        %v5945 = vadd.f32 0.0, %v5944
        %v5946 = vpop.f32.mrb[0].mxu0
        %v5947 = vpop.f32.mrb[0].mxu0
        %v5948 = vadd.f32 0.0, %v5947
        %v5949 = vpop.f32.mrb[0].mxu0
        %5950 = vmatprep.mubr.bf16.mxu0 0
        %5951 = vmatmul.mubr.bf16.gmra.mrb[0].mxu0 %v5738
        %v5952 = vpop.f32.mrb[0].mxu0
        %v5953 = vadd.f32 0.0, %v5952
        %v5954 = vpop.f32.mrb[0].mxu0
        %v5955 = vpop.f32.mrb[0].mxu0
        %v5956 = vadd.f32 0.0, %v5955
        %v5957 = vpop.f32.mrb[0].mxu0
        %5958 = vmatprep.mubr.bf16.mxu0 0
        %5959 = vmatmul.mubr.bf16.gmra.mrb[0].mxu0 %v5742
        %v5960 = vpop.f32.mrb[0].mxu0
        %v5961 = vadd.f32 0.0, %v5960
        %v5962 = vpop.f32.mrb[0].mxu0
        %v5963 = vpop.f32.mrb[0].mxu0
        %v5964 = vadd.f32 0.0, %v5963
        %v5965 = vpop.f32.mrb[0].mxu0
        %5966 = vmatprep.mubr.bf16.mxu0 0
        %5967 = vmatmul.mubr.bf16.gmra.mrb[0].mxu0 %v5746
        %v5968 = vpop.f32.mrb[0].mxu0
        %v5969 = vadd.f32 0.0, %v5968
        %v5970 = vpop.f32.mrb[0].mxu0
        %v5971 = vpop.f32.mrb[0].mxu0
        %v5972 = vadd.f32 0.0, %v5971
        %v5973 = vpop.f32.mrb[0].mxu0
        %5974 = vmatprep.mubr.bf16.mxu0 0
        %5975 = vmatmul.mubr.bf16.gmra.mrb[0].mxu0 %v5750
        %v5976 = vpop.f32.mrb[0].mxu0
        %v5977 = vadd.f32 0.0, %v5976
        %v5978 = vpop.f32.mrb[0].mxu0
        %v5979 = vpop.f32.mrb[0].mxu0
        %v5980 = vadd.f32 0.0, %v5979
        %v5981 = vpop.f32.mrb[0].mxu0
        %5982 = vmatprep.mubr.bf16.mxu0 0
        %5983 = vmatmul.mubr.bf16.gmra.mrb[0].mxu0 %v5754
        %v5984 = vpop.f32.mrb[0].mxu0
        %v5985 = vadd.f32 0.0, %v5984
        %v5986 = vpop.f32.mrb[0].mxu0
        %v5987 = vpop.f32.mrb[0].mxu0
        %v5988 = vadd.f32 0.0, %v5987
        %v5989 = vpop.f32.mrb[0].mxu0
        %5990 = vmatprep.mubr.bf16.mxu0 0
        %5991 = vmatmul.mubr.bf16.gmra.mrb[0].mxu0 %v5758
        %v5992 = vpop.f32.mrb[0].mxu0
        %v5993 = vadd.f32 0.0, %v5992
        %v5994 = vpop.f32.mrb[0].mxu0
        %v5995 = vpop.f32.mrb[0].mxu0
        %v5996 = vadd.f32 0.0, %v5995
        %v5997 = vpop.f32.mrb[0].mxu0
        %5998 = vmatprep.mubr.bf16.mxu0 0
        %5999 = vmatmul.mubr.bf16.gmra.mrb[0].mxu0 %v5762
        %v6000 = vpop.f32.mrb[0].mxu0
        %v6001 = vadd.f32 0.0, %v6000
        %v6002 = vpop.f32.mrb[0].mxu0
        %v6003 = vpop.f32.mrb[0].mxu0
        %v6004 = vadd.f32 0.0, %v6003
        %v6005 = vpop.f32.mrb[0].mxu0
        %6006 = vmatprep.mubr.bf16.mxu0 0
        %6007 = vmatmul.mubr.bf16.gmra.mrb[0].mxu0 %v5771
        %v6008 = vpop.f32.mrb[0].mxu0
        %v6009 = vadd.f32 0.0, %v6008
        %v6010 = vpop.f32.mrb[0].mxu0
        %v6011 = vpop.f32.mrb[0].mxu0
        %v6012 = vadd.f32 0.0, %v6011
        %v6013 = vpop.f32.mrb[0].mxu0
        %6014 = vdwg.mxu0
        %v6015 = vadd.f32 %v5526, %v5873
        %v6016 = vadd.f32 %v5529, %v5876
        %v6017 = vadd.f32 %v5534, %v5881
        %v6018 = vadd.f32 %v5537, %v5884
        %v6019 = vadd.f32 %v5542, %v5889
        %v6020 = vadd.f32 %v5545, %v5892
        %v6021 = vadd.f32 %v5550, %v5897
        %v6022 = vadd.f32 %v5553, %v5900
        %v6023 = vadd.f32 %v5558, %v5905
        %v6024 = vadd.f32 %v5561, %v5908
        %v6025 = vadd.f32 %v5566, %v5913
        %v6026 = vadd.f32 %v5569, %v5916
        %v6027 = vadd.f32 %v5574, %v5921
        %v6028 = vadd.f32 %v5577, %v5924
        %v6029 = vadd.f32 %v5582, %v5929
        %v6030 = vadd.f32 %v5585, %v5932
        %v6031 = vadd.f32 %v5590, %v5937
        %v6032 = vadd.f32 %v5593, %v5940
        %v6033 = vadd.f32 %v5598, %v5945
        %v6034 = vadd.f32 %v5601, %v5948
        %v6035 = vadd.f32 %v5606, %v5953
        %v6036 = vadd.f32 %v5609, %v5956
        %v6037 = vadd.f32 %v5614, %v5961
        %v6038 = vadd.f32 %v5617, %v5964
        %v6039 = vadd.f32 %v5622, %v5969
        %v6040 = vadd.f32 %v5625, %v5972
        %v6041 = vadd.f32 %v5630, %v5977
        %v6042 = vadd.f32 %v5633, %v5980
        %v6043 = vadd.f32 %v5638, %v5985
        %v6044 = vadd.f32 %v5641, %v5988
        %v6045 = vadd.f32 %v5646, %v5993
        %v6046 = vadd.f32 %v5649, %v5996
        %v6047 = vadd.f32 %v5654, %v6001
        %v6048 = vadd.f32 %v5657, %v6004
        %v6049 = vadd.f32 %v5662, %v6009
        %v6050 = vadd.f32 %v5665, %v6012
        %v6051 = vld [vmem:[#allocation2 + $0x8] sm:$0xf8]
        %v6052 = vld [vmem:[#allocation2 + $0x10] sm:$0xff]
        %v6053 = vld [vmem:[#allocation2 + $0x18] sm:$0xff]
        %v6054 = vld [vmem:[#allocation2 + $0x20] sm:$0xff]
        %v6055 = vld [vmem:[#allocation2 + $0x28] sm:$0xff]
        %v6056 = vld [vmem:[#allocation2 + $0x30] sm:$0xff]
        %v6057 = vld [vmem:[#allocation2 + $0x38] sm:$0xff]
        %v6058 = vld [vmem:[#allocation2 + $0x40] sm:$0xff]
        %v6059 = vld [vmem:[#allocation2 + $0x48] sm:$0xff]
        %v6060 = vld [vmem:[#allocation2 + $0x50] sm:$0xff]
        %v6061 = vld [vmem:[#allocation2 + $0x58] sm:$0xff]
        %v6062 = vld [vmem:[#allocation2 + $0x60] sm:$0xff]
        %v6063 = vld [vmem:[#allocation2 + $0x68] sm:$0xff]
        %v6064 = vld [vmem:[#allocation2 + $0x70] sm:$0xff]
        %v6065 = vld [vmem:[#allocation2 + $0x78] sm:$0xff]
        %v6066 = vld [vmem:[#allocation2 + $0x80] sm:$0xff]
        %v6067 = vld [vmem:[#allocation2 + $0x88] sm:$0xff]
        %v6068 = vld [vmem:[#allocation2 + $0x90] sm:$0xff]
        %v6069 = vld [vmem:[#allocation2 + $0x98] sm:$0xf]
        %s6070 = scalar_lea.vmem [#allocation8], 192
        %v6071 = vld [vmem:[%s6070] sm:$0xf]
        %v6072 = vld [vmem:[%s6070 + $0x4] sm:$0xf]
        %v6073 = vld [vmem:[%s6070 + $0x8] sm:$0xf]
        %v6074 = vld [vmem:[%s6070 + $0xc] sm:$0xf]
        %v6075 = vld [vmem:[%s6070 + $0x10] sm:$0xf]
        %v6076 = vld [vmem:[%s6070 + $0x14] sm:$0xf]
        %v6077 = vld [vmem:[%s6070 + $0x18] sm:$0xf]
        %v6078 = vld [vmem:[%s6070 + $0x1c] sm:$0xf]
        %v6079 = vld [vmem:[%s6070 + $0x20] sm:$0xf]
        %v6080 = vld [vmem:[%s6070 + $0x24] sm:$0xf]
        %v6081 = vld [vmem:[%s6070 + $0x28] sm:$0xf]
        %v6082 = vld [vmem:[%s6070 + $0x2c] sm:$0xf]
        %v6083 = vld [vmem:[%s6070 + $0x30] sm:$0xf]
        %v6084 = vld [vmem:[%s6070 + $0x34] sm:$0xf]
        %v6085 = vld [vmem:[%s6070 + $0x38] sm:$0xf]
        %v6086 = vld [vmem:[%s6070 + $0x3c] sm:$0xf]
        %v6088 = vshrl.u32 %v6051, 16
        %v6090 = vrot.slane %v6088, 3
        %v6091 = vshll.u32 %v6051, 16
        %v6093 = vrot.slane %v6091, 4
        %v6094 = vor.u32 %v6090, %v6093
        %v6096 = vshrl.u32 %v6052, 16
        %v6098 = vrot.slane %v6096, 3
        %v6099 = vshll.u32 %v6052, 16
        %v6101 = vrot.slane %v6099, 4
        %v6102 = vor.u32 %v6098, %v6101
        %v6103 = vsel %vm5686, %v6094, %v6102
        %v6105 = vshrl.u32 %v6053, 16
        %v6107 = vrot.slane %v6105, 3
        %v6108 = vshll.u32 %v6053, 16
        %v6110 = vrot.slane %v6108, 4
        %v6111 = vor.u32 %v6107, %v6110
        %v6112 = vsel %vm5686, %v6102, %v6111
        %v6114 = vshrl.u32 %v6054, 16
        %v6116 = vrot.slane %v6114, 3
        %v6117 = vshll.u32 %v6054, 16
        %v6119 = vrot.slane %v6117, 4
        %v6120 = vor.u32 %v6116, %v6119
        %v6121 = vsel %vm5686, %v6111, %v6120
        %v6123 = vshrl.u32 %v6055, 16
        %v6125 = vrot.slane %v6123, 3
        %v6126 = vshll.u32 %v6055, 16
        %v6128 = vrot.slane %v6126, 4
        %v6129 = vor.u32 %v6125, %v6128
        %v6130 = vsel %vm5686, %v6120, %v6129
        %v6132 = vshrl.u32 %v6056, 16
        %v6134 = vrot.slane %v6132, 3
        %v6135 = vshll.u32 %v6056, 16
        %v6137 = vrot.slane %v6135, 4
        %v6138 = vor.u32 %v6134, %v6137
        %v6139 = vsel %vm5686, %v6129, %v6138
        %v6141 = vshrl.u32 %v6057, 16
        %v6143 = vrot.slane %v6141, 3
        %v6144 = vshll.u32 %v6057, 16
        %v6146 = vrot.slane %v6144, 4
        %v6147 = vor.u32 %v6143, %v6146
        %v6148 = vsel %vm5686, %v6138, %v6147
        %v6150 = vshrl.u32 %v6058, 16
        %v6152 = vrot.slane %v6150, 3
        %v6153 = vshll.u32 %v6058, 16
        %v6155 = vrot.slane %v6153, 4
        %v6156 = vor.u32 %v6152, %v6155
        %v6157 = vsel %vm5686, %v6147, %v6156
        %v6159 = vshrl.u32 %v6059, 16
        %v6161 = vrot.slane %v6159, 3
        %v6162 = vshll.u32 %v6059, 16
        %v6164 = vrot.slane %v6162, 4
        %v6165 = vor.u32 %v6161, %v6164
        %v6166 = vsel %vm5686, %v6156, %v6165
        %v6168 = vshrl.u32 %v6060, 16
        %v6170 = vrot.slane %v6168, 3
        %v6171 = vshll.u32 %v6060, 16
        %v6173 = vrot.slane %v6171, 4
        %v6174 = vor.u32 %v6170, %v6173
        %v6175 = vsel %vm5686, %v6165, %v6174
        %v6177 = vshrl.u32 %v6061, 16
        %v6179 = vrot.slane %v6177, 3
        %v6180 = vshll.u32 %v6061, 16
        %v6182 = vrot.slane %v6180, 4
        %v6183 = vor.u32 %v6179, %v6182
        %v6184 = vsel %vm5686, %v6174, %v6183
        %v6186 = vshrl.u32 %v6062, 16
        %v6188 = vrot.slane %v6186, 3
        %v6189 = vshll.u32 %v6062, 16
        %v6191 = vrot.slane %v6189, 4
        %v6192 = vor.u32 %v6188, %v6191
        %v6193 = vsel %vm5686, %v6183, %v6192
        %v6195 = vshrl.u32 %v6063, 16
        %v6197 = vrot.slane %v6195, 3
        %v6198 = vshll.u32 %v6063, 16
        %v6200 = vrot.slane %v6198, 4
        %v6201 = vor.u32 %v6197, %v6200
        %v6202 = vsel %vm5686, %v6192, %v6201
        %v6204 = vshrl.u32 %v6064, 16
        %v6206 = vrot.slane %v6204, 3
        %v6207 = vshll.u32 %v6064, 16
        %v6209 = vrot.slane %v6207, 4
        %v6210 = vor.u32 %v6206, %v6209
        %v6211 = vsel %vm5686, %v6201, %v6210
        %v6213 = vshrl.u32 %v6065, 16
        %v6215 = vrot.slane %v6213, 3
        %v6216 = vshll.u32 %v6065, 16
        %v6218 = vrot.slane %v6216, 4
        %v6219 = vor.u32 %v6215, %v6218
        %v6220 = vsel %vm5686, %v6210, %v6219
        %v6222 = vshrl.u32 %v6066, 16
        %v6224 = vrot.slane %v6222, 3
        %v6225 = vshll.u32 %v6066, 16
        %v6227 = vrot.slane %v6225, 4
        %v6228 = vor.u32 %v6224, %v6227
        %v6229 = vsel %vm5686, %v6219, %v6228
        %v6231 = vshrl.u32 %v6067, 16
        %v6233 = vrot.slane %v6231, 3
        %v6234 = vshll.u32 %v6067, 16
        %v6236 = vrot.slane %v6234, 4
        %v6237 = vor.u32 %v6233, %v6236
        %v6238 = vsel %vm5686, %v6228, %v6237
        %v6240 = vshrl.u32 %v6068, 16
        %v6242 = vrot.slane %v6240, 3
        %v6243 = vshll.u32 %v6068, 16
        %v6245 = vrot.slane %v6243, 4
        %v6246 = vor.u32 %v6242, %v6245
        %v6247 = vsel %vm5686, %v6237, %v6246
        %v6249 = vshrl.u32 %v6069, 16
        %v6251 = vrot.slane %v6249, 3
        %v6252 = vshll.u32 %v6069, 16
        %v6254 = vrot.slane %v6252, 4
        %v6255 = vor.u32 %v6251, %v6254
        %v6256 = vsel %vm5686, %v6246, %v6255
        %v6291 = vunpack.c.l.b16 %v6071
        %v6292 = vunpack.c.l.b16 %v6072
        %v6293 = vunpack.c.l.b16 %v6073
        %v6294 = vunpack.c.l.b16 %v6074
        %v6295 = vunpack.c.l.b16 %v6075
        %v6296 = vunpack.c.l.b16 %v6076
        %v6297 = vunpack.c.l.b16 %v6077
        %v6298 = vunpack.c.l.b16 %v6078
        %v6299 = vunpack.c.l.b16 %v6079
        %v6300 = vunpack.c.l.b16 %v6080
        %v6301 = vunpack.c.l.b16 %v6081
        %v6302 = vunpack.c.l.b16 %v6082
        %v6303 = vunpack.c.l.b16 %v6083
        %v6304 = vunpack.c.l.b16 %v6084
        %v6305 = vunpack.c.l.b16 %v6085
        %v6306 = vunpack.c.l.b16 %v6086
        %v6307 = vpack.c.b16 %v6292, %v6291
        %v6308 = vpack.c.b16 %v6294, %v6293
        %v6309 = vpack.c.b16 %v6296, %v6295
        %v6310 = vpack.c.b16 %v6298, %v6297
        %v6311 = vpack.c.b16 %v6300, %v6299
        %v6312 = vpack.c.b16 %v6302, %v6301
        %v6313 = vpack.c.b16 %v6304, %v6303
        %v6314 = vpack.c.b16 %v6306, %v6305
        %6323 = vmatprep.subr.bf16.mxu0 0
        %6324 = vmatpush1.bf16.msra.mxu0 %v6307
        %6325 = vmatprep.subr.bf16.mxu0 0
        %6326 = vmatpush1.bf16.msra.mxu0 %v6308
        %6327 = vmatprep.subr.bf16.mxu0 0
        %6328 = vmatpush1.bf16.msra.mxu0 %v6309
        %6329 = vmatprep.subr.bf16.mxu0 0
        %6330 = vmatpush1.bf16.msra.mxu0 %v6310
        %6331 = vmatprep.subr.bf16.mxu0 0
        %6332 = vmatpush1.bf16.msra.mxu0 %v6311
        %6333 = vmatprep.subr.bf16.mxu0 0
        %6334 = vmatpush1.bf16.msra.mxu0 %v6312
        %6335 = vmatprep.subr.bf16.mxu0 0
        %6336 = vmatpush1.bf16.msra.mxu0 %v6313
        %6337 = vmatprep.subr.bf16.mxu0 0
        %6338 = vmatpush1.bf16.msra.mxu0 %v6314
        %6339 = vmatprep.subr.bf16.mxu0 0
        %6340 = vmatpush1.bf16.msra.mxu0 0
        %6341 = vmatprep.subr.bf16.mxu0 0
        %6342 = vmatpush1.bf16.msra.mxu0 0
        %6343 = vmatprep.subr.bf16.mxu0 0
        %6344 = vmatpush1.bf16.msra.mxu0 0
        %6345 = vmatprep.subr.bf16.mxu0 0
        %6346 = vmatpush1.bf16.msra.mxu0 0
        %6347 = vmatprep.subr.bf16.mxu0 0
        %6348 = vmatpush1.bf16.msra.mxu0 0
        %6349 = vmatprep.subr.bf16.mxu0 0
        %6350 = vmatpush1.bf16.msra.mxu0 0
        %6351 = vmatprep.subr.bf16.mxu0 0
        %6352 = vmatpush1.bf16.msra.mxu0 0
        %6353 = vmatprep.subr.bf16.mxu0 0
        %6354 = vmatpush1.bf16.msra.mxu0 0
        %6355 = vmatprep.mubr.bf16.mxu0 0
        %6356 = vmatmul.mubr.bf16.gmra.mrb[0].mxu0 %v6103
        %v6357 = vpop.f32.mrb[0].mxu0
        %v6358 = vadd.f32 0.0, %v6357
        %v6359 = vpop.f32.mrb[0].mxu0
        %v6360 = vpop.f32.mrb[0].mxu0
        %v6361 = vadd.f32 0.0, %v6360
        %v6362 = vpop.f32.mrb[0].mxu0
        %6363 = vmatprep.mubr.bf16.mxu0 0
        %6364 = vmatmul.mubr.bf16.gmra.mrb[0].mxu0 %v6112
        %v6365 = vpop.f32.mrb[0].mxu0
        %v6366 = vadd.f32 0.0, %v6365
        %v6367 = vpop.f32.mrb[0].mxu0
        %v6368 = vpop.f32.mrb[0].mxu0
        %v6369 = vadd.f32 0.0, %v6368
        %v6370 = vpop.f32.mrb[0].mxu0
        %6371 = vmatprep.mubr.bf16.mxu0 0
        %6372 = vmatmul.mubr.bf16.gmra.mrb[0].mxu0 %v6121
        %v6373 = vpop.f32.mrb[0].mxu0
        %v6374 = vadd.f32 0.0, %v6373
        %v6375 = vpop.f32.mrb[0].mxu0
        %v6376 = vpop.f32.mrb[0].mxu0
        %v6377 = vadd.f32 0.0, %v6376
        %v6378 = vpop.f32.mrb[0].mxu0
        %6379 = vmatprep.mubr.bf16.mxu0 0
        %6380 = vmatmul.mubr.bf16.gmra.mrb[0].mxu0 %v6130
        %v6381 = vpop.f32.mrb[0].mxu0
        %v6382 = vadd.f32 0.0, %v6381
        %v6383 = vpop.f32.mrb[0].mxu0
        %v6384 = vpop.f32.mrb[0].mxu0
        %v6385 = vadd.f32 0.0, %v6384
        %v6386 = vpop.f32.mrb[0].mxu0
        %6387 = vmatprep.mubr.bf16.mxu0 0
        %6388 = vmatmul.mubr.bf16.gmra.mrb[0].mxu0 %v6139
        %v6389 = vpop.f32.mrb[0].mxu0
        %v6390 = vadd.f32 0.0, %v6389
        %v6391 = vpop.f32.mrb[0].mxu0
        %v6392 = vpop.f32.mrb[0].mxu0
        %v6393 = vadd.f32 0.0, %v6392
        %v6394 = vpop.f32.mrb[0].mxu0
        %6395 = vmatprep.mubr.bf16.mxu0 0
        %6396 = vmatmul.mubr.bf16.gmra.mrb[0].mxu0 %v6148
        %v6397 = vpop.f32.mrb[0].mxu0
        %v6398 = vadd.f32 0.0, %v6397
        %v6399 = vpop.f32.mrb[0].mxu0
        %v6400 = vpop.f32.mrb[0].mxu0
        %v6401 = vadd.f32 0.0, %v6400
        %v6402 = vpop.f32.mrb[0].mxu0
        %6403 = vmatprep.mubr.bf16.mxu0 0
        %6404 = vmatmul.mubr.bf16.gmra.mrb[0].mxu0 %v6157
        %v6405 = vpop.f32.mrb[0].mxu0
        %v6406 = vadd.f32 0.0, %v6405
        %v6407 = vpop.f32.mrb[0].mxu0
        %v6408 = vpop.f32.mrb[0].mxu0
        %v6409 = vadd.f32 0.0, %v6408
        %v6410 = vpop.f32.mrb[0].mxu0
        %6411 = vmatprep.mubr.bf16.mxu0 0
        %6412 = vmatmul.mubr.bf16.gmra.mrb[0].mxu0 %v6166
        %v6413 = vpop.f32.mrb[0].mxu0
        %v6414 = vadd.f32 0.0, %v6413
        %v6415 = vpop.f32.mrb[0].mxu0
        %v6416 = vpop.f32.mrb[0].mxu0
        %v6417 = vadd.f32 0.0, %v6416
        %v6418 = vpop.f32.mrb[0].mxu0
        %6419 = vmatprep.mubr.bf16.mxu0 0
        %6420 = vmatmul.mubr.bf16.gmra.mrb[0].mxu0 %v6175
        %v6421 = vpop.f32.mrb[0].mxu0
        %v6422 = vadd.f32 0.0, %v6421
        %v6423 = vpop.f32.mrb[0].mxu0
        %v6424 = vpop.f32.mrb[0].mxu0
        %v6425 = vadd.f32 0.0, %v6424
        %v6426 = vpop.f32.mrb[0].mxu0
        %6427 = vmatprep.mubr.bf16.mxu0 0
        %6428 = vmatmul.mubr.bf16.gmra.mrb[0].mxu0 %v6184
        %v6429 = vpop.f32.mrb[0].mxu0
        %v6430 = vadd.f32 0.0, %v6429
        %v6431 = vpop.f32.mrb[0].mxu0
        %v6432 = vpop.f32.mrb[0].mxu0
        %v6433 = vadd.f32 0.0, %v6432
        %v6434 = vpop.f32.mrb[0].mxu0
        %6435 = vmatprep.mubr.bf16.mxu0 0
        %6436 = vmatmul.mubr.bf16.gmra.mrb[0].mxu0 %v6193
        %v6437 = vpop.f32.mrb[0].mxu0
        %v6438 = vadd.f32 0.0, %v6437
        %v6439 = vpop.f32.mrb[0].mxu0
        %v6440 = vpop.f32.mrb[0].mxu0
        %v6441 = vadd.f32 0.0, %v6440
        %v6442 = vpop.f32.mrb[0].mxu0
        %6443 = vmatprep.mubr.bf16.mxu0 0
        %6444 = vmatmul.mubr.bf16.gmra.mrb[0].mxu0 %v6202
        %v6445 = vpop.f32.mrb[0].mxu0
        %v6446 = vadd.f32 0.0, %v6445
        %v6447 = vpop.f32.mrb[0].mxu0
        %v6448 = vpop.f32.mrb[0].mxu0
        %v6449 = vadd.f32 0.0, %v6448
        %v6450 = vpop.f32.mrb[0].mxu0
        %6451 = vmatprep.mubr.bf16.mxu0 0
        %6452 = vmatmul.mubr.bf16.gmra.mrb[0].mxu0 %v6211
        %v6453 = vpop.f32.mrb[0].mxu0
        %v6454 = vadd.f32 0.0, %v6453
        %v6455 = vpop.f32.mrb[0].mxu0
        %v6456 = vpop.f32.mrb[0].mxu0
        %v6457 = vadd.f32 0.0, %v6456
        %v6458 = vpop.f32.mrb[0].mxu0
        %6459 = vmatprep.mubr.bf16.mxu0 0
        %6460 = vmatmul.mubr.bf16.gmra.mrb[0].mxu0 %v6220
        %v6461 = vpop.f32.mrb[0].mxu0
        %v6462 = vadd.f32 0.0, %v6461
        %v6463 = vpop.f32.mrb[0].mxu0
        %v6464 = vpop.f32.mrb[0].mxu0
        %v6465 = vadd.f32 0.0, %v6464
        %v6466 = vpop.f32.mrb[0].mxu0
        %6467 = vmatprep.mubr.bf16.mxu0 0
        %6468 = vmatmul.mubr.bf16.gmra.mrb[0].mxu0 %v6229
        %v6469 = vpop.f32.mrb[0].mxu0
        %v6470 = vadd.f32 0.0, %v6469
        %v6471 = vpop.f32.mrb[0].mxu0
        %v6472 = vpop.f32.mrb[0].mxu0
        %v6473 = vadd.f32 0.0, %v6472
        %v6474 = vpop.f32.mrb[0].mxu0
        %6475 = vmatprep.mubr.bf16.mxu0 0
        %6476 = vmatmul.mubr.bf16.gmra.mrb[0].mxu0 %v6238
        %v6477 = vpop.f32.mrb[0].mxu0
        %v6478 = vadd.f32 0.0, %v6477
        %v6479 = vpop.f32.mrb[0].mxu0
        %v6480 = vpop.f32.mrb[0].mxu0
        %v6481 = vadd.f32 0.0, %v6480
        %v6482 = vpop.f32.mrb[0].mxu0
        %6483 = vmatprep.mubr.bf16.mxu0 0
        %6484 = vmatmul.mubr.bf16.gmra.mrb[0].mxu0 %v6247
        %v6485 = vpop.f32.mrb[0].mxu0
        %v6486 = vadd.f32 0.0, %v6485
        %v6487 = vpop.f32.mrb[0].mxu0
        %v6488 = vpop.f32.mrb[0].mxu0
        %v6489 = vadd.f32 0.0, %v6488
        %v6490 = vpop.f32.mrb[0].mxu0
        %6491 = vmatprep.mubr.bf16.mxu0 0
        %6492 = vmatmul.mubr.bf16.gmra.mrb[0].mxu0 %v6256
        %v6493 = vpop.f32.mrb[0].mxu0
        %v6494 = vadd.f32 0.0, %v6493
        %v6495 = vpop.f32.mrb[0].mxu0
        %v6496 = vpop.f32.mrb[0].mxu0
        %v6497 = vadd.f32 0.0, %v6496
        %v6498 = vpop.f32.mrb[0].mxu0
        %6499 = vdwg.mxu0
        %v6500 = vadd.f32 %v6015, %v6358
        %v6501 = vadd.f32 %v6016, %v6361
        %v6502 = vadd.f32 %v6017, %v6366
        %v6503 = vadd.f32 %v6018, %v6369
        %v6504 = vadd.f32 %v6019, %v6374
        %v6505 = vadd.f32 %v6020, %v6377
        %v6506 = vadd.f32 %v6021, %v6382
        %v6507 = vadd.f32 %v6022, %v6385
        %v6508 = vadd.f32 %v6023, %v6390
        %v6509 = vadd.f32 %v6024, %v6393
        %v6510 = vadd.f32 %v6025, %v6398
        %v6511 = vadd.f32 %v6026, %v6401
        %v6512 = vadd.f32 %v6027, %v6406
        %v6513 = vadd.f32 %v6028, %v6409
        %v6514 = vadd.f32 %v6029, %v6414
        %v6515 = vadd.f32 %v6030, %v6417
        %v6516 = vadd.f32 %v6031, %v6422
        %v6517 = vadd.f32 %v6032, %v6425
        %v6518 = vadd.f32 %v6033, %v6430
        %v6519 = vadd.f32 %v6034, %v6433
        %v6520 = vadd.f32 %v6035, %v6438
        %v6521 = vadd.f32 %v6036, %v6441
        %v6522 = vadd.f32 %v6037, %v6446
        %v6523 = vadd.f32 %v6038, %v6449
        %v6524 = vadd.f32 %v6039, %v6454
        %v6525 = vadd.f32 %v6040, %v6457
        %v6526 = vadd.f32 %v6041, %v6462
        %v6527 = vadd.f32 %v6042, %v6465
        %v6528 = vadd.f32 %v6043, %v6470
        %v6529 = vadd.f32 %v6044, %v6473
        %v6530 = vadd.f32 %v6045, %v6478
        %v6531 = vadd.f32 %v6046, %v6481
        %v6532 = vadd.f32 %v6047, %v6486
        %v6533 = vadd.f32 %v6048, %v6489
        %v6534 = vadd.f32 %v6049, %v6494
        %v6535 = vadd.f32 %v6050, %v6497
        %v6536 = vld [vmem:[#allocation2 + $0x8] sm:$0xf0]
        %s6537 = scalar_lea.vmem [#allocation8], 256
        %v6538 = vld [vmem:[%s6537] sm:$0xf]
        %v6539 = vld [vmem:[%s6537 + $0x4] sm:$0xf]
        %v6540 = vld [vmem:[%s6537 + $0x8] sm:$0xf]
        %v6541 = vld [vmem:[%s6537 + $0xc] sm:$0xf]
        %v6542 = vld [vmem:[%s6537 + $0x10] sm:$0xf]
        %v6543 = vld [vmem:[%s6537 + $0x14] sm:$0xf]
        %v6544 = vld [vmem:[%s6537 + $0x18] sm:$0xf]
        %v6545 = vld [vmem:[%s6537 + $0x1c] sm:$0xf]
        %v6546 = vld [vmem:[%s6537 + $0x20] sm:$0xf]
        %v6547 = vld [vmem:[%s6537 + $0x24] sm:$0xf]
        %v6548 = vld [vmem:[%s6537 + $0x28] sm:$0xf]
        %v6549 = vld [vmem:[%s6537 + $0x2c] sm:$0xf]
        %v6550 = vld [vmem:[%s6537 + $0x30] sm:$0xf]
        %v6551 = vld [vmem:[%s6537 + $0x34] sm:$0xf]
        %v6552 = vld [vmem:[%s6537 + $0x38] sm:$0xf]
        %v6553 = vld [vmem:[%s6537 + $0x3c] sm:$0xf]
        %v6573 = vrot.slane %v6536, 4
        %v6574 = vrot.slane %v6052, 4
        %v6575 = vsel %vm4829, %v6573, %v6574
        %v6576 = vrot.slane %v6053, 4
        %v6577 = vsel %vm4829, %v6574, %v6576
        %v6578 = vrot.slane %v6054, 4
        %v6579 = vsel %vm4829, %v6576, %v6578
        %v6580 = vrot.slane %v6055, 4
        %v6581 = vsel %vm4829, %v6578, %v6580
        %v6582 = vrot.slane %v6056, 4
        %v6583 = vsel %vm4829, %v6580, %v6582
        %v6584 = vrot.slane %v6057, 4
        %v6585 = vsel %vm4829, %v6582, %v6584
        %v6586 = vrot.slane %v6058, 4
        %v6587 = vsel %vm4829, %v6584, %v6586
        %v6588 = vrot.slane %v6059, 4
        %v6589 = vsel %vm4829, %v6586, %v6588
        %v6590 = vrot.slane %v6060, 4
        %v6591 = vsel %vm4829, %v6588, %v6590
        %v6592 = vrot.slane %v6061, 4
        %v6593 = vsel %vm4829, %v6590, %v6592
        %v6594 = vrot.slane %v6062, 4
        %v6595 = vsel %vm4829, %v6592, %v6594
        %v6596 = vrot.slane %v6063, 4
        %v6597 = vsel %vm4829, %v6594, %v6596
        %v6598 = vrot.slane %v6064, 4
        %v6599 = vsel %vm4829, %v6596, %v6598
        %v6600 = vrot.slane %v6065, 4
        %v6601 = vsel %vm4829, %v6598, %v6600
        %v6602 = vrot.slane %v6066, 4
        %v6603 = vsel %vm4829, %v6600, %v6602
        %v6604 = vrot.slane %v6067, 4
        %v6605 = vsel %vm4829, %v6602, %v6604
        %v6606 = vrot.slane %v6068, 4
        %v6607 = vsel %vm4829, %v6604, %v6606
        %v6608 = vrot.slane %v6069, 4
        %v6609 = vsel %vm4829, %v6606, %v6608
        %v6644 = vunpack.c.l.b16 %v6538
        %v6645 = vunpack.c.l.b16 %v6539
        %v6646 = vunpack.c.l.b16 %v6540
        %v6647 = vunpack.c.l.b16 %v6541
        %v6648 = vunpack.c.l.b16 %v6542
        %v6649 = vunpack.c.l.b16 %v6543
        %v6650 = vunpack.c.l.b16 %v6544
        %v6651 = vunpack.c.l.b16 %v6545
        %v6652 = vunpack.c.l.b16 %v6546
        %v6653 = vunpack.c.l.b16 %v6547
        %v6654 = vunpack.c.l.b16 %v6548
        %v6655 = vunpack.c.l.b16 %v6549
        %v6656 = vunpack.c.l.b16 %v6550
        %v6657 = vunpack.c.l.b16 %v6551
        %v6658 = vunpack.c.l.b16 %v6552
        %v6659 = vunpack.c.l.b16 %v6553
        %v6660 = vpack.c.b16 %v6645, %v6644
        %v6661 = vpack.c.b16 %v6647, %v6646
        %v6662 = vpack.c.b16 %v6649, %v6648
        %v6663 = vpack.c.b16 %v6651, %v6650
        %v6664 = vpack.c.b16 %v6653, %v6652
        %v6665 = vpack.c.b16 %v6655, %v6654
        %v6666 = vpack.c.b16 %v6657, %v6656
        %v6667 = vpack.c.b16 %v6659, %v6658
        %6676 = vmatprep.subr.bf16.mxu0 0
        %6677 = vmatpush1.bf16.msra.mxu0 %v6660
        %6678 = vmatprep.subr.bf16.mxu0 0
        %6679 = vmatpush1.bf16.msra.mxu0 %v6661
        %6680 = vmatprep.subr.bf16.mxu0 0
        %6681 = vmatpush1.bf16.msra.mxu0 %v6662
        %6682 = vmatprep.subr.bf16.mxu0 0
        %6683 = vmatpush1.bf16.msra.mxu0 %v6663
        %6684 = vmatprep.subr.bf16.mxu0 0
        %6685 = vmatpush1.bf16.msra.mxu0 %v6664
        %6686 = vmatprep.subr.bf16.mxu0 0
        %6687 = vmatpush1.bf16.msra.mxu0 %v6665
        %6688 = vmatprep.subr.bf16.mxu0 0
        %6689 = vmatpush1.bf16.msra.mxu0 %v6666
        %6690 = vmatprep.subr.bf16.mxu0 0
        %6691 = vmatpush1.bf16.msra.mxu0 %v6667
        %6692 = vmatprep.subr.bf16.mxu0 0
        %6693 = vmatpush1.bf16.msra.mxu0 0
        %6694 = vmatprep.subr.bf16.mxu0 0
        %6695 = vmatpush1.bf16.msra.mxu0 0
        %6696 = vmatprep.subr.bf16.mxu0 0
        %6697 = vmatpush1.bf16.msra.mxu0 0
        %6698 = vmatprep.subr.bf16.mxu0 0
        %6699 = vmatpush1.bf16.msra.mxu0 0
        %6700 = vmatprep.subr.bf16.mxu0 0
        %6701 = vmatpush1.bf16.msra.mxu0 0
        %6702 = vmatprep.subr.bf16.mxu0 0
        %6703 = vmatpush1.bf16.msra.mxu0 0
        %6704 = vmatprep.subr.bf16.mxu0 0
        %6705 = vmatpush1.bf16.msra.mxu0 0
        %6706 = vmatprep.subr.bf16.mxu0 0
        %6707 = vmatpush1.bf16.msra.mxu0 0
        %6708 = vmatprep.mubr.bf16.mxu0 0
        %6709 = vmatmul.mubr.bf16.gmra.mrb[0].mxu0 %v6575
        %v6710 = vpop.f32.mrb[0].mxu0
        %v6711 = vadd.f32 0.0, %v6710
        %v6712 = vpop.f32.mrb[0].mxu0
        %v6713 = vpop.f32.mrb[0].mxu0
        %v6714 = vadd.f32 0.0, %v6713
        %v6715 = vpop.f32.mrb[0].mxu0
        %6716 = vmatprep.mubr.bf16.mxu0 0
        %6717 = vmatmul.mubr.bf16.gmra.mrb[0].mxu0 %v6577
        %v6718 = vpop.f32.mrb[0].mxu0
        %v6719 = vadd.f32 0.0, %v6718
        %v6720 = vpop.f32.mrb[0].mxu0
        %v6721 = vpop.f32.mrb[0].mxu0
        %v6722 = vadd.f32 0.0, %v6721
        %v6723 = vpop.f32.mrb[0].mxu0
        %6724 = vmatprep.mubr.bf16.mxu0 0
        %6725 = vmatmul.mubr.bf16.gmra.mrb[0].mxu0 %v6579
        %v6726 = vpop.f32.mrb[0].mxu0
        %v6727 = vadd.f32 0.0, %v6726
        %v6728 = vpop.f32.mrb[0].mxu0
        %v6729 = vpop.f32.mrb[0].mxu0
        %v6730 = vadd.f32 0.0, %v6729
        %v6731 = vpop.f32.mrb[0].mxu0
        %6732 = vmatprep.mubr.bf16.mxu0 0
        %6733 = vmatmul.mubr.bf16.gmra.mrb[0].mxu0 %v6581
        %v6734 = vpop.f32.mrb[0].mxu0
        %v6735 = vadd.f32 0.0, %v6734
        %v6736 = vpop.f32.mrb[0].mxu0
        %v6737 = vpop.f32.mrb[0].mxu0
        %v6738 = vadd.f32 0.0, %v6737
        %v6739 = vpop.f32.mrb[0].mxu0
        %6740 = vmatprep.mubr.bf16.mxu0 0
        %6741 = vmatmul.mubr.bf16.gmra.mrb[0].mxu0 %v6583
        %v6742 = vpop.f32.mrb[0].mxu0
        %v6743 = vadd.f32 0.0, %v6742
        %v6744 = vpop.f32.mrb[0].mxu0
        %v6745 = vpop.f32.mrb[0].mxu0
        %v6746 = vadd.f32 0.0, %v6745
        %v6747 = vpop.f32.mrb[0].mxu0
        %6748 = vmatprep.mubr.bf16.mxu0 0
        %6749 = vmatmul.mubr.bf16.gmra.mrb[0].mxu0 %v6585
        %v6750 = vpop.f32.mrb[0].mxu0
        %v6751 = vadd.f32 0.0, %v6750
        %v6752 = vpop.f32.mrb[0].mxu0
        %v6753 = vpop.f32.mrb[0].mxu0
        %v6754 = vadd.f32 0.0, %v6753
        %v6755 = vpop.f32.mrb[0].mxu0
        %6756 = vmatprep.mubr.bf16.mxu0 0
        %6757 = vmatmul.mubr.bf16.gmra.mrb[0].mxu0 %v6587
        %v6758 = vpop.f32.mrb[0].mxu0
        %v6759 = vadd.f32 0.0, %v6758
        %v6760 = vpop.f32.mrb[0].mxu0
        %v6761 = vpop.f32.mrb[0].mxu0
        %v6762 = vadd.f32 0.0, %v6761
        %v6763 = vpop.f32.mrb[0].mxu0
        %6764 = vmatprep.mubr.bf16.mxu0 0
        %6765 = vmatmul.mubr.bf16.gmra.mrb[0].mxu0 %v6589
        %v6766 = vpop.f32.mrb[0].mxu0
        %v6767 = vadd.f32 0.0, %v6766
        %v6768 = vpop.f32.mrb[0].mxu0
        %v6769 = vpop.f32.mrb[0].mxu0
        %v6770 = vadd.f32 0.0, %v6769
        %v6771 = vpop.f32.mrb[0].mxu0
        %6772 = vmatprep.mubr.bf16.mxu0 0
        %6773 = vmatmul.mubr.bf16.gmra.mrb[0].mxu0 %v6591
        %v6774 = vpop.f32.mrb[0].mxu0
        %v6775 = vadd.f32 0.0, %v6774
        %v6776 = vpop.f32.mrb[0].mxu0
        %v6777 = vpop.f32.mrb[0].mxu0
        %v6778 = vadd.f32 0.0, %v6777
        %v6779 = vpop.f32.mrb[0].mxu0
        %6780 = vmatprep.mubr.bf16.mxu0 0
        %6781 = vmatmul.mubr.bf16.gmra.mrb[0].mxu0 %v6593
        %v6782 = vpop.f32.mrb[0].mxu0
        %v6783 = vadd.f32 0.0, %v6782
        %v6784 = vpop.f32.mrb[0].mxu0
        %v6785 = vpop.f32.mrb[0].mxu0
        %v6786 = vadd.f32 0.0, %v6785
        %v6787 = vpop.f32.mrb[0].mxu0
        %6788 = vmatprep.mubr.bf16.mxu0 0
        %6789 = vmatmul.mubr.bf16.gmra.mrb[0].mxu0 %v6595
        %v6790 = vpop.f32.mrb[0].mxu0
        %v6791 = vadd.f32 0.0, %v6790
        %v6792 = vpop.f32.mrb[0].mxu0
        %v6793 = vpop.f32.mrb[0].mxu0
        %v6794 = vadd.f32 0.0, %v6793
        %v6795 = vpop.f32.mrb[0].mxu0
        %6796 = vmatprep.mubr.bf16.mxu0 0
        %6797 = vmatmul.mubr.bf16.gmra.mrb[0].mxu0 %v6597
        %v6798 = vpop.f32.mrb[0].mxu0
        %v6799 = vadd.f32 0.0, %v6798
        %v6800 = vpop.f32.mrb[0].mxu0
        %v6801 = vpop.f32.mrb[0].mxu0
        %v6802 = vadd.f32 0.0, %v6801
        %v6803 = vpop.f32.mrb[0].mxu0
        %6804 = vmatprep.mubr.bf16.mxu0 0
        %6805 = vmatmul.mubr.bf16.gmra.mrb[0].mxu0 %v6599
        %v6806 = vpop.f32.mrb[0].mxu0
        %v6807 = vadd.f32 0.0, %v6806
        %v6808 = vpop.f32.mrb[0].mxu0
        %v6809 = vpop.f32.mrb[0].mxu0
        %v6810 = vadd.f32 0.0, %v6809
        %v6811 = vpop.f32.mrb[0].mxu0
        %6812 = vmatprep.mubr.bf16.mxu0 0
        %6813 = vmatmul.mubr.bf16.gmra.mrb[0].mxu0 %v6601
        %v6814 = vpop.f32.mrb[0].mxu0
        %v6815 = vadd.f32 0.0, %v6814
        %v6816 = vpop.f32.mrb[0].mxu0
        %v6817 = vpop.f32.mrb[0].mxu0
        %v6818 = vadd.f32 0.0, %v6817
        %v6819 = vpop.f32.mrb[0].mxu0
        %6820 = vmatprep.mubr.bf16.mxu0 0
        %6821 = vmatmul.mubr.bf16.gmra.mrb[0].mxu0 %v6603
        %v6822 = vpop.f32.mrb[0].mxu0
        %v6823 = vadd.f32 0.0, %v6822
        %v6824 = vpop.f32.mrb[0].mxu0
        %v6825 = vpop.f32.mrb[0].mxu0
        %v6826 = vadd.f32 0.0, %v6825
        %v6827 = vpop.f32.mrb[0].mxu0
        %6828 = vmatprep.mubr.bf16.mxu0 0
        %6829 = vmatmul.mubr.bf16.gmra.mrb[0].mxu0 %v6605
        %v6830 = vpop.f32.mrb[0].mxu0
        %v6831 = vadd.f32 0.0, %v6830
        %v6832 = vpop.f32.mrb[0].mxu0
        %v6833 = vpop.f32.mrb[0].mxu0
        %v6834 = vadd.f32 0.0, %v6833
        %v6835 = vpop.f32.mrb[0].mxu0
        %6836 = vmatprep.mubr.bf16.mxu0 0
        %6837 = vmatmul.mubr.bf16.gmra.mrb[0].mxu0 %v6607
        %v6838 = vpop.f32.mrb[0].mxu0
        %v6839 = vadd.f32 0.0, %v6838
        %v6840 = vpop.f32.mrb[0].mxu0
        %v6841 = vpop.f32.mrb[0].mxu0
        %v6842 = vadd.f32 0.0, %v6841
        %v6843 = vpop.f32.mrb[0].mxu0
        %6844 = vmatprep.mubr.bf16.mxu0 0
        %6845 = vmatmul.mubr.bf16.gmra.mrb[0].mxu0 %v6609
        %v6846 = vpop.f32.mrb[0].mxu0
        %v6847 = vadd.f32 0.0, %v6846
        %v6848 = vpop.f32.mrb[0].mxu0
        %v6849 = vpop.f32.mrb[0].mxu0
        %v6850 = vadd.f32 0.0, %v6849
        %v6851 = vpop.f32.mrb[0].mxu0
        %6852 = vdwg.mxu0
        %v6853 = vadd.f32 %v6500, %v6711
        %v6854 = vadd.f32 %v6501, %v6714
        %v6855 = vadd.f32 %v6502, %v6719
        %v6856 = vadd.f32 %v6503, %v6722
        %v6857 = vadd.f32 %v6504, %v6727
        %v6858 = vadd.f32 %v6505, %v6730
        %v6859 = vadd.f32 %v6506, %v6735
        %v6860 = vadd.f32 %v6507, %v6738
        %v6861 = vadd.f32 %v6508, %v6743
        %v6862 = vadd.f32 %v6509, %v6746
        %v6863 = vadd.f32 %v6510, %v6751
        %v6864 = vadd.f32 %v6511, %v6754
        %v6865 = vadd.f32 %v6512, %v6759
        %v6866 = vadd.f32 %v6513, %v6762
        %v6867 = vadd.f32 %v6514, %v6767
        %v6868 = vadd.f32 %v6515, %v6770
        %v6869 = vadd.f32 %v6516, %v6775
        %v6870 = vadd.f32 %v6517, %v6778
        %v6871 = vadd.f32 %v6518, %v6783
        %v6872 = vadd.f32 %v6519, %v6786
        %v6873 = vadd.f32 %v6520, %v6791
        %v6874 = vadd.f32 %v6521, %v6794
        %v6875 = vadd.f32 %v6522, %v6799
        %v6876 = vadd.f32 %v6523, %v6802
        %v6877 = vadd.f32 %v6524, %v6807
        %v6878 = vadd.f32 %v6525, %v6810
        %v6879 = vadd.f32 %v6526, %v6815
        %v6880 = vadd.f32 %v6527, %v6818
        %v6881 = vadd.f32 %v6528, %v6823
        %v6882 = vadd.f32 %v6529, %v6826
        %v6883 = vadd.f32 %v6530, %v6831
        %v6884 = vadd.f32 %v6531, %v6834
        %v6885 = vadd.f32 %v6532, %v6839
        %v6886 = vadd.f32 %v6533, %v6842
        %v6887 = vadd.f32 %v6534, %v6847
        %v6888 = vadd.f32 %v6535, %v6850
        %v6889 = vld [vmem:[#allocation2 + $0x98] sm:$0x1f]
        %s6890 = scalar_lea.vmem [#allocation8], 320
        %v6891 = vld [vmem:[%s6890] sm:$0xf]
        %v6892 = vld [vmem:[%s6890 + $0x4] sm:$0xf]
        %v6893 = vld [vmem:[%s6890 + $0x8] sm:$0xf]
        %v6894 = vld [vmem:[%s6890 + $0xc] sm:$0xf]
        %v6895 = vld [vmem:[%s6890 + $0x10] sm:$0xf]
        %v6896 = vld [vmem:[%s6890 + $0x14] sm:$0xf]
        %v6897 = vld [vmem:[%s6890 + $0x18] sm:$0xf]
        %v6898 = vld [vmem:[%s6890 + $0x1c] sm:$0xf]
        %v6899 = vld [vmem:[%s6890 + $0x20] sm:$0xf]
        %v6900 = vld [vmem:[%s6890 + $0x24] sm:$0xf]
        %v6901 = vld [vmem:[%s6890 + $0x28] sm:$0xf]
        %v6902 = vld [vmem:[%s6890 + $0x2c] sm:$0xf]
        %v6903 = vld [vmem:[%s6890 + $0x30] sm:$0xf]
        %v6904 = vld [vmem:[%s6890 + $0x34] sm:$0xf]
        %v6905 = vld [vmem:[%s6890 + $0x38] sm:$0xf]
        %v6906 = vld [vmem:[%s6890 + $0x3c] sm:$0xf]
        %vm6907 = vsmask.f32 3328
        %v6909 = vshrl.u32 %v6536, 16
        %v6911 = vrot.slane %v6909, 4
        %v6912 = vshll.u32 %v6536, 16
        %v6914 = vrot.slane %v6912, 5
        %v6915 = vor.u32 %v6911, %v6914
        %v6916 = vrot.slane %v6096, 4
        %v6917 = vrot.slane %v6099, 5
        %v6918 = vor.u32 %v6916, %v6917
        %v6919 = vsel %vm6907, %v6915, %v6918
        %v6920 = vrot.slane %v6105, 4
        %v6921 = vrot.slane %v6108, 5
        %v6922 = vor.u32 %v6920, %v6921
        %v6923 = vsel %vm6907, %v6918, %v6922
        %v6924 = vrot.slane %v6114, 4
        %v6925 = vrot.slane %v6117, 5
        %v6926 = vor.u32 %v6924, %v6925
        %v6927 = vsel %vm6907, %v6922, %v6926
        %v6928 = vrot.slane %v6123, 4
        %v6929 = vrot.slane %v6126, 5
        %v6930 = vor.u32 %v6928, %v6929
        %v6931 = vsel %vm6907, %v6926, %v6930
        %v6932 = vrot.slane %v6132, 4
        %v6933 = vrot.slane %v6135, 5
        %v6934 = vor.u32 %v6932, %v6933
        %v6935 = vsel %vm6907, %v6930, %v6934
        %v6936 = vrot.slane %v6141, 4
        %v6937 = vrot.slane %v6144, 5
        %v6938 = vor.u32 %v6936, %v6937
        %v6939 = vsel %vm6907, %v6934, %v6938
        %v6940 = vrot.slane %v6150, 4
        %v6941 = vrot.slane %v6153, 5
        %v6942 = vor.u32 %v6940, %v6941
        %v6943 = vsel %vm6907, %v6938, %v6942
        %v6944 = vrot.slane %v6159, 4
        %v6945 = vrot.slane %v6162, 5
        %v6946 = vor.u32 %v6944, %v6945
        %v6947 = vsel %vm6907, %v6942, %v6946
        %v6948 = vrot.slane %v6168, 4
        %v6949 = vrot.slane %v6171, 5
        %v6950 = vor.u32 %v6948, %v6949
        %v6951 = vsel %vm6907, %v6946, %v6950
        %v6952 = vrot.slane %v6177, 4
        %v6953 = vrot.slane %v6180, 5
        %v6954 = vor.u32 %v6952, %v6953
        %v6955 = vsel %vm6907, %v6950, %v6954
        %v6956 = vrot.slane %v6186, 4
        %v6957 = vrot.slane %v6189, 5
        %v6958 = vor.u32 %v6956, %v6957
        %v6959 = vsel %vm6907, %v6954, %v6958
        %v6960 = vrot.slane %v6195, 4
        %v6961 = vrot.slane %v6198, 5
        %v6962 = vor.u32 %v6960, %v6961
        %v6963 = vsel %vm6907, %v6958, %v6962
        %v6964 = vrot.slane %v6204, 4
        %v6965 = vrot.slane %v6207, 5
        %v6966 = vor.u32 %v6964, %v6965
        %v6967 = vsel %vm6907, %v6962, %v6966
        %v6968 = vrot.slane %v6213, 4
        %v6969 = vrot.slane %v6216, 5
        %v6970 = vor.u32 %v6968, %v6969
        %v6971 = vsel %vm6907, %v6966, %v6970
        %v6972 = vrot.slane %v6222, 4
        %v6973 = vrot.slane %v6225, 5
        %v6974 = vor.u32 %v6972, %v6973
        %v6975 = vsel %vm6907, %v6970, %v6974
        %v6976 = vrot.slane %v6231, 4
        %v6977 = vrot.slane %v6234, 5
        %v6978 = vor.u32 %v6976, %v6977
        %v6979 = vsel %vm6907, %v6974, %v6978
        %v6980 = vrot.slane %v6240, 4
        %v6981 = vrot.slane %v6243, 5
        %v6982 = vor.u32 %v6980, %v6981
        %v6983 = vsel %vm6907, %v6978, %v6982
        %v6985 = vshrl.u32 %v6889, 16
        %v6987 = vrot.slane %v6985, 4
        %v6988 = vshll.u32 %v6889, 16
        %v6990 = vrot.slane %v6988, 5
        %v6991 = vor.u32 %v6987, %v6990
        %v6992 = vsel %vm6907, %v6982, %v6991
        %v7027 = vunpack.c.l.b16 %v6891
        %v7028 = vunpack.c.l.b16 %v6892
        %v7029 = vunpack.c.l.b16 %v6893
        %v7030 = vunpack.c.l.b16 %v6894
        %v7031 = vunpack.c.l.b16 %v6895
        %v7032 = vunpack.c.l.b16 %v6896
        %v7033 = vunpack.c.l.b16 %v6897
        %v7034 = vunpack.c.l.b16 %v6898
        %v7035 = vunpack.c.l.b16 %v6899
        %v7036 = vunpack.c.l.b16 %v6900
        %v7037 = vunpack.c.l.b16 %v6901
        %v7038 = vunpack.c.l.b16 %v6902
        %v7039 = vunpack.c.l.b16 %v6903
        %v7040 = vunpack.c.l.b16 %v6904
        %v7041 = vunpack.c.l.b16 %v6905
        %v7042 = vunpack.c.l.b16 %v6906
        %v7043 = vpack.c.b16 %v7028, %v7027
        %v7044 = vpack.c.b16 %v7030, %v7029
        %v7045 = vpack.c.b16 %v7032, %v7031
        %v7046 = vpack.c.b16 %v7034, %v7033
        %v7047 = vpack.c.b16 %v7036, %v7035
        %v7048 = vpack.c.b16 %v7038, %v7037
        %v7049 = vpack.c.b16 %v7040, %v7039
        %v7050 = vpack.c.b16 %v7042, %v7041
        %7059 = vmatprep.subr.bf16.mxu0 0
        %7060 = vmatpush1.bf16.msra.mxu0 %v7043
        %7061 = vmatprep.subr.bf16.mxu0 0
        %7062 = vmatpush1.bf16.msra.mxu0 %v7044
        %7063 = vmatprep.subr.bf16.mxu0 0
        %7064 = vmatpush1.bf16.msra.mxu0 %v7045
        %7065 = vmatprep.subr.bf16.mxu0 0
        %7066 = vmatpush1.bf16.msra.mxu0 %v7046
        %7067 = vmatprep.subr.bf16.mxu0 0
        %7068 = vmatpush1.bf16.msra.mxu0 %v7047
        %7069 = vmatprep.subr.bf16.mxu0 0
        %7070 = vmatpush1.bf16.msra.mxu0 %v7048
        %7071 = vmatprep.subr.bf16.mxu0 0
        %7072 = vmatpush1.bf16.msra.mxu0 %v7049
        %7073 = vmatprep.subr.bf16.mxu0 0
        %7074 = vmatpush1.bf16.msra.mxu0 %v7050
        %7075 = vmatprep.subr.bf16.mxu0 0
        %7076 = vmatpush1.bf16.msra.mxu0 0
        %7077 = vmatprep.subr.bf16.mxu0 0
        %7078 = vmatpush1.bf16.msra.mxu0 0
        %7079 = vmatprep.subr.bf16.mxu0 0
        %7080 = vmatpush1.bf16.msra.mxu0 0
        %7081 = vmatprep.subr.bf16.mxu0 0
        %7082 = vmatpush1.bf16.msra.mxu0 0
        %7083 = vmatprep.subr.bf16.mxu0 0
        %7084 = vmatpush1.bf16.msra.mxu0 0
        %7085 = vmatprep.subr.bf16.mxu0 0
        %7086 = vmatpush1.bf16.msra.mxu0 0
        %7087 = vmatprep.subr.bf16.mxu0 0
        %7088 = vmatpush1.bf16.msra.mxu0 0
        %7089 = vmatprep.subr.bf16.mxu0 0
        %7090 = vmatpush1.bf16.msra.mxu0 0
        %7091 = vmatprep.mubr.bf16.mxu0 0
        %7092 = vmatmul.mubr.bf16.gmra.mrb[0].mxu0 %v6919
        %v7093 = vpop.f32.mrb[0].mxu0
        %v7094 = vadd.f32 0.0, %v7093
        %v7095 = vpop.f32.mrb[0].mxu0
        %v7096 = vpop.f32.mrb[0].mxu0
        %v7097 = vadd.f32 0.0, %v7096
        %v7098 = vpop.f32.mrb[0].mxu0
        %7099 = vmatprep.mubr.bf16.mxu0 0
        %7100 = vmatmul.mubr.bf16.gmra.mrb[0].mxu0 %v6923
        %v7101 = vpop.f32.mrb[0].mxu0
        %v7102 = vadd.f32 0.0, %v7101
        %v7103 = vpop.f32.mrb[0].mxu0
        %v7104 = vpop.f32.mrb[0].mxu0
        %v7105 = vadd.f32 0.0, %v7104
        %v7106 = vpop.f32.mrb[0].mxu0
        %7107 = vmatprep.mubr.bf16.mxu0 0
        %7108 = vmatmul.mubr.bf16.gmra.mrb[0].mxu0 %v6927
        %v7109 = vpop.f32.mrb[0].mxu0
        %v7110 = vadd.f32 0.0, %v7109
        %v7111 = vpop.f32.mrb[0].mxu0
        %v7112 = vpop.f32.mrb[0].mxu0
        %v7113 = vadd.f32 0.0, %v7112
        %v7114 = vpop.f32.mrb[0].mxu0
        %7115 = vmatprep.mubr.bf16.mxu0 0
        %7116 = vmatmul.mubr.bf16.gmra.mrb[0].mxu0 %v6931
        %v7117 = vpop.f32.mrb[0].mxu0
        %v7118 = vadd.f32 0.0, %v7117
        %v7119 = vpop.f32.mrb[0].mxu0
        %v7120 = vpop.f32.mrb[0].mxu0
        %v7121 = vadd.f32 0.0, %v7120
        %v7122 = vpop.f32.mrb[0].mxu0
        %7123 = vmatprep.mubr.bf16.mxu0 0
        %7124 = vmatmul.mubr.bf16.gmra.mrb[0].mxu0 %v6935
        %v7125 = vpop.f32.mrb[0].mxu0
        %v7126 = vadd.f32 0.0, %v7125
        %v7127 = vpop.f32.mrb[0].mxu0
        %v7128 = vpop.f32.mrb[0].mxu0
        %v7129 = vadd.f32 0.0, %v7128
        %v7130 = vpop.f32.mrb[0].mxu0
        %7131 = vmatprep.mubr.bf16.mxu0 0
        %7132 = vmatmul.mubr.bf16.gmra.mrb[0].mxu0 %v6939
        %v7133 = vpop.f32.mrb[0].mxu0
        %v7134 = vadd.f32 0.0, %v7133
        %v7135 = vpop.f32.mrb[0].mxu0
        %v7136 = vpop.f32.mrb[0].mxu0
        %v7137 = vadd.f32 0.0, %v7136
        %v7138 = vpop.f32.mrb[0].mxu0
        %7139 = vmatprep.mubr.bf16.mxu0 0
        %7140 = vmatmul.mubr.bf16.gmra.mrb[0].mxu0 %v6943
        %v7141 = vpop.f32.mrb[0].mxu0
        %v7142 = vadd.f32 0.0, %v7141
        %v7143 = vpop.f32.mrb[0].mxu0
        %v7144 = vpop.f32.mrb[0].mxu0
        %v7145 = vadd.f32 0.0, %v7144
        %v7146 = vpop.f32.mrb[0].mxu0
        %7147 = vmatprep.mubr.bf16.mxu0 0
        %7148 = vmatmul.mubr.bf16.gmra.mrb[0].mxu0 %v6947
        %v7149 = vpop.f32.mrb[0].mxu0
        %v7150 = vadd.f32 0.0, %v7149
        %v7151 = vpop.f32.mrb[0].mxu0
        %v7152 = vpop.f32.mrb[0].mxu0
        %v7153 = vadd.f32 0.0, %v7152
        %v7154 = vpop.f32.mrb[0].mxu0
        %7155 = vmatprep.mubr.bf16.mxu0 0
        %7156 = vmatmul.mubr.bf16.gmra.mrb[0].mxu0 %v6951
        %v7157 = vpop.f32.mrb[0].mxu0
        %v7158 = vadd.f32 0.0, %v7157
        %v7159 = vpop.f32.mrb[0].mxu0
        %v7160 = vpop.f32.mrb[0].mxu0
        %v7161 = vadd.f32 0.0, %v7160
        %v7162 = vpop.f32.mrb[0].mxu0
        %7163 = vmatprep.mubr.bf16.mxu0 0
        %7164 = vmatmul.mubr.bf16.gmra.mrb[0].mxu0 %v6955
        %v7165 = vpop.f32.mrb[0].mxu0
        %v7166 = vadd.f32 0.0, %v7165
        %v7167 = vpop.f32.mrb[0].mxu0
        %v7168 = vpop.f32.mrb[0].mxu0
        %v7169 = vadd.f32 0.0, %v7168
        %v7170 = vpop.f32.mrb[0].mxu0
        %7171 = vmatprep.mubr.bf16.mxu0 0
        %7172 = vmatmul.mubr.bf16.gmra.mrb[0].mxu0 %v6959
        %v7173 = vpop.f32.mrb[0].mxu0
        %v7174 = vadd.f32 0.0, %v7173
        %v7175 = vpop.f32.mrb[0].mxu0
        %v7176 = vpop.f32.mrb[0].mxu0
        %v7177 = vadd.f32 0.0, %v7176
        %v7178 = vpop.f32.mrb[0].mxu0
        %7179 = vmatprep.mubr.bf16.mxu0 0
        %7180 = vmatmul.mubr.bf16.gmra.mrb[0].mxu0 %v6963
        %v7181 = vpop.f32.mrb[0].mxu0
        %v7182 = vadd.f32 0.0, %v7181
        %v7183 = vpop.f32.mrb[0].mxu0
        %v7184 = vpop.f32.mrb[0].mxu0
        %v7185 = vadd.f32 0.0, %v7184
        %v7186 = vpop.f32.mrb[0].mxu0
        %7187 = vmatprep.mubr.bf16.mxu0 0
        %7188 = vmatmul.mubr.bf16.gmra.mrb[0].mxu0 %v6967
        %v7189 = vpop.f32.mrb[0].mxu0
        %v7190 = vadd.f32 0.0, %v7189
        %v7191 = vpop.f32.mrb[0].mxu0
        %v7192 = vpop.f32.mrb[0].mxu0
        %v7193 = vadd.f32 0.0, %v7192
        %v7194 = vpop.f32.mrb[0].mxu0
        %7195 = vmatprep.mubr.bf16.mxu0 0
        %7196 = vmatmul.mubr.bf16.gmra.mrb[0].mxu0 %v6971
        %v7197 = vpop.f32.mrb[0].mxu0
        %v7198 = vadd.f32 0.0, %v7197
        %v7199 = vpop.f32.mrb[0].mxu0
        %v7200 = vpop.f32.mrb[0].mxu0
        %v7201 = vadd.f32 0.0, %v7200
        %v7202 = vpop.f32.mrb[0].mxu0
        %7203 = vmatprep.mubr.bf16.mxu0 0
        %7204 = vmatmul.mubr.bf16.gmra.mrb[0].mxu0 %v6975
        %v7205 = vpop.f32.mrb[0].mxu0
        %v7206 = vadd.f32 0.0, %v7205
        %v7207 = vpop.f32.mrb[0].mxu0
        %v7208 = vpop.f32.mrb[0].mxu0
        %v7209 = vadd.f32 0.0, %v7208
        %v7210 = vpop.f32.mrb[0].mxu0
        %7211 = vmatprep.mubr.bf16.mxu0 0
        %7212 = vmatmul.mubr.bf16.gmra.mrb[0].mxu0 %v6979
        %v7213 = vpop.f32.mrb[0].mxu0
        %v7214 = vadd.f32 0.0, %v7213
        %v7215 = vpop.f32.mrb[0].mxu0
        %v7216 = vpop.f32.mrb[0].mxu0
        %v7217 = vadd.f32 0.0, %v7216
        %v7218 = vpop.f32.mrb[0].mxu0
        %7219 = vmatprep.mubr.bf16.mxu0 0
        %7220 = vmatmul.mubr.bf16.gmra.mrb[0].mxu0 %v6983
        %v7221 = vpop.f32.mrb[0].mxu0
        %v7222 = vadd.f32 0.0, %v7221
        %v7223 = vpop.f32.mrb[0].mxu0
        %v7224 = vpop.f32.mrb[0].mxu0
        %v7225 = vadd.f32 0.0, %v7224
        %v7226 = vpop.f32.mrb[0].mxu0
        %7227 = vmatprep.mubr.bf16.mxu0 0
        %7228 = vmatmul.mubr.bf16.gmra.mrb[0].mxu0 %v6992
        %v7229 = vpop.f32.mrb[0].mxu0
        %v7230 = vadd.f32 0.0, %v7229
        %v7231 = vpop.f32.mrb[0].mxu0
        %v7232 = vpop.f32.mrb[0].mxu0
        %v7233 = vadd.f32 0.0, %v7232
        %v7234 = vpop.f32.mrb[0].mxu0
        %7235 = vdwg.mxu0
        %v7236 = vadd.f32 %v6853, %v7094
        %v7237 = vadd.f32 %v6854, %v7097
        %v7238 = vadd.f32 %v6855, %v7102
        %v7239 = vadd.f32 %v6856, %v7105
        %v7240 = vadd.f32 %v6857, %v7110
        %v7241 = vadd.f32 %v6858, %v7113
        %v7242 = vadd.f32 %v6859, %v7118
        %v7243 = vadd.f32 %v6860, %v7121
        %v7244 = vadd.f32 %v6861, %v7126
        %v7245 = vadd.f32 %v6862, %v7129
        %v7246 = vadd.f32 %v6863, %v7134
        %v7247 = vadd.f32 %v6864, %v7137
        %v7248 = vadd.f32 %v6865, %v7142
        %v7249 = vadd.f32 %v6866, %v7145
        %v7250 = vadd.f32 %v6867, %v7150
        %v7251 = vadd.f32 %v6868, %v7153
        %v7252 = vadd.f32 %v6869, %v7158
        %v7253 = vadd.f32 %v6870, %v7161
        %v7254 = vadd.f32 %v6871, %v7166
        %v7255 = vadd.f32 %v6872, %v7169
        %v7256 = vadd.f32 %v6873, %v7174
        %v7257 = vadd.f32 %v6874, %v7177
        %v7258 = vadd.f32 %v6875, %v7182
        %v7259 = vadd.f32 %v6876, %v7185
        %v7260 = vadd.f32 %v6877, %v7190
        %v7261 = vadd.f32 %v6878, %v7193
        %v7262 = vadd.f32 %v6879, %v7198
        %v7263 = vadd.f32 %v6880, %v7201
        %v7264 = vadd.f32 %v6881, %v7206
        %v7265 = vadd.f32 %v6882, %v7209
        %v7266 = vadd.f32 %v6883, %v7214
        %v7267 = vadd.f32 %v6884, %v7217
        %v7268 = vadd.f32 %v6885, %v7222
        %v7269 = vadd.f32 %v6886, %v7225
        %v7270 = vadd.f32 %v6887, %v7230
        %v7271 = vadd.f32 %v6888, %v7233
        %v7272 = vld [vmem:[#allocation2 + $0x10] sm:$0xf0]
        %v7273 = vld [vmem:[#allocation2 + $0x18] sm:$0xff]
        %v7274 = vld [vmem:[#allocation2 + $0x20] sm:$0xff]
        %v7275 = vld [vmem:[#allocation2 + $0x28] sm:$0xff]
        %v7276 = vld [vmem:[#allocation2 + $0x30] sm:$0xff]
        %v7277 = vld [vmem:[#allocation2 + $0x38] sm:$0xff]
        %v7278 = vld [vmem:[#allocation2 + $0x40] sm:$0xff]
        %v7279 = vld [vmem:[#allocation2 + $0x48] sm:$0xff]
        %v7280 = vld [vmem:[#allocation2 + $0x50] sm:$0xff]
        %v7281 = vld [vmem:[#allocation2 + $0x58] sm:$0xff]
        %v7282 = vld [vmem:[#allocation2 + $0x60] sm:$0xff]
        %v7283 = vld [vmem:[#allocation2 + $0x68] sm:$0xff]
        %v7284 = vld [vmem:[#allocation2 + $0x70] sm:$0xff]
        %v7285 = vld [vmem:[#allocation2 + $0x78] sm:$0xff]
        %v7286 = vld [vmem:[#allocation2 + $0x80] sm:$0xff]
        %v7287 = vld [vmem:[#allocation2 + $0x88] sm:$0xff]
        %v7288 = vld [vmem:[#allocation2 + $0x90] sm:$0xff]
        %v7289 = vld [vmem:[#allocation2 + $0x98] sm:$0xff]
        %v7290 = vld [vmem:[#allocation2 + $0xa0] sm:$0x1f]
        %s7291 = scalar_lea.vmem [#allocation8], 384
        %v7292 = vld [vmem:[%s7291] sm:$0xf]
        %v7293 = vld [vmem:[%s7291 + $0x4] sm:$0xf]
        %v7294 = vld [vmem:[%s7291 + $0x8] sm:$0xf]
        %v7295 = vld [vmem:[%s7291 + $0xc] sm:$0xf]
        %v7296 = vld [vmem:[%s7291 + $0x10] sm:$0xf]
        %v7297 = vld [vmem:[%s7291 + $0x14] sm:$0xf]
        %v7298 = vld [vmem:[%s7291 + $0x18] sm:$0xf]
        %v7299 = vld [vmem:[%s7291 + $0x1c] sm:$0xf]
        %v7300 = vld [vmem:[%s7291 + $0x20] sm:$0xf]
        %v7301 = vld [vmem:[%s7291 + $0x24] sm:$0xf]
        %v7302 = vld [vmem:[%s7291 + $0x28] sm:$0xf]
        %v7303 = vld [vmem:[%s7291 + $0x2c] sm:$0xf]
        %v7304 = vld [vmem:[%s7291 + $0x30] sm:$0xf]
        %v7305 = vld [vmem:[%s7291 + $0x34] sm:$0xf]
        %v7306 = vld [vmem:[%s7291 + $0x38] sm:$0xf]
        %v7307 = vld [vmem:[%s7291 + $0x3c] sm:$0xf]
        %v7309 = vshrl.u32 %v7272, 16
        %v7311 = vrot.slane %v7309, 4
        %v7312 = vshll.u32 %v7272, 16
        %v7314 = vrot.slane %v7312, 5
        %v7315 = vor.u32 %v7311, %v7314
        %v7317 = vshrl.u32 %v7273, 16
        %v7319 = vrot.slane %v7317, 4
        %v7320 = vshll.u32 %v7273, 16
        %v7322 = vrot.slane %v7320, 5
        %v7323 = vor.u32 %v7319, %v7322
        %v7324 = vsel %vm6907, %v7315, %v7323
        %v7326 = vshrl.u32 %v7274, 16
        %v7328 = vrot.slane %v7326, 4
        %v7329 = vshll.u32 %v7274, 16
        %v7331 = vrot.slane %v7329, 5
        %v7332 = vor.u32 %v7328, %v7331
        %v7333 = vsel %vm6907, %v7323, %v7332
        %v7335 = vshrl.u32 %v7275, 16
        %v7337 = vrot.slane %v7335, 4
        %v7338 = vshll.u32 %v7275, 16
        %v7340 = vrot.slane %v7338, 5
        %v7341 = vor.u32 %v7337, %v7340
        %v7342 = vsel %vm6907, %v7332, %v7341
        %v7344 = vshrl.u32 %v7276, 16
        %v7346 = vrot.slane %v7344, 4
        %v7347 = vshll.u32 %v7276, 16
        %v7349 = vrot.slane %v7347, 5
        %v7350 = vor.u32 %v7346, %v7349
        %v7351 = vsel %vm6907, %v7341, %v7350
        %v7353 = vshrl.u32 %v7277, 16
        %v7355 = vrot.slane %v7353, 4
        %v7356 = vshll.u32 %v7277, 16
        %v7358 = vrot.slane %v7356, 5
        %v7359 = vor.u32 %v7355, %v7358
        %v7360 = vsel %vm6907, %v7350, %v7359
        %v7362 = vshrl.u32 %v7278, 16
        %v7364 = vrot.slane %v7362, 4
        %v7365 = vshll.u32 %v7278, 16
        %v7367 = vrot.slane %v7365, 5
        %v7368 = vor.u32 %v7364, %v7367
        %v7369 = vsel %vm6907, %v7359, %v7368
        %v7371 = vshrl.u32 %v7279, 16
        %v7373 = vrot.slane %v7371, 4
        %v7374 = vshll.u32 %v7279, 16
        %v7376 = vrot.slane %v7374, 5
        %v7377 = vor.u32 %v7373, %v7376
        %v7378 = vsel %vm6907, %v7368, %v7377
        %v7380 = vshrl.u32 %v7280, 16
        %v7382 = vrot.slane %v7380, 4
        %v7383 = vshll.u32 %v7280, 16
        %v7385 = vrot.slane %v7383, 5
        %v7386 = vor.u32 %v7382, %v7385
        %v7387 = vsel %vm6907, %v7377, %v7386
        %v7389 = vshrl.u32 %v7281, 16
        %v7391 = vrot.slane %v7389, 4
        %v7392 = vshll.u32 %v7281, 16
        %v7394 = vrot.slane %v7392, 5
        %v7395 = vor.u32 %v7391, %v7394
        %v7396 = vsel %vm6907, %v7386, %v7395
        %v7398 = vshrl.u32 %v7282, 16
        %v7400 = vrot.slane %v7398, 4
        %v7401 = vshll.u32 %v7282, 16
        %v7403 = vrot.slane %v7401, 5
        %v7404 = vor.u32 %v7400, %v7403
        %v7405 = vsel %vm6907, %v7395, %v7404
        %v7407 = vshrl.u32 %v7283, 16
        %v7409 = vrot.slane %v7407, 4
        %v7410 = vshll.u32 %v7283, 16
        %v7412 = vrot.slane %v7410, 5
        %v7413 = vor.u32 %v7409, %v7412
        %v7414 = vsel %vm6907, %v7404, %v7413
        %v7416 = vshrl.u32 %v7284, 16
        %v7418 = vrot.slane %v7416, 4
        %v7419 = vshll.u32 %v7284, 16
        %v7421 = vrot.slane %v7419, 5
        %v7422 = vor.u32 %v7418, %v7421
        %v7423 = vsel %vm6907, %v7413, %v7422
        %v7425 = vshrl.u32 %v7285, 16
        %v7427 = vrot.slane %v7425, 4
        %v7428 = vshll.u32 %v7285, 16
        %v7430 = vrot.slane %v7428, 5
        %v7431 = vor.u32 %v7427, %v7430
        %v7432 = vsel %vm6907, %v7422, %v7431
        %v7434 = vshrl.u32 %v7286, 16
        %v7436 = vrot.slane %v7434, 4
        %v7437 = vshll.u32 %v7286, 16
        %v7439 = vrot.slane %v7437, 5
        %v7440 = vor.u32 %v7436, %v7439
        %v7441 = vsel %vm6907, %v7431, %v7440
        %v7443 = vshrl.u32 %v7287, 16
        %v7445 = vrot.slane %v7443, 4
        %v7446 = vshll.u32 %v7287, 16
        %v7448 = vrot.slane %v7446, 5
        %v7449 = vor.u32 %v7445, %v7448
        %v7450 = vsel %vm6907, %v7440, %v7449
        %v7452 = vshrl.u32 %v7288, 16
        %v7454 = vrot.slane %v7452, 4
        %v7455 = vshll.u32 %v7288, 16
        %v7457 = vrot.slane %v7455, 5
        %v7458 = vor.u32 %v7454, %v7457
        %v7459 = vsel %vm6907, %v7449, %v7458
        %v7461 = vshrl.u32 %v7289, 16
        %v7463 = vrot.slane %v7461, 4
        %v7464 = vshll.u32 %v7289, 16
        %v7466 = vrot.slane %v7464, 5
        %v7467 = vor.u32 %v7463, %v7466
        %v7468 = vsel %vm6907, %v7458, %v7467
        %v7470 = vshrl.u32 %v7290, 16
        %v7472 = vrot.slane %v7470, 4
        %v7473 = vshll.u32 %v7290, 16
        %v7475 = vrot.slane %v7473, 5
        %v7476 = vor.u32 %v7472, %v7475
        %v7477 = vsel %vm6907, %v7467, %v7476
        %v7512 = vunpack.c.l.b16 %v7292
        %v7513 = vunpack.c.l.b16 %v7293
        %v7514 = vunpack.c.l.b16 %v7294
        %v7515 = vunpack.c.l.b16 %v7295
        %v7516 = vunpack.c.l.b16 %v7296
        %v7517 = vunpack.c.l.b16 %v7297
        %v7518 = vunpack.c.l.b16 %v7298
        %v7519 = vunpack.c.l.b16 %v7299
        %v7520 = vunpack.c.l.b16 %v7300
        %v7521 = vunpack.c.l.b16 %v7301
        %v7522 = vunpack.c.l.b16 %v7302
        %v7523 = vunpack.c.l.b16 %v7303
        %v7524 = vunpack.c.l.b16 %v7304
        %v7525 = vunpack.c.l.b16 %v7305
        %v7526 = vunpack.c.l.b16 %v7306
        %v7527 = vunpack.c.l.b16 %v7307
        %v7528 = vpack.c.b16 %v7513, %v7512
        %v7529 = vpack.c.b16 %v7515, %v7514
        %v7530 = vpack.c.b16 %v7517, %v7516
        %v7531 = vpack.c.b16 %v7519, %v7518
        %v7532 = vpack.c.b16 %v7521, %v7520
        %v7533 = vpack.c.b16 %v7523, %v7522
        %v7534 = vpack.c.b16 %v7525, %v7524
        %v7535 = vpack.c.b16 %v7527, %v7526
        %7544 = vmatprep.subr.bf16.mxu0 0
        %7545 = vmatpush1.bf16.msra.mxu0 %v7528
        %7546 = vmatprep.subr.bf16.mxu0 0
        %7547 = vmatpush1.bf16.msra.mxu0 %v7529
        %7548 = vmatprep.subr.bf16.mxu0 0
        %7549 = vmatpush1.bf16.msra.mxu0 %v7530
        %7550 = vmatprep.subr.bf16.mxu0 0
        %7551 = vmatpush1.bf16.msra.mxu0 %v7531
        %7552 = vmatprep.subr.bf16.mxu0 0
        %7553 = vmatpush1.bf16.msra.mxu0 %v7532
        %7554 = vmatprep.subr.bf16.mxu0 0
        %7555 = vmatpush1.bf16.msra.mxu0 %v7533
        %7556 = vmatprep.subr.bf16.mxu0 0
        %7557 = vmatpush1.bf16.msra.mxu0 %v7534
        %7558 = vmatprep.subr.bf16.mxu0 0
        %7559 = vmatpush1.bf16.msra.mxu0 %v7535
        %7560 = vmatprep.subr.bf16.mxu0 0
        %7561 = vmatpush1.bf16.msra.mxu0 0
        %7562 = vmatprep.subr.bf16.mxu0 0
        %7563 = vmatpush1.bf16.msra.mxu0 0
        %7564 = vmatprep.subr.bf16.mxu0 0
        %7565 = vmatpush1.bf16.msra.mxu0 0
        %7566 = vmatprep.subr.bf16.mxu0 0
        %7567 = vmatpush1.bf16.msra.mxu0 0
        %7568 = vmatprep.subr.bf16.mxu0 0
        %7569 = vmatpush1.bf16.msra.mxu0 0
        %7570 = vmatprep.subr.bf16.mxu0 0
        %7571 = vmatpush1.bf16.msra.mxu0 0
        %7572 = vmatprep.subr.bf16.mxu0 0
        %7573 = vmatpush1.bf16.msra.mxu0 0
        %7574 = vmatprep.subr.bf16.mxu0 0
        %7575 = vmatpush1.bf16.msra.mxu0 0
        %7576 = vmatprep.mubr.bf16.mxu0 0
        %7577 = vmatmul.mubr.bf16.gmra.mrb[0].mxu0 %v7324
        %v7578 = vpop.f32.mrb[0].mxu0
        %v7579 = vadd.f32 0.0, %v7578
        %v7580 = vpop.f32.mrb[0].mxu0
        %v7581 = vpop.f32.mrb[0].mxu0
        %v7582 = vadd.f32 0.0, %v7581
        %v7583 = vpop.f32.mrb[0].mxu0
        %7584 = vmatprep.mubr.bf16.mxu0 0
        %7585 = vmatmul.mubr.bf16.gmra.mrb[0].mxu0 %v7333
        %v7586 = vpop.f32.mrb[0].mxu0
        %v7587 = vadd.f32 0.0, %v7586
        %v7588 = vpop.f32.mrb[0].mxu0
        %v7589 = vpop.f32.mrb[0].mxu0
        %v7590 = vadd.f32 0.0, %v7589
        %v7591 = vpop.f32.mrb[0].mxu0
        %7592 = vmatprep.mubr.bf16.mxu0 0
        %7593 = vmatmul.mubr.bf16.gmra.mrb[0].mxu0 %v7342
        %v7594 = vpop.f32.mrb[0].mxu0
        %v7595 = vadd.f32 0.0, %v7594
        %v7596 = vpop.f32.mrb[0].mxu0
        %v7597 = vpop.f32.mrb[0].mxu0
        %v7598 = vadd.f32 0.0, %v7597
        %v7599 = vpop.f32.mrb[0].mxu0
        %7600 = vmatprep.mubr.bf16.mxu0 0
        %7601 = vmatmul.mubr.bf16.gmra.mrb[0].mxu0 %v7351
        %v7602 = vpop.f32.mrb[0].mxu0
        %v7603 = vadd.f32 0.0, %v7602
        %v7604 = vpop.f32.mrb[0].mxu0
        %v7605 = vpop.f32.mrb[0].mxu0
        %v7606 = vadd.f32 0.0, %v7605
        %v7607 = vpop.f32.mrb[0].mxu0
        %7608 = vmatprep.mubr.bf16.mxu0 0
        %7609 = vmatmul.mubr.bf16.gmra.mrb[0].mxu0 %v7360
        %v7610 = vpop.f32.mrb[0].mxu0
        %v7611 = vadd.f32 0.0, %v7610
        %v7612 = vpop.f32.mrb[0].mxu0
        %v7613 = vpop.f32.mrb[0].mxu0
        %v7614 = vadd.f32 0.0, %v7613
        %v7615 = vpop.f32.mrb[0].mxu0
        %7616 = vmatprep.mubr.bf16.mxu0 0
        %7617 = vmatmul.mubr.bf16.gmra.mrb[0].mxu0 %v7369
        %v7618 = vpop.f32.mrb[0].mxu0
        %v7619 = vadd.f32 0.0, %v7618
        %v7620 = vpop.f32.mrb[0].mxu0
        %v7621 = vpop.f32.mrb[0].mxu0
        %v7622 = vadd.f32 0.0, %v7621
        %v7623 = vpop.f32.mrb[0].mxu0
        %7624 = vmatprep.mubr.bf16.mxu0 0
        %7625 = vmatmul.mubr.bf16.gmra.mrb[0].mxu0 %v7378
        %v7626 = vpop.f32.mrb[0].mxu0
        %v7627 = vadd.f32 0.0, %v7626
        %v7628 = vpop.f32.mrb[0].mxu0
        %v7629 = vpop.f32.mrb[0].mxu0
        %v7630 = vadd.f32 0.0, %v7629
        %v7631 = vpop.f32.mrb[0].mxu0
        %7632 = vmatprep.mubr.bf16.mxu0 0
        %7633 = vmatmul.mubr.bf16.gmra.mrb[0].mxu0 %v7387
        %v7634 = vpop.f32.mrb[0].mxu0
        %v7635 = vadd.f32 0.0, %v7634
        %v7636 = vpop.f32.mrb[0].mxu0
        %v7637 = vpop.f32.mrb[0].mxu0
        %v7638 = vadd.f32 0.0, %v7637
        %v7639 = vpop.f32.mrb[0].mxu0
        %7640 = vmatprep.mubr.bf16.mxu0 0
        %7641 = vmatmul.mubr.bf16.gmra.mrb[0].mxu0 %v7396
        %v7642 = vpop.f32.mrb[0].mxu0
        %v7643 = vadd.f32 0.0, %v7642
        %v7644 = vpop.f32.mrb[0].mxu0
        %v7645 = vpop.f32.mrb[0].mxu0
        %v7646 = vadd.f32 0.0, %v7645
        %v7647 = vpop.f32.mrb[0].mxu0
        %7648 = vmatprep.mubr.bf16.mxu0 0
        %7649 = vmatmul.mubr.bf16.gmra.mrb[0].mxu0 %v7405
        %v7650 = vpop.f32.mrb[0].mxu0
        %v7651 = vadd.f32 0.0, %v7650
        %v7652 = vpop.f32.mrb[0].mxu0
        %v7653 = vpop.f32.mrb[0].mxu0
        %v7654 = vadd.f32 0.0, %v7653
        %v7655 = vpop.f32.mrb[0].mxu0
        %7656 = vmatprep.mubr.bf16.mxu0 0
        %7657 = vmatmul.mubr.bf16.gmra.mrb[0].mxu0 %v7414
        %v7658 = vpop.f32.mrb[0].mxu0
        %v7659 = vadd.f32 0.0, %v7658
        %v7660 = vpop.f32.mrb[0].mxu0
        %v7661 = vpop.f32.mrb[0].mxu0
        %v7662 = vadd.f32 0.0, %v7661
        %v7663 = vpop.f32.mrb[0].mxu0
        %7664 = vmatprep.mubr.bf16.mxu0 0
        %7665 = vmatmul.mubr.bf16.gmra.mrb[0].mxu0 %v7423
        %v7666 = vpop.f32.mrb[0].mxu0
        %v7667 = vadd.f32 0.0, %v7666
        %v7668 = vpop.f32.mrb[0].mxu0
        %v7669 = vpop.f32.mrb[0].mxu0
        %v7670 = vadd.f32 0.0, %v7669
        %v7671 = vpop.f32.mrb[0].mxu0
        %7672 = vmatprep.mubr.bf16.mxu0 0
        %7673 = vmatmul.mubr.bf16.gmra.mrb[0].mxu0 %v7432
        %v7674 = vpop.f32.mrb[0].mxu0
        %v7675 = vadd.f32 0.0, %v7674
        %v7676 = vpop.f32.mrb[0].mxu0
        %v7677 = vpop.f32.mrb[0].mxu0
        %v7678 = vadd.f32 0.0, %v7677
        %v7679 = vpop.f32.mrb[0].mxu0
        %7680 = vmatprep.mubr.bf16.mxu0 0
        %7681 = vmatmul.mubr.bf16.gmra.mrb[0].mxu0 %v7441
        %v7682 = vpop.f32.mrb[0].mxu0
        %v7683 = vadd.f32 0.0, %v7682
        %v7684 = vpop.f32.mrb[0].mxu0
        %v7685 = vpop.f32.mrb[0].mxu0
        %v7686 = vadd.f32 0.0, %v7685
        %v7687 = vpop.f32.mrb[0].mxu0
        %7688 = vmatprep.mubr.bf16.mxu0 0
        %7689 = vmatmul.mubr.bf16.gmra.mrb[0].mxu0 %v7450
        %v7690 = vpop.f32.mrb[0].mxu0
        %v7691 = vadd.f32 0.0, %v7690
        %v7692 = vpop.f32.mrb[0].mxu0
        %v7693 = vpop.f32.mrb[0].mxu0
        %v7694 = vadd.f32 0.0, %v7693
        %v7695 = vpop.f32.mrb[0].mxu0
        %7696 = vmatprep.mubr.bf16.mxu0 0
        %7697 = vmatmul.mubr.bf16.gmra.mrb[0].mxu0 %v7459
        %v7698 = vpop.f32.mrb[0].mxu0
        %v7699 = vadd.f32 0.0, %v7698
        %v7700 = vpop.f32.mrb[0].mxu0
        %v7701 = vpop.f32.mrb[0].mxu0
        %v7702 = vadd.f32 0.0, %v7701
        %v7703 = vpop.f32.mrb[0].mxu0
        %7704 = vmatprep.mubr.bf16.mxu0 0
        %7705 = vmatmul.mubr.bf16.gmra.mrb[0].mxu0 %v7468
        %v7706 = vpop.f32.mrb[0].mxu0
        %v7707 = vadd.f32 0.0, %v7706
        %v7708 = vpop.f32.mrb[0].mxu0
        %v7709 = vpop.f32.mrb[0].mxu0
        %v7710 = vadd.f32 0.0, %v7709
        %v7711 = vpop.f32.mrb[0].mxu0
        %7712 = vmatprep.mubr.bf16.mxu0 0
        %7713 = vmatmul.mubr.bf16.gmra.mrb[0].mxu0 %v7477
        %v7714 = vpop.f32.mrb[0].mxu0
        %v7715 = vadd.f32 0.0, %v7714
        %v7716 = vpop.f32.mrb[0].mxu0
        %v7717 = vpop.f32.mrb[0].mxu0
        %v7718 = vadd.f32 0.0, %v7717
        %v7719 = vpop.f32.mrb[0].mxu0
        %7720 = vdwg.mxu0
        %v7721 = vadd.f32 %v7236, %v7579
        %v7722 = vadd.f32 %v7237, %v7582
        %v7723 = vadd.f32 %v7238, %v7587
        %v7724 = vadd.f32 %v7239, %v7590
        %v7725 = vadd.f32 %v7240, %v7595
        %v7726 = vadd.f32 %v7241, %v7598
        %v7727 = vadd.f32 %v7242, %v7603
        %v7728 = vadd.f32 %v7243, %v7606
        %v7729 = vadd.f32 %v7244, %v7611
        %v7730 = vadd.f32 %v7245, %v7614
        %v7731 = vadd.f32 %v7246, %v7619
        %v7732 = vadd.f32 %v7247, %v7622
        %v7733 = vadd.f32 %v7248, %v7627
        %v7734 = vadd.f32 %v7249, %v7630
        %v7735 = vadd.f32 %v7250, %v7635
        %v7736 = vadd.f32 %v7251, %v7638
        %v7737 = vadd.f32 %v7252, %v7643
        %v7738 = vadd.f32 %v7253, %v7646
        %v7739 = vadd.f32 %v7254, %v7651
        %v7740 = vadd.f32 %v7255, %v7654
        %v7741 = vadd.f32 %v7256, %v7659
        %v7742 = vadd.f32 %v7257, %v7662
        %v7743 = vadd.f32 %v7258, %v7667
        %v7744 = vadd.f32 %v7259, %v7670
        %v7745 = vadd.f32 %v7260, %v7675
        %v7746 = vadd.f32 %v7261, %v7678
        %v7747 = vadd.f32 %v7262, %v7683
        %v7748 = vadd.f32 %v7263, %v7686
        %v7749 = vadd.f32 %v7264, %v7691
        %v7750 = vadd.f32 %v7265, %v7694
        %v7751 = vadd.f32 %v7266, %v7699
        %v7752 = vadd.f32 %v7267, %v7702
        %v7753 = vadd.f32 %v7268, %v7707
        %v7754 = vadd.f32 %v7269, %v7710
        %v7755 = vadd.f32 %v7270, %v7715
        %v7756 = vadd.f32 %v7271, %v7718
        %v7757 = vld [vmem:[#allocation2 + $0x10] sm:$0xe0]
        %s7758 = scalar_lea.vmem [#allocation8], 448
        %v7759 = vld [vmem:[%s7758] sm:$0xf]
        %v7760 = vld [vmem:[%s7758 + $0x4] sm:$0xf]
        %v7761 = vld [vmem:[%s7758 + $0x8] sm:$0xf]
        %v7762 = vld [vmem:[%s7758 + $0xc] sm:$0xf]
        %v7763 = vld [vmem:[%s7758 + $0x10] sm:$0xf]
        %v7764 = vld [vmem:[%s7758 + $0x14] sm:$0xf]
        %v7765 = vld [vmem:[%s7758 + $0x18] sm:$0xf]
        %v7766 = vld [vmem:[%s7758 + $0x1c] sm:$0xf]
        %v7767 = vld [vmem:[%s7758 + $0x20] sm:$0xf]
        %v7768 = vld [vmem:[%s7758 + $0x24] sm:$0xf]
        %v7769 = vld [vmem:[%s7758 + $0x28] sm:$0xf]
        %v7770 = vld [vmem:[%s7758 + $0x2c] sm:$0xf]
        %v7771 = vld [vmem:[%s7758 + $0x30] sm:$0xf]
        %v7772 = vld [vmem:[%s7758 + $0x34] sm:$0xf]
        %v7773 = vld [vmem:[%s7758 + $0x38] sm:$0xf]
        %v7774 = vld [vmem:[%s7758 + $0x3c] sm:$0xf]
        %vm7794 = vcmask 1042432
        %v7795 = vrot.slane %v7757, 5
        %v7796 = vrot.slane %v7273, 5
        %v7797 = vsel %vm7794, %v7795, %v7796
        %v7798 = vrot.slane %v7274, 5
        %v7799 = vsel %vm7794, %v7796, %v7798
        %v7800 = vrot.slane %v7275, 5
        %v7801 = vsel %vm7794, %v7798, %v7800
        %v7802 = vrot.slane %v7276, 5
        %v7803 = vsel %vm7794, %v7800, %v7802
        %v7804 = vrot.slane %v7277, 5
        %v7805 = vsel %vm7794, %v7802, %v7804
        %v7806 = vrot.slane %v7278, 5
        %v7807 = vsel %vm7794, %v7804, %v7806
        %v7808 = vrot.slane %v7279, 5
        %v7809 = vsel %vm7794, %v7806, %v7808
        %v7810 = vrot.slane %v7280, 5
        %v7811 = vsel %vm7794, %v7808, %v7810
        %v7812 = vrot.slane %v7281, 5
        %v7813 = vsel %vm7794, %v7810, %v7812
        %v7814 = vrot.slane %v7282, 5
        %v7815 = vsel %vm7794, %v7812, %v7814
        %v7816 = vrot.slane %v7283, 5
        %v7817 = vsel %vm7794, %v7814, %v7816
        %v7818 = vrot.slane %v7284, 5
        %v7819 = vsel %vm7794, %v7816, %v7818
        %v7820 = vrot.slane %v7285, 5
        %v7821 = vsel %vm7794, %v7818, %v7820
        %v7822 = vrot.slane %v7286, 5
        %v7823 = vsel %vm7794, %v7820, %v7822
        %v7824 = vrot.slane %v7287, 5
        %v7825 = vsel %vm7794, %v7822, %v7824
        %v7826 = vrot.slane %v7288, 5
        %v7827 = vsel %vm7794, %v7824, %v7826
        %v7828 = vrot.slane %v7289, 5
        %v7829 = vsel %vm7794, %v7826, %v7828
        %v7830 = vrot.slane %v7290, 5
        %v7831 = vsel %vm7794, %v7828, %v7830
        %v7866 = vunpack.c.l.b16 %v7759
        %v7867 = vunpack.c.l.b16 %v7760
        %v7868 = vunpack.c.l.b16 %v7761
        %v7869 = vunpack.c.l.b16 %v7762
        %v7870 = vunpack.c.l.b16 %v7763
        %v7871 = vunpack.c.l.b16 %v7764
        %v7872 = vunpack.c.l.b16 %v7765
        %v7873 = vunpack.c.l.b16 %v7766
        %v7874 = vunpack.c.l.b16 %v7767
        %v7875 = vunpack.c.l.b16 %v7768
        %v7876 = vunpack.c.l.b16 %v7769
        %v7877 = vunpack.c.l.b16 %v7770
        %v7878 = vunpack.c.l.b16 %v7771
        %v7879 = vunpack.c.l.b16 %v7772
        %v7880 = vunpack.c.l.b16 %v7773
        %v7881 = vunpack.c.l.b16 %v7774
        %v7882 = vpack.c.b16 %v7867, %v7866
        %v7883 = vpack.c.b16 %v7869, %v7868
        %v7884 = vpack.c.b16 %v7871, %v7870
        %v7885 = vpack.c.b16 %v7873, %v7872
        %v7886 = vpack.c.b16 %v7875, %v7874
        %v7887 = vpack.c.b16 %v7877, %v7876
        %v7888 = vpack.c.b16 %v7879, %v7878
        %v7889 = vpack.c.b16 %v7881, %v7880
        %7898 = vmatprep.subr.bf16.mxu0 0
        %7899 = vmatpush1.bf16.msra.mxu0 %v7882
        %7900 = vmatprep.subr.bf16.mxu0 0
        %7901 = vmatpush1.bf16.msra.mxu0 %v7883
        %7902 = vmatprep.subr.bf16.mxu0 0
        %7903 = vmatpush1.bf16.msra.mxu0 %v7884
        %7904 = vmatprep.subr.bf16.mxu0 0
        %7905 = vmatpush1.bf16.msra.mxu0 %v7885
        %7906 = vmatprep.subr.bf16.mxu0 0
        %7907 = vmatpush1.bf16.msra.mxu0 %v7886
        %7908 = vmatprep.subr.bf16.mxu0 0
        %7909 = vmatpush1.bf16.msra.mxu0 %v7887
        %7910 = vmatprep.subr.bf16.mxu0 0
        %7911 = vmatpush1.bf16.msra.mxu0 %v7888
        %7912 = vmatprep.subr.bf16.mxu0 0
        %7913 = vmatpush1.bf16.msra.mxu0 %v7889
        %7914 = vmatprep.subr.bf16.mxu0 0
        %7915 = vmatpush1.bf16.msra.mxu0 0
        %7916 = vmatprep.subr.bf16.mxu0 0
        %7917 = vmatpush1.bf16.msra.mxu0 0
        %7918 = vmatprep.subr.bf16.mxu0 0
        %7919 = vmatpush1.bf16.msra.mxu0 0
        %7920 = vmatprep.subr.bf16.mxu0 0
        %7921 = vmatpush1.bf16.msra.mxu0 0
        %7922 = vmatprep.subr.bf16.mxu0 0
        %7923 = vmatpush1.bf16.msra.mxu0 0
        %7924 = vmatprep.subr.bf16.mxu0 0
        %7925 = vmatpush1.bf16.msra.mxu0 0
        %7926 = vmatprep.subr.bf16.mxu0 0
        %7927 = vmatpush1.bf16.msra.mxu0 0
        %7928 = vmatprep.subr.bf16.mxu0 0
        %7929 = vmatpush1.bf16.msra.mxu0 0
        %7930 = vmatprep.mubr.bf16.mxu0 0
        %7931 = vmatmul.mubr.bf16.gmra.mrb[0].mxu0 %v7797
        %v7932 = vpop.f32.mrb[0].mxu0
        %v7933 = vadd.f32 0.0, %v7932
        %v7934 = vpop.f32.mrb[0].mxu0
        %v7935 = vpop.f32.mrb[0].mxu0
        %v7936 = vadd.f32 0.0, %v7935
        %v7937 = vpop.f32.mrb[0].mxu0
        %7938 = vmatprep.mubr.bf16.mxu0 0
        %7939 = vmatmul.mubr.bf16.gmra.mrb[0].mxu0 %v7799
        %v7940 = vpop.f32.mrb[0].mxu0
        %v7941 = vadd.f32 0.0, %v7940
        %v7942 = vpop.f32.mrb[0].mxu0
        %v7943 = vpop.f32.mrb[0].mxu0
        %v7944 = vadd.f32 0.0, %v7943
        %v7945 = vpop.f32.mrb[0].mxu0
        %7946 = vmatprep.mubr.bf16.mxu0 0
        %7947 = vmatmul.mubr.bf16.gmra.mrb[0].mxu0 %v7801
        %v7948 = vpop.f32.mrb[0].mxu0
        %v7949 = vadd.f32 0.0, %v7948
        %v7950 = vpop.f32.mrb[0].mxu0
        %v7951 = vpop.f32.mrb[0].mxu0
        %v7952 = vadd.f32 0.0, %v7951
        %v7953 = vpop.f32.mrb[0].mxu0
        %7954 = vmatprep.mubr.bf16.mxu0 0
        %7955 = vmatmul.mubr.bf16.gmra.mrb[0].mxu0 %v7803
        %v7956 = vpop.f32.mrb[0].mxu0
        %v7957 = vadd.f32 0.0, %v7956
        %v7958 = vpop.f32.mrb[0].mxu0
        %v7959 = vpop.f32.mrb[0].mxu0
        %v7960 = vadd.f32 0.0, %v7959
        %v7961 = vpop.f32.mrb[0].mxu0
        %7962 = vmatprep.mubr.bf16.mxu0 0
        %7963 = vmatmul.mubr.bf16.gmra.mrb[0].mxu0 %v7805
        %v7964 = vpop.f32.mrb[0].mxu0
        %v7965 = vadd.f32 0.0, %v7964
        %v7966 = vpop.f32.mrb[0].mxu0
        %v7967 = vpop.f32.mrb[0].mxu0
        %v7968 = vadd.f32 0.0, %v7967
        %v7969 = vpop.f32.mrb[0].mxu0
        %7970 = vmatprep.mubr.bf16.mxu0 0
        %7971 = vmatmul.mubr.bf16.gmra.mrb[0].mxu0 %v7807
        %v7972 = vpop.f32.mrb[0].mxu0
        %v7973 = vadd.f32 0.0, %v7972
        %v7974 = vpop.f32.mrb[0].mxu0
        %v7975 = vpop.f32.mrb[0].mxu0
        %v7976 = vadd.f32 0.0, %v7975
        %v7977 = vpop.f32.mrb[0].mxu0
        %7978 = vmatprep.mubr.bf16.mxu0 0
        %7979 = vmatmul.mubr.bf16.gmra.mrb[0].mxu0 %v7809
        %v7980 = vpop.f32.mrb[0].mxu0
        %v7981 = vadd.f32 0.0, %v7980
        %v7982 = vpop.f32.mrb[0].mxu0
        %v7983 = vpop.f32.mrb[0].mxu0
        %v7984 = vadd.f32 0.0, %v7983
        %v7985 = vpop.f32.mrb[0].mxu0
        %7986 = vmatprep.mubr.bf16.mxu0 0
        %7987 = vmatmul.mubr.bf16.gmra.mrb[0].mxu0 %v7811
        %v7988 = vpop.f32.mrb[0].mxu0
        %v7989 = vadd.f32 0.0, %v7988
        %v7990 = vpop.f32.mrb[0].mxu0
        %v7991 = vpop.f32.mrb[0].mxu0
        %v7992 = vadd.f32 0.0, %v7991
        %v7993 = vpop.f32.mrb[0].mxu0
        %7994 = vmatprep.mubr.bf16.mxu0 0
        %7995 = vmatmul.mubr.bf16.gmra.mrb[0].mxu0 %v7813
        %v7996 = vpop.f32.mrb[0].mxu0
        %v7997 = vadd.f32 0.0, %v7996
        %v7998 = vpop.f32.mrb[0].mxu0
        %v7999 = vpop.f32.mrb[0].mxu0
        %v8000 = vadd.f32 0.0, %v7999
        %v8001 = vpop.f32.mrb[0].mxu0
        %8002 = vmatprep.mubr.bf16.mxu0 0
        %8003 = vmatmul.mubr.bf16.gmra.mrb[0].mxu0 %v7815
        %v8004 = vpop.f32.mrb[0].mxu0
        %v8005 = vadd.f32 0.0, %v8004
        %v8006 = vpop.f32.mrb[0].mxu0
        %v8007 = vpop.f32.mrb[0].mxu0
        %v8008 = vadd.f32 0.0, %v8007
        %v8009 = vpop.f32.mrb[0].mxu0
        %8010 = vmatprep.mubr.bf16.mxu0 0
        %8011 = vmatmul.mubr.bf16.gmra.mrb[0].mxu0 %v7817
        %v8012 = vpop.f32.mrb[0].mxu0
        %v8013 = vadd.f32 0.0, %v8012
        %v8014 = vpop.f32.mrb[0].mxu0
        %v8015 = vpop.f32.mrb[0].mxu0
        %v8016 = vadd.f32 0.0, %v8015
        %v8017 = vpop.f32.mrb[0].mxu0
        %8018 = vmatprep.mubr.bf16.mxu0 0
        %8019 = vmatmul.mubr.bf16.gmra.mrb[0].mxu0 %v7819
        %v8020 = vpop.f32.mrb[0].mxu0
        %v8021 = vadd.f32 0.0, %v8020
        %v8022 = vpop.f32.mrb[0].mxu0
        %v8023 = vpop.f32.mrb[0].mxu0
        %v8024 = vadd.f32 0.0, %v8023
        %v8025 = vpop.f32.mrb[0].mxu0
        %8026 = vmatprep.mubr.bf16.mxu0 0
        %8027 = vmatmul.mubr.bf16.gmra.mrb[0].mxu0 %v7821
        %v8028 = vpop.f32.mrb[0].mxu0
        %v8029 = vadd.f32 0.0, %v8028
        %v8030 = vpop.f32.mrb[0].mxu0
        %v8031 = vpop.f32.mrb[0].mxu0
        %v8032 = vadd.f32 0.0, %v8031
        %v8033 = vpop.f32.mrb[0].mxu0
        %8034 = vmatprep.mubr.bf16.mxu0 0
        %8035 = vmatmul.mubr.bf16.gmra.mrb[0].mxu0 %v7823
        %v8036 = vpop.f32.mrb[0].mxu0
        %v8037 = vadd.f32 0.0, %v8036
        %v8038 = vpop.f32.mrb[0].mxu0
        %v8039 = vpop.f32.mrb[0].mxu0
        %v8040 = vadd.f32 0.0, %v8039
        %v8041 = vpop.f32.mrb[0].mxu0
        %8042 = vmatprep.mubr.bf16.mxu0 0
        %8043 = vmatmul.mubr.bf16.gmra.mrb[0].mxu0 %v7825
        %v8044 = vpop.f32.mrb[0].mxu0
        %v8045 = vadd.f32 0.0, %v8044
        %v8046 = vpop.f32.mrb[0].mxu0
        %v8047 = vpop.f32.mrb[0].mxu0
        %v8048 = vadd.f32 0.0, %v8047
        %v8049 = vpop.f32.mrb[0].mxu0
        %8050 = vmatprep.mubr.bf16.mxu0 0
        %8051 = vmatmul.mubr.bf16.gmra.mrb[0].mxu0 %v7827
        %v8052 = vpop.f32.mrb[0].mxu0
        %v8053 = vadd.f32 0.0, %v8052
        %v8054 = vpop.f32.mrb[0].mxu0
        %v8055 = vpop.f32.mrb[0].mxu0
        %v8056 = vadd.f32 0.0, %v8055
        %v8057 = vpop.f32.mrb[0].mxu0
        %8058 = vmatprep.mubr.bf16.mxu0 0
        %8059 = vmatmul.mubr.bf16.gmra.mrb[0].mxu0 %v7829
        %v8060 = vpop.f32.mrb[0].mxu0
        %v8061 = vadd.f32 0.0, %v8060
        %v8062 = vpop.f32.mrb[0].mxu0
        %v8063 = vpop.f32.mrb[0].mxu0
        %v8064 = vadd.f32 0.0, %v8063
        %v8065 = vpop.f32.mrb[0].mxu0
        %8066 = vmatprep.mubr.bf16.mxu0 0
        %8067 = vmatmul.mubr.bf16.gmra.mrb[0].mxu0 %v7831
        %v8068 = vpop.f32.mrb[0].mxu0
        %v8069 = vadd.f32 0.0, %v8068
        %v8070 = vpop.f32.mrb[0].mxu0
        %v8071 = vpop.f32.mrb[0].mxu0
        %v8072 = vadd.f32 0.0, %v8071
        %v8073 = vpop.f32.mrb[0].mxu0
        %8074 = vdwg.mxu0
        %v8075 = vadd.f32 %v7721, %v7933
        %v8076 = vadd.f32 %v7722, %v7936
        %v8077 = vadd.f32 %v7723, %v7941
        %v8078 = vadd.f32 %v7724, %v7944
        %v8079 = vadd.f32 %v7725, %v7949
        %v8080 = vadd.f32 %v7726, %v7952
        %v8081 = vadd.f32 %v7727, %v7957
        %v8082 = vadd.f32 %v7728, %v7960
        %v8083 = vadd.f32 %v7729, %v7965
        %v8084 = vadd.f32 %v7730, %v7968
        %v8085 = vadd.f32 %v7731, %v7973
        %v8086 = vadd.f32 %v7732, %v7976
        %v8087 = vadd.f32 %v7733, %v7981
        %v8088 = vadd.f32 %v7734, %v7984
        %v8089 = vadd.f32 %v7735, %v7989
        %v8090 = vadd.f32 %v7736, %v7992
        %v8091 = vadd.f32 %v7737, %v7997
        %v8092 = vadd.f32 %v7738, %v8000
        %v8093 = vadd.f32 %v7739, %v8005
        %v8094 = vadd.f32 %v7740, %v8008
        %v8095 = vadd.f32 %v7741, %v8013
        %v8096 = vadd.f32 %v7742, %v8016
        %v8097 = vadd.f32 %v7743, %v8021
        %v8098 = vadd.f32 %v7744, %v8024
        %v8099 = vadd.f32 %v7745, %v8029
        %v8100 = vadd.f32 %v7746, %v8032
        %v8101 = vadd.f32 %v7747, %v8037
        %v8102 = vadd.f32 %v7748, %v8040
        %v8103 = vadd.f32 %v7749, %v8045
        %v8104 = vadd.f32 %v7750, %v8048
        %v8105 = vadd.f32 %v7751, %v8053
        %v8106 = vadd.f32 %v7752, %v8056
        %v8107 = vadd.f32 %v7753, %v8061
        %v8108 = vadd.f32 %v7754, %v8064
        %v8109 = vadd.f32 %v7755, %v8069
        %v8110 = vadd.f32 %v7756, %v8072
        %v8111 = vld [vmem:[#allocation2 + $0xa0] sm:$0x3f]
        %s8112 = scalar_lea.vmem [#allocation8], 512
        %v8113 = vld [vmem:[%s8112] sm:$0xf]
        %v8114 = vld [vmem:[%s8112 + $0x4] sm:$0xf]
        %v8115 = vld [vmem:[%s8112 + $0x8] sm:$0xf]
        %v8116 = vld [vmem:[%s8112 + $0xc] sm:$0xf]
        %v8117 = vld [vmem:[%s8112 + $0x10] sm:$0xf]
        %v8118 = vld [vmem:[%s8112 + $0x14] sm:$0xf]
        %v8119 = vld [vmem:[%s8112 + $0x18] sm:$0xf]
        %v8120 = vld [vmem:[%s8112 + $0x1c] sm:$0xf]
        %v8121 = vld [vmem:[%s8112 + $0x20] sm:$0xf]
        %v8122 = vld [vmem:[%s8112 + $0x24] sm:$0xf]
        %v8123 = vld [vmem:[%s8112 + $0x28] sm:$0xf]
        %v8124 = vld [vmem:[%s8112 + $0x2c] sm:$0xf]
        %v8125 = vld [vmem:[%s8112 + $0x30] sm:$0xf]
        %v8126 = vld [vmem:[%s8112 + $0x34] sm:$0xf]
        %v8127 = vld [vmem:[%s8112 + $0x38] sm:$0xf]
        %v8128 = vld [vmem:[%s8112 + $0x3c] sm:$0xf]
        %vm8129 = vsmask.f32 2304
        %v8131 = vshrl.u32 %v7757, 16
        %v8133 = vrot.slane %v8131, 5
        %v8134 = vshll.u32 %v7757, 16
        %v8136 = vrot.slane %v8134, 6
        %v8137 = vor.u32 %v8133, %v8136
        %v8138 = vrot.slane %v7317, 5
        %v8139 = vrot.slane %v7320, 6
        %v8140 = vor.u32 %v8138, %v8139
        %v8141 = vsel %vm8129, %v8137, %v8140
        %v8142 = vrot.slane %v7326, 5
        %v8143 = vrot.slane %v7329, 6
        %v8144 = vor.u32 %v8142, %v8143
        %v8145 = vsel %vm8129, %v8140, %v8144
        %v8146 = vrot.slane %v7335, 5
        %v8147 = vrot.slane %v7338, 6
        %v8148 = vor.u32 %v8146, %v8147
        %v8149 = vsel %vm8129, %v8144, %v8148
        %v8150 = vrot.slane %v7344, 5
        %v8151 = vrot.slane %v7347, 6
        %v8152 = vor.u32 %v8150, %v8151
        %v8153 = vsel %vm8129, %v8148, %v8152
        %v8154 = vrot.slane %v7353, 5
        %v8155 = vrot.slane %v7356, 6
        %v8156 = vor.u32 %v8154, %v8155
        %v8157 = vsel %vm8129, %v8152, %v8156
        %v8158 = vrot.slane %v7362, 5
        %v8159 = vrot.slane %v7365, 6
        %v8160 = vor.u32 %v8158, %v8159
        %v8161 = vsel %vm8129, %v8156, %v8160
        %v8162 = vrot.slane %v7371, 5
        %v8163 = vrot.slane %v7374, 6
        %v8164 = vor.u32 %v8162, %v8163
        %v8165 = vsel %vm8129, %v8160, %v8164
        %v8166 = vrot.slane %v7380, 5
        %v8167 = vrot.slane %v7383, 6
        %v8168 = vor.u32 %v8166, %v8167
        %v8169 = vsel %vm8129, %v8164, %v8168
        %v8170 = vrot.slane %v7389, 5
        %v8171 = vrot.slane %v7392, 6
        %v8172 = vor.u32 %v8170, %v8171
        %v8173 = vsel %vm8129, %v8168, %v8172
        %v8174 = vrot.slane %v7398, 5
        %v8175 = vrot.slane %v7401, 6
        %v8176 = vor.u32 %v8174, %v8175
        %v8177 = vsel %vm8129, %v8172, %v8176
        %v8178 = vrot.slane %v7407, 5
        %v8179 = vrot.slane %v7410, 6
        %v8180 = vor.u32 %v8178, %v8179
        %v8181 = vsel %vm8129, %v8176, %v8180
        %v8182 = vrot.slane %v7416, 5
        %v8183 = vrot.slane %v7419, 6
        %v8184 = vor.u32 %v8182, %v8183
        %v8185 = vsel %vm8129, %v8180, %v8184
        %v8186 = vrot.slane %v7425, 5
        %v8187 = vrot.slane %v7428, 6
        %v8188 = vor.u32 %v8186, %v8187
        %v8189 = vsel %vm8129, %v8184, %v8188
        %v8190 = vrot.slane %v7434, 5
        %v8191 = vrot.slane %v7437, 6
        %v8192 = vor.u32 %v8190, %v8191
        %v8193 = vsel %vm8129, %v8188, %v8192
        %v8194 = vrot.slane %v7443, 5
        %v8195 = vrot.slane %v7446, 6
        %v8196 = vor.u32 %v8194, %v8195
        %v8197 = vsel %vm8129, %v8192, %v8196
        %v8198 = vrot.slane %v7452, 5
        %v8199 = vrot.slane %v7455, 6
        %v8200 = vor.u32 %v8198, %v8199
        %v8201 = vsel %vm8129, %v8196, %v8200
        %v8202 = vrot.slane %v7461, 5
        %v8203 = vrot.slane %v7464, 6
        %v8204 = vor.u32 %v8202, %v8203
        %v8205 = vsel %vm8129, %v8200, %v8204
        %v8207 = vshrl.u32 %v8111, 16
        %v8209 = vrot.slane %v8207, 5
        %v8210 = vshll.u32 %v8111, 16
        %v8212 = vrot.slane %v8210, 6
        %v8213 = vor.u32 %v8209, %v8212
        %v8214 = vsel %vm8129, %v8204, %v8213
        %v8249 = vunpack.c.l.b16 %v8113
        %v8250 = vunpack.c.l.b16 %v8114
        %v8251 = vunpack.c.l.b16 %v8115
        %v8252 = vunpack.c.l.b16 %v8116
        %v8253 = vunpack.c.l.b16 %v8117
        %v8254 = vunpack.c.l.b16 %v8118
        %v8255 = vunpack.c.l.b16 %v8119
        %v8256 = vunpack.c.l.b16 %v8120
        %v8257 = vunpack.c.l.b16 %v8121
        %v8258 = vunpack.c.l.b16 %v8122
        %v8259 = vunpack.c.l.b16 %v8123
        %v8260 = vunpack.c.l.b16 %v8124
        %v8261 = vunpack.c.l.b16 %v8125
        %v8262 = vunpack.c.l.b16 %v8126
        %v8263 = vunpack.c.l.b16 %v8127
        %v8264 = vunpack.c.l.b16 %v8128
        %v8265 = vpack.c.b16 %v8250, %v8249
        %v8266 = vpack.c.b16 %v8252, %v8251
        %v8267 = vpack.c.b16 %v8254, %v8253
        %v8268 = vpack.c.b16 %v8256, %v8255
        %v8269 = vpack.c.b16 %v8258, %v8257
        %v8270 = vpack.c.b16 %v8260, %v8259
        %v8271 = vpack.c.b16 %v8262, %v8261
        %v8272 = vpack.c.b16 %v8264, %v8263
        %8281 = vmatprep.subr.bf16.mxu0 0
        %8282 = vmatpush1.bf16.msra.mxu0 %v8265
        %8283 = vmatprep.subr.bf16.mxu0 0
        %8284 = vmatpush1.bf16.msra.mxu0 %v8266
        %8285 = vmatprep.subr.bf16.mxu0 0
        %8286 = vmatpush1.bf16.msra.mxu0 %v8267
        %8287 = vmatprep.subr.bf16.mxu0 0
        %8288 = vmatpush1.bf16.msra.mxu0 %v8268
        %8289 = vmatprep.subr.bf16.mxu0 0
        %8290 = vmatpush1.bf16.msra.mxu0 %v8269
        %8291 = vmatprep.subr.bf16.mxu0 0
        %8292 = vmatpush1.bf16.msra.mxu0 %v8270
        %8293 = vmatprep.subr.bf16.mxu0 0
        %8294 = vmatpush1.bf16.msra.mxu0 %v8271
        %8295 = vmatprep.subr.bf16.mxu0 0
        %8296 = vmatpush1.bf16.msra.mxu0 %v8272
        %8297 = vmatprep.subr.bf16.mxu0 0
        %8298 = vmatpush1.bf16.msra.mxu0 0
        %8299 = vmatprep.subr.bf16.mxu0 0
        %8300 = vmatpush1.bf16.msra.mxu0 0
        %8301 = vmatprep.subr.bf16.mxu0 0
        %8302 = vmatpush1.bf16.msra.mxu0 0
        %8303 = vmatprep.subr.bf16.mxu0 0
        %8304 = vmatpush1.bf16.msra.mxu0 0
        %8305 = vmatprep.subr.bf16.mxu0 0
        %8306 = vmatpush1.bf16.msra.mxu0 0
        %8307 = vmatprep.subr.bf16.mxu0 0
        %8308 = vmatpush1.bf16.msra.mxu0 0
        %8309 = vmatprep.subr.bf16.mxu0 0
        %8310 = vmatpush1.bf16.msra.mxu0 0
        %8311 = vmatprep.subr.bf16.mxu0 0
        %8312 = vmatpush1.bf16.msra.mxu0 0
        %8313 = vmatprep.mubr.bf16.mxu0 0
        %8314 = vmatmul.mubr.bf16.gmra.mrb[0].mxu0 %v8141
        %v8315 = vpop.f32.mrb[0].mxu0
        %v8316 = vadd.f32 0.0, %v8315
        %v8317 = vpop.f32.mrb[0].mxu0
        %v8318 = vpop.f32.mrb[0].mxu0
        %v8319 = vadd.f32 0.0, %v8318
        %v8320 = vpop.f32.mrb[0].mxu0
        %8321 = vmatprep.mubr.bf16.mxu0 0
        %8322 = vmatmul.mubr.bf16.gmra.mrb[0].mxu0 %v8145
        %v8323 = vpop.f32.mrb[0].mxu0
        %v8324 = vadd.f32 0.0, %v8323
        %v8325 = vpop.f32.mrb[0].mxu0
        %v8326 = vpop.f32.mrb[0].mxu0
        %v8327 = vadd.f32 0.0, %v8326
        %v8328 = vpop.f32.mrb[0].mxu0
        %8329 = vmatprep.mubr.bf16.mxu0 0
        %8330 = vmatmul.mubr.bf16.gmra.mrb[0].mxu0 %v8149
        %v8331 = vpop.f32.mrb[0].mxu0
        %v8332 = vadd.f32 0.0, %v8331
        %v8333 = vpop.f32.mrb[0].mxu0
        %v8334 = vpop.f32.mrb[0].mxu0
        %v8335 = vadd.f32 0.0, %v8334
        %v8336 = vpop.f32.mrb[0].mxu0
        %8337 = vmatprep.mubr.bf16.mxu0 0
        %8338 = vmatmul.mubr.bf16.gmra.mrb[0].mxu0 %v8153
        %v8339 = vpop.f32.mrb[0].mxu0
        %v8340 = vadd.f32 0.0, %v8339
        %v8341 = vpop.f32.mrb[0].mxu0
        %v8342 = vpop.f32.mrb[0].mxu0
        %v8343 = vadd.f32 0.0, %v8342
        %v8344 = vpop.f32.mrb[0].mxu0
        %8345 = vmatprep.mubr.bf16.mxu0 0
        %8346 = vmatmul.mubr.bf16.gmra.mrb[0].mxu0 %v8157
        %v8347 = vpop.f32.mrb[0].mxu0
        %v8348 = vadd.f32 0.0, %v8347
        %v8349 = vpop.f32.mrb[0].mxu0
        %v8350 = vpop.f32.mrb[0].mxu0
        %v8351 = vadd.f32 0.0, %v8350
        %v8352 = vpop.f32.mrb[0].mxu0
        %8353 = vmatprep.mubr.bf16.mxu0 0
        %8354 = vmatmul.mubr.bf16.gmra.mrb[0].mxu0 %v8161
        %v8355 = vpop.f32.mrb[0].mxu0
        %v8356 = vadd.f32 0.0, %v8355
        %v8357 = vpop.f32.mrb[0].mxu0
        %v8358 = vpop.f32.mrb[0].mxu0
        %v8359 = vadd.f32 0.0, %v8358
        %v8360 = vpop.f32.mrb[0].mxu0
        %8361 = vmatprep.mubr.bf16.mxu0 0
        %8362 = vmatmul.mubr.bf16.gmra.mrb[0].mxu0 %v8165
        %v8363 = vpop.f32.mrb[0].mxu0
        %v8364 = vadd.f32 0.0, %v8363
        %v8365 = vpop.f32.mrb[0].mxu0
        %v8366 = vpop.f32.mrb[0].mxu0
        %v8367 = vadd.f32 0.0, %v8366
        %v8368 = vpop.f32.mrb[0].mxu0
        %8369 = vmatprep.mubr.bf16.mxu0 0
        %8370 = vmatmul.mubr.bf16.gmra.mrb[0].mxu0 %v8169
        %v8371 = vpop.f32.mrb[0].mxu0
        %v8372 = vadd.f32 0.0, %v8371
        %v8373 = vpop.f32.mrb[0].mxu0
        %v8374 = vpop.f32.mrb[0].mxu0
        %v8375 = vadd.f32 0.0, %v8374
        %v8376 = vpop.f32.mrb[0].mxu0
        %8377 = vmatprep.mubr.bf16.mxu0 0
        %8378 = vmatmul.mubr.bf16.gmra.mrb[0].mxu0 %v8173
        %v8379 = vpop.f32.mrb[0].mxu0
        %v8380 = vadd.f32 0.0, %v8379
        %v8381 = vpop.f32.mrb[0].mxu0
        %v8382 = vpop.f32.mrb[0].mxu0
        %v8383 = vadd.f32 0.0, %v8382
        %v8384 = vpop.f32.mrb[0].mxu0
        %8385 = vmatprep.mubr.bf16.mxu0 0
        %8386 = vmatmul.mubr.bf16.gmra.mrb[0].mxu0 %v8177
        %v8387 = vpop.f32.mrb[0].mxu0
        %v8388 = vadd.f32 0.0, %v8387
        %v8389 = vpop.f32.mrb[0].mxu0
        %v8390 = vpop.f32.mrb[0].mxu0
        %v8391 = vadd.f32 0.0, %v8390
        %v8392 = vpop.f32.mrb[0].mxu0
        %8393 = vmatprep.mubr.bf16.mxu0 0
        %8394 = vmatmul.mubr.bf16.gmra.mrb[0].mxu0 %v8181
        %v8395 = vpop.f32.mrb[0].mxu0
        %v8396 = vadd.f32 0.0, %v8395
        %v8397 = vpop.f32.mrb[0].mxu0
        %v8398 = vpop.f32.mrb[0].mxu0
        %v8399 = vadd.f32 0.0, %v8398
        %v8400 = vpop.f32.mrb[0].mxu0
        %8401 = vmatprep.mubr.bf16.mxu0 0
        %8402 = vmatmul.mubr.bf16.gmra.mrb[0].mxu0 %v8185
        %v8403 = vpop.f32.mrb[0].mxu0
        %v8404 = vadd.f32 0.0, %v8403
        %v8405 = vpop.f32.mrb[0].mxu0
        %v8406 = vpop.f32.mrb[0].mxu0
        %v8407 = vadd.f32 0.0, %v8406
        %v8408 = vpop.f32.mrb[0].mxu0
        %8409 = vmatprep.mubr.bf16.mxu0 0
        %8410 = vmatmul.mubr.bf16.gmra.mrb[0].mxu0 %v8189
        %v8411 = vpop.f32.mrb[0].mxu0
        %v8412 = vadd.f32 0.0, %v8411
        %v8413 = vpop.f32.mrb[0].mxu0
        %v8414 = vpop.f32.mrb[0].mxu0
        %v8415 = vadd.f32 0.0, %v8414
        %v8416 = vpop.f32.mrb[0].mxu0
        %8417 = vmatprep.mubr.bf16.mxu0 0
        %8418 = vmatmul.mubr.bf16.gmra.mrb[0].mxu0 %v8193
        %v8419 = vpop.f32.mrb[0].mxu0
        %v8420 = vadd.f32 0.0, %v8419
        %v8421 = vpop.f32.mrb[0].mxu0
        %v8422 = vpop.f32.mrb[0].mxu0
        %v8423 = vadd.f32 0.0, %v8422
        %v8424 = vpop.f32.mrb[0].mxu0
        %8425 = vmatprep.mubr.bf16.mxu0 0
        %8426 = vmatmul.mubr.bf16.gmra.mrb[0].mxu0 %v8197
        %v8427 = vpop.f32.mrb[0].mxu0
        %v8428 = vadd.f32 0.0, %v8427
        %v8429 = vpop.f32.mrb[0].mxu0
        %v8430 = vpop.f32.mrb[0].mxu0
        %v8431 = vadd.f32 0.0, %v8430
        %v8432 = vpop.f32.mrb[0].mxu0
        %8433 = vmatprep.mubr.bf16.mxu0 0
        %8434 = vmatmul.mubr.bf16.gmra.mrb[0].mxu0 %v8201
        %v8435 = vpop.f32.mrb[0].mxu0
        %v8436 = vadd.f32 0.0, %v8435
        %v8437 = vpop.f32.mrb[0].mxu0
        %v8438 = vpop.f32.mrb[0].mxu0
        %v8439 = vadd.f32 0.0, %v8438
        %v8440 = vpop.f32.mrb[0].mxu0
        %8441 = vmatprep.mubr.bf16.mxu0 0
        %8442 = vmatmul.mubr.bf16.gmra.mrb[0].mxu0 %v8205
        %v8443 = vpop.f32.mrb[0].mxu0
        %v8444 = vadd.f32 0.0, %v8443
        %v8445 = vpop.f32.mrb[0].mxu0
        %v8446 = vpop.f32.mrb[0].mxu0
        %v8447 = vadd.f32 0.0, %v8446
        %v8448 = vpop.f32.mrb[0].mxu0
        %8449 = vmatprep.mubr.bf16.mxu0 0
        %8450 = vmatmul.mubr.bf16.gmra.mrb[0].mxu0 %v8214
        %v8451 = vpop.f32.mrb[0].mxu0
        %v8452 = vadd.f32 0.0, %v8451
        %v8453 = vpop.f32.mrb[0].mxu0
        %v8454 = vpop.f32.mrb[0].mxu0
        %v8455 = vadd.f32 0.0, %v8454
        %v8456 = vpop.f32.mrb[0].mxu0
        %8457 = vdwg.mxu0
        %v8458 = vadd.f32 %v8075, %v8316
        %v8459 = vadd.f32 %v8076, %v8319
        %v8460 = vadd.f32 %v8077, %v8324
        %v8461 = vadd.f32 %v8078, %v8327
        %v8462 = vadd.f32 %v8079, %v8332
        %v8463 = vadd.f32 %v8080, %v8335
        %v8464 = vadd.f32 %v8081, %v8340
        %v8465 = vadd.f32 %v8082, %v8343
        %v8466 = vadd.f32 %v8083, %v8348
        %v8467 = vadd.f32 %v8084, %v8351
        %v8468 = vadd.f32 %v8085, %v8356
        %v8469 = vadd.f32 %v8086, %v8359
        %v8470 = vadd.f32 %v8087, %v8364
        %v8471 = vadd.f32 %v8088, %v8367
        %v8472 = vadd.f32 %v8089, %v8372
        %v8473 = vadd.f32 %v8090, %v8375
        %v8474 = vadd.f32 %v8091, %v8380
        %v8475 = vadd.f32 %v8092, %v8383
        %v8476 = vadd.f32 %v8093, %v8388
        %v8477 = vadd.f32 %v8094, %v8391
        %v8478 = vadd.f32 %v8095, %v8396
        %v8479 = vadd.f32 %v8096, %v8399
        %v8480 = vadd.f32 %v8097, %v8404
        %v8481 = vadd.f32 %v8098, %v8407
        %v8482 = vadd.f32 %v8099, %v8412
        %v8483 = vadd.f32 %v8100, %v8415
        %v8484 = vadd.f32 %v8101, %v8420
        %v8485 = vadd.f32 %v8102, %v8423
        %v8486 = vadd.f32 %v8103, %v8428
        %v8487 = vadd.f32 %v8104, %v8431
        %v8488 = vadd.f32 %v8105, %v8436
        %v8489 = vadd.f32 %v8106, %v8439
        %v8490 = vadd.f32 %v8107, %v8444
        %v8491 = vadd.f32 %v8108, %v8447
        %v8492 = vadd.f32 %v8109, %v8452
        %v8493 = vadd.f32 %v8110, %v8455
        %v8494 = vld [vmem:[%s237 + $0x8] sm:$0xe]
        %v8495 = vld [vmem:[%s237 + $0xc] sm:$0xf]
        %v8496 = vld [vmem:[%s237 + $0x10] sm:$0xf]
        %v8497 = vld [vmem:[%s237 + $0x14] sm:$0xf]
        %v8498 = vld [vmem:[%s237 + $0x18] sm:$0xf]
        %v8499 = vld [vmem:[%s237 + $0x1c] sm:$0xf]
        %v8500 = vld [vmem:[%s237 + $0x20] sm:$0xf]
        %v8501 = vld [vmem:[%s237 + $0x24] sm:$0xf]
        %v8502 = vld [vmem:[%s237 + $0x28] sm:$0xf]
        %v8503 = vld [vmem:[%s237 + $0x2c] sm:$0xf]
        %v8504 = vld [vmem:[%s237 + $0x30] sm:$0xf]
        %v8505 = vld [vmem:[%s237 + $0x34] sm:$0xf]
        %v8506 = vld [vmem:[%s237 + $0x38] sm:$0xf]
        %v8507 = vld [vmem:[%s237 + $0x3c] sm:$0xf]
        %v8508 = vld [vmem:[%s237 + $0x40] sm:$0xf]
        %v8509 = vld [vmem:[%s237 + $0x44] sm:$0xf]
        %v8510 = vld [vmem:[%s237 + $0x48] sm:$0xf]
        %v8511 = vld [vmem:[%s237 + $0x4c] sm:$0xf]
        %v8512 = vld [vmem:[%s237 + $0x50] sm:$0xf]
        %v8513 = vld [vmem:[%s237 + $0x54] sm:$0xf]
        %v8514 = vld [vmem:[%s237 + $0x58] sm:$0xf]
        %v8515 = vld [vmem:[%s237 + $0x5c] sm:$0xf]
        %v8516 = vld [vmem:[%s237 + $0x60] sm:$0xf]
        %v8517 = vld [vmem:[%s237 + $0x64] sm:$0xf]
        %v8518 = vld [vmem:[%s237 + $0x68] sm:$0xf]
        %v8519 = vld [vmem:[%s237 + $0x6c] sm:$0xf]
        %v8520 = vld [vmem:[%s237 + $0x70] sm:$0xf]
        %v8521 = vld [vmem:[%s237 + $0x74] sm:$0xf]
        %v8522 = vld [vmem:[%s237 + $0x78] sm:$0xf]
        %v8523 = vld [vmem:[%s237 + $0x7c] sm:$0xf]
        %v8524 = vld [vmem:[%s237 + $0x80] sm:$0xf]
        %v8525 = vld [vmem:[%s237 + $0x84] sm:$0xf]
        %v8526 = vld [vmem:[%s237 + $0x88] sm:$0xf]
        %v8527 = vld [vmem:[%s237 + $0x8c] sm:$0xf]
        %v8528 = vld [vmem:[%s237 + $0x90] sm:$0xf]
        %v8529 = vld [vmem:[%s237 + $0x94] sm:$0xf]
        %v8530 = vld [vmem:[%s237 + $0x98] sm:$0x3]
        %v8531 = vunpack.c.l.bf16 %v8494
        %v8532 = vunpack.c.l.bf16 %v8495
        %v8533 = vunpack.c.l.bf16 %v8496
        %v8534 = vunpack.c.l.bf16 %v8497
        %v8535 = vunpack.c.l.bf16 %v8498
        %v8536 = vunpack.c.l.bf16 %v8499
        %v8537 = vunpack.c.l.bf16 %v8500
        %v8538 = vunpack.c.l.bf16 %v8501
        %v8539 = vunpack.c.l.bf16 %v8502
        %v8540 = vunpack.c.l.bf16 %v8503
        %v8541 = vunpack.c.l.bf16 %v8504
        %v8542 = vunpack.c.l.bf16 %v8505
        %v8543 = vunpack.c.l.bf16 %v8506
        %v8544 = vunpack.c.l.bf16 %v8507
        %v8545 = vunpack.c.l.bf16 %v8508
        %v8546 = vunpack.c.l.bf16 %v8509
        %v8547 = vunpack.c.l.bf16 %v8510
        %v8548 = vunpack.c.l.bf16 %v8511
        %v8549 = vunpack.c.l.bf16 %v8512
        %v8550 = vunpack.c.l.bf16 %v8513
        %v8551 = vunpack.c.l.bf16 %v8514
        %v8552 = vunpack.c.l.bf16 %v8515
        %v8553 = vunpack.c.l.bf16 %v8516
        %v8554 = vunpack.c.l.bf16 %v8517
        %v8555 = vunpack.c.l.bf16 %v8518
        %v8556 = vunpack.c.l.bf16 %v8519
        %v8557 = vunpack.c.l.bf16 %v8520
        %v8558 = vunpack.c.l.bf16 %v8521
        %v8559 = vunpack.c.l.bf16 %v8522
        %v8560 = vunpack.c.l.bf16 %v8523
        %v8561 = vunpack.c.l.bf16 %v8524
        %v8562 = vunpack.c.l.bf16 %v8525
        %v8563 = vunpack.c.l.bf16 %v8526
        %v8564 = vunpack.c.l.bf16 %v8527
        %v8565 = vunpack.c.l.bf16 %v8528
        %v8566 = vunpack.c.l.bf16 %v8529
        %v8567 = vunpack.c.l.bf16 %v8530
        %v8568 = vld [vmem:[%s4] sm:$0x1]
        %v8570 = vlaneseq
        %v8571 = vshrl.u32 %v8570, 7
        %v8572 = vsub.s32 0, %v8571
        %v8573 = vrot.slane %v8568, %v8572
        %v8575 = vadd.f32 %v8458, %v8573
        %v8576 = vadd.f32 %v8459, %v8573
        %v8577 = vadd.f32 %v8460, %v8573
        %v8578 = vadd.f32 %v8461, %v8573
        %v8579 = vadd.f32 %v8462, %v8573
        %v8580 = vadd.f32 %v8463, %v8573
        %v8581 = vadd.f32 %v8464, %v8573
        %v8582 = vadd.f32 %v8465, %v8573
        %v8583 = vadd.f32 %v8466, %v8573
        %v8584 = vadd.f32 %v8467, %v8573
        %v8585 = vadd.f32 %v8468, %v8573
        %v8586 = vadd.f32 %v8469, %v8573
        %v8587 = vadd.f32 %v8470, %v8573
        %v8588 = vadd.f32 %v8471, %v8573
        %v8589 = vadd.f32 %v8472, %v8573
        %v8590 = vadd.f32 %v8473, %v8573
        %v8591 = vadd.f32 %v8474, %v8573
        %v8592 = vadd.f32 %v8475, %v8573
        %v8593 = vadd.f32 %v8476, %v8573
        %v8594 = vadd.f32 %v8477, %v8573
        %v8595 = vadd.f32 %v8478, %v8573
        %v8596 = vadd.f32 %v8479, %v8573
        %v8597 = vadd.f32 %v8480, %v8573
        %v8598 = vadd.f32 %v8481, %v8573
        %v8599 = vadd.f32 %v8482, %v8573
        %v8600 = vadd.f32 %v8483, %v8573
        %v8601 = vadd.f32 %v8484, %v8573
        %v8602 = vadd.f32 %v8485, %v8573
        %v8603 = vadd.f32 %v8486, %v8573
        %v8604 = vadd.f32 %v8487, %v8573
        %v8605 = vadd.f32 %v8488, %v8573
        %v8606 = vadd.f32 %v8489, %v8573
        %v8607 = vadd.f32 %v8490, %v8573
        %v8608 = vadd.f32 %v8491, %v8573
        %v8609 = vadd.f32 %v8492, %v8573
        %v8610 = vadd.f32 %v8493, %v8573
        %vm8648 = vcmask 1044480
        %v8649 = vrot.slane %v8531, 3
        %v8650 = vrot.slane %v8532, 3
        %v8651 = vsel %vm8648, %v8649, %v8650
        %v8652 = vrot.slane %v8533, 3
        %v8653 = vsel %vm8648, %v8650, %v8652
        %v8654 = vrot.slane %v8534, 3
        %v8655 = vsel %vm8648, %v8652, %v8654
        %v8656 = vrot.slane %v8535, 3
        %v8657 = vsel %vm8648, %v8654, %v8656
        %v8658 = vrot.slane %v8536, 3
        %v8659 = vsel %vm8648, %v8656, %v8658
        %v8660 = vrot.slane %v8537, 3
        %v8661 = vsel %vm8648, %v8658, %v8660
        %v8662 = vrot.slane %v8538, 3
        %v8663 = vsel %vm8648, %v8660, %v8662
        %v8664 = vrot.slane %v8539, 3
        %v8665 = vsel %vm8648, %v8662, %v8664
        %v8666 = vrot.slane %v8540, 3
        %v8667 = vsel %vm8648, %v8664, %v8666
        %v8668 = vrot.slane %v8541, 3
        %v8669 = vsel %vm8648, %v8666, %v8668
        %v8670 = vrot.slane %v8542, 3
        %v8671 = vsel %vm8648, %v8668, %v8670
        %v8672 = vrot.slane %v8543, 3
        %v8673 = vsel %vm8648, %v8670, %v8672
        %v8674 = vrot.slane %v8544, 3
        %v8675 = vsel %vm8648, %v8672, %v8674
        %v8676 = vrot.slane %v8545, 3
        %v8677 = vsel %vm8648, %v8674, %v8676
        %v8678 = vrot.slane %v8546, 3
        %v8679 = vsel %vm8648, %v8676, %v8678
        %v8680 = vrot.slane %v8547, 3
        %v8681 = vsel %vm8648, %v8678, %v8680
        %v8682 = vrot.slane %v8548, 3
        %v8683 = vsel %vm8648, %v8680, %v8682
        %v8684 = vrot.slane %v8549, 3
        %v8685 = vsel %vm8648, %v8682, %v8684
        %v8686 = vrot.slane %v8550, 3
        %v8687 = vsel %vm8648, %v8684, %v8686
        %v8688 = vrot.slane %v8551, 3
        %v8689 = vsel %vm8648, %v8686, %v8688
        %v8690 = vrot.slane %v8552, 3
        %v8691 = vsel %vm8648, %v8688, %v8690
        %v8692 = vrot.slane %v8553, 3
        %v8693 = vsel %vm8648, %v8690, %v8692
        %v8694 = vrot.slane %v8554, 3
        %v8695 = vsel %vm8648, %v8692, %v8694
        %v8696 = vrot.slane %v8555, 3
        %v8697 = vsel %vm8648, %v8694, %v8696
        %v8698 = vrot.slane %v8556, 3
        %v8699 = vsel %vm8648, %v8696, %v8698
        %v8700 = vrot.slane %v8557, 3
        %v8701 = vsel %vm8648, %v8698, %v8700
        %v8702 = vrot.slane %v8558, 3
        %v8703 = vsel %vm8648, %v8700, %v8702
        %v8704 = vrot.slane %v8559, 3
        %v8705 = vsel %vm8648, %v8702, %v8704
        %v8706 = vrot.slane %v8560, 3
        %v8707 = vsel %vm8648, %v8704, %v8706
        %v8708 = vrot.slane %v8561, 3
        %v8709 = vsel %vm8648, %v8706, %v8708
        %v8710 = vrot.slane %v8562, 3
        %v8711 = vsel %vm8648, %v8708, %v8710
        %v8712 = vrot.slane %v8563, 3
        %v8713 = vsel %vm8648, %v8710, %v8712
        %v8714 = vrot.slane %v8564, 3
        %v8715 = vsel %vm8648, %v8712, %v8714
        %v8716 = vrot.slane %v8565, 3
        %v8717 = vsel %vm8648, %v8714, %v8716
        %v8718 = vrot.slane %v8566, 3
        %v8719 = vsel %vm8648, %v8716, %v8718
        %v8720 = vrot.slane %v8567, 3
        %v8721 = vsel %vm8648, %v8718, %v8720
        %v8758 = vadd.f32 %v8575, %v8651
        %v8759 = vadd.f32 %v8576, %v8653
        %v8760 = vadd.f32 %v8577, %v8655
        %v8761 = vadd.f32 %v8578, %v8657
        %v8762 = vadd.f32 %v8579, %v8659
        %v8763 = vadd.f32 %v8580, %v8661
        %v8764 = vadd.f32 %v8581, %v8663
        %v8765 = vadd.f32 %v8582, %v8665
        %v8766 = vadd.f32 %v8583, %v8667
        %v8767 = vadd.f32 %v8584, %v8669
        %v8768 = vadd.f32 %v8585, %v8671
        %v8769 = vadd.f32 %v8586, %v8673
        %v8770 = vadd.f32 %v8587, %v8675
        %v8771 = vadd.f32 %v8588, %v8677
        %v8772 = vadd.f32 %v8589, %v8679
        %v8773 = vadd.f32 %v8590, %v8681
        %v8774 = vadd.f32 %v8591, %v8683
        %v8775 = vadd.f32 %v8592, %v8685
        %v8776 = vadd.f32 %v8593, %v8687
        %v8777 = vadd.f32 %v8594, %v8689
        %v8778 = vadd.f32 %v8595, %v8691
        %v8779 = vadd.f32 %v8596, %v8693
        %v8780 = vadd.f32 %v8597, %v8695
        %v8781 = vadd.f32 %v8598, %v8697
        %v8782 = vadd.f32 %v8599, %v8699
        %v8783 = vadd.f32 %v8600, %v8701
        %v8784 = vadd.f32 %v8601, %v8703
        %v8785 = vadd.f32 %v8602, %v8705
        %v8786 = vadd.f32 %v8603, %v8707
        %v8787 = vadd.f32 %v8604, %v8709
        %v8788 = vadd.f32 %v8605, %v8711
        %v8789 = vadd.f32 %v8606, %v8713
        %v8790 = vadd.f32 %v8607, %v8715
        %v8791 = vadd.f32 %v8608, %v8717
        %v8792 = vadd.f32 %v8609, %v8719
        %v8793 = vadd.f32 %v8610, %v8721
        %v8794 = vmax.f32 %v8758, 0.0
        %v8795 = vmax.f32 %v8759, 0.0
        %v8796 = vmax.f32 %v8760, 0.0
        %v8797 = vmax.f32 %v8761, 0.0
        %v8798 = vmax.f32 %v8762, 0.0
        %v8799 = vmax.f32 %v8763, 0.0
        %v8800 = vmax.f32 %v8764, 0.0
        %v8801 = vmax.f32 %v8765, 0.0
        %v8802 = vmax.f32 %v8766, 0.0
        %v8803 = vmax.f32 %v8767, 0.0
        %v8804 = vmax.f32 %v8768, 0.0
        %v8805 = vmax.f32 %v8769, 0.0
        %v8806 = vmax.f32 %v8770, 0.0
        %v8807 = vmax.f32 %v8771, 0.0
        %v8808 = vmax.f32 %v8772, 0.0
        %v8809 = vmax.f32 %v8773, 0.0
        %v8810 = vmax.f32 %v8774, 0.0
        %v8811 = vmax.f32 %v8775, 0.0
        %v8812 = vmax.f32 %v8776, 0.0
        %v8813 = vmax.f32 %v8777, 0.0
        %v8814 = vmax.f32 %v8778, 0.0
        %v8815 = vmax.f32 %v8779, 0.0
        %v8816 = vmax.f32 %v8780, 0.0
        %v8817 = vmax.f32 %v8781, 0.0
        %v8818 = vmax.f32 %v8782, 0.0
        %v8819 = vmax.f32 %v8783, 0.0
        %v8820 = vmax.f32 %v8784, 0.0
        %v8821 = vmax.f32 %v8785, 0.0
        %v8822 = vmax.f32 %v8786, 0.0
        %v8823 = vmax.f32 %v8787, 0.0
        %v8824 = vmax.f32 %v8788, 0.0
        %v8825 = vmax.f32 %v8789, 0.0
        %v8826 = vmax.f32 %v8790, 0.0
        %v8827 = vmax.f32 %v8791, 0.0
        %v8828 = vmax.f32 %v8792, 0.0
        %v8829 = vmax.f32 %v8793, 0.0
        %8830 = vst [vmem:[%s271] sm:$0xff] %v8794
        %8831 = vst [vmem:[%s271 + $0x8] sm:$0xff] %v8795
        %8832 = vst [vmem:[%s271 + $0x10] sm:$0xff] %v8796
        %8833 = vst [vmem:[%s271 + $0x18] sm:$0xff] %v8797
        %8834 = vst [vmem:[%s271 + $0x20] sm:$0xff] %v8798
        %8835 = vst [vmem:[%s271 + $0x28] sm:$0xff] %v8799
        %8836 = vst [vmem:[%s271 + $0x30] sm:$0xff] %v8800
        %8837 = vst [vmem:[%s271 + $0x38] sm:$0xff] %v8801
        %8838 = vst [vmem:[%s271 + $0x40] sm:$0xff] %v8802
        %8839 = vst [vmem:[%s271 + $0x48] sm:$0xff] %v8803
        %8840 = vst [vmem:[%s271 + $0x50] sm:$0xff] %v8804
        %8841 = vst [vmem:[%s271 + $0x58] sm:$0xff] %v8805
        %8842 = vst [vmem:[%s271 + $0x60] sm:$0xff] %v8806
        %8843 = vst [vmem:[%s271 + $0x68] sm:$0xff] %v8807
        %8844 = vst [vmem:[%s271 + $0x70] sm:$0xff] %v8808
        %8845 = vst [vmem:[%s271 + $0x78] sm:$0xff] %v8809
        %8846 = vst [vmem:[%s271 + $0x80] sm:$0xff] %v8810
        %8847 = vst [vmem:[%s271 + $0x88] sm:$0xff] %v8811
        %8848 = vst [vmem:[%s271 + $0x90] sm:$0xff] %v8812
        %8849 = vst [vmem:[%s271 + $0x98] sm:$0xff] %v8813
        %8850 = vst [vmem:[%s271 + $0xa0] sm:$0xff] %v8814
        %8851 = vst [vmem:[%s271 + $0xa8] sm:$0xff] %v8815
        %8852 = vst [vmem:[%s271 + $0xb0] sm:$0xff] %v8816
        %8853 = vst [vmem:[%s271 + $0xb8] sm:$0xff] %v8817
        %8854 = vst [vmem:[%s271 + $0xc0] sm:$0xff] %v8818
        %8855 = vst [vmem:[%s271 + $0xc8] sm:$0xff] %v8819
        %8856 = vst [vmem:[%s271 + $0xd0] sm:$0xff] %v8820
        %8857 = vst [vmem:[%s271 + $0xd8] sm:$0xff] %v8821
        %8858 = vst [vmem:[%s271 + $0xe0] sm:$0xff] %v8822
        %8859 = vst [vmem:[%s271 + $0xe8] sm:$0xff] %v8823
        %8860 = vst [vmem:[%s271 + $0xf0] sm:$0xff] %v8824
        %8861 = vst [vmem:[%s271 + $0xf8] sm:$0xff] %v8825
        %8862 = vst [vmem:[%s271 + $0x100] sm:$0xff] %v8826
        %8863 = vst [vmem:[%s271 + $0x108] sm:$0xff] %v8827
        %8864 = vst [vmem:[%s271 + $0x110] sm:$0xff] %v8828
        %8865 = vst [vmem:[%s271 + $0x118] sm:$0xff] %v8829
        %s8866 = sand.u32 %s141, 1
        %s8867 = scalar_lea.sflag [#allocation5], %s8866
        %s8868 = sand.u32 %s141, 1
        %s8869 = smul.addr %s8868, 288
        %s8870 = scalar_lea.vmem [#allocation9], %s8869
        // Predicated region
        $region53: #{tpu_custom_call.1} parent=39 // pred_check
          %p8871 = pneg %p151
        $region54: #{tpu_custom_call.1} parent=39 // pred_check_branch
          %8873 = sbr.rel (%p8871) target = $region56
        $region55: #{tpu_custom_call.1} parent=39 // pred_region
          %s8875 = ssub.s32 4608, 4608
          %8876 = vsyncadd %s8867, %s8875
          %s8877 = smul.addr %s23, 36
          %s8878 = smul.addr %s8877, 128
          %s8879 = scalar_lea.hbm %s5, %s8878
          %s8880 = sshll.u32 %s8870, 4
          %s8881 = int_to_ptr.vmem [resolvable:$true] %s8880
          %8886 = dma.vmem_to_hbm [thread:$0]  %s8881, 4608, %s8879, %s8867, 128, 128, 8
        $region56: #{tpu_custom_call.1} parent=39 // pred_fallthru
          _
      $region40: #{tpu_custom_call.1} parent=5 // pred_fallthru
        _
      %p8887 = scmp.le.s32.totalorder 2, %s18
      // Predicated region
      $region57: #{tpu_custom_call.1} parent=5 // pred_check
        %p8888 = pneg %p8887
      $region58: #{tpu_custom_call.1} parent=5 // pred_check_branch
        %8890 = sbr.rel (%p8888) target = $region60
      $region59: #{tpu_custom_call.1} parent=5 // pred_region
        %s8891 = ssub.s32 %s18, 2
        // Predicated region
        $region61: #{tpu_custom_call.1} parent=59 // pred_check
          %p8892 = pneg %p157
        $region62: #{tpu_custom_call.1} parent=59 // pred_check_branch
          %8894 = sbr.rel (%p8892) target = $region64
        $region63: #{tpu_custom_call.1} parent=59 // pred_region
          %s8895 = sand.u32 %s142, 1
          %s8896 = scalar_lea.sflag [#allocation5], %s8895
          %s8897 = sand.u32 %s142, 1
          %s8898 = smul.addr %s8897, 288
          %s8899 = scalar_lea.vmem [#allocation9], %s8898
          %8900 = dma.done %s8896, 4608
        $region64: #{tpu_custom_call.1} parent=59 // pred_fallthru
          _
      $region60: #{tpu_custom_call.1} parent=5 // pred_fallthru
        _
    $region6: #{tpu_custom_call.1} parent=1 // loop_footer
      %s22 = sadd.s32 1, %s18
    $region7: #{tpu_custom_call.1} parent=1 // loop_footer_branch
      %17 = sbr.rel target = $region3
    $region8: #{tpu_custom_call.1} parent=1 // loop_exit
      _
    %8901 = vsyncpa [#allocation4], 1
    %s8902 = scalar_lea.sflag [#allocation4], 1
    %8903 = vsyncpa %s8902, 1
    %8904 = vsyncpa [#allocation7], 1
    %8905 = vsyncpa [#allocation5], 1
    %s8906 = scalar_lea.sflag [#allocation5], 1
    %8907 = vsyncpa %s8906, 1

</llo_original>
